<compile_context>
chip_gen: v7x
topology: tpu7x:2x2x1
jax: 0.10.0
libtpu: 0.0.40
codegen_flags: <defaults>
</compile_context>

<pallas_src>
import functools

import jax
import jax.numpy as jnp
from jax import lax
from jax.experimental import pallas as pl
from jax.experimental.pallas import tpu as pltpu

JOINER_DIM = 1024


def _round_up(x, m):
    return ((x + m - 1) // m) * m


def _joiner_kernel(enc_ref, pred_ref, w_ref, b_ref, out_ref, act_ref, *, f32_act):
    # enc_ref : (1, tT, D)       bf16
    # pred_ref: (1, U_pad, D)    bf16
    # w_ref   : (tV, D)          bf16  (native PyTorch Linear layout)
    # b_ref   : (1, tV)          f32
    # out_ref : (1, tT*U_pad, tV)
    # act_ref : (tT*U_pad, D)    bf16  VMEM scratch, cached across V-tiles
    iv = pl.program_id(2)

    @pl.when(iv == 0)
    def _():
        enc = enc_ref[0]                       # (tT, D)
        pred = pred_ref[0]                     # (U_pad, D)
        tT, D = enc.shape
        U = pred.shape[0]
        if f32_act:
            # v5e path: f32 VALU add/relu, single cast for the MXU operand.
            act = jnp.maximum(enc.astype(jnp.float32)[:, None, :]
                              + pred.astype(jnp.float32)[None, :, :], 0.0)
            act = act.astype(jnp.bfloat16)
        else:
            # v6e/v7x path: native bf16 VALU, half the vregs.
            act = jnp.maximum(enc[:, None, :] + pred[None, :, :], 0)
        # U_pad % 8 == 0 -> this merge is a layout no-op.
        act_ref[...] = act.reshape(tT * U, D)

    # "NT" matmul on the MXU: contract D of act against D of the (tV, D) weight,
    # accumulating in f32.
    out = lax.dot_general(
        act_ref[...], w_ref[...],
        dimension_numbers=(((1,), (1,)), ((), ())),
        preferred_element_type=jnp.float32,
    )                                          # (tT*U_pad, tV) f32
    out_ref[0] = (out + b_ref[...]).astype(out_ref.dtype)


@functools.partial(jax.jit,
                   static_argnames=("tile_t", "tile_v", "out_dtype", "f32_act"))
def joiner_forward(encoder_out, predictor_out, weight, bias, *,
                   tile_t=None, tile_v=None, out_dtype=jnp.float32, f32_act=None):
    """encoder_out: (B, T, D), predictor_out: (B, U, D),
       weight: (V, D) (PyTorch Linear layout), bias: (V,) -> out (B, T, U, V)."""
    B, T, D = encoder_out.shape
    Bp, U, Dp = predictor_out.shape
    V, Dw = weight.shape
    assert B == Bp and D == Dp == Dw and D % 128 == 0

    # --- chip-generation knobs (resolved at trace time) ---------------------
    kind = jax.devices()[0].device_kind.lower()
    old_gen = any(s in kind for s in ("v2", "v3", "v4", "v5"))
    if f32_act is None:
        f32_act = old_gen                 # v5e: f32 add/relu, cast once for MXU
    lane_q = 128 if old_gen else 256      # MXU column quantum: 4x128^2 vs 2x256^2

    # --- tile selection + padding (no full-dim fallback) --------------------
    U_pad = _round_up(max(U, 1), 8)
    if tile_t is None:
        # target M = tile_t*U_pad ~ 512 MXU rows, at least 8, capped by (padded) T.
        tile_t = max(8, _round_up(max(512 // U_pad, 1), 8))
        tile_t = min(tile_t, _round_up(T, 8))
    tile_t = _round_up(tile_t, 8)
    T_pad = _round_up(T, tile_t)

    if tile_v is None:
        tile_v = 512 if V >= 512 else _round_up(V, lane_q)
    tile_v = _round_up(tile_v, 128)
    V_pad = _round_up(V, tile_v)

    n_t = T_pad // tile_t
    n_v = V_pad // tile_v
    m_rows = tile_t * U_pad

    # --- wrapper-side padding + dtype prep -----------------------------------
    enc = encoder_out.astype(jnp.bfloat16)
    pred = predictor_out.astype(jnp.bfloat16)
    w = weight.astype(jnp.bfloat16)
    b = bias.astype(jnp.float32)
    if T_pad != T:
        enc = jnp.pad(enc, ((0, 0), (0, T_pad - T), (0, 0)))
    if U_pad != U:
        pred = jnp.pad(pred, ((0, 0), (0, U_pad - U), (0, 0)))
    if V_pad != V:
        w = jnp.pad(w, ((0, V_pad - V), (0, 0)))
        b = jnp.pad(b, ((0, V_pad - V),))
    b2d = b.reshape(1, V_pad)

    # --- VMEM budget: pipeline buffers + act scratch + in-kernel temporaries --
    bf16 = 2
    out_bytes = jnp.dtype(out_dtype).itemsize
    vmem_est = (2 * bf16 * (tile_t * D)            # enc blocks (double-buffered)
                + 2 * bf16 * (U_pad * D)           # pred blocks
                + 2 * bf16 * (tile_v * D)          # weight blocks
                + 2 * 4 * tile_v                   # bias blocks
                + 2 * out_bytes * (m_rows * tile_v)  # output blocks
                + bf16 * (m_rows * D)              # act scratch
                + 4 * (m_rows * D)                 # f32 act temp / headroom
                + 4 * (m_rows * tile_v))           # f32 matmul result temp
    vmem_limit = int(min(max(2 * vmem_est, 32 << 20), 48 << 20))  # <= 48 MiB (v7x)

    cost = pl.CostEstimate(
        flops=2 * B * T_pad * U_pad * D * V_pad,
        transcendentals=0,
        bytes_accessed=(B * T_pad * D + B * U_pad * D + V_pad * D) * bf16
                       + B * T_pad * U_pad * V_pad * out_bytes,
    )

    kernel = functools.partial(_joiner_kernel, f32_act=bool(f32_act))

    out_flat = pl.pallas_call(
        kernel,
        out_shape=jax.ShapeDtypeStruct((B, T_pad * U_pad, V_pad), out_dtype),
        grid_spec=pltpu.PrefetchScalarGridSpec(
            num_scalar_prefetch=0,
            # V-tile axis innermost & "arbitrary": act scratch is computed at iv==0
            # and reused for all V-tiles of that (b, it); enc/pred block indices are
            # constant across it so their DMAs are skipped.  b/it are "parallel"
            # so one of them shards across TensorCores even when B == 1.
            grid=(B, n_t, n_v),
            in_specs=[
                pl.BlockSpec((1, tile_t, D), lambda b, it, iv: (b, it, 0)),
                pl.BlockSpec((1, U_pad, D), lambda b, it, iv: (b, 0, 0)),
                pl.BlockSpec((tile_v, D), lambda b, it, iv: (iv, 0)),
                pl.BlockSpec((1, tile_v), lambda b, it, iv: (0, iv)),
            ],
            out_specs=pl.BlockSpec((1, m_rows, tile_v),
                                   lambda b, it, iv: (b, it, iv)),
            scratch_shapes=[pltpu.VMEM((m_rows, D), jnp.bfloat16)],
        ),
        compiler_params=pltpu.CompilerParams(
            dimension_semantics=("parallel", "parallel", "arbitrary"),
            vmem_limit_bytes=vmem_limit,
        ),
        cost_estimate=cost,
    )(enc, pred, w, b2d)

    # Free reshape back to (B, T_pad, U_pad, V_pad), then slice off the padding.
    out = out_flat.reshape(B, T_pad, U_pad, V_pad)
    return out[:, :T, :U, :V]


if __name__ == "__main__":
    key = jax.random.PRNGKey(0)
    k_enc, k_pred, k_w, k_b = jax.random.split(key, 4)

    # Small shapes chosen to exercise T padding (80 -> 128), U padding (6 -> 8),
    # and a multi-tile (B, T, V) grid with the act-scratch reuse path (n_v = 2).
    B, T, U, D = 2, 80, 6, JOINER_DIM
    num_outputs = 512

    encoder_out = jax.random.normal(k_enc, (B, T, D), dtype=jnp.float32)
    predictor_out = jax.random.normal(k_pred, (B, U, D), dtype=jnp.float32)

    # Linear(joiner_dim, num_outputs) parameters in PyTorch layout (out, in).
    bound = 1.0 / (D ** 0.5)
    weight = jax.random.uniform(k_w, (num_outputs, D), minval=-bound, maxval=bound,
                                dtype=jnp.float32)
    bias = jax.random.uniform(k_b, (num_outputs,), minval=-bound, maxval=bound,
                              dtype=jnp.float32)

    # Pure-JAX f32 reference; bf16 MXU inputs => loosened tolerance.
    ref = jnp.maximum(encoder_out[:, :, None, :] + predictor_out[:, None, :, :], 0.0)
    ref = jnp.einsum("btud,vd->btuv", ref, weight) + bias

    # f32-output path (matches PyTorch dtype), MXU-friendly tile_v=256.
    out = joiner_forward(encoder_out, predictor_out, weight, bias,
                         tile_v=256, out_dtype=jnp.float32)
    out = jax.block_until_ready(out)
    assert out.shape == (B, T, U, num_outputs)
    assert jnp.allclose(out, ref, atol=1e-1, rtol=5e-2), \
        float(jnp.max(jnp.abs(out - ref)))

    # bf16-output path (relieves the HBM-writeback bound on v6e).
    out_bf16 = joiner_forward(encoder_out, predictor_out, weight, bias,
                              tile_v=256, out_dtype=jnp.bfloat16)
    out_bf16 = jax.block_until_ready(out_bf16)
    assert out_bf16.shape == (B, T, U, num_outputs)
    assert jnp.allclose(out_bf16.astype(jnp.float32), ref, atol=1.5e-1, rtol=5e-2), \
        float(jnp.max(jnp.abs(out_bf16.astype(jnp.float32) - ref)))

    print("KERNEL_OK")
</pallas_src>

<mosaic_0001>
module attributes {stable_mosaic.version = 11 : i64} {
  func.func @_joiner_kernel(%arg0: i32, %arg1: i32, %arg2: i32, %arg3: memref<1x64x1024xbf16, #tpu.memory_space<vmem>>, %arg4: memref<1x8x1024xbf16, #tpu.memory_space<vmem>>, %arg5: memref<256x1024xbf16, #tpu.memory_space<vmem>>, %arg6: memref<1x256xf32, #tpu.memory_space<vmem>>, %arg7: memref<1x512x256xf32, #tpu.memory_space<vmem>>, %arg8: memref<512x1024xbf16, #tpu.memory_space<vmem>>) attributes {dimension_semantics = [#tpu.dimension_semantics<parallel>, #tpu.dimension_semantics<parallel>, #tpu.dimension_semantics<arbitrary>], iteration_bounds = array<i64: 2, 2, 2>, scalar_prefetch = 0 : i64, scratch_operands = 1 : i64, tpu.core_type = #tpu.core_type<tc>, window_params = [{transform_indices = @transform_0, window_bounds = array<i64: 1, 64, 1024>}, {transform_indices = @transform_1, window_bounds = array<i64: 1, 8, 1024>}, {transform_indices = @transform_2, window_bounds = array<i64: 256, 1024>}, {transform_indices = @transform_3, window_bounds = array<i64: 1, 256>}, {transform_indices = @transform_4, window_bounds = array<i64: 1, 512, 256>}]} {
    %c0_i32 = arith.constant 0 : i32
    %0 = arith.cmpi eq, %arg2, %c0_i32 : i32
    %1 = arith.extui %0 : i1 to i32
    %c0_i32_0 = arith.constant 0 : i32
    %2 = arith.cmpi ne, %1, %c0_i32_0 : i32
    scf.if %2 {
      %c0_9 = arith.constant 0 : index
      %c0_10 = arith.constant 0 : index
      %c0_11 = arith.constant 0 : index
      %12 = vector.load %arg3[%c0_9, %c0_10, %c0_11] : memref<1x64x1024xbf16, #tpu.memory_space<vmem>>, vector<1x64x1024xbf16>
      %13 = vector.shape_cast %12 : vector<1x64x1024xbf16> to vector<64x1024xbf16>
      %c0_12 = arith.constant 0 : index
      %c0_13 = arith.constant 0 : index
      %c0_14 = arith.constant 0 : index
      %14 = vector.load %arg4[%c0_12, %c0_13, %c0_14] : memref<1x8x1024xbf16, #tpu.memory_space<vmem>>, vector<1x8x1024xbf16>
      %15 = vector.shape_cast %14 : vector<1x8x1024xbf16> to vector<8x1024xbf16>
      %16 = vector.shape_cast %13 : vector<64x1024xbf16> to vector<64x1x1024xbf16>
      %17 = vector.shape_cast %15 : vector<8x1024xbf16> to vector<1x8x1024xbf16>
      %18 = vector.broadcast %16 : vector<64x1x1024xbf16> to vector<64x8x1024xbf16>
      %19 = vector.broadcast %17 : vector<1x8x1024xbf16> to vector<64x8x1024xbf16>
      %20 = arith.addf %18, %19 : vector<64x8x1024xbf16>
      %cst_15 = arith.constant 0.000000e+00 : bf16
      %21 = vector.broadcast %cst_15 : bf16 to vector<64x8x1024xbf16>
      %22 = arith.maximumf %20, %21 : vector<64x8x1024xbf16>
      %23 = vector.shape_cast %22 : vector<64x8x1024xbf16> to vector<512x1024xbf16>
      %c0_16 = arith.constant 0 : index
      %c0_17 = arith.constant 0 : index
      %24 = vector.load %arg8[%c0_16, %c0_17] : memref<512x1024xbf16, #tpu.memory_space<vmem>>, vector<512x1024xbf16>
      tpu.vector_store %arg8[%c0_16, %c0_17], %23 {strides = array<i32>} : memref<512x1024xbf16, #tpu.memory_space<vmem>>, vector<512x1024xbf16>,
    } else {
    }
    %c0 = arith.constant 0 : index
    %c0_1 = arith.constant 0 : index
    %3 = vector.load %arg8[%c0, %c0_1] : memref<512x1024xbf16, #tpu.memory_space<vmem>>, vector<512x1024xbf16>
    %c0_2 = arith.constant 0 : index
    %c0_3 = arith.constant 0 : index
    %4 = vector.load %arg5[%c0_2, %c0_3] : memref<256x1024xbf16, #tpu.memory_space<vmem>>, vector<256x1024xbf16>
    %cst = arith.constant dense<0.000000e+00> : vector<512x256xf32>
    %5 = tpu.matmul %3, %4, %cst {dimension_numbers = #tpu.dot_dimension_numbers<[1], [1], [0], [0], [0, 0, 1, 0], [], []>} : vector<512x1024xbf16>, vector<256x1024xbf16>, vector<512x256xf32> -> vector<512x256xf32>
    %c0_4 = arith.constant 0 : index
    %c0_5 = arith.constant 0 : index
    %6 = vector.load %arg6[%c0_4, %c0_5] : memref<1x256xf32, #tpu.memory_space<vmem>>, vector<1x256xf32>
    %7 = vector.broadcast %6 : vector<1x256xf32> to vector<512x256xf32>
    %8 = arith.addf %5, %7 : vector<512x256xf32>
    %c0_6 = arith.constant 0 : index
    %c0_7 = arith.constant 0 : index
    %c0_8 = arith.constant 0 : index
    %9 = vector.load %arg7[%c0_6, %c0_7, %c0_8] : memref<1x512x256xf32, #tpu.memory_space<vmem>>, vector<1x512x256xf32>
    %10 = vector.shape_cast %9 : vector<1x512x256xf32> to vector<512x256xf32>
    %11 = vector.shape_cast %8 : vector<512x256xf32> to vector<1x512x256xf32>
    tpu.vector_store %arg7[%c0_6, %c0_7, %c0_8], %11 {strides = array<i32>} : memref<1x512x256xf32, #tpu.memory_space<vmem>>, vector<1x512x256xf32>,
    return
  }
  func.func @transform_0(%arg0: i32, %arg1: i32, %arg2: i32) -> (i32, i32, i32) {
    %c0_i32 = arith.constant 0 : i32
    %c0_i32_0 = arith.constant 0 : i32
    return %arg0, %arg1, %c0_i32 : i32, i32, i32
  }
  func.func @transform_1(%arg0: i32, %arg1: i32, %arg2: i32) -> (i32, i32, i32) {
    %c0_i32 = arith.constant 0 : i32
    %c0_i32_0 = arith.constant 0 : i32
    %c0_i32_1 = arith.constant 0 : i32
    return %arg0, %c0_i32, %c0_i32_0 : i32, i32, i32
  }
  func.func @transform_2(%arg0: i32, %arg1: i32, %arg2: i32) -> (i32, i32) {
    %c0_i32 = arith.constant 0 : i32
    %c0_i32_0 = arith.constant 0 : i32
    return %arg2, %c0_i32 : i32, i32
  }
  func.func @transform_3(%arg0: i32, %arg1: i32, %arg2: i32) -> (i32, i32) {
    %c0_i32 = arith.constant 0 : i32
    %c0_i32_0 = arith.constant 0 : i32
    return %c0_i32, %arg2 : i32, i32
  }
  func.func @transform_4(%arg0: i32, %arg1: i32, %arg2: i32) -> (i32, i32, i32) {
    %c0_i32 = arith.constant 0 : i32
    return %arg0, %arg1, %arg2 : i32, i32, i32
  }
}

</mosaic_0001>

<llo_original>
// kernel: joiner_forward.1
$region0: #{joiner_forward.1}
  #allocation0 [shape = 'u32[]', space=smem, size = 0x4, offset = 0x4, fixed_abs, tag = 'smem constant byte address 0x4 - core index']
  #allocation1 [shape = 'u32[144,128]{1,0:T(1,128)}', space=vmem, size = 0x12000, scoped, tag = 'internal scratch']
  #allocation2 [shape = 'bf16[512,1024]{1,0:T(16,128)(2,1)}', space=vmem, size = 0x100000, scoped, tag = 'scratch operand']
  %s0 = inlined_call_operand.vmem [shape: bf16[2,128,1024], index: 0, kind: input, shape index: {}]
  %s1 = inlined_call_operand.vmem [shape: bf16[2,8,1024], index: 1, kind: input, shape index: {}]
  %s2 = inlined_call_operand.vmem [shape: bf16[512,1024], index: 2, kind: input, shape index: {}]
  %s3 = inlined_call_operand.vmem [shape: f32[1,512], index: 3, kind: input, shape index: {}]
  %s4 = inlined_call_operand.vmem [shape: f32[2,1024,512], index: 4, kind: output, shape index: {}]
  %s5 = sld [smem:[#allocation0]]
  $region72: #{joiner_forward.1} parent=0
    _
  %s7 = ssub.s32 1, %s5
  %s8 = scalar_select 0, %s7, %s5
  $region1: #{joiner_forward.1} parent=0
    #allocation3 [shape = 'u8[1048576]{0}', space=vmem, size = 0x100000, scoped, tag = 'output window, operand 0']
    loop: start=0, step=1, limit=10
    $region2: #{joiner_forward.1} parent=1 // loop_pre_header
      _
    $region3: #{joiner_forward.1} parent=1 // loop_header
      %s10 = sphi 0, %s14
      %p11 = scmp.ge.s32.totalorder %s10, 10
      %s17 = sphi 0, %s36
      %s18 = sphi 0, %s32
      %s19 = sphi 0, %s28
      %s20 = sphi 0, %s17
      %s21 = sphi 0, %s18
      %s22 = sphi 0, %s19
      %s23 = sphi 0, %s20
      %s24 = sphi 0, %s21
      %s25 = sphi 0, %s22
      %s41 = sphi 0, %s43
      %s44 = sphi 0, %s41
      %s45 = sphi 0, %s44
      %s61 = sphi 0, %s45
      %s67 = sphi 0, %s69
      %s70 = sphi 0, %s67
      %s71 = sphi 0, %s70
      %s87 = sphi 0, %s71
      %s93 = sphi 0, %s95
      %s96 = sphi 0, %s93
      %s97 = sphi 0, %s96
      %s113 = sphi 0, %s97
      %s119 = sphi 0, %s121
      %s122 = sphi 0, %s119
      %s123 = sphi 0, %s122
      %s139 = sphi 0, %s123
      %s149 = sphi 0, %s151
      %s152 = sphi 0, %s149
      %s153 = sphi 0, %s152
      %s169 = sphi 0, %s153
    $region4: #{joiner_forward.1} parent=1 // loop_header_branch
      %13 = sbr.rel (%p11) target = $region8
    $region5: #{joiner_forward.1} parent=1 // loop_body
      %s15 = ssub.s32 %s10, 1
      %s16 = ssub.s32 %s10, 2
      %s26 = sadd.s32 1, %s19
      %p27 = scmp.ge.s32.totalorder %s26, 2
      %s28 = scalar_select %p27, 0, %s26
      %s29 = sadd.s32 1, %s18
      %s30 = scalar_select %p27, %s29, %s18
      %p31 = scmp.ge.s32.totalorder %s30, 2
      %s32 = scalar_select %p31, 0, %s30
      %s33 = sadd.s32 1, %s17
      %s34 = scalar_select %p31, %s33, %s17
      %p35 = scmp.ge.s32.totalorder %s34, 2
      %s36 = scalar_select %p35, 0, %s34
      %s37 = ssub.s32 %s17, %s36
      %s38 = ssub.s32 %s18, %s32
      %s39 = sor.u32 %s37, %s38
      %p40 = scmp.eq.s32.totalorder %s39, 0
      %s42 = sadd.s32 %s41, 1
      %s43 = scalar_select %p40, %s41, %s42
      %p46 = pneg %p40
      %p47 = scmp.eq.s32.totalorder %s10, 7
      %p48 = por %p46, %p47
      %p49 = scmp.ne.s32.totalorder %s41, %s44
      %p50 = scmp.eq.s32.totalorder %s10, 0
      %p51 = por %p49, %p50
      %p52 = scmp.ne.s32.totalorder %s41, %s44
      %p53 = scmp.eq.s32.totalorder %s15, 7
      %p54 = por %p52, %p53
      %p55 = scmp.ne.s32.totalorder %s44, %s45
      %p56 = scmp.eq.s32.totalorder %s15, 0
      %p57 = por %p55, %p56
      %p58 = scmp.ne.s32.totalorder %s44, %s45
      %p59 = scmp.eq.s32.totalorder %s16, 7
      %p60 = por %p58, %p59
      %p62 = scmp.ne.s32.totalorder %s45, %s61
      %p63 = scmp.eq.s32.totalorder %s16, 0
      %p64 = por %p62, %p63
      %s65 = ssub.s32 %s17, %s36
      %p66 = scmp.eq.s32.totalorder %s65, 0
      %s68 = sadd.s32 %s67, 1
      %s69 = scalar_select %p66, %s67, %s68
      %p72 = pneg %p66
      %p73 = scmp.eq.s32.totalorder %s10, 7
      %p74 = por %p72, %p73
      %p75 = scmp.ne.s32.totalorder %s67, %s70
      %p76 = scmp.eq.s32.totalorder %s10, 0
      %p77 = por %p75, %p76
      %p78 = scmp.ne.s32.totalorder %s67, %s70
      %p79 = scmp.eq.s32.totalorder %s15, 7
      %p80 = por %p78, %p79
      %p81 = scmp.ne.s32.totalorder %s70, %s71
      %p82 = scmp.eq.s32.totalorder %s15, 0
      %p83 = por %p81, %p82
      %p84 = scmp.ne.s32.totalorder %s70, %s71
      %p85 = scmp.eq.s32.totalorder %s16, 7
      %p86 = por %p84, %p85
      %p88 = scmp.ne.s32.totalorder %s71, %s87
      %p89 = scmp.eq.s32.totalorder %s16, 0
      %p90 = por %p88, %p89
      %s91 = ssub.s32 %s19, %s28
      %p92 = scmp.eq.s32.totalorder %s91, 0
      %s94 = sadd.s32 %s93, 1
      %s95 = scalar_select %p92, %s93, %s94
      %p98 = pneg %p92
      %p99 = scmp.eq.s32.totalorder %s10, 7
      %p100 = por %p98, %p99
      %p101 = scmp.ne.s32.totalorder %s93, %s96
      %p102 = scmp.eq.s32.totalorder %s10, 0
      %p103 = por %p101, %p102
      %p104 = scmp.ne.s32.totalorder %s93, %s96
      %p105 = scmp.eq.s32.totalorder %s15, 7
      %p106 = por %p104, %p105
      %p107 = scmp.ne.s32.totalorder %s96, %s97
      %p108 = scmp.eq.s32.totalorder %s15, 0
      %p109 = por %p107, %p108
      %p110 = scmp.ne.s32.totalorder %s96, %s97
      %p111 = scmp.eq.s32.totalorder %s16, 7
      %p112 = por %p110, %p111
      %p114 = scmp.ne.s32.totalorder %s97, %s113
      %p115 = scmp.eq.s32.totalorder %s16, 0
      %p116 = por %p114, %p115
      %s117 = ssub.s32 %s19, %s28
      %p118 = scmp.eq.s32.totalorder %s117, 0
      %s120 = sadd.s32 %s119, 1
      %s121 = scalar_select %p118, %s119, %s120
      %p124 = pneg %p118
      %p125 = scmp.eq.s32.totalorder %s10, 7
      %p126 = por %p124, %p125
      %p127 = scmp.ne.s32.totalorder %s119, %s122
      %p128 = scmp.eq.s32.totalorder %s10, 0
      %p129 = por %p127, %p128
      %p130 = scmp.ne.s32.totalorder %s119, %s122
      %p131 = scmp.eq.s32.totalorder %s15, 7
      %p132 = por %p130, %p131
      %p133 = scmp.ne.s32.totalorder %s122, %s123
      %p134 = scmp.eq.s32.totalorder %s15, 0
      %p135 = por %p133, %p134
      %p136 = scmp.ne.s32.totalorder %s122, %s123
      %p137 = scmp.eq.s32.totalorder %s16, 7
      %p138 = por %p136, %p137
      %p140 = scmp.ne.s32.totalorder %s123, %s139
      %p141 = scmp.eq.s32.totalorder %s16, 0
      %p142 = por %p140, %p141
      %s143 = ssub.s32 %s17, %s36
      %s144 = ssub.s32 %s18, %s32
      %s145 = sor.u32 %s143, %s144
      %s146 = ssub.s32 %s19, %s28
      %s147 = sor.u32 %s145, %s146
      %p148 = scmp.eq.s32.totalorder %s147, 0
      %s150 = sadd.s32 %s149, 1
      %s151 = scalar_select %p148, %s149, %s150
      %p154 = pneg %p148
      %p155 = scmp.eq.s32.totalorder %s10, 7
      %p156 = por %p154, %p155
      %p157 = scmp.ne.s32.totalorder %s149, %s152
      %p158 = scmp.eq.s32.totalorder %s10, 0
      %p159 = por %p157, %p158
      %p160 = scmp.ne.s32.totalorder %s149, %s152
      %p161 = scmp.eq.s32.totalorder %s15, 7
      %p162 = por %p160, %p161
      %p163 = scmp.ne.s32.totalorder %s152, %s153
      %p164 = scmp.eq.s32.totalorder %s15, 0
      %p165 = por %p163, %p164
      %p166 = scmp.ne.s32.totalorder %s152, %s153
      %p167 = scmp.eq.s32.totalorder %s16, 7
      %p168 = por %p166, %p167
      %p170 = scmp.ne.s32.totalorder %s153, %s169
      %p171 = scmp.eq.s32.totalorder %s16, 0
      %p172 = por %p170, %p171
      %p173 = scmp.le.s32.totalorder 1, %s10
      %p174 = scmp.lt.s32.totalorder %s10, 9
      %p175 = pnand %p173, %p174
      %p176 = pneg %p175
      // Predicated region
      $region9: #{joiner_forward.1} parent=5 // pred_check
        _
      $region10: #{joiner_forward.1} parent=5 // pred_check_branch
        %178 = sbr.rel (%p175) target = $region12
      $region11: #{joiner_forward.1} parent=5 // pred_region
        %s179 = ssub.s32 %s10, 1
      $region12: #{joiner_forward.1} parent=5 // pred_fallthru
        _
      %p180 = scmp.lt.s32.totalorder %s10, 8
      // Predicated region
      $region13: #{joiner_forward.1} parent=5 // pred_check
        %p181 = pneg %p180
      $region14: #{joiner_forward.1} parent=5 // pred_check_branch
        %183 = sbr.rel (%p181) target = $region16
      $region15: #{joiner_forward.1} parent=5 // pred_region
        // Predicated region
        $region17: #{joiner_forward.1} parent=15 // pred_check
          %p184 = pneg %p51
        $region18: #{joiner_forward.1} parent=15 // pred_check_branch
          %186 = sbr.rel (%p184) target = $region20
        $region19: #{joiner_forward.1} parent=15 // pred_region
          %s187 = smul.u32 8, %s18
          %p188 = scmp.lt.s32.totalorder %s17, 1
          %s189 = scalar_select %p188, %s17, 1
          %p190 = scmp.lt.s32.totalorder %s187, 15
          %s191 = scalar_select %p190, %s187, 15
          %s192 = smul.addr %s191, 8
          %s193 = smul.addr %s189, 128
          %s194 = sadd.s32 %s192, %s193
          %s195 = smul.addr %s194, 4
          %s196 = scalar_lea.vmem %s0, %s195
          %s197 = smul.u32 8, %s18
        $region20: #{joiner_forward.1} parent=15 // pred_fallthru
          _
        // Predicated region
        $region21: #{joiner_forward.1} parent=15 // pred_check
          %p198 = pneg %p77
        $region22: #{joiner_forward.1} parent=15 // pred_check_branch
          %200 = sbr.rel (%p198) target = $region24
        $region23: #{joiner_forward.1} parent=15 // pred_region
          %p201 = scmp.lt.s32.totalorder %s17, 1
          %s202 = scalar_select %p201, %s17, 1
          %s203 = smul.addr %s202, 8
          %s204 = smul.addr %s203, 4
          %s205 = scalar_lea.vmem %s1, %s204
        $region24: #{joiner_forward.1} parent=15 // pred_fallthru
          _
        // Predicated region
        $region25: #{joiner_forward.1} parent=15 // pred_check
          %p206 = pneg %p103
        $region26: #{joiner_forward.1} parent=15 // pred_check_branch
          %208 = sbr.rel (%p206) target = $region28
        $region27: #{joiner_forward.1} parent=15 // pred_region
          %s209 = smul.u32 32, %s19
          %p210 = scmp.lt.s32.totalorder %s209, 63
          %s211 = scalar_select %p210, %s209, 63
          %s212 = smul.addr %s211, 8
          %s213 = smul.addr %s212, 4
          %s214 = scalar_lea.vmem %s2, %s213
          %s215 = smul.u32 32, %s19
        $region28: #{joiner_forward.1} parent=15 // pred_fallthru
          _
        // Predicated region
        $region29: #{joiner_forward.1} parent=15 // pred_check
          %p216 = pneg %p129
        $region30: #{joiner_forward.1} parent=15 // pred_check_branch
          %218 = sbr.rel (%p216) target = $region32
        $region31: #{joiner_forward.1} parent=15 // pred_region
          %s219 = smul.u32 2, %s19
          %p220 = scmp.lt.s32.totalorder %s219, 3
          %s221 = scalar_select %p220, %s219, 3
          %s222 = scalar_lea.vmem %s3, %s221
          %s223 = smul.u32 2, %s19
        $region32: #{joiner_forward.1} parent=15 // pred_fallthru
          _
      $region16: #{joiner_forward.1} parent=5 // pred_fallthru
        _
      %p224 = scmp.le.s32.totalorder 1, %s10
      %p225 = scmp.lt.s32.totalorder %s10, 9
      %p226 = pnand %p224, %p225
      %p227 = pneg %p226
      // Predicated region
      $region33: #{joiner_forward.1} parent=5 // pred_check
        _
      $region34: #{joiner_forward.1} parent=5 // pred_check_branch
        %229 = sbr.rel (%p226) target = $region36
      $region35: #{joiner_forward.1} parent=5 // pred_region
        %s230 = ssub.s32 %s10, 1
        %s231 = smul.u32 8, %s21
        %p232 = scmp.lt.s32.totalorder %s20, 1
        %s233 = scalar_select %p232, %s20, 1
        %p234 = scmp.lt.s32.totalorder %s231, 15
        %s235 = scalar_select %p234, %s231, 15
        %s236 = smul.addr %s235, 8
        %s237 = smul.addr %s233, 128
        %s238 = sadd.s32 %s236, %s237
        %s239 = smul.addr %s238, 4
        %s240 = scalar_lea.vmem %s0, %s239
        %p241 = pneg %p57
        %p242 = pneg %p54
        %p243 = scmp.lt.s32.totalorder %s20, 1
        %s244 = scalar_select %p243, %s20, 1
        %s245 = smul.addr %s244, 8
        %s246 = smul.addr %s245, 4
        %s247 = scalar_lea.vmem %s1, %s246
        %p248 = pneg %p83
        %p249 = pneg %p80
        %s250 = smul.u32 32, %s22
        %p251 = scmp.lt.s32.totalorder %s250, 63
        %s252 = scalar_select %p251, %s250, 63
        %s253 = smul.addr %s252, 8
        %s254 = smul.addr %s253, 4
        %s255 = scalar_lea.vmem %s2, %s254
        %p256 = pneg %p109
        %p257 = pneg %p106
        %s258 = smul.u32 2, %s22
        %p259 = scmp.lt.s32.totalorder %s258, 3
        %s260 = scalar_select %p259, %s258, 3
        %s261 = scalar_lea.vmem %s3, %s260
        %p262 = pneg %p135
        %p263 = pneg %p132
        %p264 = pneg %p165
        %p265 = pneg %p162
        %s266 = sand.u32 %s152, 1
        %s267 = sand.u32 %s152, 1
        %s268 = smul.addr %s267, 1024
        %s269 = scalar_lea.vmem [#allocation3], %s268
        %s270 = smul.u32 8, %s21
        %p271 = scmp.lt.s32.totalorder %s20, 1
        %s272 = scalar_select %p271, %s20, 1
        %p273 = scmp.lt.s32.totalorder %s270, 15
        %s274 = scalar_select %p273, %s270, 15
        %s275 = smul.addr %s274, 8
        %s276 = smul.addr %s272, 128
        %s277 = sadd.s32 %s275, %s276
        %s278 = smul.addr %s277, 4
        %s279 = scalar_lea.vmem %s0, %s278
        %s280 = smul.u32 8, %s21
        %p281 = scmp.lt.s32.totalorder %s20, 1
        %s282 = scalar_select %p281, %s20, 1
        %s283 = smul.addr %s282, 8
        %s284 = smul.addr %s283, 4
        %s285 = scalar_lea.vmem %s1, %s284
        %s286 = smul.u32 32, %s22
        %p287 = scmp.lt.s32.totalorder %s286, 63
        %s288 = scalar_select %p287, %s286, 63
        %s289 = smul.addr %s288, 8
        %s290 = smul.addr %s289, 4
        %s291 = scalar_lea.vmem %s2, %s290
        %s292 = smul.u32 32, %s22
        %s293 = smul.u32 2, %s22
        %p294 = scmp.lt.s32.totalorder %s293, 3
        %s295 = scalar_select %p294, %s293, 3
        %s296 = scalar_lea.vmem %s3, %s295
        %s297 = smul.u32 2, %s22
        %s298 = smul.u32 64, %s21
        %s299 = smul.u32 2, %s22
        %p301 = scmp.eq.s32.totalorder %s22, 0
        // Predicated region
        $region37: #{joiner_forward.1} parent=35 // pred_check
          %p302 = pneg %p301
        $region38: #{joiner_forward.1} parent=35 // pred_check_branch
          %304 = sbr.rel (%p302) target = $region40
        $region39: #{joiner_forward.1} parent=35 // pred_region
          %v305 = vld [vmem:[%s279] sm:$0xff]
          %v306 = vld [vmem:[%s279 + $0x8] sm:$0xff]
          %v307 = vld [vmem:[%s279 + $0x10] sm:$0xff]
          %v308 = vld [vmem:[%s279 + $0x18] sm:$0xff]
          %v309 = vld [vmem:[%s279 + $0x20] sm:$0xff]
          %v310 = vld [vmem:[%s279 + $0x28] sm:$0xff]
          %v311 = vld [vmem:[%s279 + $0x30] sm:$0xff]
          %v312 = vld [vmem:[%s279 + $0x38] sm:$0xff]
          %v313 = vld [vmem:[%s279 + $0x40] sm:$0xff]
          %v314 = vld [vmem:[%s279 + $0x48] sm:$0xff]
          %v315 = vld [vmem:[%s279 + $0x50] sm:$0xff]
          %v316 = vld [vmem:[%s279 + $0x58] sm:$0xff]
          %v317 = vld [vmem:[%s279 + $0x60] sm:$0xff]
          %v318 = vld [vmem:[%s279 + $0x68] sm:$0xff]
          %v319 = vld [vmem:[%s279 + $0x70] sm:$0xff]
          %v320 = vld [vmem:[%s279 + $0x78] sm:$0xff]
          %v321 = vld [vmem:[%s279 + $0x80] sm:$0xff]
          %v322 = vld [vmem:[%s279 + $0x88] sm:$0xff]
          %v323 = vld [vmem:[%s279 + $0x90] sm:$0xff]
          %v324 = vld [vmem:[%s279 + $0x98] sm:$0xff]
          %v325 = vld [vmem:[%s279 + $0xa0] sm:$0xff]
          %v326 = vld [vmem:[%s279 + $0xa8] sm:$0xff]
          %v327 = vld [vmem:[%s279 + $0xb0] sm:$0xff]
          %v328 = vld [vmem:[%s279 + $0xb8] sm:$0xff]
          %v329 = vld [vmem:[%s279 + $0xc0] sm:$0xff]
          %v330 = vld [vmem:[%s279 + $0xc8] sm:$0xff]
          %v331 = vld [vmem:[%s279 + $0xd0] sm:$0xff]
          %v332 = vld [vmem:[%s279 + $0xd8] sm:$0xff]
          %v333 = vld [vmem:[%s279 + $0xe0] sm:$0xff]
          %v334 = vld [vmem:[%s279 + $0xe8] sm:$0xff]
          %v335 = vld [vmem:[%s279 + $0xf0] sm:$0xff]
          %v336 = vld [vmem:[%s279 + $0xf8] sm:$0xff]
          %v337 = vld [vmem:[%s285] sm:$0xff]
          %v338 = vld [vmem:[%s285 + $0x8] sm:$0xff]
          %v339 = vld [vmem:[%s285 + $0x10] sm:$0xff]
          %v340 = vld [vmem:[%s285 + $0x18] sm:$0xff]
          %v374 = vunpack.c.l.s4 1966171168
          %v375 = vunpack.c.0.s8 %v374
          %v376 = vlaneseq
          %v377 = vshrl.u32 %v376, 7
          %v378 = vsub.s32 %v375, %v377
          %v379 = vrot.slane %v305, %v378
          %v381 = vunpack.c.l.s4 1966171168
          %v382 = vunpack.c.0.s8 %v381
          %v383 = vlaneseq
          %v384 = vshrl.u32 %v383, 7
          %v385 = vsub.s32 %v382, %v384
          %v386 = vrot.slane %v306, %v385
          %v388 = vunpack.c.l.s4 1966171168
          %v389 = vunpack.c.0.s8 %v388
          %v390 = vlaneseq
          %v391 = vshrl.u32 %v390, 7
          %v392 = vsub.s32 %v389, %v391
          %v393 = vrot.slane %v307, %v392
          %v395 = vunpack.c.l.s4 1966171168
          %v396 = vunpack.c.0.s8 %v395
          %v397 = vlaneseq
          %v398 = vshrl.u32 %v397, 7
          %v399 = vsub.s32 %v396, %v398
          %v400 = vrot.slane %v308, %v399
          %v401 = vcombine.low %v379, %v386
          %v402 = vcombine.high %v379, %v386
          %v403 = vcombine.low %v393, %v400
          %v404 = vcombine.high %v393, %v400
          %v406 = vunpack.c.l.s4 1966171168
          %v407 = vunpack.c.0.s8 %v406
          %v408 = vlaneseq
          %v409 = vshrl.u32 %v408, 7
          %v410 = vsub.s32 %v407, %v409
          %v411 = vrot.slane %v401, %v410
          %v413 = vunpack.c.l.s4 1966171168
          %v414 = vunpack.c.0.s8 %v413
          %v415 = vlaneseq
          %v416 = vshrl.u32 %v415, 7
          %v417 = vsub.s32 %v414, %v416
          %v418 = vrot.slane %v402, %v417
          %v420 = vunpack.c.l.s4 1966171168
          %v421 = vunpack.c.0.s8 %v420
          %v422 = vlaneseq
          %v423 = vshrl.u32 %v422, 7
          %v424 = vsub.s32 %v421, %v423
          %v425 = vrot.slane %v403, %v424
          %v427 = vunpack.c.l.s4 1966171168
          %v428 = vunpack.c.0.s8 %v427
          %v429 = vlaneseq
          %v430 = vshrl.u32 %v429, 7
          %v431 = vsub.s32 %v428, %v430
          %v432 = vrot.slane %v404, %v431
          %v433 = vcombine.low %v411, %v425
          %v434 = vcombine.high %v411, %v425
          %v435 = vcombine.low %v418, %v432
          %v436 = vcombine.high %v418, %v432
          %v438 = vunpack.c.l.s4 1966171168
          %v439 = vunpack.c.0.s8 %v438
          %v440 = vlaneseq
          %v441 = vshrl.u32 %v440, 7
          %v442 = vsub.s32 %v439, %v441
          %v443 = vrot.slane %v309, %v442
          %v445 = vunpack.c.l.s4 1966171168
          %v446 = vunpack.c.0.s8 %v445
          %v447 = vlaneseq
          %v448 = vshrl.u32 %v447, 7
          %v449 = vsub.s32 %v446, %v448
          %v450 = vrot.slane %v310, %v449
          %v452 = vunpack.c.l.s4 1966171168
          %v453 = vunpack.c.0.s8 %v452
          %v454 = vlaneseq
          %v455 = vshrl.u32 %v454, 7
          %v456 = vsub.s32 %v453, %v455
          %v457 = vrot.slane %v311, %v456
          %v459 = vunpack.c.l.s4 1966171168
          %v460 = vunpack.c.0.s8 %v459
          %v461 = vlaneseq
          %v462 = vshrl.u32 %v461, 7
          %v463 = vsub.s32 %v460, %v462
          %v464 = vrot.slane %v312, %v463
          %v465 = vcombine.low %v443, %v450
          %v466 = vcombine.high %v443, %v450
          %v467 = vcombine.low %v457, %v464
          %v468 = vcombine.high %v457, %v464
          %v470 = vunpack.c.l.s4 1966171168
          %v471 = vunpack.c.0.s8 %v470
          %v472 = vlaneseq
          %v473 = vshrl.u32 %v472, 7
          %v474 = vsub.s32 %v471, %v473
          %v475 = vrot.slane %v465, %v474
          %v477 = vunpack.c.l.s4 1966171168
          %v478 = vunpack.c.0.s8 %v477
          %v479 = vlaneseq
          %v480 = vshrl.u32 %v479, 7
          %v481 = vsub.s32 %v478, %v480
          %v482 = vrot.slane %v466, %v481
          %v484 = vunpack.c.l.s4 1966171168
          %v485 = vunpack.c.0.s8 %v484
          %v486 = vlaneseq
          %v487 = vshrl.u32 %v486, 7
          %v488 = vsub.s32 %v485, %v487
          %v489 = vrot.slane %v467, %v488
          %v491 = vunpack.c.l.s4 1966171168
          %v492 = vunpack.c.0.s8 %v491
          %v493 = vlaneseq
          %v494 = vshrl.u32 %v493, 7
          %v495 = vsub.s32 %v492, %v494
          %v496 = vrot.slane %v468, %v495
          %v497 = vcombine.low %v475, %v489
          %v498 = vcombine.high %v475, %v489
          %v499 = vcombine.low %v482, %v496
          %v500 = vcombine.high %v482, %v496
          %v502 = vunpack.c.l.s4 1966171168
          %v503 = vunpack.c.0.s8 %v502
          %v504 = vlaneseq
          %v505 = vshrl.u32 %v504, 7
          %v506 = vsub.s32 %v503, %v505
          %v507 = vrot.slane %v313, %v506
          %v509 = vunpack.c.l.s4 1966171168
          %v510 = vunpack.c.0.s8 %v509
          %v511 = vlaneseq
          %v512 = vshrl.u32 %v511, 7
          %v513 = vsub.s32 %v510, %v512
          %v514 = vrot.slane %v314, %v513
          %v516 = vunpack.c.l.s4 1966171168
          %v517 = vunpack.c.0.s8 %v516
          %v518 = vlaneseq
          %v519 = vshrl.u32 %v518, 7
          %v520 = vsub.s32 %v517, %v519
          %v521 = vrot.slane %v315, %v520
          %v523 = vunpack.c.l.s4 1966171168
          %v524 = vunpack.c.0.s8 %v523
          %v525 = vlaneseq
          %v526 = vshrl.u32 %v525, 7
          %v527 = vsub.s32 %v524, %v526
          %v528 = vrot.slane %v316, %v527
          %v529 = vcombine.low %v507, %v514
          %v530 = vcombine.high %v507, %v514
          %v531 = vcombine.low %v521, %v528
          %v532 = vcombine.high %v521, %v528
          %v534 = vunpack.c.l.s4 1966171168
          %v535 = vunpack.c.0.s8 %v534
          %v536 = vlaneseq
          %v537 = vshrl.u32 %v536, 7
          %v538 = vsub.s32 %v535, %v537
          %v539 = vrot.slane %v529, %v538
          %v541 = vunpack.c.l.s4 1966171168
          %v542 = vunpack.c.0.s8 %v541
          %v543 = vlaneseq
          %v544 = vshrl.u32 %v543, 7
          %v545 = vsub.s32 %v542, %v544
          %v546 = vrot.slane %v530, %v545
          %v548 = vunpack.c.l.s4 1966171168
          %v549 = vunpack.c.0.s8 %v548
          %v550 = vlaneseq
          %v551 = vshrl.u32 %v550, 7
          %v552 = vsub.s32 %v549, %v551
          %v553 = vrot.slane %v531, %v552
          %v555 = vunpack.c.l.s4 1966171168
          %v556 = vunpack.c.0.s8 %v555
          %v557 = vlaneseq
          %v558 = vshrl.u32 %v557, 7
          %v559 = vsub.s32 %v556, %v558
          %v560 = vrot.slane %v532, %v559
          %v561 = vcombine.low %v539, %v553
          %v562 = vcombine.high %v539, %v553
          %v563 = vcombine.low %v546, %v560
          %v564 = vcombine.high %v546, %v560
          %v566 = vunpack.c.l.s4 1966171168
          %v567 = vunpack.c.0.s8 %v566
          %v568 = vlaneseq
          %v569 = vshrl.u32 %v568, 7
          %v570 = vsub.s32 %v567, %v569
          %v571 = vrot.slane %v317, %v570
          %v573 = vunpack.c.l.s4 1966171168
          %v574 = vunpack.c.0.s8 %v573
          %v575 = vlaneseq
          %v576 = vshrl.u32 %v575, 7
          %v577 = vsub.s32 %v574, %v576
          %v578 = vrot.slane %v318, %v577
          %v580 = vunpack.c.l.s4 1966171168
          %v581 = vunpack.c.0.s8 %v580
          %v582 = vlaneseq
          %v583 = vshrl.u32 %v582, 7
          %v584 = vsub.s32 %v581, %v583
          %v585 = vrot.slane %v319, %v584
          %v587 = vunpack.c.l.s4 1966171168
          %v588 = vunpack.c.0.s8 %v587
          %v589 = vlaneseq
          %v590 = vshrl.u32 %v589, 7
          %v591 = vsub.s32 %v588, %v590
          %v592 = vrot.slane %v320, %v591
          %v593 = vcombine.low %v571, %v578
          %v594 = vcombine.high %v571, %v578
          %v595 = vcombine.low %v585, %v592
          %v596 = vcombine.high %v585, %v592
          %v598 = vunpack.c.l.s4 1966171168
          %v599 = vunpack.c.0.s8 %v598
          %v600 = vlaneseq
          %v601 = vshrl.u32 %v600, 7
          %v602 = vsub.s32 %v599, %v601
          %v603 = vrot.slane %v593, %v602
          %v605 = vunpack.c.l.s4 1966171168
          %v606 = vunpack.c.0.s8 %v605
          %v607 = vlaneseq
          %v608 = vshrl.u32 %v607, 7
          %v609 = vsub.s32 %v606, %v608
          %v610 = vrot.slane %v594, %v609
          %v612 = vunpack.c.l.s4 1966171168
          %v613 = vunpack.c.0.s8 %v612
          %v614 = vlaneseq
          %v615 = vshrl.u32 %v614, 7
          %v616 = vsub.s32 %v613, %v615
          %v617 = vrot.slane %v595, %v616
          %v619 = vunpack.c.l.s4 1966171168
          %v620 = vunpack.c.0.s8 %v619
          %v621 = vlaneseq
          %v622 = vshrl.u32 %v621, 7
          %v623 = vsub.s32 %v620, %v622
          %v624 = vrot.slane %v596, %v623
          %v625 = vcombine.low %v603, %v617
          %v626 = vcombine.high %v603, %v617
          %v627 = vcombine.low %v610, %v624
          %v628 = vcombine.high %v610, %v624
          %v630 = vunpack.c.l.s4 1966171168
          %v631 = vunpack.c.0.s8 %v630
          %v632 = vlaneseq
          %v633 = vshrl.u32 %v632, 7
          %v634 = vsub.s32 %v631, %v633
          %v635 = vrot.slane %v321, %v634
          %v637 = vunpack.c.l.s4 1966171168
          %v638 = vunpack.c.0.s8 %v637
          %v639 = vlaneseq
          %v640 = vshrl.u32 %v639, 7
          %v641 = vsub.s32 %v638, %v640
          %v642 = vrot.slane %v322, %v641
          %v644 = vunpack.c.l.s4 1966171168
          %v645 = vunpack.c.0.s8 %v644
          %v646 = vlaneseq
          %v647 = vshrl.u32 %v646, 7
          %v648 = vsub.s32 %v645, %v647
          %v649 = vrot.slane %v323, %v648
          %v651 = vunpack.c.l.s4 1966171168
          %v652 = vunpack.c.0.s8 %v651
          %v653 = vlaneseq
          %v654 = vshrl.u32 %v653, 7
          %v655 = vsub.s32 %v652, %v654
          %v656 = vrot.slane %v324, %v655
          %v657 = vcombine.low %v635, %v642
          %v658 = vcombine.high %v635, %v642
          %v659 = vcombine.low %v649, %v656
          %v660 = vcombine.high %v649, %v656
          %v662 = vunpack.c.l.s4 1966171168
          %v663 = vunpack.c.0.s8 %v662
          %v664 = vlaneseq
          %v665 = vshrl.u32 %v664, 7
          %v666 = vsub.s32 %v663, %v665
          %v667 = vrot.slane %v657, %v666
          %v669 = vunpack.c.l.s4 1966171168
          %v670 = vunpack.c.0.s8 %v669
          %v671 = vlaneseq
          %v672 = vshrl.u32 %v671, 7
          %v673 = vsub.s32 %v670, %v672
          %v674 = vrot.slane %v658, %v673
          %v676 = vunpack.c.l.s4 1966171168
          %v677 = vunpack.c.0.s8 %v676
          %v678 = vlaneseq
          %v679 = vshrl.u32 %v678, 7
          %v680 = vsub.s32 %v677, %v679
          %v681 = vrot.slane %v659, %v680
          %v683 = vunpack.c.l.s4 1966171168
          %v684 = vunpack.c.0.s8 %v683
          %v685 = vlaneseq
          %v686 = vshrl.u32 %v685, 7
          %v687 = vsub.s32 %v684, %v686
          %v688 = vrot.slane %v660, %v687
          %v689 = vcombine.low %v667, %v681
          %v690 = vcombine.high %v667, %v681
          %v691 = vcombine.low %v674, %v688
          %v692 = vcombine.high %v674, %v688
          %v694 = vunpack.c.l.s4 1966171168
          %v695 = vunpack.c.0.s8 %v694
          %v696 = vlaneseq
          %v697 = vshrl.u32 %v696, 7
          %v698 = vsub.s32 %v695, %v697
          %v699 = vrot.slane %v325, %v698
          %v701 = vunpack.c.l.s4 1966171168
          %v702 = vunpack.c.0.s8 %v701
          %v703 = vlaneseq
          %v704 = vshrl.u32 %v703, 7
          %v705 = vsub.s32 %v702, %v704
          %v706 = vrot.slane %v326, %v705
          %v708 = vunpack.c.l.s4 1966171168
          %v709 = vunpack.c.0.s8 %v708
          %v710 = vlaneseq
          %v711 = vshrl.u32 %v710, 7
          %v712 = vsub.s32 %v709, %v711
          %v713 = vrot.slane %v327, %v712
          %v715 = vunpack.c.l.s4 1966171168
          %v716 = vunpack.c.0.s8 %v715
          %v717 = vlaneseq
          %v718 = vshrl.u32 %v717, 7
          %v719 = vsub.s32 %v716, %v718
          %v720 = vrot.slane %v328, %v719
          %v721 = vcombine.low %v699, %v706
          %v722 = vcombine.high %v699, %v706
          %v723 = vcombine.low %v713, %v720
          %v724 = vcombine.high %v713, %v720
          %v726 = vunpack.c.l.s4 1966171168
          %v727 = vunpack.c.0.s8 %v726
          %v728 = vlaneseq
          %v729 = vshrl.u32 %v728, 7
          %v730 = vsub.s32 %v727, %v729
          %v731 = vrot.slane %v721, %v730
          %v733 = vunpack.c.l.s4 1966171168
          %v734 = vunpack.c.0.s8 %v733
          %v735 = vlaneseq
          %v736 = vshrl.u32 %v735, 7
          %v737 = vsub.s32 %v734, %v736
          %v738 = vrot.slane %v722, %v737
          %v740 = vunpack.c.l.s4 1966171168
          %v741 = vunpack.c.0.s8 %v740
          %v742 = vlaneseq
          %v743 = vshrl.u32 %v742, 7
          %v744 = vsub.s32 %v741, %v743
          %v745 = vrot.slane %v723, %v744
          %v747 = vunpack.c.l.s4 1966171168
          %v748 = vunpack.c.0.s8 %v747
          %v749 = vlaneseq
          %v750 = vshrl.u32 %v749, 7
          %v751 = vsub.s32 %v748, %v750
          %v752 = vrot.slane %v724, %v751
          %v753 = vcombine.low %v731, %v745
          %v754 = vcombine.high %v731, %v745
          %v755 = vcombine.low %v738, %v752
          %v756 = vcombine.high %v738, %v752
          %v758 = vunpack.c.l.s4 1966171168
          %v759 = vunpack.c.0.s8 %v758
          %v760 = vlaneseq
          %v761 = vshrl.u32 %v760, 7
          %v762 = vsub.s32 %v759, %v761
          %v763 = vrot.slane %v329, %v762
          %v765 = vunpack.c.l.s4 1966171168
          %v766 = vunpack.c.0.s8 %v765
          %v767 = vlaneseq
          %v768 = vshrl.u32 %v767, 7
          %v769 = vsub.s32 %v766, %v768
          %v770 = vrot.slane %v330, %v769
          %v772 = vunpack.c.l.s4 1966171168
          %v773 = vunpack.c.0.s8 %v772
          %v774 = vlaneseq
          %v775 = vshrl.u32 %v774, 7
          %v776 = vsub.s32 %v773, %v775
          %v777 = vrot.slane %v331, %v776
          %v779 = vunpack.c.l.s4 1966171168
          %v780 = vunpack.c.0.s8 %v779
          %v781 = vlaneseq
          %v782 = vshrl.u32 %v781, 7
          %v783 = vsub.s32 %v780, %v782
          %v784 = vrot.slane %v332, %v783
          %v785 = vcombine.low %v763, %v770
          %v786 = vcombine.high %v763, %v770
          %v787 = vcombine.low %v777, %v784
          %v788 = vcombine.high %v777, %v784
          %v790 = vunpack.c.l.s4 1966171168
          %v791 = vunpack.c.0.s8 %v790
          %v792 = vlaneseq
          %v793 = vshrl.u32 %v792, 7
          %v794 = vsub.s32 %v791, %v793
          %v795 = vrot.slane %v785, %v794
          %v797 = vunpack.c.l.s4 1966171168
          %v798 = vunpack.c.0.s8 %v797
          %v799 = vlaneseq
          %v800 = vshrl.u32 %v799, 7
          %v801 = vsub.s32 %v798, %v800
          %v802 = vrot.slane %v786, %v801
          %v804 = vunpack.c.l.s4 1966171168
          %v805 = vunpack.c.0.s8 %v804
          %v806 = vlaneseq
          %v807 = vshrl.u32 %v806, 7
          %v808 = vsub.s32 %v805, %v807
          %v809 = vrot.slane %v787, %v808
          %v811 = vunpack.c.l.s4 1966171168
          %v812 = vunpack.c.0.s8 %v811
          %v813 = vlaneseq
          %v814 = vshrl.u32 %v813, 7
          %v815 = vsub.s32 %v812, %v814
          %v816 = vrot.slane %v788, %v815
          %v817 = vcombine.low %v795, %v809
          %v818 = vcombine.high %v795, %v809
          %v819 = vcombine.low %v802, %v816
          %v820 = vcombine.high %v802, %v816
          %v822 = vunpack.c.l.s4 1966171168
          %v823 = vunpack.c.0.s8 %v822
          %v824 = vlaneseq
          %v825 = vshrl.u32 %v824, 7
          %v826 = vsub.s32 %v823, %v825
          %v827 = vrot.slane %v333, %v826
          %v829 = vunpack.c.l.s4 1966171168
          %v830 = vunpack.c.0.s8 %v829
          %v831 = vlaneseq
          %v832 = vshrl.u32 %v831, 7
          %v833 = vsub.s32 %v830, %v832
          %v834 = vrot.slane %v334, %v833
          %v836 = vunpack.c.l.s4 1966171168
          %v837 = vunpack.c.0.s8 %v836
          %v838 = vlaneseq
          %v839 = vshrl.u32 %v838, 7
          %v840 = vsub.s32 %v837, %v839
          %v841 = vrot.slane %v335, %v840
          %v843 = vunpack.c.l.s4 1966171168
          %v844 = vunpack.c.0.s8 %v843
          %v845 = vlaneseq
          %v846 = vshrl.u32 %v845, 7
          %v847 = vsub.s32 %v844, %v846
          %v848 = vrot.slane %v336, %v847
          %v849 = vcombine.low %v827, %v834
          %v850 = vcombine.high %v827, %v834
          %v851 = vcombine.low %v841, %v848
          %v852 = vcombine.high %v841, %v848
          %v854 = vunpack.c.l.s4 1966171168
          %v855 = vunpack.c.0.s8 %v854
          %v856 = vlaneseq
          %v857 = vshrl.u32 %v856, 7
          %v858 = vsub.s32 %v855, %v857
          %v859 = vrot.slane %v849, %v858
          %v861 = vunpack.c.l.s4 1966171168
          %v862 = vunpack.c.0.s8 %v861
          %v863 = vlaneseq
          %v864 = vshrl.u32 %v863, 7
          %v865 = vsub.s32 %v862, %v864
          %v866 = vrot.slane %v850, %v865
          %v868 = vunpack.c.l.s4 1966171168
          %v869 = vunpack.c.0.s8 %v868
          %v870 = vlaneseq
          %v871 = vshrl.u32 %v870, 7
          %v872 = vsub.s32 %v869, %v871
          %v873 = vrot.slane %v851, %v872
          %v875 = vunpack.c.l.s4 1966171168
          %v876 = vunpack.c.0.s8 %v875
          %v877 = vlaneseq
          %v878 = vshrl.u32 %v877, 7
          %v879 = vsub.s32 %v876, %v878
          %v880 = vrot.slane %v852, %v879
          %v881 = vcombine.low %v859, %v873
          %v882 = vcombine.high %v859, %v873
          %v883 = vcombine.low %v866, %v880
          %v884 = vcombine.high %v866, %v880
          %v885 = vunpack.i.l.s16 %v433
          %v886 = vunpack.i.h.s16 %v433
          %v887 = vunpack.i.l.s16 %v435
          %v888 = vunpack.i.h.s16 %v435
          %v889 = vunpack.i.l.s16 %v434
          %v890 = vunpack.i.h.s16 %v434
          %v891 = vunpack.i.l.s16 %v436
          %v892 = vunpack.i.h.s16 %v436
          %v893 = vunpack.i.l.s16 %v497
          %v894 = vunpack.i.h.s16 %v497
          %v895 = vunpack.i.l.s16 %v499
          %v896 = vunpack.i.h.s16 %v499
          %v897 = vunpack.i.l.s16 %v498
          %v898 = vunpack.i.h.s16 %v498
          %v899 = vunpack.i.l.s16 %v500
          %v900 = vunpack.i.h.s16 %v500
          %v901 = vunpack.i.l.s16 %v561
          %v902 = vunpack.i.h.s16 %v561
          %v903 = vunpack.i.l.s16 %v563
          %v904 = vunpack.i.h.s16 %v563
          %v905 = vunpack.i.l.s16 %v562
          %v906 = vunpack.i.h.s16 %v562
          %v907 = vunpack.i.l.s16 %v564
          %v908 = vunpack.i.h.s16 %v564
          %v909 = vunpack.i.l.s16 %v625
          %v910 = vunpack.i.h.s16 %v625
          %v911 = vunpack.i.l.s16 %v627
          %v912 = vunpack.i.h.s16 %v627
          %v913 = vunpack.i.l.s16 %v626
          %v914 = vunpack.i.h.s16 %v626
          %v915 = vunpack.i.l.s16 %v628
          %v916 = vunpack.i.h.s16 %v628
          %v917 = vunpack.i.l.s16 %v689
          %v918 = vunpack.i.h.s16 %v689
          %v919 = vunpack.i.l.s16 %v691
          %v920 = vunpack.i.h.s16 %v691
          %v921 = vunpack.i.l.s16 %v690
          %v922 = vunpack.i.h.s16 %v690
          %v923 = vunpack.i.l.s16 %v692
          %v924 = vunpack.i.h.s16 %v692
          %v925 = vunpack.i.l.s16 %v753
          %v926 = vunpack.i.h.s16 %v753
          %v927 = vunpack.i.l.s16 %v755
          %v928 = vunpack.i.h.s16 %v755
          %v929 = vunpack.i.l.s16 %v754
          %v930 = vunpack.i.h.s16 %v754
          %v931 = vunpack.i.l.s16 %v756
          %v932 = vunpack.i.h.s16 %v756
          %v933 = vunpack.i.l.s16 %v817
          %v934 = vunpack.i.h.s16 %v817
          %v935 = vunpack.i.l.s16 %v819
          %v936 = vunpack.i.h.s16 %v819
          %v937 = vunpack.i.l.s16 %v818
          %v938 = vunpack.i.h.s16 %v818
          %v939 = vunpack.i.l.s16 %v820
          %v940 = vunpack.i.h.s16 %v820
          %v941 = vunpack.i.l.s16 %v881
          %v942 = vunpack.i.h.s16 %v881
          %v943 = vunpack.i.l.s16 %v883
          %v944 = vunpack.i.h.s16 %v883
          %v945 = vunpack.i.l.s16 %v882
          %v946 = vunpack.i.h.s16 %v882
          %v947 = vunpack.i.l.s16 %v884
          %v948 = vunpack.i.h.s16 %v884
          %v949 = vpack.i.b16 %v885, %v885
          %v950 = vpack.i.b16 %v886, %v886
          %v951 = vpack.i.b16 %v887, %v887
          %v952 = vpack.i.b16 %v888, %v888
          %v953 = vpack.i.b16 %v889, %v889
          %v954 = vpack.i.b16 %v890, %v890
          %v955 = vpack.i.b16 %v891, %v891
          %v956 = vpack.i.b16 %v892, %v892
          %v957 = vpack.i.b16 %v893, %v893
          %v958 = vpack.i.b16 %v894, %v894
          %v959 = vpack.i.b16 %v895, %v895
          %v960 = vpack.i.b16 %v896, %v896
          %v961 = vpack.i.b16 %v897, %v897
          %v962 = vpack.i.b16 %v898, %v898
          %v963 = vpack.i.b16 %v899, %v899
          %v964 = vpack.i.b16 %v900, %v900
          %v965 = vpack.i.b16 %v901, %v901
          %v966 = vpack.i.b16 %v902, %v902
          %v967 = vpack.i.b16 %v903, %v903
          %v968 = vpack.i.b16 %v904, %v904
          %v969 = vpack.i.b16 %v905, %v905
          %v970 = vpack.i.b16 %v906, %v906
          %v971 = vpack.i.b16 %v907, %v907
          %v972 = vpack.i.b16 %v908, %v908
          %v973 = vpack.i.b16 %v909, %v909
          %v974 = vpack.i.b16 %v910, %v910
          %v975 = vpack.i.b16 %v911, %v911
          %v976 = vpack.i.b16 %v912, %v912
          %v977 = vpack.i.b16 %v913, %v913
          %v978 = vpack.i.b16 %v914, %v914
          %v979 = vpack.i.b16 %v915, %v915
          %v980 = vpack.i.b16 %v916, %v916
          %v981 = vpack.i.b16 %v917, %v917
          %v982 = vpack.i.b16 %v918, %v918
          %v983 = vpack.i.b16 %v919, %v919
          %v984 = vpack.i.b16 %v920, %v920
          %v985 = vpack.i.b16 %v921, %v921
          %v986 = vpack.i.b16 %v922, %v922
          %v987 = vpack.i.b16 %v923, %v923
          %v988 = vpack.i.b16 %v924, %v924
          %v989 = vpack.i.b16 %v925, %v925
          %v990 = vpack.i.b16 %v926, %v926
          %v991 = vpack.i.b16 %v927, %v927
          %v992 = vpack.i.b16 %v928, %v928
          %v993 = vpack.i.b16 %v929, %v929
          %v994 = vpack.i.b16 %v930, %v930
          %v995 = vpack.i.b16 %v931, %v931
          %v996 = vpack.i.b16 %v932, %v932
          %v997 = vpack.i.b16 %v933, %v933
          %v998 = vpack.i.b16 %v934, %v934
          %v999 = vpack.i.b16 %v935, %v935
          %v1000 = vpack.i.b16 %v936, %v936
          %v1001 = vpack.i.b16 %v937, %v937
          %v1002 = vpack.i.b16 %v938, %v938
          %v1003 = vpack.i.b16 %v939, %v939
          %v1004 = vpack.i.b16 %v940, %v940
          %v1005 = vpack.i.b16 %v941, %v941
          %v1006 = vpack.i.b16 %v942, %v942
          %v1007 = vpack.i.b16 %v943, %v943
          %v1008 = vpack.i.b16 %v944, %v944
          %v1009 = vpack.i.b16 %v945, %v945
          %v1010 = vpack.i.b16 %v946, %v946
          %v1011 = vpack.i.b16 %v947, %v947
          %v1012 = vpack.i.b16 %v948, %v948
          %v1013 = vlaneseq
          %v1014 = vshrl.u32 %v1013, 7
          %v1015 = vsub.s32 0, %v1014
          %v1016 = vrot.slane %v949, %v1015
          %v1017 = vlaneseq
          %v1018 = vshrl.u32 %v1017, 7
          %v1019 = vsub.s32 1, %v1018
          %v1020 = vrot.slane %v949, %v1019
          %v1021 = vlaneseq
          %v1022 = vshrl.u32 %v1021, 7
          %v1023 = vsub.s32 2, %v1022
          %v1024 = vrot.slane %v949, %v1023
          %v1025 = vlaneseq
          %v1026 = vshrl.u32 %v1025, 7
          %v1027 = vsub.s32 3, %v1026
          %v1028 = vrot.slane %v949, %v1027
          %v1029 = vlaneseq
          %v1030 = vshrl.u32 %v1029, 7
          %v1031 = vsub.s32 4, %v1030
          %v1032 = vrot.slane %v949, %v1031
          %v1033 = vlaneseq
          %v1034 = vshrl.u32 %v1033, 7
          %v1035 = vsub.s32 5, %v1034
          %v1036 = vrot.slane %v949, %v1035
          %v1037 = vlaneseq
          %v1038 = vshrl.u32 %v1037, 7
          %v1039 = vsub.s32 6, %v1038
          %v1040 = vrot.slane %v949, %v1039
          %v1041 = vlaneseq
          %v1042 = vshrl.u32 %v1041, 7
          %v1043 = vsub.s32 7, %v1042
          %v1044 = vrot.slane %v949, %v1043
          %v1045 = vlaneseq
          %v1046 = vshrl.u32 %v1045, 7
          %v1047 = vsub.s32 0, %v1046
          %v1048 = vrot.slane %v950, %v1047
          %v1049 = vlaneseq
          %v1050 = vshrl.u32 %v1049, 7
          %v1051 = vsub.s32 1, %v1050
          %v1052 = vrot.slane %v950, %v1051
          %v1053 = vlaneseq
          %v1054 = vshrl.u32 %v1053, 7
          %v1055 = vsub.s32 2, %v1054
          %v1056 = vrot.slane %v950, %v1055
          %v1057 = vlaneseq
          %v1058 = vshrl.u32 %v1057, 7
          %v1059 = vsub.s32 3, %v1058
          %v1060 = vrot.slane %v950, %v1059
          %v1061 = vlaneseq
          %v1062 = vshrl.u32 %v1061, 7
          %v1063 = vsub.s32 4, %v1062
          %v1064 = vrot.slane %v950, %v1063
          %v1065 = vlaneseq
          %v1066 = vshrl.u32 %v1065, 7
          %v1067 = vsub.s32 5, %v1066
          %v1068 = vrot.slane %v950, %v1067
          %v1069 = vlaneseq
          %v1070 = vshrl.u32 %v1069, 7
          %v1071 = vsub.s32 6, %v1070
          %v1072 = vrot.slane %v950, %v1071
          %v1073 = vlaneseq
          %v1074 = vshrl.u32 %v1073, 7
          %v1075 = vsub.s32 7, %v1074
          %v1076 = vrot.slane %v950, %v1075
          %v1077 = vlaneseq
          %v1078 = vshrl.u32 %v1077, 7
          %v1079 = vsub.s32 0, %v1078
          %v1080 = vrot.slane %v951, %v1079
          %v1081 = vlaneseq
          %v1082 = vshrl.u32 %v1081, 7
          %v1083 = vsub.s32 1, %v1082
          %v1084 = vrot.slane %v951, %v1083
          %v1085 = vlaneseq
          %v1086 = vshrl.u32 %v1085, 7
          %v1087 = vsub.s32 2, %v1086
          %v1088 = vrot.slane %v951, %v1087
          %v1089 = vlaneseq
          %v1090 = vshrl.u32 %v1089, 7
          %v1091 = vsub.s32 3, %v1090
          %v1092 = vrot.slane %v951, %v1091
          %v1093 = vlaneseq
          %v1094 = vshrl.u32 %v1093, 7
          %v1095 = vsub.s32 4, %v1094
          %v1096 = vrot.slane %v951, %v1095
          %v1097 = vlaneseq
          %v1098 = vshrl.u32 %v1097, 7
          %v1099 = vsub.s32 5, %v1098
          %v1100 = vrot.slane %v951, %v1099
          %v1101 = vlaneseq
          %v1102 = vshrl.u32 %v1101, 7
          %v1103 = vsub.s32 6, %v1102
          %v1104 = vrot.slane %v951, %v1103
          %v1105 = vlaneseq
          %v1106 = vshrl.u32 %v1105, 7
          %v1107 = vsub.s32 7, %v1106
          %v1108 = vrot.slane %v951, %v1107
          %v1109 = vlaneseq
          %v1110 = vshrl.u32 %v1109, 7
          %v1111 = vsub.s32 0, %v1110
          %v1112 = vrot.slane %v952, %v1111
          %v1113 = vlaneseq
          %v1114 = vshrl.u32 %v1113, 7
          %v1115 = vsub.s32 1, %v1114
          %v1116 = vrot.slane %v952, %v1115
          %v1117 = vlaneseq
          %v1118 = vshrl.u32 %v1117, 7
          %v1119 = vsub.s32 2, %v1118
          %v1120 = vrot.slane %v952, %v1119
          %v1121 = vlaneseq
          %v1122 = vshrl.u32 %v1121, 7
          %v1123 = vsub.s32 3, %v1122
          %v1124 = vrot.slane %v952, %v1123
          %v1125 = vlaneseq
          %v1126 = vshrl.u32 %v1125, 7
          %v1127 = vsub.s32 4, %v1126
          %v1128 = vrot.slane %v952, %v1127
          %v1129 = vlaneseq
          %v1130 = vshrl.u32 %v1129, 7
          %v1131 = vsub.s32 5, %v1130
          %v1132 = vrot.slane %v952, %v1131
          %v1133 = vlaneseq
          %v1134 = vshrl.u32 %v1133, 7
          %v1135 = vsub.s32 6, %v1134
          %v1136 = vrot.slane %v952, %v1135
          %v1137 = vlaneseq
          %v1138 = vshrl.u32 %v1137, 7
          %v1139 = vsub.s32 7, %v1138
          %v1140 = vrot.slane %v952, %v1139
          %v1141 = vlaneseq
          %v1142 = vshrl.u32 %v1141, 7
          %v1143 = vsub.s32 0, %v1142
          %v1144 = vrot.slane %v953, %v1143
          %v1145 = vlaneseq
          %v1146 = vshrl.u32 %v1145, 7
          %v1147 = vsub.s32 1, %v1146
          %v1148 = vrot.slane %v953, %v1147
          %v1149 = vlaneseq
          %v1150 = vshrl.u32 %v1149, 7
          %v1151 = vsub.s32 2, %v1150
          %v1152 = vrot.slane %v953, %v1151
          %v1153 = vlaneseq
          %v1154 = vshrl.u32 %v1153, 7
          %v1155 = vsub.s32 3, %v1154
          %v1156 = vrot.slane %v953, %v1155
          %v1157 = vlaneseq
          %v1158 = vshrl.u32 %v1157, 7
          %v1159 = vsub.s32 4, %v1158
          %v1160 = vrot.slane %v953, %v1159
          %v1161 = vlaneseq
          %v1162 = vshrl.u32 %v1161, 7
          %v1163 = vsub.s32 5, %v1162
          %v1164 = vrot.slane %v953, %v1163
          %v1165 = vlaneseq
          %v1166 = vshrl.u32 %v1165, 7
          %v1167 = vsub.s32 6, %v1166
          %v1168 = vrot.slane %v953, %v1167
          %v1169 = vlaneseq
          %v1170 = vshrl.u32 %v1169, 7
          %v1171 = vsub.s32 7, %v1170
          %v1172 = vrot.slane %v953, %v1171
          %v1173 = vlaneseq
          %v1174 = vshrl.u32 %v1173, 7
          %v1175 = vsub.s32 0, %v1174
          %v1176 = vrot.slane %v954, %v1175
          %v1177 = vlaneseq
          %v1178 = vshrl.u32 %v1177, 7
          %v1179 = vsub.s32 1, %v1178
          %v1180 = vrot.slane %v954, %v1179
          %v1181 = vlaneseq
          %v1182 = vshrl.u32 %v1181, 7
          %v1183 = vsub.s32 2, %v1182
          %v1184 = vrot.slane %v954, %v1183
          %v1185 = vlaneseq
          %v1186 = vshrl.u32 %v1185, 7
          %v1187 = vsub.s32 3, %v1186
          %v1188 = vrot.slane %v954, %v1187
          %v1189 = vlaneseq
          %v1190 = vshrl.u32 %v1189, 7
          %v1191 = vsub.s32 4, %v1190
          %v1192 = vrot.slane %v954, %v1191
          %v1193 = vlaneseq
          %v1194 = vshrl.u32 %v1193, 7
          %v1195 = vsub.s32 5, %v1194
          %v1196 = vrot.slane %v954, %v1195
          %v1197 = vlaneseq
          %v1198 = vshrl.u32 %v1197, 7
          %v1199 = vsub.s32 6, %v1198
          %v1200 = vrot.slane %v954, %v1199
          %v1201 = vlaneseq
          %v1202 = vshrl.u32 %v1201, 7
          %v1203 = vsub.s32 7, %v1202
          %v1204 = vrot.slane %v954, %v1203
          %v1205 = vlaneseq
          %v1206 = vshrl.u32 %v1205, 7
          %v1207 = vsub.s32 0, %v1206
          %v1208 = vrot.slane %v955, %v1207
          %v1209 = vlaneseq
          %v1210 = vshrl.u32 %v1209, 7
          %v1211 = vsub.s32 1, %v1210
          %v1212 = vrot.slane %v955, %v1211
          %v1213 = vlaneseq
          %v1214 = vshrl.u32 %v1213, 7
          %v1215 = vsub.s32 2, %v1214
          %v1216 = vrot.slane %v955, %v1215
          %v1217 = vlaneseq
          %v1218 = vshrl.u32 %v1217, 7
          %v1219 = vsub.s32 3, %v1218
          %v1220 = vrot.slane %v955, %v1219
          %v1221 = vlaneseq
          %v1222 = vshrl.u32 %v1221, 7
          %v1223 = vsub.s32 4, %v1222
          %v1224 = vrot.slane %v955, %v1223
          %v1225 = vlaneseq
          %v1226 = vshrl.u32 %v1225, 7
          %v1227 = vsub.s32 5, %v1226
          %v1228 = vrot.slane %v955, %v1227
          %v1229 = vlaneseq
          %v1230 = vshrl.u32 %v1229, 7
          %v1231 = vsub.s32 6, %v1230
          %v1232 = vrot.slane %v955, %v1231
          %v1233 = vlaneseq
          %v1234 = vshrl.u32 %v1233, 7
          %v1235 = vsub.s32 7, %v1234
          %v1236 = vrot.slane %v955, %v1235
          %v1237 = vlaneseq
          %v1238 = vshrl.u32 %v1237, 7
          %v1239 = vsub.s32 0, %v1238
          %v1240 = vrot.slane %v956, %v1239
          %v1241 = vlaneseq
          %v1242 = vshrl.u32 %v1241, 7
          %v1243 = vsub.s32 1, %v1242
          %v1244 = vrot.slane %v956, %v1243
          %v1245 = vlaneseq
          %v1246 = vshrl.u32 %v1245, 7
          %v1247 = vsub.s32 2, %v1246
          %v1248 = vrot.slane %v956, %v1247
          %v1249 = vlaneseq
          %v1250 = vshrl.u32 %v1249, 7
          %v1251 = vsub.s32 3, %v1250
          %v1252 = vrot.slane %v956, %v1251
          %v1253 = vlaneseq
          %v1254 = vshrl.u32 %v1253, 7
          %v1255 = vsub.s32 4, %v1254
          %v1256 = vrot.slane %v956, %v1255
          %v1257 = vlaneseq
          %v1258 = vshrl.u32 %v1257, 7
          %v1259 = vsub.s32 5, %v1258
          %v1260 = vrot.slane %v956, %v1259
          %v1261 = vlaneseq
          %v1262 = vshrl.u32 %v1261, 7
          %v1263 = vsub.s32 6, %v1262
          %v1264 = vrot.slane %v956, %v1263
          %v1265 = vlaneseq
          %v1266 = vshrl.u32 %v1265, 7
          %v1267 = vsub.s32 7, %v1266
          %v1268 = vrot.slane %v956, %v1267
          %v1269 = vlaneseq
          %v1270 = vshrl.u32 %v1269, 7
          %v1271 = vsub.s32 0, %v1270
          %v1272 = vrot.slane %v957, %v1271
          %v1273 = vlaneseq
          %v1274 = vshrl.u32 %v1273, 7
          %v1275 = vsub.s32 1, %v1274
          %v1276 = vrot.slane %v957, %v1275
          %v1277 = vlaneseq
          %v1278 = vshrl.u32 %v1277, 7
          %v1279 = vsub.s32 2, %v1278
          %v1280 = vrot.slane %v957, %v1279
          %v1281 = vlaneseq
          %v1282 = vshrl.u32 %v1281, 7
          %v1283 = vsub.s32 3, %v1282
          %v1284 = vrot.slane %v957, %v1283
          %v1285 = vlaneseq
          %v1286 = vshrl.u32 %v1285, 7
          %v1287 = vsub.s32 4, %v1286
          %v1288 = vrot.slane %v957, %v1287
          %v1289 = vlaneseq
          %v1290 = vshrl.u32 %v1289, 7
          %v1291 = vsub.s32 5, %v1290
          %v1292 = vrot.slane %v957, %v1291
          %v1293 = vlaneseq
          %v1294 = vshrl.u32 %v1293, 7
          %v1295 = vsub.s32 6, %v1294
          %v1296 = vrot.slane %v957, %v1295
          %v1297 = vlaneseq
          %v1298 = vshrl.u32 %v1297, 7
          %v1299 = vsub.s32 7, %v1298
          %v1300 = vrot.slane %v957, %v1299
          %v1301 = vlaneseq
          %v1302 = vshrl.u32 %v1301, 7
          %v1303 = vsub.s32 0, %v1302
          %v1304 = vrot.slane %v958, %v1303
          %v1305 = vlaneseq
          %v1306 = vshrl.u32 %v1305, 7
          %v1307 = vsub.s32 1, %v1306
          %v1308 = vrot.slane %v958, %v1307
          %v1309 = vlaneseq
          %v1310 = vshrl.u32 %v1309, 7
          %v1311 = vsub.s32 2, %v1310
          %v1312 = vrot.slane %v958, %v1311
          %v1313 = vlaneseq
          %v1314 = vshrl.u32 %v1313, 7
          %v1315 = vsub.s32 3, %v1314
          %v1316 = vrot.slane %v958, %v1315
          %v1317 = vlaneseq
          %v1318 = vshrl.u32 %v1317, 7
          %v1319 = vsub.s32 4, %v1318
          %v1320 = vrot.slane %v958, %v1319
          %v1321 = vlaneseq
          %v1322 = vshrl.u32 %v1321, 7
          %v1323 = vsub.s32 5, %v1322
          %v1324 = vrot.slane %v958, %v1323
          %v1325 = vlaneseq
          %v1326 = vshrl.u32 %v1325, 7
          %v1327 = vsub.s32 6, %v1326
          %v1328 = vrot.slane %v958, %v1327
          %v1329 = vlaneseq
          %v1330 = vshrl.u32 %v1329, 7
          %v1331 = vsub.s32 7, %v1330
          %v1332 = vrot.slane %v958, %v1331
          %v1333 = vlaneseq
          %v1334 = vshrl.u32 %v1333, 7
          %v1335 = vsub.s32 0, %v1334
          %v1336 = vrot.slane %v959, %v1335
          %v1337 = vlaneseq
          %v1338 = vshrl.u32 %v1337, 7
          %v1339 = vsub.s32 1, %v1338
          %v1340 = vrot.slane %v959, %v1339
          %v1341 = vlaneseq
          %v1342 = vshrl.u32 %v1341, 7
          %v1343 = vsub.s32 2, %v1342
          %v1344 = vrot.slane %v959, %v1343
          %v1345 = vlaneseq
          %v1346 = vshrl.u32 %v1345, 7
          %v1347 = vsub.s32 3, %v1346
          %v1348 = vrot.slane %v959, %v1347
          %v1349 = vlaneseq
          %v1350 = vshrl.u32 %v1349, 7
          %v1351 = vsub.s32 4, %v1350
          %v1352 = vrot.slane %v959, %v1351
          %v1353 = vlaneseq
          %v1354 = vshrl.u32 %v1353, 7
          %v1355 = vsub.s32 5, %v1354
          %v1356 = vrot.slane %v959, %v1355
          %v1357 = vlaneseq
          %v1358 = vshrl.u32 %v1357, 7
          %v1359 = vsub.s32 6, %v1358
          %v1360 = vrot.slane %v959, %v1359
          %v1361 = vlaneseq
          %v1362 = vshrl.u32 %v1361, 7
          %v1363 = vsub.s32 7, %v1362
          %v1364 = vrot.slane %v959, %v1363
          %v1365 = vlaneseq
          %v1366 = vshrl.u32 %v1365, 7
          %v1367 = vsub.s32 0, %v1366
          %v1368 = vrot.slane %v960, %v1367
          %v1369 = vlaneseq
          %v1370 = vshrl.u32 %v1369, 7
          %v1371 = vsub.s32 1, %v1370
          %v1372 = vrot.slane %v960, %v1371
          %v1373 = vlaneseq
          %v1374 = vshrl.u32 %v1373, 7
          %v1375 = vsub.s32 2, %v1374
          %v1376 = vrot.slane %v960, %v1375
          %v1377 = vlaneseq
          %v1378 = vshrl.u32 %v1377, 7
          %v1379 = vsub.s32 3, %v1378
          %v1380 = vrot.slane %v960, %v1379
          %v1381 = vlaneseq
          %v1382 = vshrl.u32 %v1381, 7
          %v1383 = vsub.s32 4, %v1382
          %v1384 = vrot.slane %v960, %v1383
          %v1385 = vlaneseq
          %v1386 = vshrl.u32 %v1385, 7
          %v1387 = vsub.s32 5, %v1386
          %v1388 = vrot.slane %v960, %v1387
          %v1389 = vlaneseq
          %v1390 = vshrl.u32 %v1389, 7
          %v1391 = vsub.s32 6, %v1390
          %v1392 = vrot.slane %v960, %v1391
          %v1393 = vlaneseq
          %v1394 = vshrl.u32 %v1393, 7
          %v1395 = vsub.s32 7, %v1394
          %v1396 = vrot.slane %v960, %v1395
          %v1397 = vlaneseq
          %v1398 = vshrl.u32 %v1397, 7
          %v1399 = vsub.s32 0, %v1398
          %v1400 = vrot.slane %v961, %v1399
          %v1401 = vlaneseq
          %v1402 = vshrl.u32 %v1401, 7
          %v1403 = vsub.s32 1, %v1402
          %v1404 = vrot.slane %v961, %v1403
          %v1405 = vlaneseq
          %v1406 = vshrl.u32 %v1405, 7
          %v1407 = vsub.s32 2, %v1406
          %v1408 = vrot.slane %v961, %v1407
          %v1409 = vlaneseq
          %v1410 = vshrl.u32 %v1409, 7
          %v1411 = vsub.s32 3, %v1410
          %v1412 = vrot.slane %v961, %v1411
          %v1413 = vlaneseq
          %v1414 = vshrl.u32 %v1413, 7
          %v1415 = vsub.s32 4, %v1414
          %v1416 = vrot.slane %v961, %v1415
          %v1417 = vlaneseq
          %v1418 = vshrl.u32 %v1417, 7
          %v1419 = vsub.s32 5, %v1418
          %v1420 = vrot.slane %v961, %v1419
          %v1421 = vlaneseq
          %v1422 = vshrl.u32 %v1421, 7
          %v1423 = vsub.s32 6, %v1422
          %v1424 = vrot.slane %v961, %v1423
          %v1425 = vlaneseq
          %v1426 = vshrl.u32 %v1425, 7
          %v1427 = vsub.s32 7, %v1426
          %v1428 = vrot.slane %v961, %v1427
          %v1429 = vlaneseq
          %v1430 = vshrl.u32 %v1429, 7
          %v1431 = vsub.s32 0, %v1430
          %v1432 = vrot.slane %v962, %v1431
          %v1433 = vlaneseq
          %v1434 = vshrl.u32 %v1433, 7
          %v1435 = vsub.s32 1, %v1434
          %v1436 = vrot.slane %v962, %v1435
          %v1437 = vlaneseq
          %v1438 = vshrl.u32 %v1437, 7
          %v1439 = vsub.s32 2, %v1438
          %v1440 = vrot.slane %v962, %v1439
          %v1441 = vlaneseq
          %v1442 = vshrl.u32 %v1441, 7
          %v1443 = vsub.s32 3, %v1442
          %v1444 = vrot.slane %v962, %v1443
          %v1445 = vlaneseq
          %v1446 = vshrl.u32 %v1445, 7
          %v1447 = vsub.s32 4, %v1446
          %v1448 = vrot.slane %v962, %v1447
          %v1449 = vlaneseq
          %v1450 = vshrl.u32 %v1449, 7
          %v1451 = vsub.s32 5, %v1450
          %v1452 = vrot.slane %v962, %v1451
          %v1453 = vlaneseq
          %v1454 = vshrl.u32 %v1453, 7
          %v1455 = vsub.s32 6, %v1454
          %v1456 = vrot.slane %v962, %v1455
          %v1457 = vlaneseq
          %v1458 = vshrl.u32 %v1457, 7
          %v1459 = vsub.s32 7, %v1458
          %v1460 = vrot.slane %v962, %v1459
          %v1461 = vlaneseq
          %v1462 = vshrl.u32 %v1461, 7
          %v1463 = vsub.s32 0, %v1462
          %v1464 = vrot.slane %v963, %v1463
          %v1465 = vlaneseq
          %v1466 = vshrl.u32 %v1465, 7
          %v1467 = vsub.s32 1, %v1466
          %v1468 = vrot.slane %v963, %v1467
          %v1469 = vlaneseq
          %v1470 = vshrl.u32 %v1469, 7
          %v1471 = vsub.s32 2, %v1470
          %v1472 = vrot.slane %v963, %v1471
          %v1473 = vlaneseq
          %v1474 = vshrl.u32 %v1473, 7
          %v1475 = vsub.s32 3, %v1474
          %v1476 = vrot.slane %v963, %v1475
          %v1477 = vlaneseq
          %v1478 = vshrl.u32 %v1477, 7
          %v1479 = vsub.s32 4, %v1478
          %v1480 = vrot.slane %v963, %v1479
          %v1481 = vlaneseq
          %v1482 = vshrl.u32 %v1481, 7
          %v1483 = vsub.s32 5, %v1482
          %v1484 = vrot.slane %v963, %v1483
          %v1485 = vlaneseq
          %v1486 = vshrl.u32 %v1485, 7
          %v1487 = vsub.s32 6, %v1486
          %v1488 = vrot.slane %v963, %v1487
          %v1489 = vlaneseq
          %v1490 = vshrl.u32 %v1489, 7
          %v1491 = vsub.s32 7, %v1490
          %v1492 = vrot.slane %v963, %v1491
          %v1493 = vlaneseq
          %v1494 = vshrl.u32 %v1493, 7
          %v1495 = vsub.s32 0, %v1494
          %v1496 = vrot.slane %v964, %v1495
          %v1497 = vlaneseq
          %v1498 = vshrl.u32 %v1497, 7
          %v1499 = vsub.s32 1, %v1498
          %v1500 = vrot.slane %v964, %v1499
          %v1501 = vlaneseq
          %v1502 = vshrl.u32 %v1501, 7
          %v1503 = vsub.s32 2, %v1502
          %v1504 = vrot.slane %v964, %v1503
          %v1505 = vlaneseq
          %v1506 = vshrl.u32 %v1505, 7
          %v1507 = vsub.s32 3, %v1506
          %v1508 = vrot.slane %v964, %v1507
          %v1509 = vlaneseq
          %v1510 = vshrl.u32 %v1509, 7
          %v1511 = vsub.s32 4, %v1510
          %v1512 = vrot.slane %v964, %v1511
          %v1513 = vlaneseq
          %v1514 = vshrl.u32 %v1513, 7
          %v1515 = vsub.s32 5, %v1514
          %v1516 = vrot.slane %v964, %v1515
          %v1517 = vlaneseq
          %v1518 = vshrl.u32 %v1517, 7
          %v1519 = vsub.s32 6, %v1518
          %v1520 = vrot.slane %v964, %v1519
          %v1521 = vlaneseq
          %v1522 = vshrl.u32 %v1521, 7
          %v1523 = vsub.s32 7, %v1522
          %v1524 = vrot.slane %v964, %v1523
          %v1525 = vlaneseq
          %v1526 = vshrl.u32 %v1525, 7
          %v1527 = vsub.s32 0, %v1526
          %v1528 = vrot.slane %v965, %v1527
          %v1529 = vlaneseq
          %v1530 = vshrl.u32 %v1529, 7
          %v1531 = vsub.s32 1, %v1530
          %v1532 = vrot.slane %v965, %v1531
          %v1533 = vlaneseq
          %v1534 = vshrl.u32 %v1533, 7
          %v1535 = vsub.s32 2, %v1534
          %v1536 = vrot.slane %v965, %v1535
          %v1537 = vlaneseq
          %v1538 = vshrl.u32 %v1537, 7
          %v1539 = vsub.s32 3, %v1538
          %v1540 = vrot.slane %v965, %v1539
          %v1541 = vlaneseq
          %v1542 = vshrl.u32 %v1541, 7
          %v1543 = vsub.s32 4, %v1542
          %v1544 = vrot.slane %v965, %v1543
          %v1545 = vlaneseq
          %v1546 = vshrl.u32 %v1545, 7
          %v1547 = vsub.s32 5, %v1546
          %v1548 = vrot.slane %v965, %v1547
          %v1549 = vlaneseq
          %v1550 = vshrl.u32 %v1549, 7
          %v1551 = vsub.s32 6, %v1550
          %v1552 = vrot.slane %v965, %v1551
          %v1553 = vlaneseq
          %v1554 = vshrl.u32 %v1553, 7
          %v1555 = vsub.s32 7, %v1554
          %v1556 = vrot.slane %v965, %v1555
          %v1557 = vlaneseq
          %v1558 = vshrl.u32 %v1557, 7
          %v1559 = vsub.s32 0, %v1558
          %v1560 = vrot.slane %v966, %v1559
          %v1561 = vlaneseq
          %v1562 = vshrl.u32 %v1561, 7
          %v1563 = vsub.s32 1, %v1562
          %v1564 = vrot.slane %v966, %v1563
          %v1565 = vlaneseq
          %v1566 = vshrl.u32 %v1565, 7
          %v1567 = vsub.s32 2, %v1566
          %v1568 = vrot.slane %v966, %v1567
          %v1569 = vlaneseq
          %v1570 = vshrl.u32 %v1569, 7
          %v1571 = vsub.s32 3, %v1570
          %v1572 = vrot.slane %v966, %v1571
          %v1573 = vlaneseq
          %v1574 = vshrl.u32 %v1573, 7
          %v1575 = vsub.s32 4, %v1574
          %v1576 = vrot.slane %v966, %v1575
          %v1577 = vlaneseq
          %v1578 = vshrl.u32 %v1577, 7
          %v1579 = vsub.s32 5, %v1578
          %v1580 = vrot.slane %v966, %v1579
          %v1581 = vlaneseq
          %v1582 = vshrl.u32 %v1581, 7
          %v1583 = vsub.s32 6, %v1582
          %v1584 = vrot.slane %v966, %v1583
          %v1585 = vlaneseq
          %v1586 = vshrl.u32 %v1585, 7
          %v1587 = vsub.s32 7, %v1586
          %v1588 = vrot.slane %v966, %v1587
          %v1589 = vlaneseq
          %v1590 = vshrl.u32 %v1589, 7
          %v1591 = vsub.s32 0, %v1590
          %v1592 = vrot.slane %v967, %v1591
          %v1593 = vlaneseq
          %v1594 = vshrl.u32 %v1593, 7
          %v1595 = vsub.s32 1, %v1594
          %v1596 = vrot.slane %v967, %v1595
          %v1597 = vlaneseq
          %v1598 = vshrl.u32 %v1597, 7
          %v1599 = vsub.s32 2, %v1598
          %v1600 = vrot.slane %v967, %v1599
          %v1601 = vlaneseq
          %v1602 = vshrl.u32 %v1601, 7
          %v1603 = vsub.s32 3, %v1602
          %v1604 = vrot.slane %v967, %v1603
          %v1605 = vlaneseq
          %v1606 = vshrl.u32 %v1605, 7
          %v1607 = vsub.s32 4, %v1606
          %v1608 = vrot.slane %v967, %v1607
          %v1609 = vlaneseq
          %v1610 = vshrl.u32 %v1609, 7
          %v1611 = vsub.s32 5, %v1610
          %v1612 = vrot.slane %v967, %v1611
          %v1613 = vlaneseq
          %v1614 = vshrl.u32 %v1613, 7
          %v1615 = vsub.s32 6, %v1614
          %v1616 = vrot.slane %v967, %v1615
          %v1617 = vlaneseq
          %v1618 = vshrl.u32 %v1617, 7
          %v1619 = vsub.s32 7, %v1618
          %v1620 = vrot.slane %v967, %v1619
          %v1621 = vlaneseq
          %v1622 = vshrl.u32 %v1621, 7
          %v1623 = vsub.s32 0, %v1622
          %v1624 = vrot.slane %v968, %v1623
          %v1625 = vlaneseq
          %v1626 = vshrl.u32 %v1625, 7
          %v1627 = vsub.s32 1, %v1626
          %v1628 = vrot.slane %v968, %v1627
          %v1629 = vlaneseq
          %v1630 = vshrl.u32 %v1629, 7
          %v1631 = vsub.s32 2, %v1630
          %v1632 = vrot.slane %v968, %v1631
          %v1633 = vlaneseq
          %v1634 = vshrl.u32 %v1633, 7
          %v1635 = vsub.s32 3, %v1634
          %v1636 = vrot.slane %v968, %v1635
          %v1637 = vlaneseq
          %v1638 = vshrl.u32 %v1637, 7
          %v1639 = vsub.s32 4, %v1638
          %v1640 = vrot.slane %v968, %v1639
          %v1641 = vlaneseq
          %v1642 = vshrl.u32 %v1641, 7
          %v1643 = vsub.s32 5, %v1642
          %v1644 = vrot.slane %v968, %v1643
          %v1645 = vlaneseq
          %v1646 = vshrl.u32 %v1645, 7
          %v1647 = vsub.s32 6, %v1646
          %v1648 = vrot.slane %v968, %v1647
          %v1649 = vlaneseq
          %v1650 = vshrl.u32 %v1649, 7
          %v1651 = vsub.s32 7, %v1650
          %v1652 = vrot.slane %v968, %v1651
          %v1653 = vlaneseq
          %v1654 = vshrl.u32 %v1653, 7
          %v1655 = vsub.s32 0, %v1654
          %v1656 = vrot.slane %v969, %v1655
          %v1657 = vlaneseq
          %v1658 = vshrl.u32 %v1657, 7
          %v1659 = vsub.s32 1, %v1658
          %v1660 = vrot.slane %v969, %v1659
          %v1661 = vlaneseq
          %v1662 = vshrl.u32 %v1661, 7
          %v1663 = vsub.s32 2, %v1662
          %v1664 = vrot.slane %v969, %v1663
          %v1665 = vlaneseq
          %v1666 = vshrl.u32 %v1665, 7
          %v1667 = vsub.s32 3, %v1666
          %v1668 = vrot.slane %v969, %v1667
          %v1669 = vlaneseq
          %v1670 = vshrl.u32 %v1669, 7
          %v1671 = vsub.s32 4, %v1670
          %v1672 = vrot.slane %v969, %v1671
          %v1673 = vlaneseq
          %v1674 = vshrl.u32 %v1673, 7
          %v1675 = vsub.s32 5, %v1674
          %v1676 = vrot.slane %v969, %v1675
          %v1677 = vlaneseq
          %v1678 = vshrl.u32 %v1677, 7
          %v1679 = vsub.s32 6, %v1678
          %v1680 = vrot.slane %v969, %v1679
          %v1681 = vlaneseq
          %v1682 = vshrl.u32 %v1681, 7
          %v1683 = vsub.s32 7, %v1682
          %v1684 = vrot.slane %v969, %v1683
          %v1685 = vlaneseq
          %v1686 = vshrl.u32 %v1685, 7
          %v1687 = vsub.s32 0, %v1686
          %v1688 = vrot.slane %v970, %v1687
          %v1689 = vlaneseq
          %v1690 = vshrl.u32 %v1689, 7
          %v1691 = vsub.s32 1, %v1690
          %v1692 = vrot.slane %v970, %v1691
          %v1693 = vlaneseq
          %v1694 = vshrl.u32 %v1693, 7
          %v1695 = vsub.s32 2, %v1694
          %v1696 = vrot.slane %v970, %v1695
          %v1697 = vlaneseq
          %v1698 = vshrl.u32 %v1697, 7
          %v1699 = vsub.s32 3, %v1698
          %v1700 = vrot.slane %v970, %v1699
          %v1701 = vlaneseq
          %v1702 = vshrl.u32 %v1701, 7
          %v1703 = vsub.s32 4, %v1702
          %v1704 = vrot.slane %v970, %v1703
          %v1705 = vlaneseq
          %v1706 = vshrl.u32 %v1705, 7
          %v1707 = vsub.s32 5, %v1706
          %v1708 = vrot.slane %v970, %v1707
          %v1709 = vlaneseq
          %v1710 = vshrl.u32 %v1709, 7
          %v1711 = vsub.s32 6, %v1710
          %v1712 = vrot.slane %v970, %v1711
          %v1713 = vlaneseq
          %v1714 = vshrl.u32 %v1713, 7
          %v1715 = vsub.s32 7, %v1714
          %v1716 = vrot.slane %v970, %v1715
          %v1717 = vlaneseq
          %v1718 = vshrl.u32 %v1717, 7
          %v1719 = vsub.s32 0, %v1718
          %v1720 = vrot.slane %v971, %v1719
          %v1721 = vlaneseq
          %v1722 = vshrl.u32 %v1721, 7
          %v1723 = vsub.s32 1, %v1722
          %v1724 = vrot.slane %v971, %v1723
          %v1725 = vlaneseq
          %v1726 = vshrl.u32 %v1725, 7
          %v1727 = vsub.s32 2, %v1726
          %v1728 = vrot.slane %v971, %v1727
          %v1729 = vlaneseq
          %v1730 = vshrl.u32 %v1729, 7
          %v1731 = vsub.s32 3, %v1730
          %v1732 = vrot.slane %v971, %v1731
          %v1733 = vlaneseq
          %v1734 = vshrl.u32 %v1733, 7
          %v1735 = vsub.s32 4, %v1734
          %v1736 = vrot.slane %v971, %v1735
          %v1737 = vlaneseq
          %v1738 = vshrl.u32 %v1737, 7
          %v1739 = vsub.s32 5, %v1738
          %v1740 = vrot.slane %v971, %v1739
          %v1741 = vlaneseq
          %v1742 = vshrl.u32 %v1741, 7
          %v1743 = vsub.s32 6, %v1742
          %v1744 = vrot.slane %v971, %v1743
          %v1745 = vlaneseq
          %v1746 = vshrl.u32 %v1745, 7
          %v1747 = vsub.s32 7, %v1746
          %v1748 = vrot.slane %v971, %v1747
          %v1749 = vlaneseq
          %v1750 = vshrl.u32 %v1749, 7
          %v1751 = vsub.s32 0, %v1750
          %v1752 = vrot.slane %v972, %v1751
          %v1753 = vlaneseq
          %v1754 = vshrl.u32 %v1753, 7
          %v1755 = vsub.s32 1, %v1754
          %v1756 = vrot.slane %v972, %v1755
          %v1757 = vlaneseq
          %v1758 = vshrl.u32 %v1757, 7
          %v1759 = vsub.s32 2, %v1758
          %v1760 = vrot.slane %v972, %v1759
          %v1761 = vlaneseq
          %v1762 = vshrl.u32 %v1761, 7
          %v1763 = vsub.s32 3, %v1762
          %v1764 = vrot.slane %v972, %v1763
          %v1765 = vlaneseq
          %v1766 = vshrl.u32 %v1765, 7
          %v1767 = vsub.s32 4, %v1766
          %v1768 = vrot.slane %v972, %v1767
          %v1769 = vlaneseq
          %v1770 = vshrl.u32 %v1769, 7
          %v1771 = vsub.s32 5, %v1770
          %v1772 = vrot.slane %v972, %v1771
          %v1773 = vlaneseq
          %v1774 = vshrl.u32 %v1773, 7
          %v1775 = vsub.s32 6, %v1774
          %v1776 = vrot.slane %v972, %v1775
          %v1777 = vlaneseq
          %v1778 = vshrl.u32 %v1777, 7
          %v1779 = vsub.s32 7, %v1778
          %v1780 = vrot.slane %v972, %v1779
          %v1781 = vlaneseq
          %v1782 = vshrl.u32 %v1781, 7
          %v1783 = vsub.s32 0, %v1782
          %v1784 = vrot.slane %v973, %v1783
          %v1785 = vlaneseq
          %v1786 = vshrl.u32 %v1785, 7
          %v1787 = vsub.s32 1, %v1786
          %v1788 = vrot.slane %v973, %v1787
          %v1789 = vlaneseq
          %v1790 = vshrl.u32 %v1789, 7
          %v1791 = vsub.s32 2, %v1790
          %v1792 = vrot.slane %v973, %v1791
          %v1793 = vlaneseq
          %v1794 = vshrl.u32 %v1793, 7
          %v1795 = vsub.s32 3, %v1794
          %v1796 = vrot.slane %v973, %v1795
          %v1797 = vlaneseq
          %v1798 = vshrl.u32 %v1797, 7
          %v1799 = vsub.s32 4, %v1798
          %v1800 = vrot.slane %v973, %v1799
          %v1801 = vlaneseq
          %v1802 = vshrl.u32 %v1801, 7
          %v1803 = vsub.s32 5, %v1802
          %v1804 = vrot.slane %v973, %v1803
          %v1805 = vlaneseq
          %v1806 = vshrl.u32 %v1805, 7
          %v1807 = vsub.s32 6, %v1806
          %v1808 = vrot.slane %v973, %v1807
          %v1809 = vlaneseq
          %v1810 = vshrl.u32 %v1809, 7
          %v1811 = vsub.s32 7, %v1810
          %v1812 = vrot.slane %v973, %v1811
          %v1813 = vlaneseq
          %v1814 = vshrl.u32 %v1813, 7
          %v1815 = vsub.s32 0, %v1814
          %v1816 = vrot.slane %v974, %v1815
          %v1817 = vlaneseq
          %v1818 = vshrl.u32 %v1817, 7
          %v1819 = vsub.s32 1, %v1818
          %v1820 = vrot.slane %v974, %v1819
          %v1821 = vlaneseq
          %v1822 = vshrl.u32 %v1821, 7
          %v1823 = vsub.s32 2, %v1822
          %v1824 = vrot.slane %v974, %v1823
          %v1825 = vlaneseq
          %v1826 = vshrl.u32 %v1825, 7
          %v1827 = vsub.s32 3, %v1826
          %v1828 = vrot.slane %v974, %v1827
          %v1829 = vlaneseq
          %v1830 = vshrl.u32 %v1829, 7
          %v1831 = vsub.s32 4, %v1830
          %v1832 = vrot.slane %v974, %v1831
          %v1833 = vlaneseq
          %v1834 = vshrl.u32 %v1833, 7
          %v1835 = vsub.s32 5, %v1834
          %v1836 = vrot.slane %v974, %v1835
          %v1837 = vlaneseq
          %v1838 = vshrl.u32 %v1837, 7
          %v1839 = vsub.s32 6, %v1838
          %v1840 = vrot.slane %v974, %v1839
          %v1841 = vlaneseq
          %v1842 = vshrl.u32 %v1841, 7
          %v1843 = vsub.s32 7, %v1842
          %v1844 = vrot.slane %v974, %v1843
          %v1845 = vlaneseq
          %v1846 = vshrl.u32 %v1845, 7
          %v1847 = vsub.s32 0, %v1846
          %v1848 = vrot.slane %v975, %v1847
          %v1849 = vlaneseq
          %v1850 = vshrl.u32 %v1849, 7
          %v1851 = vsub.s32 1, %v1850
          %v1852 = vrot.slane %v975, %v1851
          %v1853 = vlaneseq
          %v1854 = vshrl.u32 %v1853, 7
          %v1855 = vsub.s32 2, %v1854
          %v1856 = vrot.slane %v975, %v1855
          %v1857 = vlaneseq
          %v1858 = vshrl.u32 %v1857, 7
          %v1859 = vsub.s32 3, %v1858
          %v1860 = vrot.slane %v975, %v1859
          %v1861 = vlaneseq
          %v1862 = vshrl.u32 %v1861, 7
          %v1863 = vsub.s32 4, %v1862
          %v1864 = vrot.slane %v975, %v1863
          %v1865 = vlaneseq
          %v1866 = vshrl.u32 %v1865, 7
          %v1867 = vsub.s32 5, %v1866
          %v1868 = vrot.slane %v975, %v1867
          %v1869 = vlaneseq
          %v1870 = vshrl.u32 %v1869, 7
          %v1871 = vsub.s32 6, %v1870
          %v1872 = vrot.slane %v975, %v1871
          %v1873 = vlaneseq
          %v1874 = vshrl.u32 %v1873, 7
          %v1875 = vsub.s32 7, %v1874
          %v1876 = vrot.slane %v975, %v1875
          %v1877 = vlaneseq
          %v1878 = vshrl.u32 %v1877, 7
          %v1879 = vsub.s32 0, %v1878
          %v1880 = vrot.slane %v976, %v1879
          %v1881 = vlaneseq
          %v1882 = vshrl.u32 %v1881, 7
          %v1883 = vsub.s32 1, %v1882
          %v1884 = vrot.slane %v976, %v1883
          %v1885 = vlaneseq
          %v1886 = vshrl.u32 %v1885, 7
          %v1887 = vsub.s32 2, %v1886
          %v1888 = vrot.slane %v976, %v1887
          %v1889 = vlaneseq
          %v1890 = vshrl.u32 %v1889, 7
          %v1891 = vsub.s32 3, %v1890
          %v1892 = vrot.slane %v976, %v1891
          %v1893 = vlaneseq
          %v1894 = vshrl.u32 %v1893, 7
          %v1895 = vsub.s32 4, %v1894
          %v1896 = vrot.slane %v976, %v1895
          %v1897 = vlaneseq
          %v1898 = vshrl.u32 %v1897, 7
          %v1899 = vsub.s32 5, %v1898
          %v1900 = vrot.slane %v976, %v1899
          %v1901 = vlaneseq
          %v1902 = vshrl.u32 %v1901, 7
          %v1903 = vsub.s32 6, %v1902
          %v1904 = vrot.slane %v976, %v1903
          %v1905 = vlaneseq
          %v1906 = vshrl.u32 %v1905, 7
          %v1907 = vsub.s32 7, %v1906
          %v1908 = vrot.slane %v976, %v1907
          %v1909 = vlaneseq
          %v1910 = vshrl.u32 %v1909, 7
          %v1911 = vsub.s32 0, %v1910
          %v1912 = vrot.slane %v977, %v1911
          %v1913 = vlaneseq
          %v1914 = vshrl.u32 %v1913, 7
          %v1915 = vsub.s32 1, %v1914
          %v1916 = vrot.slane %v977, %v1915
          %v1917 = vlaneseq
          %v1918 = vshrl.u32 %v1917, 7
          %v1919 = vsub.s32 2, %v1918
          %v1920 = vrot.slane %v977, %v1919
          %v1921 = vlaneseq
          %v1922 = vshrl.u32 %v1921, 7
          %v1923 = vsub.s32 3, %v1922
          %v1924 = vrot.slane %v977, %v1923
          %v1925 = vlaneseq
          %v1926 = vshrl.u32 %v1925, 7
          %v1927 = vsub.s32 4, %v1926
          %v1928 = vrot.slane %v977, %v1927
          %v1929 = vlaneseq
          %v1930 = vshrl.u32 %v1929, 7
          %v1931 = vsub.s32 5, %v1930
          %v1932 = vrot.slane %v977, %v1931
          %v1933 = vlaneseq
          %v1934 = vshrl.u32 %v1933, 7
          %v1935 = vsub.s32 6, %v1934
          %v1936 = vrot.slane %v977, %v1935
          %v1937 = vlaneseq
          %v1938 = vshrl.u32 %v1937, 7
          %v1939 = vsub.s32 7, %v1938
          %v1940 = vrot.slane %v977, %v1939
          %v1941 = vlaneseq
          %v1942 = vshrl.u32 %v1941, 7
          %v1943 = vsub.s32 0, %v1942
          %v1944 = vrot.slane %v978, %v1943
          %v1945 = vlaneseq
          %v1946 = vshrl.u32 %v1945, 7
          %v1947 = vsub.s32 1, %v1946
          %v1948 = vrot.slane %v978, %v1947
          %v1949 = vlaneseq
          %v1950 = vshrl.u32 %v1949, 7
          %v1951 = vsub.s32 2, %v1950
          %v1952 = vrot.slane %v978, %v1951
          %v1953 = vlaneseq
          %v1954 = vshrl.u32 %v1953, 7
          %v1955 = vsub.s32 3, %v1954
          %v1956 = vrot.slane %v978, %v1955
          %v1957 = vlaneseq
          %v1958 = vshrl.u32 %v1957, 7
          %v1959 = vsub.s32 4, %v1958
          %v1960 = vrot.slane %v978, %v1959
          %v1961 = vlaneseq
          %v1962 = vshrl.u32 %v1961, 7
          %v1963 = vsub.s32 5, %v1962
          %v1964 = vrot.slane %v978, %v1963
          %v1965 = vlaneseq
          %v1966 = vshrl.u32 %v1965, 7
          %v1967 = vsub.s32 6, %v1966
          %v1968 = vrot.slane %v978, %v1967
          %v1969 = vlaneseq
          %v1970 = vshrl.u32 %v1969, 7
          %v1971 = vsub.s32 7, %v1970
          %v1972 = vrot.slane %v978, %v1971
          %v1973 = vlaneseq
          %v1974 = vshrl.u32 %v1973, 7
          %v1975 = vsub.s32 0, %v1974
          %v1976 = vrot.slane %v979, %v1975
          %v1977 = vlaneseq
          %v1978 = vshrl.u32 %v1977, 7
          %v1979 = vsub.s32 1, %v1978
          %v1980 = vrot.slane %v979, %v1979
          %v1981 = vlaneseq
          %v1982 = vshrl.u32 %v1981, 7
          %v1983 = vsub.s32 2, %v1982
          %v1984 = vrot.slane %v979, %v1983
          %v1985 = vlaneseq
          %v1986 = vshrl.u32 %v1985, 7
          %v1987 = vsub.s32 3, %v1986
          %v1988 = vrot.slane %v979, %v1987
          %v1989 = vlaneseq
          %v1990 = vshrl.u32 %v1989, 7
          %v1991 = vsub.s32 4, %v1990
          %v1992 = vrot.slane %v979, %v1991
          %v1993 = vlaneseq
          %v1994 = vshrl.u32 %v1993, 7
          %v1995 = vsub.s32 5, %v1994
          %v1996 = vrot.slane %v979, %v1995
          %v1997 = vlaneseq
          %v1998 = vshrl.u32 %v1997, 7
          %v1999 = vsub.s32 6, %v1998
          %v2000 = vrot.slane %v979, %v1999
          %v2001 = vlaneseq
          %v2002 = vshrl.u32 %v2001, 7
          %v2003 = vsub.s32 7, %v2002
          %v2004 = vrot.slane %v979, %v2003
          %v2005 = vlaneseq
          %v2006 = vshrl.u32 %v2005, 7
          %v2007 = vsub.s32 0, %v2006
          %v2008 = vrot.slane %v980, %v2007
          %v2009 = vlaneseq
          %v2010 = vshrl.u32 %v2009, 7
          %v2011 = vsub.s32 1, %v2010
          %v2012 = vrot.slane %v980, %v2011
          %v2013 = vlaneseq
          %v2014 = vshrl.u32 %v2013, 7
          %v2015 = vsub.s32 2, %v2014
          %v2016 = vrot.slane %v980, %v2015
          %v2017 = vlaneseq
          %v2018 = vshrl.u32 %v2017, 7
          %v2019 = vsub.s32 3, %v2018
          %v2020 = vrot.slane %v980, %v2019
          %v2021 = vlaneseq
          %v2022 = vshrl.u32 %v2021, 7
          %v2023 = vsub.s32 4, %v2022
          %v2024 = vrot.slane %v980, %v2023
          %v2025 = vlaneseq
          %v2026 = vshrl.u32 %v2025, 7
          %v2027 = vsub.s32 5, %v2026
          %v2028 = vrot.slane %v980, %v2027
          %v2029 = vlaneseq
          %v2030 = vshrl.u32 %v2029, 7
          %v2031 = vsub.s32 6, %v2030
          %v2032 = vrot.slane %v980, %v2031
          %v2033 = vlaneseq
          %v2034 = vshrl.u32 %v2033, 7
          %v2035 = vsub.s32 7, %v2034
          %v2036 = vrot.slane %v980, %v2035
          %v2037 = vlaneseq
          %v2038 = vshrl.u32 %v2037, 7
          %v2039 = vsub.s32 0, %v2038
          %v2040 = vrot.slane %v981, %v2039
          %v2041 = vlaneseq
          %v2042 = vshrl.u32 %v2041, 7
          %v2043 = vsub.s32 1, %v2042
          %v2044 = vrot.slane %v981, %v2043
          %v2045 = vlaneseq
          %v2046 = vshrl.u32 %v2045, 7
          %v2047 = vsub.s32 2, %v2046
          %v2048 = vrot.slane %v981, %v2047
          %v2049 = vlaneseq
          %v2050 = vshrl.u32 %v2049, 7
          %v2051 = vsub.s32 3, %v2050
          %v2052 = vrot.slane %v981, %v2051
          %v2053 = vlaneseq
          %v2054 = vshrl.u32 %v2053, 7
          %v2055 = vsub.s32 4, %v2054
          %v2056 = vrot.slane %v981, %v2055
          %v2057 = vlaneseq
          %v2058 = vshrl.u32 %v2057, 7
          %v2059 = vsub.s32 5, %v2058
          %v2060 = vrot.slane %v981, %v2059
          %v2061 = vlaneseq
          %v2062 = vshrl.u32 %v2061, 7
          %v2063 = vsub.s32 6, %v2062
          %v2064 = vrot.slane %v981, %v2063
          %v2065 = vlaneseq
          %v2066 = vshrl.u32 %v2065, 7
          %v2067 = vsub.s32 7, %v2066
          %v2068 = vrot.slane %v981, %v2067
          %v2069 = vlaneseq
          %v2070 = vshrl.u32 %v2069, 7
          %v2071 = vsub.s32 0, %v2070
          %v2072 = vrot.slane %v982, %v2071
          %v2073 = vlaneseq
          %v2074 = vshrl.u32 %v2073, 7
          %v2075 = vsub.s32 1, %v2074
          %v2076 = vrot.slane %v982, %v2075
          %v2077 = vlaneseq
          %v2078 = vshrl.u32 %v2077, 7
          %v2079 = vsub.s32 2, %v2078
          %v2080 = vrot.slane %v982, %v2079
          %v2081 = vlaneseq
          %v2082 = vshrl.u32 %v2081, 7
          %v2083 = vsub.s32 3, %v2082
          %v2084 = vrot.slane %v982, %v2083
          %v2085 = vlaneseq
          %v2086 = vshrl.u32 %v2085, 7
          %v2087 = vsub.s32 4, %v2086
          %v2088 = vrot.slane %v982, %v2087
          %v2089 = vlaneseq
          %v2090 = vshrl.u32 %v2089, 7
          %v2091 = vsub.s32 5, %v2090
          %v2092 = vrot.slane %v982, %v2091
          %v2093 = vlaneseq
          %v2094 = vshrl.u32 %v2093, 7
          %v2095 = vsub.s32 6, %v2094
          %v2096 = vrot.slane %v982, %v2095
          %v2097 = vlaneseq
          %v2098 = vshrl.u32 %v2097, 7
          %v2099 = vsub.s32 7, %v2098
          %v2100 = vrot.slane %v982, %v2099
          %v2101 = vlaneseq
          %v2102 = vshrl.u32 %v2101, 7
          %v2103 = vsub.s32 0, %v2102
          %v2104 = vrot.slane %v983, %v2103
          %v2105 = vlaneseq
          %v2106 = vshrl.u32 %v2105, 7
          %v2107 = vsub.s32 1, %v2106
          %v2108 = vrot.slane %v983, %v2107
          %v2109 = vlaneseq
          %v2110 = vshrl.u32 %v2109, 7
          %v2111 = vsub.s32 2, %v2110
          %v2112 = vrot.slane %v983, %v2111
          %v2113 = vlaneseq
          %v2114 = vshrl.u32 %v2113, 7
          %v2115 = vsub.s32 3, %v2114
          %v2116 = vrot.slane %v983, %v2115
          %v2117 = vlaneseq
          %v2118 = vshrl.u32 %v2117, 7
          %v2119 = vsub.s32 4, %v2118
          %v2120 = vrot.slane %v983, %v2119
          %v2121 = vlaneseq
          %v2122 = vshrl.u32 %v2121, 7
          %v2123 = vsub.s32 5, %v2122
          %v2124 = vrot.slane %v983, %v2123
          %v2125 = vlaneseq
          %v2126 = vshrl.u32 %v2125, 7
          %v2127 = vsub.s32 6, %v2126
          %v2128 = vrot.slane %v983, %v2127
          %v2129 = vlaneseq
          %v2130 = vshrl.u32 %v2129, 7
          %v2131 = vsub.s32 7, %v2130
          %v2132 = vrot.slane %v983, %v2131
          %v2133 = vlaneseq
          %v2134 = vshrl.u32 %v2133, 7
          %v2135 = vsub.s32 0, %v2134
          %v2136 = vrot.slane %v984, %v2135
          %v2137 = vlaneseq
          %v2138 = vshrl.u32 %v2137, 7
          %v2139 = vsub.s32 1, %v2138
          %v2140 = vrot.slane %v984, %v2139
          %v2141 = vlaneseq
          %v2142 = vshrl.u32 %v2141, 7
          %v2143 = vsub.s32 2, %v2142
          %v2144 = vrot.slane %v984, %v2143
          %v2145 = vlaneseq
          %v2146 = vshrl.u32 %v2145, 7
          %v2147 = vsub.s32 3, %v2146
          %v2148 = vrot.slane %v984, %v2147
          %v2149 = vlaneseq
          %v2150 = vshrl.u32 %v2149, 7
          %v2151 = vsub.s32 4, %v2150
          %v2152 = vrot.slane %v984, %v2151
          %v2153 = vlaneseq
          %v2154 = vshrl.u32 %v2153, 7
          %v2155 = vsub.s32 5, %v2154
          %v2156 = vrot.slane %v984, %v2155
          %v2157 = vlaneseq
          %v2158 = vshrl.u32 %v2157, 7
          %v2159 = vsub.s32 6, %v2158
          %v2160 = vrot.slane %v984, %v2159
          %v2161 = vlaneseq
          %v2162 = vshrl.u32 %v2161, 7
          %v2163 = vsub.s32 7, %v2162
          %v2164 = vrot.slane %v984, %v2163
          %v2165 = vlaneseq
          %v2166 = vshrl.u32 %v2165, 7
          %v2167 = vsub.s32 0, %v2166
          %v2168 = vrot.slane %v985, %v2167
          %v2169 = vlaneseq
          %v2170 = vshrl.u32 %v2169, 7
          %v2171 = vsub.s32 1, %v2170
          %v2172 = vrot.slane %v985, %v2171
          %v2173 = vlaneseq
          %v2174 = vshrl.u32 %v2173, 7
          %v2175 = vsub.s32 2, %v2174
          %v2176 = vrot.slane %v985, %v2175
          %v2177 = vlaneseq
          %v2178 = vshrl.u32 %v2177, 7
          %v2179 = vsub.s32 3, %v2178
          %v2180 = vrot.slane %v985, %v2179
          %v2181 = vlaneseq
          %v2182 = vshrl.u32 %v2181, 7
          %v2183 = vsub.s32 4, %v2182
          %v2184 = vrot.slane %v985, %v2183
          %v2185 = vlaneseq
          %v2186 = vshrl.u32 %v2185, 7
          %v2187 = vsub.s32 5, %v2186
          %v2188 = vrot.slane %v985, %v2187
          %v2189 = vlaneseq
          %v2190 = vshrl.u32 %v2189, 7
          %v2191 = vsub.s32 6, %v2190
          %v2192 = vrot.slane %v985, %v2191
          %v2193 = vlaneseq
          %v2194 = vshrl.u32 %v2193, 7
          %v2195 = vsub.s32 7, %v2194
          %v2196 = vrot.slane %v985, %v2195
          %v2197 = vlaneseq
          %v2198 = vshrl.u32 %v2197, 7
          %v2199 = vsub.s32 0, %v2198
          %v2200 = vrot.slane %v986, %v2199
          %v2201 = vlaneseq
          %v2202 = vshrl.u32 %v2201, 7
          %v2203 = vsub.s32 1, %v2202
          %v2204 = vrot.slane %v986, %v2203
          %v2205 = vlaneseq
          %v2206 = vshrl.u32 %v2205, 7
          %v2207 = vsub.s32 2, %v2206
          %v2208 = vrot.slane %v986, %v2207
          %v2209 = vlaneseq
          %v2210 = vshrl.u32 %v2209, 7
          %v2211 = vsub.s32 3, %v2210
          %v2212 = vrot.slane %v986, %v2211
          %v2213 = vlaneseq
          %v2214 = vshrl.u32 %v2213, 7
          %v2215 = vsub.s32 4, %v2214
          %v2216 = vrot.slane %v986, %v2215
          %v2217 = vlaneseq
          %v2218 = vshrl.u32 %v2217, 7
          %v2219 = vsub.s32 5, %v2218
          %v2220 = vrot.slane %v986, %v2219
          %v2221 = vlaneseq
          %v2222 = vshrl.u32 %v2221, 7
          %v2223 = vsub.s32 6, %v2222
          %v2224 = vrot.slane %v986, %v2223
          %v2225 = vlaneseq
          %v2226 = vshrl.u32 %v2225, 7
          %v2227 = vsub.s32 7, %v2226
          %v2228 = vrot.slane %v986, %v2227
          %v2229 = vlaneseq
          %v2230 = vshrl.u32 %v2229, 7
          %v2231 = vsub.s32 0, %v2230
          %v2232 = vrot.slane %v987, %v2231
          %v2233 = vlaneseq
          %v2234 = vshrl.u32 %v2233, 7
          %v2235 = vsub.s32 1, %v2234
          %v2236 = vrot.slane %v987, %v2235
          %v2237 = vlaneseq
          %v2238 = vshrl.u32 %v2237, 7
          %v2239 = vsub.s32 2, %v2238
          %v2240 = vrot.slane %v987, %v2239
          %v2241 = vlaneseq
          %v2242 = vshrl.u32 %v2241, 7
          %v2243 = vsub.s32 3, %v2242
          %v2244 = vrot.slane %v987, %v2243
          %v2245 = vlaneseq
          %v2246 = vshrl.u32 %v2245, 7
          %v2247 = vsub.s32 4, %v2246
          %v2248 = vrot.slane %v987, %v2247
          %v2249 = vlaneseq
          %v2250 = vshrl.u32 %v2249, 7
          %v2251 = vsub.s32 5, %v2250
          %v2252 = vrot.slane %v987, %v2251
          %v2253 = vlaneseq
          %v2254 = vshrl.u32 %v2253, 7
          %v2255 = vsub.s32 6, %v2254
          %v2256 = vrot.slane %v987, %v2255
          %v2257 = vlaneseq
          %v2258 = vshrl.u32 %v2257, 7
          %v2259 = vsub.s32 7, %v2258
          %v2260 = vrot.slane %v987, %v2259
          %v2261 = vlaneseq
          %v2262 = vshrl.u32 %v2261, 7
          %v2263 = vsub.s32 0, %v2262
          %v2264 = vrot.slane %v988, %v2263
          %v2265 = vlaneseq
          %v2266 = vshrl.u32 %v2265, 7
          %v2267 = vsub.s32 1, %v2266
          %v2268 = vrot.slane %v988, %v2267
          %v2269 = vlaneseq
          %v2270 = vshrl.u32 %v2269, 7
          %v2271 = vsub.s32 2, %v2270
          %v2272 = vrot.slane %v988, %v2271
          %v2273 = vlaneseq
          %v2274 = vshrl.u32 %v2273, 7
          %v2275 = vsub.s32 3, %v2274
          %v2276 = vrot.slane %v988, %v2275
          %v2277 = vlaneseq
          %v2278 = vshrl.u32 %v2277, 7
          %v2279 = vsub.s32 4, %v2278
          %v2280 = vrot.slane %v988, %v2279
          %v2281 = vlaneseq
          %v2282 = vshrl.u32 %v2281, 7
          %v2283 = vsub.s32 5, %v2282
          %v2284 = vrot.slane %v988, %v2283
          %v2285 = vlaneseq
          %v2286 = vshrl.u32 %v2285, 7
          %v2287 = vsub.s32 6, %v2286
          %v2288 = vrot.slane %v988, %v2287
          %v2289 = vlaneseq
          %v2290 = vshrl.u32 %v2289, 7
          %v2291 = vsub.s32 7, %v2290
          %v2292 = vrot.slane %v988, %v2291
          %v2293 = vlaneseq
          %v2294 = vshrl.u32 %v2293, 7
          %v2295 = vsub.s32 0, %v2294
          %v2296 = vrot.slane %v989, %v2295
          %v2297 = vlaneseq
          %v2298 = vshrl.u32 %v2297, 7
          %v2299 = vsub.s32 1, %v2298
          %v2300 = vrot.slane %v989, %v2299
          %v2301 = vlaneseq
          %v2302 = vshrl.u32 %v2301, 7
          %v2303 = vsub.s32 2, %v2302
          %v2304 = vrot.slane %v989, %v2303
          %v2305 = vlaneseq
          %v2306 = vshrl.u32 %v2305, 7
          %v2307 = vsub.s32 3, %v2306
          %v2308 = vrot.slane %v989, %v2307
          %v2309 = vlaneseq
          %v2310 = vshrl.u32 %v2309, 7
          %v2311 = vsub.s32 4, %v2310
          %v2312 = vrot.slane %v989, %v2311
          %v2313 = vlaneseq
          %v2314 = vshrl.u32 %v2313, 7
          %v2315 = vsub.s32 5, %v2314
          %v2316 = vrot.slane %v989, %v2315
          %v2317 = vlaneseq
          %v2318 = vshrl.u32 %v2317, 7
          %v2319 = vsub.s32 6, %v2318
          %v2320 = vrot.slane %v989, %v2319
          %v2321 = vlaneseq
          %v2322 = vshrl.u32 %v2321, 7
          %v2323 = vsub.s32 7, %v2322
          %v2324 = vrot.slane %v989, %v2323
          %v2325 = vlaneseq
          %v2326 = vshrl.u32 %v2325, 7
          %v2327 = vsub.s32 0, %v2326
          %v2328 = vrot.slane %v990, %v2327
          %v2329 = vlaneseq
          %v2330 = vshrl.u32 %v2329, 7
          %v2331 = vsub.s32 1, %v2330
          %v2332 = vrot.slane %v990, %v2331
          %v2333 = vlaneseq
          %v2334 = vshrl.u32 %v2333, 7
          %v2335 = vsub.s32 2, %v2334
          %v2336 = vrot.slane %v990, %v2335
          %v2337 = vlaneseq
          %v2338 = vshrl.u32 %v2337, 7
          %v2339 = vsub.s32 3, %v2338
          %v2340 = vrot.slane %v990, %v2339
          %v2341 = vlaneseq
          %v2342 = vshrl.u32 %v2341, 7
          %v2343 = vsub.s32 4, %v2342
          %v2344 = vrot.slane %v990, %v2343
          %v2345 = vlaneseq
          %v2346 = vshrl.u32 %v2345, 7
          %v2347 = vsub.s32 5, %v2346
          %v2348 = vrot.slane %v990, %v2347
          %v2349 = vlaneseq
          %v2350 = vshrl.u32 %v2349, 7
          %v2351 = vsub.s32 6, %v2350
          %v2352 = vrot.slane %v990, %v2351
          %v2353 = vlaneseq
          %v2354 = vshrl.u32 %v2353, 7
          %v2355 = vsub.s32 7, %v2354
          %v2356 = vrot.slane %v990, %v2355
          %v2357 = vlaneseq
          %v2358 = vshrl.u32 %v2357, 7
          %v2359 = vsub.s32 0, %v2358
          %v2360 = vrot.slane %v991, %v2359
          %v2361 = vlaneseq
          %v2362 = vshrl.u32 %v2361, 7
          %v2363 = vsub.s32 1, %v2362
          %v2364 = vrot.slane %v991, %v2363
          %v2365 = vlaneseq
          %v2366 = vshrl.u32 %v2365, 7
          %v2367 = vsub.s32 2, %v2366
          %v2368 = vrot.slane %v991, %v2367
          %v2369 = vlaneseq
          %v2370 = vshrl.u32 %v2369, 7
          %v2371 = vsub.s32 3, %v2370
          %v2372 = vrot.slane %v991, %v2371
          %v2373 = vlaneseq
          %v2374 = vshrl.u32 %v2373, 7
          %v2375 = vsub.s32 4, %v2374
          %v2376 = vrot.slane %v991, %v2375
          %v2377 = vlaneseq
          %v2378 = vshrl.u32 %v2377, 7
          %v2379 = vsub.s32 5, %v2378
          %v2380 = vrot.slane %v991, %v2379
          %v2381 = vlaneseq
          %v2382 = vshrl.u32 %v2381, 7
          %v2383 = vsub.s32 6, %v2382
          %v2384 = vrot.slane %v991, %v2383
          %v2385 = vlaneseq
          %v2386 = vshrl.u32 %v2385, 7
          %v2387 = vsub.s32 7, %v2386
          %v2388 = vrot.slane %v991, %v2387
          %v2389 = vlaneseq
          %v2390 = vshrl.u32 %v2389, 7
          %v2391 = vsub.s32 0, %v2390
          %v2392 = vrot.slane %v992, %v2391
          %v2393 = vlaneseq
          %v2394 = vshrl.u32 %v2393, 7
          %v2395 = vsub.s32 1, %v2394
          %v2396 = vrot.slane %v992, %v2395
          %v2397 = vlaneseq
          %v2398 = vshrl.u32 %v2397, 7
          %v2399 = vsub.s32 2, %v2398
          %v2400 = vrot.slane %v992, %v2399
          %v2401 = vlaneseq
          %v2402 = vshrl.u32 %v2401, 7
          %v2403 = vsub.s32 3, %v2402
          %v2404 = vrot.slane %v992, %v2403
          %v2405 = vlaneseq
          %v2406 = vshrl.u32 %v2405, 7
          %v2407 = vsub.s32 4, %v2406
          %v2408 = vrot.slane %v992, %v2407
          %v2409 = vlaneseq
          %v2410 = vshrl.u32 %v2409, 7
          %v2411 = vsub.s32 5, %v2410
          %v2412 = vrot.slane %v992, %v2411
          %v2413 = vlaneseq
          %v2414 = vshrl.u32 %v2413, 7
          %v2415 = vsub.s32 6, %v2414
          %v2416 = vrot.slane %v992, %v2415
          %v2417 = vlaneseq
          %v2418 = vshrl.u32 %v2417, 7
          %v2419 = vsub.s32 7, %v2418
          %v2420 = vrot.slane %v992, %v2419
          %v2421 = vlaneseq
          %v2422 = vshrl.u32 %v2421, 7
          %v2423 = vsub.s32 0, %v2422
          %v2424 = vrot.slane %v993, %v2423
          %v2425 = vlaneseq
          %v2426 = vshrl.u32 %v2425, 7
          %v2427 = vsub.s32 1, %v2426
          %v2428 = vrot.slane %v993, %v2427
          %v2429 = vlaneseq
          %v2430 = vshrl.u32 %v2429, 7
          %v2431 = vsub.s32 2, %v2430
          %v2432 = vrot.slane %v993, %v2431
          %v2433 = vlaneseq
          %v2434 = vshrl.u32 %v2433, 7
          %v2435 = vsub.s32 3, %v2434
          %v2436 = vrot.slane %v993, %v2435
          %v2437 = vlaneseq
          %v2438 = vshrl.u32 %v2437, 7
          %v2439 = vsub.s32 4, %v2438
          %v2440 = vrot.slane %v993, %v2439
          %v2441 = vlaneseq
          %v2442 = vshrl.u32 %v2441, 7
          %v2443 = vsub.s32 5, %v2442
          %v2444 = vrot.slane %v993, %v2443
          %v2445 = vlaneseq
          %v2446 = vshrl.u32 %v2445, 7
          %v2447 = vsub.s32 6, %v2446
          %v2448 = vrot.slane %v993, %v2447
          %v2449 = vlaneseq
          %v2450 = vshrl.u32 %v2449, 7
          %v2451 = vsub.s32 7, %v2450
          %v2452 = vrot.slane %v993, %v2451
          %v2453 = vlaneseq
          %v2454 = vshrl.u32 %v2453, 7
          %v2455 = vsub.s32 0, %v2454
          %v2456 = vrot.slane %v994, %v2455
          %v2457 = vlaneseq
          %v2458 = vshrl.u32 %v2457, 7
          %v2459 = vsub.s32 1, %v2458
          %v2460 = vrot.slane %v994, %v2459
          %v2461 = vlaneseq
          %v2462 = vshrl.u32 %v2461, 7
          %v2463 = vsub.s32 2, %v2462
          %v2464 = vrot.slane %v994, %v2463
          %v2465 = vlaneseq
          %v2466 = vshrl.u32 %v2465, 7
          %v2467 = vsub.s32 3, %v2466
          %v2468 = vrot.slane %v994, %v2467
          %v2469 = vlaneseq
          %v2470 = vshrl.u32 %v2469, 7
          %v2471 = vsub.s32 4, %v2470
          %v2472 = vrot.slane %v994, %v2471
          %v2473 = vlaneseq
          %v2474 = vshrl.u32 %v2473, 7
          %v2475 = vsub.s32 5, %v2474
          %v2476 = vrot.slane %v994, %v2475
          %v2477 = vlaneseq
          %v2478 = vshrl.u32 %v2477, 7
          %v2479 = vsub.s32 6, %v2478
          %v2480 = vrot.slane %v994, %v2479
          %v2481 = vlaneseq
          %v2482 = vshrl.u32 %v2481, 7
          %v2483 = vsub.s32 7, %v2482
          %v2484 = vrot.slane %v994, %v2483
          %v2485 = vlaneseq
          %v2486 = vshrl.u32 %v2485, 7
          %v2487 = vsub.s32 0, %v2486
          %v2488 = vrot.slane %v995, %v2487
          %v2489 = vlaneseq
          %v2490 = vshrl.u32 %v2489, 7
          %v2491 = vsub.s32 1, %v2490
          %v2492 = vrot.slane %v995, %v2491
          %v2493 = vlaneseq
          %v2494 = vshrl.u32 %v2493, 7
          %v2495 = vsub.s32 2, %v2494
          %v2496 = vrot.slane %v995, %v2495
          %v2497 = vlaneseq
          %v2498 = vshrl.u32 %v2497, 7
          %v2499 = vsub.s32 3, %v2498
          %v2500 = vrot.slane %v995, %v2499
          %v2501 = vlaneseq
          %v2502 = vshrl.u32 %v2501, 7
          %v2503 = vsub.s32 4, %v2502
          %v2504 = vrot.slane %v995, %v2503
          %v2505 = vlaneseq
          %v2506 = vshrl.u32 %v2505, 7
          %v2507 = vsub.s32 5, %v2506
          %v2508 = vrot.slane %v995, %v2507
          %v2509 = vlaneseq
          %v2510 = vshrl.u32 %v2509, 7
          %v2511 = vsub.s32 6, %v2510
          %v2512 = vrot.slane %v995, %v2511
          %v2513 = vlaneseq
          %v2514 = vshrl.u32 %v2513, 7
          %v2515 = vsub.s32 7, %v2514
          %v2516 = vrot.slane %v995, %v2515
          %v2517 = vlaneseq
          %v2518 = vshrl.u32 %v2517, 7
          %v2519 = vsub.s32 0, %v2518
          %v2520 = vrot.slane %v996, %v2519
          %v2521 = vlaneseq
          %v2522 = vshrl.u32 %v2521, 7
          %v2523 = vsub.s32 1, %v2522
          %v2524 = vrot.slane %v996, %v2523
          %v2525 = vlaneseq
          %v2526 = vshrl.u32 %v2525, 7
          %v2527 = vsub.s32 2, %v2526
          %v2528 = vrot.slane %v996, %v2527
          %v2529 = vlaneseq
          %v2530 = vshrl.u32 %v2529, 7
          %v2531 = vsub.s32 3, %v2530
          %v2532 = vrot.slane %v996, %v2531
          %v2533 = vlaneseq
          %v2534 = vshrl.u32 %v2533, 7
          %v2535 = vsub.s32 4, %v2534
          %v2536 = vrot.slane %v996, %v2535
          %v2537 = vlaneseq
          %v2538 = vshrl.u32 %v2537, 7
          %v2539 = vsub.s32 5, %v2538
          %v2540 = vrot.slane %v996, %v2539
          %v2541 = vlaneseq
          %v2542 = vshrl.u32 %v2541, 7
          %v2543 = vsub.s32 6, %v2542
          %v2544 = vrot.slane %v996, %v2543
          %v2545 = vlaneseq
          %v2546 = vshrl.u32 %v2545, 7
          %v2547 = vsub.s32 7, %v2546
          %v2548 = vrot.slane %v996, %v2547
          %v2549 = vlaneseq
          %v2550 = vshrl.u32 %v2549, 7
          %v2551 = vsub.s32 0, %v2550
          %v2552 = vrot.slane %v997, %v2551
          %v2553 = vlaneseq
          %v2554 = vshrl.u32 %v2553, 7
          %v2555 = vsub.s32 1, %v2554
          %v2556 = vrot.slane %v997, %v2555
          %v2557 = vlaneseq
          %v2558 = vshrl.u32 %v2557, 7
          %v2559 = vsub.s32 2, %v2558
          %v2560 = vrot.slane %v997, %v2559
          %v2561 = vlaneseq
          %v2562 = vshrl.u32 %v2561, 7
          %v2563 = vsub.s32 3, %v2562
          %v2564 = vrot.slane %v997, %v2563
          %v2565 = vlaneseq
          %v2566 = vshrl.u32 %v2565, 7
          %v2567 = vsub.s32 4, %v2566
          %v2568 = vrot.slane %v997, %v2567
          %v2569 = vlaneseq
          %v2570 = vshrl.u32 %v2569, 7
          %v2571 = vsub.s32 5, %v2570
          %v2572 = vrot.slane %v997, %v2571
          %v2573 = vlaneseq
          %v2574 = vshrl.u32 %v2573, 7
          %v2575 = vsub.s32 6, %v2574
          %v2576 = vrot.slane %v997, %v2575
          %v2577 = vlaneseq
          %v2578 = vshrl.u32 %v2577, 7
          %v2579 = vsub.s32 7, %v2578
          %v2580 = vrot.slane %v997, %v2579
          %v2581 = vlaneseq
          %v2582 = vshrl.u32 %v2581, 7
          %v2583 = vsub.s32 0, %v2582
          %v2584 = vrot.slane %v998, %v2583
          %v2585 = vlaneseq
          %v2586 = vshrl.u32 %v2585, 7
          %v2587 = vsub.s32 1, %v2586
          %v2588 = vrot.slane %v998, %v2587
          %v2589 = vlaneseq
          %v2590 = vshrl.u32 %v2589, 7
          %v2591 = vsub.s32 2, %v2590
          %v2592 = vrot.slane %v998, %v2591
          %v2593 = vlaneseq
          %v2594 = vshrl.u32 %v2593, 7
          %v2595 = vsub.s32 3, %v2594
          %v2596 = vrot.slane %v998, %v2595
          %v2597 = vlaneseq
          %v2598 = vshrl.u32 %v2597, 7
          %v2599 = vsub.s32 4, %v2598
          %v2600 = vrot.slane %v998, %v2599
          %v2601 = vlaneseq
          %v2602 = vshrl.u32 %v2601, 7
          %v2603 = vsub.s32 5, %v2602
          %v2604 = vrot.slane %v998, %v2603
          %v2605 = vlaneseq
          %v2606 = vshrl.u32 %v2605, 7
          %v2607 = vsub.s32 6, %v2606
          %v2608 = vrot.slane %v998, %v2607
          %v2609 = vlaneseq
          %v2610 = vshrl.u32 %v2609, 7
          %v2611 = vsub.s32 7, %v2610
          %v2612 = vrot.slane %v998, %v2611
          %v2613 = vlaneseq
          %v2614 = vshrl.u32 %v2613, 7
          %v2615 = vsub.s32 0, %v2614
          %v2616 = vrot.slane %v999, %v2615
          %v2617 = vlaneseq
          %v2618 = vshrl.u32 %v2617, 7
          %v2619 = vsub.s32 1, %v2618
          %v2620 = vrot.slane %v999, %v2619
          %v2621 = vlaneseq
          %v2622 = vshrl.u32 %v2621, 7
          %v2623 = vsub.s32 2, %v2622
          %v2624 = vrot.slane %v999, %v2623
          %v2625 = vlaneseq
          %v2626 = vshrl.u32 %v2625, 7
          %v2627 = vsub.s32 3, %v2626
          %v2628 = vrot.slane %v999, %v2627
          %v2629 = vlaneseq
          %v2630 = vshrl.u32 %v2629, 7
          %v2631 = vsub.s32 4, %v2630
          %v2632 = vrot.slane %v999, %v2631
          %v2633 = vlaneseq
          %v2634 = vshrl.u32 %v2633, 7
          %v2635 = vsub.s32 5, %v2634
          %v2636 = vrot.slane %v999, %v2635
          %v2637 = vlaneseq
          %v2638 = vshrl.u32 %v2637, 7
          %v2639 = vsub.s32 6, %v2638
          %v2640 = vrot.slane %v999, %v2639
          %v2641 = vlaneseq
          %v2642 = vshrl.u32 %v2641, 7
          %v2643 = vsub.s32 7, %v2642
          %v2644 = vrot.slane %v999, %v2643
          %v2645 = vlaneseq
          %v2646 = vshrl.u32 %v2645, 7
          %v2647 = vsub.s32 0, %v2646
          %v2648 = vrot.slane %v1000, %v2647
          %v2649 = vlaneseq
          %v2650 = vshrl.u32 %v2649, 7
          %v2651 = vsub.s32 1, %v2650
          %v2652 = vrot.slane %v1000, %v2651
          %v2653 = vlaneseq
          %v2654 = vshrl.u32 %v2653, 7
          %v2655 = vsub.s32 2, %v2654
          %v2656 = vrot.slane %v1000, %v2655
          %v2657 = vlaneseq
          %v2658 = vshrl.u32 %v2657, 7
          %v2659 = vsub.s32 3, %v2658
          %v2660 = vrot.slane %v1000, %v2659
          %v2661 = vlaneseq
          %v2662 = vshrl.u32 %v2661, 7
          %v2663 = vsub.s32 4, %v2662
          %v2664 = vrot.slane %v1000, %v2663
          %v2665 = vlaneseq
          %v2666 = vshrl.u32 %v2665, 7
          %v2667 = vsub.s32 5, %v2666
          %v2668 = vrot.slane %v1000, %v2667
          %v2669 = vlaneseq
          %v2670 = vshrl.u32 %v2669, 7
          %v2671 = vsub.s32 6, %v2670
          %v2672 = vrot.slane %v1000, %v2671
          %v2673 = vlaneseq
          %v2674 = vshrl.u32 %v2673, 7
          %v2675 = vsub.s32 7, %v2674
          %v2676 = vrot.slane %v1000, %v2675
          %v2677 = vlaneseq
          %v2678 = vshrl.u32 %v2677, 7
          %v2679 = vsub.s32 0, %v2678
          %v2680 = vrot.slane %v1001, %v2679
          %v2681 = vlaneseq
          %v2682 = vshrl.u32 %v2681, 7
          %v2683 = vsub.s32 1, %v2682
          %v2684 = vrot.slane %v1001, %v2683
          %v2685 = vlaneseq
          %v2686 = vshrl.u32 %v2685, 7
          %v2687 = vsub.s32 2, %v2686
          %v2688 = vrot.slane %v1001, %v2687
          %v2689 = vlaneseq
          %v2690 = vshrl.u32 %v2689, 7
          %v2691 = vsub.s32 3, %v2690
          %v2692 = vrot.slane %v1001, %v2691
          %v2693 = vlaneseq
          %v2694 = vshrl.u32 %v2693, 7
          %v2695 = vsub.s32 4, %v2694
          %v2696 = vrot.slane %v1001, %v2695
          %v2697 = vlaneseq
          %v2698 = vshrl.u32 %v2697, 7
          %v2699 = vsub.s32 5, %v2698
          %v2700 = vrot.slane %v1001, %v2699
          %v2701 = vlaneseq
          %v2702 = vshrl.u32 %v2701, 7
          %v2703 = vsub.s32 6, %v2702
          %v2704 = vrot.slane %v1001, %v2703
          %v2705 = vlaneseq
          %v2706 = vshrl.u32 %v2705, 7
          %v2707 = vsub.s32 7, %v2706
          %v2708 = vrot.slane %v1001, %v2707
          %v2709 = vlaneseq
          %v2710 = vshrl.u32 %v2709, 7
          %v2711 = vsub.s32 0, %v2710
          %v2712 = vrot.slane %v1002, %v2711
          %v2713 = vlaneseq
          %v2714 = vshrl.u32 %v2713, 7
          %v2715 = vsub.s32 1, %v2714
          %v2716 = vrot.slane %v1002, %v2715
          %v2717 = vlaneseq
          %v2718 = vshrl.u32 %v2717, 7
          %v2719 = vsub.s32 2, %v2718
          %v2720 = vrot.slane %v1002, %v2719
          %v2721 = vlaneseq
          %v2722 = vshrl.u32 %v2721, 7
          %v2723 = vsub.s32 3, %v2722
          %v2724 = vrot.slane %v1002, %v2723
          %v2725 = vlaneseq
          %v2726 = vshrl.u32 %v2725, 7
          %v2727 = vsub.s32 4, %v2726
          %v2728 = vrot.slane %v1002, %v2727
          %v2729 = vlaneseq
          %v2730 = vshrl.u32 %v2729, 7
          %v2731 = vsub.s32 5, %v2730
          %v2732 = vrot.slane %v1002, %v2731
          %v2733 = vlaneseq
          %v2734 = vshrl.u32 %v2733, 7
          %v2735 = vsub.s32 6, %v2734
          %v2736 = vrot.slane %v1002, %v2735
          %v2737 = vlaneseq
          %v2738 = vshrl.u32 %v2737, 7
          %v2739 = vsub.s32 7, %v2738
          %v2740 = vrot.slane %v1002, %v2739
          %v2741 = vlaneseq
          %v2742 = vshrl.u32 %v2741, 7
          %v2743 = vsub.s32 0, %v2742
          %v2744 = vrot.slane %v1003, %v2743
          %v2745 = vlaneseq
          %v2746 = vshrl.u32 %v2745, 7
          %v2747 = vsub.s32 1, %v2746
          %v2748 = vrot.slane %v1003, %v2747
          %v2749 = vlaneseq
          %v2750 = vshrl.u32 %v2749, 7
          %v2751 = vsub.s32 2, %v2750
          %v2752 = vrot.slane %v1003, %v2751
          %v2753 = vlaneseq
          %v2754 = vshrl.u32 %v2753, 7
          %v2755 = vsub.s32 3, %v2754
          %v2756 = vrot.slane %v1003, %v2755
          %v2757 = vlaneseq
          %v2758 = vshrl.u32 %v2757, 7
          %v2759 = vsub.s32 4, %v2758
          %v2760 = vrot.slane %v1003, %v2759
          %v2761 = vlaneseq
          %v2762 = vshrl.u32 %v2761, 7
          %v2763 = vsub.s32 5, %v2762
          %v2764 = vrot.slane %v1003, %v2763
          %v2765 = vlaneseq
          %v2766 = vshrl.u32 %v2765, 7
          %v2767 = vsub.s32 6, %v2766
          %v2768 = vrot.slane %v1003, %v2767
          %v2769 = vlaneseq
          %v2770 = vshrl.u32 %v2769, 7
          %v2771 = vsub.s32 7, %v2770
          %v2772 = vrot.slane %v1003, %v2771
          %v2773 = vlaneseq
          %v2774 = vshrl.u32 %v2773, 7
          %v2775 = vsub.s32 0, %v2774
          %v2776 = vrot.slane %v1004, %v2775
          %v2777 = vlaneseq
          %v2778 = vshrl.u32 %v2777, 7
          %v2779 = vsub.s32 1, %v2778
          %v2780 = vrot.slane %v1004, %v2779
          %v2781 = vlaneseq
          %v2782 = vshrl.u32 %v2781, 7
          %v2783 = vsub.s32 2, %v2782
          %v2784 = vrot.slane %v1004, %v2783
          %v2785 = vlaneseq
          %v2786 = vshrl.u32 %v2785, 7
          %v2787 = vsub.s32 3, %v2786
          %v2788 = vrot.slane %v1004, %v2787
          %v2789 = vlaneseq
          %v2790 = vshrl.u32 %v2789, 7
          %v2791 = vsub.s32 4, %v2790
          %v2792 = vrot.slane %v1004, %v2791
          %v2793 = vlaneseq
          %v2794 = vshrl.u32 %v2793, 7
          %v2795 = vsub.s32 5, %v2794
          %v2796 = vrot.slane %v1004, %v2795
          %v2797 = vlaneseq
          %v2798 = vshrl.u32 %v2797, 7
          %v2799 = vsub.s32 6, %v2798
          %v2800 = vrot.slane %v1004, %v2799
          %v2801 = vlaneseq
          %v2802 = vshrl.u32 %v2801, 7
          %v2803 = vsub.s32 7, %v2802
          %v2804 = vrot.slane %v1004, %v2803
          %v2805 = vlaneseq
          %v2806 = vshrl.u32 %v2805, 7
          %v2807 = vsub.s32 0, %v2806
          %v2808 = vrot.slane %v1005, %v2807
          %v2809 = vlaneseq
          %v2810 = vshrl.u32 %v2809, 7
          %v2811 = vsub.s32 1, %v2810
          %v2812 = vrot.slane %v1005, %v2811
          %v2813 = vlaneseq
          %v2814 = vshrl.u32 %v2813, 7
          %v2815 = vsub.s32 2, %v2814
          %v2816 = vrot.slane %v1005, %v2815
          %v2817 = vlaneseq
          %v2818 = vshrl.u32 %v2817, 7
          %v2819 = vsub.s32 3, %v2818
          %v2820 = vrot.slane %v1005, %v2819
          %v2821 = vlaneseq
          %v2822 = vshrl.u32 %v2821, 7
          %v2823 = vsub.s32 4, %v2822
          %v2824 = vrot.slane %v1005, %v2823
          %v2825 = vlaneseq
          %v2826 = vshrl.u32 %v2825, 7
          %v2827 = vsub.s32 5, %v2826
          %v2828 = vrot.slane %v1005, %v2827
          %v2829 = vlaneseq
          %v2830 = vshrl.u32 %v2829, 7
          %v2831 = vsub.s32 6, %v2830
          %v2832 = vrot.slane %v1005, %v2831
          %v2833 = vlaneseq
          %v2834 = vshrl.u32 %v2833, 7
          %v2835 = vsub.s32 7, %v2834
          %v2836 = vrot.slane %v1005, %v2835
          %v2837 = vlaneseq
          %v2838 = vshrl.u32 %v2837, 7
          %v2839 = vsub.s32 0, %v2838
          %v2840 = vrot.slane %v1006, %v2839
          %v2841 = vlaneseq
          %v2842 = vshrl.u32 %v2841, 7
          %v2843 = vsub.s32 1, %v2842
          %v2844 = vrot.slane %v1006, %v2843
          %v2845 = vlaneseq
          %v2846 = vshrl.u32 %v2845, 7
          %v2847 = vsub.s32 2, %v2846
          %v2848 = vrot.slane %v1006, %v2847
          %v2849 = vlaneseq
          %v2850 = vshrl.u32 %v2849, 7
          %v2851 = vsub.s32 3, %v2850
          %v2852 = vrot.slane %v1006, %v2851
          %v2853 = vlaneseq
          %v2854 = vshrl.u32 %v2853, 7
          %v2855 = vsub.s32 4, %v2854
          %v2856 = vrot.slane %v1006, %v2855
          %v2857 = vlaneseq
          %v2858 = vshrl.u32 %v2857, 7
          %v2859 = vsub.s32 5, %v2858
          %v2860 = vrot.slane %v1006, %v2859
          %v2861 = vlaneseq
          %v2862 = vshrl.u32 %v2861, 7
          %v2863 = vsub.s32 6, %v2862
          %v2864 = vrot.slane %v1006, %v2863
          %v2865 = vlaneseq
          %v2866 = vshrl.u32 %v2865, 7
          %v2867 = vsub.s32 7, %v2866
          %v2868 = vrot.slane %v1006, %v2867
          %v2869 = vlaneseq
          %v2870 = vshrl.u32 %v2869, 7
          %v2871 = vsub.s32 0, %v2870
          %v2872 = vrot.slane %v1007, %v2871
          %v2873 = vlaneseq
          %v2874 = vshrl.u32 %v2873, 7
          %v2875 = vsub.s32 1, %v2874
          %v2876 = vrot.slane %v1007, %v2875
          %v2877 = vlaneseq
          %v2878 = vshrl.u32 %v2877, 7
          %v2879 = vsub.s32 2, %v2878
          %v2880 = vrot.slane %v1007, %v2879
          %v2881 = vlaneseq
          %v2882 = vshrl.u32 %v2881, 7
          %v2883 = vsub.s32 3, %v2882
          %v2884 = vrot.slane %v1007, %v2883
          %v2885 = vlaneseq
          %v2886 = vshrl.u32 %v2885, 7
          %v2887 = vsub.s32 4, %v2886
          %v2888 = vrot.slane %v1007, %v2887
          %v2889 = vlaneseq
          %v2890 = vshrl.u32 %v2889, 7
          %v2891 = vsub.s32 5, %v2890
          %v2892 = vrot.slane %v1007, %v2891
          %v2893 = vlaneseq
          %v2894 = vshrl.u32 %v2893, 7
          %v2895 = vsub.s32 6, %v2894
          %v2896 = vrot.slane %v1007, %v2895
          %v2897 = vlaneseq
          %v2898 = vshrl.u32 %v2897, 7
          %v2899 = vsub.s32 7, %v2898
          %v2900 = vrot.slane %v1007, %v2899
          %v2901 = vlaneseq
          %v2902 = vshrl.u32 %v2901, 7
          %v2903 = vsub.s32 0, %v2902
          %v2904 = vrot.slane %v1008, %v2903
          %v2905 = vlaneseq
          %v2906 = vshrl.u32 %v2905, 7
          %v2907 = vsub.s32 1, %v2906
          %v2908 = vrot.slane %v1008, %v2907
          %v2909 = vlaneseq
          %v2910 = vshrl.u32 %v2909, 7
          %v2911 = vsub.s32 2, %v2910
          %v2912 = vrot.slane %v1008, %v2911
          %v2913 = vlaneseq
          %v2914 = vshrl.u32 %v2913, 7
          %v2915 = vsub.s32 3, %v2914
          %v2916 = vrot.slane %v1008, %v2915
          %v2917 = vlaneseq
          %v2918 = vshrl.u32 %v2917, 7
          %v2919 = vsub.s32 4, %v2918
          %v2920 = vrot.slane %v1008, %v2919
          %v2921 = vlaneseq
          %v2922 = vshrl.u32 %v2921, 7
          %v2923 = vsub.s32 5, %v2922
          %v2924 = vrot.slane %v1008, %v2923
          %v2925 = vlaneseq
          %v2926 = vshrl.u32 %v2925, 7
          %v2927 = vsub.s32 6, %v2926
          %v2928 = vrot.slane %v1008, %v2927
          %v2929 = vlaneseq
          %v2930 = vshrl.u32 %v2929, 7
          %v2931 = vsub.s32 7, %v2930
          %v2932 = vrot.slane %v1008, %v2931
          %v2933 = vlaneseq
          %v2934 = vshrl.u32 %v2933, 7
          %v2935 = vsub.s32 0, %v2934
          %v2936 = vrot.slane %v1009, %v2935
          %v2937 = vlaneseq
          %v2938 = vshrl.u32 %v2937, 7
          %v2939 = vsub.s32 1, %v2938
          %v2940 = vrot.slane %v1009, %v2939
          %v2941 = vlaneseq
          %v2942 = vshrl.u32 %v2941, 7
          %v2943 = vsub.s32 2, %v2942
          %v2944 = vrot.slane %v1009, %v2943
          %v2945 = vlaneseq
          %v2946 = vshrl.u32 %v2945, 7
          %v2947 = vsub.s32 3, %v2946
          %v2948 = vrot.slane %v1009, %v2947
          %v2949 = vlaneseq
          %v2950 = vshrl.u32 %v2949, 7
          %v2951 = vsub.s32 4, %v2950
          %v2952 = vrot.slane %v1009, %v2951
          %v2953 = vlaneseq
          %v2954 = vshrl.u32 %v2953, 7
          %v2955 = vsub.s32 5, %v2954
          %v2956 = vrot.slane %v1009, %v2955
          %v2957 = vlaneseq
          %v2958 = vshrl.u32 %v2957, 7
          %v2959 = vsub.s32 6, %v2958
          %v2960 = vrot.slane %v1009, %v2959
          %v2961 = vlaneseq
          %v2962 = vshrl.u32 %v2961, 7
          %v2963 = vsub.s32 7, %v2962
          %v2964 = vrot.slane %v1009, %v2963
          %v2965 = vlaneseq
          %v2966 = vshrl.u32 %v2965, 7
          %v2967 = vsub.s32 0, %v2966
          %v2968 = vrot.slane %v1010, %v2967
          %v2969 = vlaneseq
          %v2970 = vshrl.u32 %v2969, 7
          %v2971 = vsub.s32 1, %v2970
          %v2972 = vrot.slane %v1010, %v2971
          %v2973 = vlaneseq
          %v2974 = vshrl.u32 %v2973, 7
          %v2975 = vsub.s32 2, %v2974
          %v2976 = vrot.slane %v1010, %v2975
          %v2977 = vlaneseq
          %v2978 = vshrl.u32 %v2977, 7
          %v2979 = vsub.s32 3, %v2978
          %v2980 = vrot.slane %v1010, %v2979
          %v2981 = vlaneseq
          %v2982 = vshrl.u32 %v2981, 7
          %v2983 = vsub.s32 4, %v2982
          %v2984 = vrot.slane %v1010, %v2983
          %v2985 = vlaneseq
          %v2986 = vshrl.u32 %v2985, 7
          %v2987 = vsub.s32 5, %v2986
          %v2988 = vrot.slane %v1010, %v2987
          %v2989 = vlaneseq
          %v2990 = vshrl.u32 %v2989, 7
          %v2991 = vsub.s32 6, %v2990
          %v2992 = vrot.slane %v1010, %v2991
          %v2993 = vlaneseq
          %v2994 = vshrl.u32 %v2993, 7
          %v2995 = vsub.s32 7, %v2994
          %v2996 = vrot.slane %v1010, %v2995
          %v2997 = vlaneseq
          %v2998 = vshrl.u32 %v2997, 7
          %v2999 = vsub.s32 0, %v2998
          %v3000 = vrot.slane %v1011, %v2999
          %v3001 = vlaneseq
          %v3002 = vshrl.u32 %v3001, 7
          %v3003 = vsub.s32 1, %v3002
          %v3004 = vrot.slane %v1011, %v3003
          %v3005 = vlaneseq
          %v3006 = vshrl.u32 %v3005, 7
          %v3007 = vsub.s32 2, %v3006
          %v3008 = vrot.slane %v1011, %v3007
          %v3009 = vlaneseq
          %v3010 = vshrl.u32 %v3009, 7
          %v3011 = vsub.s32 3, %v3010
          %v3012 = vrot.slane %v1011, %v3011
          %v3013 = vlaneseq
          %v3014 = vshrl.u32 %v3013, 7
          %v3015 = vsub.s32 4, %v3014
          %v3016 = vrot.slane %v1011, %v3015
          %v3017 = vlaneseq
          %v3018 = vshrl.u32 %v3017, 7
          %v3019 = vsub.s32 5, %v3018
          %v3020 = vrot.slane %v1011, %v3019
          %v3021 = vlaneseq
          %v3022 = vshrl.u32 %v3021, 7
          %v3023 = vsub.s32 6, %v3022
          %v3024 = vrot.slane %v1011, %v3023
          %v3025 = vlaneseq
          %v3026 = vshrl.u32 %v3025, 7
          %v3027 = vsub.s32 7, %v3026
          %v3028 = vrot.slane %v1011, %v3027
          %v3029 = vlaneseq
          %v3030 = vshrl.u32 %v3029, 7
          %v3031 = vsub.s32 0, %v3030
          %v3032 = vrot.slane %v1012, %v3031
          %v3033 = vlaneseq
          %v3034 = vshrl.u32 %v3033, 7
          %v3035 = vsub.s32 1, %v3034
          %v3036 = vrot.slane %v1012, %v3035
          %v3037 = vlaneseq
          %v3038 = vshrl.u32 %v3037, 7
          %v3039 = vsub.s32 2, %v3038
          %v3040 = vrot.slane %v1012, %v3039
          %v3041 = vlaneseq
          %v3042 = vshrl.u32 %v3041, 7
          %v3043 = vsub.s32 3, %v3042
          %v3044 = vrot.slane %v1012, %v3043
          %v3045 = vlaneseq
          %v3046 = vshrl.u32 %v3045, 7
          %v3047 = vsub.s32 4, %v3046
          %v3048 = vrot.slane %v1012, %v3047
          %v3049 = vlaneseq
          %v3050 = vshrl.u32 %v3049, 7
          %v3051 = vsub.s32 5, %v3050
          %v3052 = vrot.slane %v1012, %v3051
          %v3053 = vlaneseq
          %v3054 = vshrl.u32 %v3053, 7
          %v3055 = vsub.s32 6, %v3054
          %v3056 = vrot.slane %v1012, %v3055
          %v3057 = vlaneseq
          %v3058 = vshrl.u32 %v3057, 7
          %v3059 = vsub.s32 7, %v3058
          %v3060 = vrot.slane %v1012, %v3059
          %v3062 = vpack.i.b16 %v1016, %v1016
          %v3064 = vlaneseq
          %v3065 = vshrl.u32 %v3064, 7
          %v3066 = vsub.s32 0, %v3065
          %v3067 = vrot.slane %v3062, %v3066
          %v3069 = vpack.i.b16 %v1020, %v1020
          %v3071 = vlaneseq
          %v3072 = vshrl.u32 %v3071, 7
          %v3073 = vsub.s32 0, %v3072
          %v3074 = vrot.slane %v3069, %v3073
          %v3076 = vpack.i.b16 %v1024, %v1024
          %v3078 = vlaneseq
          %v3079 = vshrl.u32 %v3078, 7
          %v3080 = vsub.s32 0, %v3079
          %v3081 = vrot.slane %v3076, %v3080
          %v3083 = vpack.i.b16 %v1028, %v1028
          %v3085 = vlaneseq
          %v3086 = vshrl.u32 %v3085, 7
          %v3087 = vsub.s32 0, %v3086
          %v3088 = vrot.slane %v3083, %v3087
          %v3090 = vpack.i.b16 %v1032, %v1032
          %v3092 = vlaneseq
          %v3093 = vshrl.u32 %v3092, 7
          %v3094 = vsub.s32 0, %v3093
          %v3095 = vrot.slane %v3090, %v3094
          %v3097 = vpack.i.b16 %v1036, %v1036
          %v3099 = vlaneseq
          %v3100 = vshrl.u32 %v3099, 7
          %v3101 = vsub.s32 0, %v3100
          %v3102 = vrot.slane %v3097, %v3101
          %v3104 = vpack.i.b16 %v1040, %v1040
          %v3106 = vlaneseq
          %v3107 = vshrl.u32 %v3106, 7
          %v3108 = vsub.s32 0, %v3107
          %v3109 = vrot.slane %v3104, %v3108
          %v3111 = vpack.i.b16 %v1044, %v1044
          %v3113 = vlaneseq
          %v3114 = vshrl.u32 %v3113, 7
          %v3115 = vsub.s32 0, %v3114
          %v3116 = vrot.slane %v3111, %v3115
          %v3118 = vpack.i.b16 %v1048, %v1048
          %v3120 = vlaneseq
          %v3121 = vshrl.u32 %v3120, 7
          %v3122 = vsub.s32 0, %v3121
          %v3123 = vrot.slane %v3118, %v3122
          %v3125 = vpack.i.b16 %v1052, %v1052
          %v3127 = vlaneseq
          %v3128 = vshrl.u32 %v3127, 7
          %v3129 = vsub.s32 0, %v3128
          %v3130 = vrot.slane %v3125, %v3129
          %v3132 = vpack.i.b16 %v1056, %v1056
          %v3134 = vlaneseq
          %v3135 = vshrl.u32 %v3134, 7
          %v3136 = vsub.s32 0, %v3135
          %v3137 = vrot.slane %v3132, %v3136
          %v3139 = vpack.i.b16 %v1060, %v1060
          %v3141 = vlaneseq
          %v3142 = vshrl.u32 %v3141, 7
          %v3143 = vsub.s32 0, %v3142
          %v3144 = vrot.slane %v3139, %v3143
          %v3146 = vpack.i.b16 %v1064, %v1064
          %v3148 = vlaneseq
          %v3149 = vshrl.u32 %v3148, 7
          %v3150 = vsub.s32 0, %v3149
          %v3151 = vrot.slane %v3146, %v3150
          %v3153 = vpack.i.b16 %v1068, %v1068
          %v3155 = vlaneseq
          %v3156 = vshrl.u32 %v3155, 7
          %v3157 = vsub.s32 0, %v3156
          %v3158 = vrot.slane %v3153, %v3157
          %v3160 = vpack.i.b16 %v1072, %v1072
          %v3162 = vlaneseq
          %v3163 = vshrl.u32 %v3162, 7
          %v3164 = vsub.s32 0, %v3163
          %v3165 = vrot.slane %v3160, %v3164
          %v3167 = vpack.i.b16 %v1076, %v1076
          %v3169 = vlaneseq
          %v3170 = vshrl.u32 %v3169, 7
          %v3171 = vsub.s32 0, %v3170
          %v3172 = vrot.slane %v3167, %v3171
          %v3174 = vpack.i.b16 %v1080, %v1080
          %v3176 = vlaneseq
          %v3177 = vshrl.u32 %v3176, 7
          %v3178 = vsub.s32 0, %v3177
          %v3179 = vrot.slane %v3174, %v3178
          %v3181 = vpack.i.b16 %v1084, %v1084
          %v3183 = vlaneseq
          %v3184 = vshrl.u32 %v3183, 7
          %v3185 = vsub.s32 0, %v3184
          %v3186 = vrot.slane %v3181, %v3185
          %v3188 = vpack.i.b16 %v1088, %v1088
          %v3190 = vlaneseq
          %v3191 = vshrl.u32 %v3190, 7
          %v3192 = vsub.s32 0, %v3191
          %v3193 = vrot.slane %v3188, %v3192
          %v3195 = vpack.i.b16 %v1092, %v1092
          %v3197 = vlaneseq
          %v3198 = vshrl.u32 %v3197, 7
          %v3199 = vsub.s32 0, %v3198
          %v3200 = vrot.slane %v3195, %v3199
          %v3202 = vpack.i.b16 %v1096, %v1096
          %v3204 = vlaneseq
          %v3205 = vshrl.u32 %v3204, 7
          %v3206 = vsub.s32 0, %v3205
          %v3207 = vrot.slane %v3202, %v3206
          %v3209 = vpack.i.b16 %v1100, %v1100
          %v3211 = vlaneseq
          %v3212 = vshrl.u32 %v3211, 7
          %v3213 = vsub.s32 0, %v3212
          %v3214 = vrot.slane %v3209, %v3213
          %v3216 = vpack.i.b16 %v1104, %v1104
          %v3218 = vlaneseq
          %v3219 = vshrl.u32 %v3218, 7
          %v3220 = vsub.s32 0, %v3219
          %v3221 = vrot.slane %v3216, %v3220
          %v3223 = vpack.i.b16 %v1108, %v1108
          %v3225 = vlaneseq
          %v3226 = vshrl.u32 %v3225, 7
          %v3227 = vsub.s32 0, %v3226
          %v3228 = vrot.slane %v3223, %v3227
          %v3230 = vpack.i.b16 %v1112, %v1112
          %v3232 = vlaneseq
          %v3233 = vshrl.u32 %v3232, 7
          %v3234 = vsub.s32 0, %v3233
          %v3235 = vrot.slane %v3230, %v3234
          %v3237 = vpack.i.b16 %v1116, %v1116
          %v3239 = vlaneseq
          %v3240 = vshrl.u32 %v3239, 7
          %v3241 = vsub.s32 0, %v3240
          %v3242 = vrot.slane %v3237, %v3241
          %v3244 = vpack.i.b16 %v1120, %v1120
          %v3246 = vlaneseq
          %v3247 = vshrl.u32 %v3246, 7
          %v3248 = vsub.s32 0, %v3247
          %v3249 = vrot.slane %v3244, %v3248
          %v3251 = vpack.i.b16 %v1124, %v1124
          %v3253 = vlaneseq
          %v3254 = vshrl.u32 %v3253, 7
          %v3255 = vsub.s32 0, %v3254
          %v3256 = vrot.slane %v3251, %v3255
          %v3258 = vpack.i.b16 %v1128, %v1128
          %v3260 = vlaneseq
          %v3261 = vshrl.u32 %v3260, 7
          %v3262 = vsub.s32 0, %v3261
          %v3263 = vrot.slane %v3258, %v3262
          %v3265 = vpack.i.b16 %v1132, %v1132
          %v3267 = vlaneseq
          %v3268 = vshrl.u32 %v3267, 7
          %v3269 = vsub.s32 0, %v3268
          %v3270 = vrot.slane %v3265, %v3269
          %v3272 = vpack.i.b16 %v1136, %v1136
          %v3274 = vlaneseq
          %v3275 = vshrl.u32 %v3274, 7
          %v3276 = vsub.s32 0, %v3275
          %v3277 = vrot.slane %v3272, %v3276
          %v3279 = vpack.i.b16 %v1140, %v1140
          %v3281 = vlaneseq
          %v3282 = vshrl.u32 %v3281, 7
          %v3283 = vsub.s32 0, %v3282
          %v3284 = vrot.slane %v3279, %v3283
          %v3286 = vpack.i.b16 %v1144, %v1144
          %v3288 = vlaneseq
          %v3289 = vshrl.u32 %v3288, 7
          %v3290 = vsub.s32 0, %v3289
          %v3291 = vrot.slane %v3286, %v3290
          %v3293 = vpack.i.b16 %v1148, %v1148
          %v3295 = vlaneseq
          %v3296 = vshrl.u32 %v3295, 7
          %v3297 = vsub.s32 0, %v3296
          %v3298 = vrot.slane %v3293, %v3297
          %v3300 = vpack.i.b16 %v1152, %v1152
          %v3302 = vlaneseq
          %v3303 = vshrl.u32 %v3302, 7
          %v3304 = vsub.s32 0, %v3303
          %v3305 = vrot.slane %v3300, %v3304
          %v3307 = vpack.i.b16 %v1156, %v1156
          %v3309 = vlaneseq
          %v3310 = vshrl.u32 %v3309, 7
          %v3311 = vsub.s32 0, %v3310
          %v3312 = vrot.slane %v3307, %v3311
          %v3314 = vpack.i.b16 %v1160, %v1160
          %v3316 = vlaneseq
          %v3317 = vshrl.u32 %v3316, 7
          %v3318 = vsub.s32 0, %v3317
          %v3319 = vrot.slane %v3314, %v3318
          %v3321 = vpack.i.b16 %v1164, %v1164
          %v3323 = vlaneseq
          %v3324 = vshrl.u32 %v3323, 7
          %v3325 = vsub.s32 0, %v3324
          %v3326 = vrot.slane %v3321, %v3325
          %v3328 = vpack.i.b16 %v1168, %v1168
          %v3330 = vlaneseq
          %v3331 = vshrl.u32 %v3330, 7
          %v3332 = vsub.s32 0, %v3331
          %v3333 = vrot.slane %v3328, %v3332
          %v3335 = vpack.i.b16 %v1172, %v1172
          %v3337 = vlaneseq
          %v3338 = vshrl.u32 %v3337, 7
          %v3339 = vsub.s32 0, %v3338
          %v3340 = vrot.slane %v3335, %v3339
          %v3342 = vpack.i.b16 %v1176, %v1176
          %v3344 = vlaneseq
          %v3345 = vshrl.u32 %v3344, 7
          %v3346 = vsub.s32 0, %v3345
          %v3347 = vrot.slane %v3342, %v3346
          %v3349 = vpack.i.b16 %v1180, %v1180
          %v3351 = vlaneseq
          %v3352 = vshrl.u32 %v3351, 7
          %v3353 = vsub.s32 0, %v3352
          %v3354 = vrot.slane %v3349, %v3353
          %v3356 = vpack.i.b16 %v1184, %v1184
          %v3358 = vlaneseq
          %v3359 = vshrl.u32 %v3358, 7
          %v3360 = vsub.s32 0, %v3359
          %v3361 = vrot.slane %v3356, %v3360
          %v3363 = vpack.i.b16 %v1188, %v1188
          %v3365 = vlaneseq
          %v3366 = vshrl.u32 %v3365, 7
          %v3367 = vsub.s32 0, %v3366
          %v3368 = vrot.slane %v3363, %v3367
          %v3370 = vpack.i.b16 %v1192, %v1192
          %v3372 = vlaneseq
          %v3373 = vshrl.u32 %v3372, 7
          %v3374 = vsub.s32 0, %v3373
          %v3375 = vrot.slane %v3370, %v3374
          %v3377 = vpack.i.b16 %v1196, %v1196
          %v3379 = vlaneseq
          %v3380 = vshrl.u32 %v3379, 7
          %v3381 = vsub.s32 0, %v3380
          %v3382 = vrot.slane %v3377, %v3381
          %v3384 = vpack.i.b16 %v1200, %v1200
          %v3386 = vlaneseq
          %v3387 = vshrl.u32 %v3386, 7
          %v3388 = vsub.s32 0, %v3387
          %v3389 = vrot.slane %v3384, %v3388
          %v3391 = vpack.i.b16 %v1204, %v1204
          %v3393 = vlaneseq
          %v3394 = vshrl.u32 %v3393, 7
          %v3395 = vsub.s32 0, %v3394
          %v3396 = vrot.slane %v3391, %v3395
          %v3398 = vpack.i.b16 %v1208, %v1208
          %v3400 = vlaneseq
          %v3401 = vshrl.u32 %v3400, 7
          %v3402 = vsub.s32 0, %v3401
          %v3403 = vrot.slane %v3398, %v3402
          %v3405 = vpack.i.b16 %v1212, %v1212
          %v3407 = vlaneseq
          %v3408 = vshrl.u32 %v3407, 7
          %v3409 = vsub.s32 0, %v3408
          %v3410 = vrot.slane %v3405, %v3409
          %v3412 = vpack.i.b16 %v1216, %v1216
          %v3414 = vlaneseq
          %v3415 = vshrl.u32 %v3414, 7
          %v3416 = vsub.s32 0, %v3415
          %v3417 = vrot.slane %v3412, %v3416
          %v3419 = vpack.i.b16 %v1220, %v1220
          %v3421 = vlaneseq
          %v3422 = vshrl.u32 %v3421, 7
          %v3423 = vsub.s32 0, %v3422
          %v3424 = vrot.slane %v3419, %v3423
          %v3426 = vpack.i.b16 %v1224, %v1224
          %v3428 = vlaneseq
          %v3429 = vshrl.u32 %v3428, 7
          %v3430 = vsub.s32 0, %v3429
          %v3431 = vrot.slane %v3426, %v3430
          %v3433 = vpack.i.b16 %v1228, %v1228
          %v3435 = vlaneseq
          %v3436 = vshrl.u32 %v3435, 7
          %v3437 = vsub.s32 0, %v3436
          %v3438 = vrot.slane %v3433, %v3437
          %v3440 = vpack.i.b16 %v1232, %v1232
          %v3442 = vlaneseq
          %v3443 = vshrl.u32 %v3442, 7
          %v3444 = vsub.s32 0, %v3443
          %v3445 = vrot.slane %v3440, %v3444
          %v3447 = vpack.i.b16 %v1236, %v1236
          %v3449 = vlaneseq
          %v3450 = vshrl.u32 %v3449, 7
          %v3451 = vsub.s32 0, %v3450
          %v3452 = vrot.slane %v3447, %v3451
          %v3454 = vpack.i.b16 %v1240, %v1240
          %v3456 = vlaneseq
          %v3457 = vshrl.u32 %v3456, 7
          %v3458 = vsub.s32 0, %v3457
          %v3459 = vrot.slane %v3454, %v3458
          %v3461 = vpack.i.b16 %v1244, %v1244
          %v3463 = vlaneseq
          %v3464 = vshrl.u32 %v3463, 7
          %v3465 = vsub.s32 0, %v3464
          %v3466 = vrot.slane %v3461, %v3465
          %v3468 = vpack.i.b16 %v1248, %v1248
          %v3470 = vlaneseq
          %v3471 = vshrl.u32 %v3470, 7
          %v3472 = vsub.s32 0, %v3471
          %v3473 = vrot.slane %v3468, %v3472
          %v3475 = vpack.i.b16 %v1252, %v1252
          %v3477 = vlaneseq
          %v3478 = vshrl.u32 %v3477, 7
          %v3479 = vsub.s32 0, %v3478
          %v3480 = vrot.slane %v3475, %v3479
          %v3482 = vpack.i.b16 %v1256, %v1256
          %v3484 = vlaneseq
          %v3485 = vshrl.u32 %v3484, 7
          %v3486 = vsub.s32 0, %v3485
          %v3487 = vrot.slane %v3482, %v3486
          %v3489 = vpack.i.b16 %v1260, %v1260
          %v3491 = vlaneseq
          %v3492 = vshrl.u32 %v3491, 7
          %v3493 = vsub.s32 0, %v3492
          %v3494 = vrot.slane %v3489, %v3493
          %v3496 = vpack.i.b16 %v1264, %v1264
          %v3498 = vlaneseq
          %v3499 = vshrl.u32 %v3498, 7
          %v3500 = vsub.s32 0, %v3499
          %v3501 = vrot.slane %v3496, %v3500
          %v3503 = vpack.i.b16 %v1268, %v1268
          %v3505 = vlaneseq
          %v3506 = vshrl.u32 %v3505, 7
          %v3507 = vsub.s32 0, %v3506
          %v3508 = vrot.slane %v3503, %v3507
          %v3510 = vpack.i.b16 %v1272, %v1272
          %v3512 = vlaneseq
          %v3513 = vshrl.u32 %v3512, 7
          %v3514 = vsub.s32 0, %v3513
          %v3515 = vrot.slane %v3510, %v3514
          %v3517 = vpack.i.b16 %v1276, %v1276
          %v3519 = vlaneseq
          %v3520 = vshrl.u32 %v3519, 7
          %v3521 = vsub.s32 0, %v3520
          %v3522 = vrot.slane %v3517, %v3521
          %v3524 = vpack.i.b16 %v1280, %v1280
          %v3526 = vlaneseq
          %v3527 = vshrl.u32 %v3526, 7
          %v3528 = vsub.s32 0, %v3527
          %v3529 = vrot.slane %v3524, %v3528
          %v3531 = vpack.i.b16 %v1284, %v1284
          %v3533 = vlaneseq
          %v3534 = vshrl.u32 %v3533, 7
          %v3535 = vsub.s32 0, %v3534
          %v3536 = vrot.slane %v3531, %v3535
          %v3538 = vpack.i.b16 %v1288, %v1288
          %v3540 = vlaneseq
          %v3541 = vshrl.u32 %v3540, 7
          %v3542 = vsub.s32 0, %v3541
          %v3543 = vrot.slane %v3538, %v3542
          %v3545 = vpack.i.b16 %v1292, %v1292
          %v3547 = vlaneseq
          %v3548 = vshrl.u32 %v3547, 7
          %v3549 = vsub.s32 0, %v3548
          %v3550 = vrot.slane %v3545, %v3549
          %v3552 = vpack.i.b16 %v1296, %v1296
          %v3554 = vlaneseq
          %v3555 = vshrl.u32 %v3554, 7
          %v3556 = vsub.s32 0, %v3555
          %v3557 = vrot.slane %v3552, %v3556
          %v3559 = vpack.i.b16 %v1300, %v1300
          %v3561 = vlaneseq
          %v3562 = vshrl.u32 %v3561, 7
          %v3563 = vsub.s32 0, %v3562
          %v3564 = vrot.slane %v3559, %v3563
          %v3566 = vpack.i.b16 %v1304, %v1304
          %v3568 = vlaneseq
          %v3569 = vshrl.u32 %v3568, 7
          %v3570 = vsub.s32 0, %v3569
          %v3571 = vrot.slane %v3566, %v3570
          %v3573 = vpack.i.b16 %v1308, %v1308
          %v3575 = vlaneseq
          %v3576 = vshrl.u32 %v3575, 7
          %v3577 = vsub.s32 0, %v3576
          %v3578 = vrot.slane %v3573, %v3577
          %v3580 = vpack.i.b16 %v1312, %v1312
          %v3582 = vlaneseq
          %v3583 = vshrl.u32 %v3582, 7
          %v3584 = vsub.s32 0, %v3583
          %v3585 = vrot.slane %v3580, %v3584
          %v3587 = vpack.i.b16 %v1316, %v1316
          %v3589 = vlaneseq
          %v3590 = vshrl.u32 %v3589, 7
          %v3591 = vsub.s32 0, %v3590
          %v3592 = vrot.slane %v3587, %v3591
          %v3594 = vpack.i.b16 %v1320, %v1320
          %v3596 = vlaneseq
          %v3597 = vshrl.u32 %v3596, 7
          %v3598 = vsub.s32 0, %v3597
          %v3599 = vrot.slane %v3594, %v3598
          %v3601 = vpack.i.b16 %v1324, %v1324
          %v3603 = vlaneseq
          %v3604 = vshrl.u32 %v3603, 7
          %v3605 = vsub.s32 0, %v3604
          %v3606 = vrot.slane %v3601, %v3605
          %v3608 = vpack.i.b16 %v1328, %v1328
          %v3610 = vlaneseq
          %v3611 = vshrl.u32 %v3610, 7
          %v3612 = vsub.s32 0, %v3611
          %v3613 = vrot.slane %v3608, %v3612
          %v3615 = vpack.i.b16 %v1332, %v1332
          %v3617 = vlaneseq
          %v3618 = vshrl.u32 %v3617, 7
          %v3619 = vsub.s32 0, %v3618
          %v3620 = vrot.slane %v3615, %v3619
          %v3622 = vpack.i.b16 %v1336, %v1336
          %v3624 = vlaneseq
          %v3625 = vshrl.u32 %v3624, 7
          %v3626 = vsub.s32 0, %v3625
          %v3627 = vrot.slane %v3622, %v3626
          %v3629 = vpack.i.b16 %v1340, %v1340
          %v3631 = vlaneseq
          %v3632 = vshrl.u32 %v3631, 7
          %v3633 = vsub.s32 0, %v3632
          %v3634 = vrot.slane %v3629, %v3633
          %v3636 = vpack.i.b16 %v1344, %v1344
          %v3638 = vlaneseq
          %v3639 = vshrl.u32 %v3638, 7
          %v3640 = vsub.s32 0, %v3639
          %v3641 = vrot.slane %v3636, %v3640
          %v3643 = vpack.i.b16 %v1348, %v1348
          %v3645 = vlaneseq
          %v3646 = vshrl.u32 %v3645, 7
          %v3647 = vsub.s32 0, %v3646
          %v3648 = vrot.slane %v3643, %v3647
          %v3650 = vpack.i.b16 %v1352, %v1352
          %v3652 = vlaneseq
          %v3653 = vshrl.u32 %v3652, 7
          %v3654 = vsub.s32 0, %v3653
          %v3655 = vrot.slane %v3650, %v3654
          %v3657 = vpack.i.b16 %v1356, %v1356
          %v3659 = vlaneseq
          %v3660 = vshrl.u32 %v3659, 7
          %v3661 = vsub.s32 0, %v3660
          %v3662 = vrot.slane %v3657, %v3661
          %v3664 = vpack.i.b16 %v1360, %v1360
          %v3666 = vlaneseq
          %v3667 = vshrl.u32 %v3666, 7
          %v3668 = vsub.s32 0, %v3667
          %v3669 = vrot.slane %v3664, %v3668
          %v3671 = vpack.i.b16 %v1364, %v1364
          %v3673 = vlaneseq
          %v3674 = vshrl.u32 %v3673, 7
          %v3675 = vsub.s32 0, %v3674
          %v3676 = vrot.slane %v3671, %v3675
          %v3678 = vpack.i.b16 %v1368, %v1368
          %v3680 = vlaneseq
          %v3681 = vshrl.u32 %v3680, 7
          %v3682 = vsub.s32 0, %v3681
          %v3683 = vrot.slane %v3678, %v3682
          %v3685 = vpack.i.b16 %v1372, %v1372
          %v3687 = vlaneseq
          %v3688 = vshrl.u32 %v3687, 7
          %v3689 = vsub.s32 0, %v3688
          %v3690 = vrot.slane %v3685, %v3689
          %v3692 = vpack.i.b16 %v1376, %v1376
          %v3694 = vlaneseq
          %v3695 = vshrl.u32 %v3694, 7
          %v3696 = vsub.s32 0, %v3695
          %v3697 = vrot.slane %v3692, %v3696
          %v3699 = vpack.i.b16 %v1380, %v1380
          %v3701 = vlaneseq
          %v3702 = vshrl.u32 %v3701, 7
          %v3703 = vsub.s32 0, %v3702
          %v3704 = vrot.slane %v3699, %v3703
          %v3706 = vpack.i.b16 %v1384, %v1384
          %v3708 = vlaneseq
          %v3709 = vshrl.u32 %v3708, 7
          %v3710 = vsub.s32 0, %v3709
          %v3711 = vrot.slane %v3706, %v3710
          %v3713 = vpack.i.b16 %v1388, %v1388
          %v3715 = vlaneseq
          %v3716 = vshrl.u32 %v3715, 7
          %v3717 = vsub.s32 0, %v3716
          %v3718 = vrot.slane %v3713, %v3717
          %v3720 = vpack.i.b16 %v1392, %v1392
          %v3722 = vlaneseq
          %v3723 = vshrl.u32 %v3722, 7
          %v3724 = vsub.s32 0, %v3723
          %v3725 = vrot.slane %v3720, %v3724
          %v3727 = vpack.i.b16 %v1396, %v1396
          %v3729 = vlaneseq
          %v3730 = vshrl.u32 %v3729, 7
          %v3731 = vsub.s32 0, %v3730
          %v3732 = vrot.slane %v3727, %v3731
          %v3734 = vpack.i.b16 %v1400, %v1400
          %v3736 = vlaneseq
          %v3737 = vshrl.u32 %v3736, 7
          %v3738 = vsub.s32 0, %v3737
          %v3739 = vrot.slane %v3734, %v3738
          %v3741 = vpack.i.b16 %v1404, %v1404
          %v3743 = vlaneseq
          %v3744 = vshrl.u32 %v3743, 7
          %v3745 = vsub.s32 0, %v3744
          %v3746 = vrot.slane %v3741, %v3745
          %v3748 = vpack.i.b16 %v1408, %v1408
          %v3750 = vlaneseq
          %v3751 = vshrl.u32 %v3750, 7
          %v3752 = vsub.s32 0, %v3751
          %v3753 = vrot.slane %v3748, %v3752
          %v3755 = vpack.i.b16 %v1412, %v1412
          %v3757 = vlaneseq
          %v3758 = vshrl.u32 %v3757, 7
          %v3759 = vsub.s32 0, %v3758
          %v3760 = vrot.slane %v3755, %v3759
          %v3762 = vpack.i.b16 %v1416, %v1416
          %v3764 = vlaneseq
          %v3765 = vshrl.u32 %v3764, 7
          %v3766 = vsub.s32 0, %v3765
          %v3767 = vrot.slane %v3762, %v3766
          %v3769 = vpack.i.b16 %v1420, %v1420
          %v3771 = vlaneseq
          %v3772 = vshrl.u32 %v3771, 7
          %v3773 = vsub.s32 0, %v3772
          %v3774 = vrot.slane %v3769, %v3773
          %v3776 = vpack.i.b16 %v1424, %v1424
          %v3778 = vlaneseq
          %v3779 = vshrl.u32 %v3778, 7
          %v3780 = vsub.s32 0, %v3779
          %v3781 = vrot.slane %v3776, %v3780
          %v3783 = vpack.i.b16 %v1428, %v1428
          %v3785 = vlaneseq
          %v3786 = vshrl.u32 %v3785, 7
          %v3787 = vsub.s32 0, %v3786
          %v3788 = vrot.slane %v3783, %v3787
          %v3790 = vpack.i.b16 %v1432, %v1432
          %v3792 = vlaneseq
          %v3793 = vshrl.u32 %v3792, 7
          %v3794 = vsub.s32 0, %v3793
          %v3795 = vrot.slane %v3790, %v3794
          %v3797 = vpack.i.b16 %v1436, %v1436
          %v3799 = vlaneseq
          %v3800 = vshrl.u32 %v3799, 7
          %v3801 = vsub.s32 0, %v3800
          %v3802 = vrot.slane %v3797, %v3801
          %v3804 = vpack.i.b16 %v1440, %v1440
          %v3806 = vlaneseq
          %v3807 = vshrl.u32 %v3806, 7
          %v3808 = vsub.s32 0, %v3807
          %v3809 = vrot.slane %v3804, %v3808
          %v3811 = vpack.i.b16 %v1444, %v1444
          %v3813 = vlaneseq
          %v3814 = vshrl.u32 %v3813, 7
          %v3815 = vsub.s32 0, %v3814
          %v3816 = vrot.slane %v3811, %v3815
          %v3818 = vpack.i.b16 %v1448, %v1448
          %v3820 = vlaneseq
          %v3821 = vshrl.u32 %v3820, 7
          %v3822 = vsub.s32 0, %v3821
          %v3823 = vrot.slane %v3818, %v3822
          %v3825 = vpack.i.b16 %v1452, %v1452
          %v3827 = vlaneseq
          %v3828 = vshrl.u32 %v3827, 7
          %v3829 = vsub.s32 0, %v3828
          %v3830 = vrot.slane %v3825, %v3829
          %v3832 = vpack.i.b16 %v1456, %v1456
          %v3834 = vlaneseq
          %v3835 = vshrl.u32 %v3834, 7
          %v3836 = vsub.s32 0, %v3835
          %v3837 = vrot.slane %v3832, %v3836
          %v3839 = vpack.i.b16 %v1460, %v1460
          %v3841 = vlaneseq
          %v3842 = vshrl.u32 %v3841, 7
          %v3843 = vsub.s32 0, %v3842
          %v3844 = vrot.slane %v3839, %v3843
          %v3846 = vpack.i.b16 %v1464, %v1464
          %v3848 = vlaneseq
          %v3849 = vshrl.u32 %v3848, 7
          %v3850 = vsub.s32 0, %v3849
          %v3851 = vrot.slane %v3846, %v3850
          %v3853 = vpack.i.b16 %v1468, %v1468
          %v3855 = vlaneseq
          %v3856 = vshrl.u32 %v3855, 7
          %v3857 = vsub.s32 0, %v3856
          %v3858 = vrot.slane %v3853, %v3857
          %v3860 = vpack.i.b16 %v1472, %v1472
          %v3862 = vlaneseq
          %v3863 = vshrl.u32 %v3862, 7
          %v3864 = vsub.s32 0, %v3863
          %v3865 = vrot.slane %v3860, %v3864
          %v3867 = vpack.i.b16 %v1476, %v1476
          %v3869 = vlaneseq
          %v3870 = vshrl.u32 %v3869, 7
          %v3871 = vsub.s32 0, %v3870
          %v3872 = vrot.slane %v3867, %v3871
          %v3874 = vpack.i.b16 %v1480, %v1480
          %v3876 = vlaneseq
          %v3877 = vshrl.u32 %v3876, 7
          %v3878 = vsub.s32 0, %v3877
          %v3879 = vrot.slane %v3874, %v3878
          %v3881 = vpack.i.b16 %v1484, %v1484
          %v3883 = vlaneseq
          %v3884 = vshrl.u32 %v3883, 7
          %v3885 = vsub.s32 0, %v3884
          %v3886 = vrot.slane %v3881, %v3885
          %v3888 = vpack.i.b16 %v1488, %v1488
          %v3890 = vlaneseq
          %v3891 = vshrl.u32 %v3890, 7
          %v3892 = vsub.s32 0, %v3891
          %v3893 = vrot.slane %v3888, %v3892
          %v3895 = vpack.i.b16 %v1492, %v1492
          %v3897 = vlaneseq
          %v3898 = vshrl.u32 %v3897, 7
          %v3899 = vsub.s32 0, %v3898
          %v3900 = vrot.slane %v3895, %v3899
          %v3902 = vpack.i.b16 %v1496, %v1496
          %v3904 = vlaneseq
          %v3905 = vshrl.u32 %v3904, 7
          %v3906 = vsub.s32 0, %v3905
          %v3907 = vrot.slane %v3902, %v3906
          %v3909 = vpack.i.b16 %v1500, %v1500
          %v3911 = vlaneseq
          %v3912 = vshrl.u32 %v3911, 7
          %v3913 = vsub.s32 0, %v3912
          %v3914 = vrot.slane %v3909, %v3913
          %v3916 = vpack.i.b16 %v1504, %v1504
          %v3918 = vlaneseq
          %v3919 = vshrl.u32 %v3918, 7
          %v3920 = vsub.s32 0, %v3919
          %v3921 = vrot.slane %v3916, %v3920
          %v3923 = vpack.i.b16 %v1508, %v1508
          %v3925 = vlaneseq
          %v3926 = vshrl.u32 %v3925, 7
          %v3927 = vsub.s32 0, %v3926
          %v3928 = vrot.slane %v3923, %v3927
          %v3930 = vpack.i.b16 %v1512, %v1512
          %v3932 = vlaneseq
          %v3933 = vshrl.u32 %v3932, 7
          %v3934 = vsub.s32 0, %v3933
          %v3935 = vrot.slane %v3930, %v3934
          %v3937 = vpack.i.b16 %v1516, %v1516
          %v3939 = vlaneseq
          %v3940 = vshrl.u32 %v3939, 7
          %v3941 = vsub.s32 0, %v3940
          %v3942 = vrot.slane %v3937, %v3941
          %v3944 = vpack.i.b16 %v1520, %v1520
          %v3946 = vlaneseq
          %v3947 = vshrl.u32 %v3946, 7
          %v3948 = vsub.s32 0, %v3947
          %v3949 = vrot.slane %v3944, %v3948
          %v3951 = vpack.i.b16 %v1524, %v1524
          %v3953 = vlaneseq
          %v3954 = vshrl.u32 %v3953, 7
          %v3955 = vsub.s32 0, %v3954
          %v3956 = vrot.slane %v3951, %v3955
          %v3958 = vpack.i.b16 %v1528, %v1528
          %v3960 = vlaneseq
          %v3961 = vshrl.u32 %v3960, 7
          %v3962 = vsub.s32 0, %v3961
          %v3963 = vrot.slane %v3958, %v3962
          %v3965 = vpack.i.b16 %v1532, %v1532
          %v3967 = vlaneseq
          %v3968 = vshrl.u32 %v3967, 7
          %v3969 = vsub.s32 0, %v3968
          %v3970 = vrot.slane %v3965, %v3969
          %v3972 = vpack.i.b16 %v1536, %v1536
          %v3974 = vlaneseq
          %v3975 = vshrl.u32 %v3974, 7
          %v3976 = vsub.s32 0, %v3975
          %v3977 = vrot.slane %v3972, %v3976
          %v3979 = vpack.i.b16 %v1540, %v1540
          %v3981 = vlaneseq
          %v3982 = vshrl.u32 %v3981, 7
          %v3983 = vsub.s32 0, %v3982
          %v3984 = vrot.slane %v3979, %v3983
          %v3986 = vpack.i.b16 %v1544, %v1544
          %v3988 = vlaneseq
          %v3989 = vshrl.u32 %v3988, 7
          %v3990 = vsub.s32 0, %v3989
          %v3991 = vrot.slane %v3986, %v3990
          %v3993 = vpack.i.b16 %v1548, %v1548
          %v3995 = vlaneseq
          %v3996 = vshrl.u32 %v3995, 7
          %v3997 = vsub.s32 0, %v3996
          %v3998 = vrot.slane %v3993, %v3997
          %v4000 = vpack.i.b16 %v1552, %v1552
          %v4002 = vlaneseq
          %v4003 = vshrl.u32 %v4002, 7
          %v4004 = vsub.s32 0, %v4003
          %v4005 = vrot.slane %v4000, %v4004
          %v4007 = vpack.i.b16 %v1556, %v1556
          %v4009 = vlaneseq
          %v4010 = vshrl.u32 %v4009, 7
          %v4011 = vsub.s32 0, %v4010
          %v4012 = vrot.slane %v4007, %v4011
          %v4014 = vpack.i.b16 %v1560, %v1560
          %v4016 = vlaneseq
          %v4017 = vshrl.u32 %v4016, 7
          %v4018 = vsub.s32 0, %v4017
          %v4019 = vrot.slane %v4014, %v4018
          %v4021 = vpack.i.b16 %v1564, %v1564
          %v4023 = vlaneseq
          %v4024 = vshrl.u32 %v4023, 7
          %v4025 = vsub.s32 0, %v4024
          %v4026 = vrot.slane %v4021, %v4025
          %v4028 = vpack.i.b16 %v1568, %v1568
          %v4030 = vlaneseq
          %v4031 = vshrl.u32 %v4030, 7
          %v4032 = vsub.s32 0, %v4031
          %v4033 = vrot.slane %v4028, %v4032
          %v4035 = vpack.i.b16 %v1572, %v1572
          %v4037 = vlaneseq
          %v4038 = vshrl.u32 %v4037, 7
          %v4039 = vsub.s32 0, %v4038
          %v4040 = vrot.slane %v4035, %v4039
          %v4042 = vpack.i.b16 %v1576, %v1576
          %v4044 = vlaneseq
          %v4045 = vshrl.u32 %v4044, 7
          %v4046 = vsub.s32 0, %v4045
          %v4047 = vrot.slane %v4042, %v4046
          %v4049 = vpack.i.b16 %v1580, %v1580
          %v4051 = vlaneseq
          %v4052 = vshrl.u32 %v4051, 7
          %v4053 = vsub.s32 0, %v4052
          %v4054 = vrot.slane %v4049, %v4053
          %v4056 = vpack.i.b16 %v1584, %v1584
          %v4058 = vlaneseq
          %v4059 = vshrl.u32 %v4058, 7
          %v4060 = vsub.s32 0, %v4059
          %v4061 = vrot.slane %v4056, %v4060
          %v4063 = vpack.i.b16 %v1588, %v1588
          %v4065 = vlaneseq
          %v4066 = vshrl.u32 %v4065, 7
          %v4067 = vsub.s32 0, %v4066
          %v4068 = vrot.slane %v4063, %v4067
          %v4070 = vpack.i.b16 %v1592, %v1592
          %v4072 = vlaneseq
          %v4073 = vshrl.u32 %v4072, 7
          %v4074 = vsub.s32 0, %v4073
          %v4075 = vrot.slane %v4070, %v4074
          %v4077 = vpack.i.b16 %v1596, %v1596
          %v4079 = vlaneseq
          %v4080 = vshrl.u32 %v4079, 7
          %v4081 = vsub.s32 0, %v4080
          %v4082 = vrot.slane %v4077, %v4081
          %v4084 = vpack.i.b16 %v1600, %v1600
          %v4086 = vlaneseq
          %v4087 = vshrl.u32 %v4086, 7
          %v4088 = vsub.s32 0, %v4087
          %v4089 = vrot.slane %v4084, %v4088
          %v4091 = vpack.i.b16 %v1604, %v1604
          %v4093 = vlaneseq
          %v4094 = vshrl.u32 %v4093, 7
          %v4095 = vsub.s32 0, %v4094
          %v4096 = vrot.slane %v4091, %v4095
          %v4098 = vpack.i.b16 %v1608, %v1608
          %v4100 = vlaneseq
          %v4101 = vshrl.u32 %v4100, 7
          %v4102 = vsub.s32 0, %v4101
          %v4103 = vrot.slane %v4098, %v4102
          %v4105 = vpack.i.b16 %v1612, %v1612
          %v4107 = vlaneseq
          %v4108 = vshrl.u32 %v4107, 7
          %v4109 = vsub.s32 0, %v4108
          %v4110 = vrot.slane %v4105, %v4109
          %v4112 = vpack.i.b16 %v1616, %v1616
          %v4114 = vlaneseq
          %v4115 = vshrl.u32 %v4114, 7
          %v4116 = vsub.s32 0, %v4115
          %v4117 = vrot.slane %v4112, %v4116
          %v4119 = vpack.i.b16 %v1620, %v1620
          %v4121 = vlaneseq
          %v4122 = vshrl.u32 %v4121, 7
          %v4123 = vsub.s32 0, %v4122
          %v4124 = vrot.slane %v4119, %v4123
          %v4126 = vpack.i.b16 %v1624, %v1624
          %v4128 = vlaneseq
          %v4129 = vshrl.u32 %v4128, 7
          %v4130 = vsub.s32 0, %v4129
          %v4131 = vrot.slane %v4126, %v4130
          %v4133 = vpack.i.b16 %v1628, %v1628
          %v4135 = vlaneseq
          %v4136 = vshrl.u32 %v4135, 7
          %v4137 = vsub.s32 0, %v4136
          %v4138 = vrot.slane %v4133, %v4137
          %v4140 = vpack.i.b16 %v1632, %v1632
          %v4142 = vlaneseq
          %v4143 = vshrl.u32 %v4142, 7
          %v4144 = vsub.s32 0, %v4143
          %v4145 = vrot.slane %v4140, %v4144
          %v4147 = vpack.i.b16 %v1636, %v1636
          %v4149 = vlaneseq
          %v4150 = vshrl.u32 %v4149, 7
          %v4151 = vsub.s32 0, %v4150
          %v4152 = vrot.slane %v4147, %v4151
          %v4154 = vpack.i.b16 %v1640, %v1640
          %v4156 = vlaneseq
          %v4157 = vshrl.u32 %v4156, 7
          %v4158 = vsub.s32 0, %v4157
          %v4159 = vrot.slane %v4154, %v4158
          %v4161 = vpack.i.b16 %v1644, %v1644
          %v4163 = vlaneseq
          %v4164 = vshrl.u32 %v4163, 7
          %v4165 = vsub.s32 0, %v4164
          %v4166 = vrot.slane %v4161, %v4165
          %v4168 = vpack.i.b16 %v1648, %v1648
          %v4170 = vlaneseq
          %v4171 = vshrl.u32 %v4170, 7
          %v4172 = vsub.s32 0, %v4171
          %v4173 = vrot.slane %v4168, %v4172
          %v4175 = vpack.i.b16 %v1652, %v1652
          %v4177 = vlaneseq
          %v4178 = vshrl.u32 %v4177, 7
          %v4179 = vsub.s32 0, %v4178
          %v4180 = vrot.slane %v4175, %v4179
          %v4182 = vpack.i.b16 %v1656, %v1656
          %v4184 = vlaneseq
          %v4185 = vshrl.u32 %v4184, 7
          %v4186 = vsub.s32 0, %v4185
          %v4187 = vrot.slane %v4182, %v4186
          %v4189 = vpack.i.b16 %v1660, %v1660
          %v4191 = vlaneseq
          %v4192 = vshrl.u32 %v4191, 7
          %v4193 = vsub.s32 0, %v4192
          %v4194 = vrot.slane %v4189, %v4193
          %v4196 = vpack.i.b16 %v1664, %v1664
          %v4198 = vlaneseq
          %v4199 = vshrl.u32 %v4198, 7
          %v4200 = vsub.s32 0, %v4199
          %v4201 = vrot.slane %v4196, %v4200
          %v4203 = vpack.i.b16 %v1668, %v1668
          %v4205 = vlaneseq
          %v4206 = vshrl.u32 %v4205, 7
          %v4207 = vsub.s32 0, %v4206
          %v4208 = vrot.slane %v4203, %v4207
          %v4210 = vpack.i.b16 %v1672, %v1672
          %v4212 = vlaneseq
          %v4213 = vshrl.u32 %v4212, 7
          %v4214 = vsub.s32 0, %v4213
          %v4215 = vrot.slane %v4210, %v4214
          %v4217 = vpack.i.b16 %v1676, %v1676
          %v4219 = vlaneseq
          %v4220 = vshrl.u32 %v4219, 7
          %v4221 = vsub.s32 0, %v4220
          %v4222 = vrot.slane %v4217, %v4221
          %v4224 = vpack.i.b16 %v1680, %v1680
          %v4226 = vlaneseq
          %v4227 = vshrl.u32 %v4226, 7
          %v4228 = vsub.s32 0, %v4227
          %v4229 = vrot.slane %v4224, %v4228
          %v4231 = vpack.i.b16 %v1684, %v1684
          %v4233 = vlaneseq
          %v4234 = vshrl.u32 %v4233, 7
          %v4235 = vsub.s32 0, %v4234
          %v4236 = vrot.slane %v4231, %v4235
          %v4238 = vpack.i.b16 %v1688, %v1688
          %v4240 = vlaneseq
          %v4241 = vshrl.u32 %v4240, 7
          %v4242 = vsub.s32 0, %v4241
          %v4243 = vrot.slane %v4238, %v4242
          %v4245 = vpack.i.b16 %v1692, %v1692
          %v4247 = vlaneseq
          %v4248 = vshrl.u32 %v4247, 7
          %v4249 = vsub.s32 0, %v4248
          %v4250 = vrot.slane %v4245, %v4249
          %v4252 = vpack.i.b16 %v1696, %v1696
          %v4254 = vlaneseq
          %v4255 = vshrl.u32 %v4254, 7
          %v4256 = vsub.s32 0, %v4255
          %v4257 = vrot.slane %v4252, %v4256
          %v4259 = vpack.i.b16 %v1700, %v1700
          %v4261 = vlaneseq
          %v4262 = vshrl.u32 %v4261, 7
          %v4263 = vsub.s32 0, %v4262
          %v4264 = vrot.slane %v4259, %v4263
          %v4266 = vpack.i.b16 %v1704, %v1704
          %v4268 = vlaneseq
          %v4269 = vshrl.u32 %v4268, 7
          %v4270 = vsub.s32 0, %v4269
          %v4271 = vrot.slane %v4266, %v4270
          %v4273 = vpack.i.b16 %v1708, %v1708
          %v4275 = vlaneseq
          %v4276 = vshrl.u32 %v4275, 7
          %v4277 = vsub.s32 0, %v4276
          %v4278 = vrot.slane %v4273, %v4277
          %v4280 = vpack.i.b16 %v1712, %v1712
          %v4282 = vlaneseq
          %v4283 = vshrl.u32 %v4282, 7
          %v4284 = vsub.s32 0, %v4283
          %v4285 = vrot.slane %v4280, %v4284
          %v4287 = vpack.i.b16 %v1716, %v1716
          %v4289 = vlaneseq
          %v4290 = vshrl.u32 %v4289, 7
          %v4291 = vsub.s32 0, %v4290
          %v4292 = vrot.slane %v4287, %v4291
          %v4294 = vpack.i.b16 %v1720, %v1720
          %v4296 = vlaneseq
          %v4297 = vshrl.u32 %v4296, 7
          %v4298 = vsub.s32 0, %v4297
          %v4299 = vrot.slane %v4294, %v4298
          %v4301 = vpack.i.b16 %v1724, %v1724
          %v4303 = vlaneseq
          %v4304 = vshrl.u32 %v4303, 7
          %v4305 = vsub.s32 0, %v4304
          %v4306 = vrot.slane %v4301, %v4305
          %v4308 = vpack.i.b16 %v1728, %v1728
          %v4310 = vlaneseq
          %v4311 = vshrl.u32 %v4310, 7
          %v4312 = vsub.s32 0, %v4311
          %v4313 = vrot.slane %v4308, %v4312
          %v4315 = vpack.i.b16 %v1732, %v1732
          %v4317 = vlaneseq
          %v4318 = vshrl.u32 %v4317, 7
          %v4319 = vsub.s32 0, %v4318
          %v4320 = vrot.slane %v4315, %v4319
          %v4322 = vpack.i.b16 %v1736, %v1736
          %v4324 = vlaneseq
          %v4325 = vshrl.u32 %v4324, 7
          %v4326 = vsub.s32 0, %v4325
          %v4327 = vrot.slane %v4322, %v4326
          %v4329 = vpack.i.b16 %v1740, %v1740
          %v4331 = vlaneseq
          %v4332 = vshrl.u32 %v4331, 7
          %v4333 = vsub.s32 0, %v4332
          %v4334 = vrot.slane %v4329, %v4333
          %v4336 = vpack.i.b16 %v1744, %v1744
          %v4338 = vlaneseq
          %v4339 = vshrl.u32 %v4338, 7
          %v4340 = vsub.s32 0, %v4339
          %v4341 = vrot.slane %v4336, %v4340
          %v4343 = vpack.i.b16 %v1748, %v1748
          %v4345 = vlaneseq
          %v4346 = vshrl.u32 %v4345, 7
          %v4347 = vsub.s32 0, %v4346
          %v4348 = vrot.slane %v4343, %v4347
          %v4350 = vpack.i.b16 %v1752, %v1752
          %v4352 = vlaneseq
          %v4353 = vshrl.u32 %v4352, 7
          %v4354 = vsub.s32 0, %v4353
          %v4355 = vrot.slane %v4350, %v4354
          %v4357 = vpack.i.b16 %v1756, %v1756
          %v4359 = vlaneseq
          %v4360 = vshrl.u32 %v4359, 7
          %v4361 = vsub.s32 0, %v4360
          %v4362 = vrot.slane %v4357, %v4361
          %v4364 = vpack.i.b16 %v1760, %v1760
          %v4366 = vlaneseq
          %v4367 = vshrl.u32 %v4366, 7
          %v4368 = vsub.s32 0, %v4367
          %v4369 = vrot.slane %v4364, %v4368
          %v4371 = vpack.i.b16 %v1764, %v1764
          %v4373 = vlaneseq
          %v4374 = vshrl.u32 %v4373, 7
          %v4375 = vsub.s32 0, %v4374
          %v4376 = vrot.slane %v4371, %v4375
          %v4378 = vpack.i.b16 %v1768, %v1768
          %v4380 = vlaneseq
          %v4381 = vshrl.u32 %v4380, 7
          %v4382 = vsub.s32 0, %v4381
          %v4383 = vrot.slane %v4378, %v4382
          %v4385 = vpack.i.b16 %v1772, %v1772
          %v4387 = vlaneseq
          %v4388 = vshrl.u32 %v4387, 7
          %v4389 = vsub.s32 0, %v4388
          %v4390 = vrot.slane %v4385, %v4389
          %v4392 = vpack.i.b16 %v1776, %v1776
          %v4394 = vlaneseq
          %v4395 = vshrl.u32 %v4394, 7
          %v4396 = vsub.s32 0, %v4395
          %v4397 = vrot.slane %v4392, %v4396
          %v4399 = vpack.i.b16 %v1780, %v1780
          %v4401 = vlaneseq
          %v4402 = vshrl.u32 %v4401, 7
          %v4403 = vsub.s32 0, %v4402
          %v4404 = vrot.slane %v4399, %v4403
          %v4406 = vpack.i.b16 %v1784, %v1784
          %v4408 = vlaneseq
          %v4409 = vshrl.u32 %v4408, 7
          %v4410 = vsub.s32 0, %v4409
          %v4411 = vrot.slane %v4406, %v4410
          %v4413 = vpack.i.b16 %v1788, %v1788
          %v4415 = vlaneseq
          %v4416 = vshrl.u32 %v4415, 7
          %v4417 = vsub.s32 0, %v4416
          %v4418 = vrot.slane %v4413, %v4417
          %v4420 = vpack.i.b16 %v1792, %v1792
          %v4422 = vlaneseq
          %v4423 = vshrl.u32 %v4422, 7
          %v4424 = vsub.s32 0, %v4423
          %v4425 = vrot.slane %v4420, %v4424
          %v4427 = vpack.i.b16 %v1796, %v1796
          %v4429 = vlaneseq
          %v4430 = vshrl.u32 %v4429, 7
          %v4431 = vsub.s32 0, %v4430
          %v4432 = vrot.slane %v4427, %v4431
          %v4434 = vpack.i.b16 %v1800, %v1800
          %v4436 = vlaneseq
          %v4437 = vshrl.u32 %v4436, 7
          %v4438 = vsub.s32 0, %v4437
          %v4439 = vrot.slane %v4434, %v4438
          %v4441 = vpack.i.b16 %v1804, %v1804
          %v4443 = vlaneseq
          %v4444 = vshrl.u32 %v4443, 7
          %v4445 = vsub.s32 0, %v4444
          %v4446 = vrot.slane %v4441, %v4445
          %v4448 = vpack.i.b16 %v1808, %v1808
          %v4450 = vlaneseq
          %v4451 = vshrl.u32 %v4450, 7
          %v4452 = vsub.s32 0, %v4451
          %v4453 = vrot.slane %v4448, %v4452
          %v4455 = vpack.i.b16 %v1812, %v1812
          %v4457 = vlaneseq
          %v4458 = vshrl.u32 %v4457, 7
          %v4459 = vsub.s32 0, %v4458
          %v4460 = vrot.slane %v4455, %v4459
          %v4462 = vpack.i.b16 %v1816, %v1816
          %v4464 = vlaneseq
          %v4465 = vshrl.u32 %v4464, 7
          %v4466 = vsub.s32 0, %v4465
          %v4467 = vrot.slane %v4462, %v4466
          %v4469 = vpack.i.b16 %v1820, %v1820
          %v4471 = vlaneseq
          %v4472 = vshrl.u32 %v4471, 7
          %v4473 = vsub.s32 0, %v4472
          %v4474 = vrot.slane %v4469, %v4473
          %v4476 = vpack.i.b16 %v1824, %v1824
          %v4478 = vlaneseq
          %v4479 = vshrl.u32 %v4478, 7
          %v4480 = vsub.s32 0, %v4479
          %v4481 = vrot.slane %v4476, %v4480
          %v4483 = vpack.i.b16 %v1828, %v1828
          %v4485 = vlaneseq
          %v4486 = vshrl.u32 %v4485, 7
          %v4487 = vsub.s32 0, %v4486
          %v4488 = vrot.slane %v4483, %v4487
          %v4490 = vpack.i.b16 %v1832, %v1832
          %v4492 = vlaneseq
          %v4493 = vshrl.u32 %v4492, 7
          %v4494 = vsub.s32 0, %v4493
          %v4495 = vrot.slane %v4490, %v4494
          %v4497 = vpack.i.b16 %v1836, %v1836
          %v4499 = vlaneseq
          %v4500 = vshrl.u32 %v4499, 7
          %v4501 = vsub.s32 0, %v4500
          %v4502 = vrot.slane %v4497, %v4501
          %v4504 = vpack.i.b16 %v1840, %v1840
          %v4506 = vlaneseq
          %v4507 = vshrl.u32 %v4506, 7
          %v4508 = vsub.s32 0, %v4507
          %v4509 = vrot.slane %v4504, %v4508
          %v4511 = vpack.i.b16 %v1844, %v1844
          %v4513 = vlaneseq
          %v4514 = vshrl.u32 %v4513, 7
          %v4515 = vsub.s32 0, %v4514
          %v4516 = vrot.slane %v4511, %v4515
          %v4518 = vpack.i.b16 %v1848, %v1848
          %v4520 = vlaneseq
          %v4521 = vshrl.u32 %v4520, 7
          %v4522 = vsub.s32 0, %v4521
          %v4523 = vrot.slane %v4518, %v4522
          %v4525 = vpack.i.b16 %v1852, %v1852
          %v4527 = vlaneseq
          %v4528 = vshrl.u32 %v4527, 7
          %v4529 = vsub.s32 0, %v4528
          %v4530 = vrot.slane %v4525, %v4529
          %v4532 = vpack.i.b16 %v1856, %v1856
          %v4534 = vlaneseq
          %v4535 = vshrl.u32 %v4534, 7
          %v4536 = vsub.s32 0, %v4535
          %v4537 = vrot.slane %v4532, %v4536
          %v4539 = vpack.i.b16 %v1860, %v1860
          %v4541 = vlaneseq
          %v4542 = vshrl.u32 %v4541, 7
          %v4543 = vsub.s32 0, %v4542
          %v4544 = vrot.slane %v4539, %v4543
          %v4546 = vpack.i.b16 %v1864, %v1864
          %v4548 = vlaneseq
          %v4549 = vshrl.u32 %v4548, 7
          %v4550 = vsub.s32 0, %v4549
          %v4551 = vrot.slane %v4546, %v4550
          %v4553 = vpack.i.b16 %v1868, %v1868
          %v4555 = vlaneseq
          %v4556 = vshrl.u32 %v4555, 7
          %v4557 = vsub.s32 0, %v4556
          %v4558 = vrot.slane %v4553, %v4557
          %v4560 = vpack.i.b16 %v1872, %v1872
          %v4562 = vlaneseq
          %v4563 = vshrl.u32 %v4562, 7
          %v4564 = vsub.s32 0, %v4563
          %v4565 = vrot.slane %v4560, %v4564
          %v4567 = vpack.i.b16 %v1876, %v1876
          %v4569 = vlaneseq
          %v4570 = vshrl.u32 %v4569, 7
          %v4571 = vsub.s32 0, %v4570
          %v4572 = vrot.slane %v4567, %v4571
          %v4574 = vpack.i.b16 %v1880, %v1880
          %v4576 = vlaneseq
          %v4577 = vshrl.u32 %v4576, 7
          %v4578 = vsub.s32 0, %v4577
          %v4579 = vrot.slane %v4574, %v4578
          %v4581 = vpack.i.b16 %v1884, %v1884
          %v4583 = vlaneseq
          %v4584 = vshrl.u32 %v4583, 7
          %v4585 = vsub.s32 0, %v4584
          %v4586 = vrot.slane %v4581, %v4585
          %v4588 = vpack.i.b16 %v1888, %v1888
          %v4590 = vlaneseq
          %v4591 = vshrl.u32 %v4590, 7
          %v4592 = vsub.s32 0, %v4591
          %v4593 = vrot.slane %v4588, %v4592
          %v4595 = vpack.i.b16 %v1892, %v1892
          %v4597 = vlaneseq
          %v4598 = vshrl.u32 %v4597, 7
          %v4599 = vsub.s32 0, %v4598
          %v4600 = vrot.slane %v4595, %v4599
          %v4602 = vpack.i.b16 %v1896, %v1896
          %v4604 = vlaneseq
          %v4605 = vshrl.u32 %v4604, 7
          %v4606 = vsub.s32 0, %v4605
          %v4607 = vrot.slane %v4602, %v4606
          %v4609 = vpack.i.b16 %v1900, %v1900
          %v4611 = vlaneseq
          %v4612 = vshrl.u32 %v4611, 7
          %v4613 = vsub.s32 0, %v4612
          %v4614 = vrot.slane %v4609, %v4613
          %v4616 = vpack.i.b16 %v1904, %v1904
          %v4618 = vlaneseq
          %v4619 = vshrl.u32 %v4618, 7
          %v4620 = vsub.s32 0, %v4619
          %v4621 = vrot.slane %v4616, %v4620
          %v4623 = vpack.i.b16 %v1908, %v1908
          %v4625 = vlaneseq
          %v4626 = vshrl.u32 %v4625, 7
          %v4627 = vsub.s32 0, %v4626
          %v4628 = vrot.slane %v4623, %v4627
          %v4630 = vpack.i.b16 %v1912, %v1912
          %v4632 = vlaneseq
          %v4633 = vshrl.u32 %v4632, 7
          %v4634 = vsub.s32 0, %v4633
          %v4635 = vrot.slane %v4630, %v4634
          %v4637 = vpack.i.b16 %v1916, %v1916
          %v4639 = vlaneseq
          %v4640 = vshrl.u32 %v4639, 7
          %v4641 = vsub.s32 0, %v4640
          %v4642 = vrot.slane %v4637, %v4641
          %v4644 = vpack.i.b16 %v1920, %v1920
          %v4646 = vlaneseq
          %v4647 = vshrl.u32 %v4646, 7
          %v4648 = vsub.s32 0, %v4647
          %v4649 = vrot.slane %v4644, %v4648
          %v4651 = vpack.i.b16 %v1924, %v1924
          %v4653 = vlaneseq
          %v4654 = vshrl.u32 %v4653, 7
          %v4655 = vsub.s32 0, %v4654
          %v4656 = vrot.slane %v4651, %v4655
          %v4658 = vpack.i.b16 %v1928, %v1928
          %v4660 = vlaneseq
          %v4661 = vshrl.u32 %v4660, 7
          %v4662 = vsub.s32 0, %v4661
          %v4663 = vrot.slane %v4658, %v4662
          %v4665 = vpack.i.b16 %v1932, %v1932
          %v4667 = vlaneseq
          %v4668 = vshrl.u32 %v4667, 7
          %v4669 = vsub.s32 0, %v4668
          %v4670 = vrot.slane %v4665, %v4669
          %v4672 = vpack.i.b16 %v1936, %v1936
          %v4674 = vlaneseq
          %v4675 = vshrl.u32 %v4674, 7
          %v4676 = vsub.s32 0, %v4675
          %v4677 = vrot.slane %v4672, %v4676
          %v4679 = vpack.i.b16 %v1940, %v1940
          %v4681 = vlaneseq
          %v4682 = vshrl.u32 %v4681, 7
          %v4683 = vsub.s32 0, %v4682
          %v4684 = vrot.slane %v4679, %v4683
          %v4686 = vpack.i.b16 %v1944, %v1944
          %v4688 = vlaneseq
          %v4689 = vshrl.u32 %v4688, 7
          %v4690 = vsub.s32 0, %v4689
          %v4691 = vrot.slane %v4686, %v4690
          %v4693 = vpack.i.b16 %v1948, %v1948
          %v4695 = vlaneseq
          %v4696 = vshrl.u32 %v4695, 7
          %v4697 = vsub.s32 0, %v4696
          %v4698 = vrot.slane %v4693, %v4697
          %v4700 = vpack.i.b16 %v1952, %v1952
          %v4702 = vlaneseq
          %v4703 = vshrl.u32 %v4702, 7
          %v4704 = vsub.s32 0, %v4703
          %v4705 = vrot.slane %v4700, %v4704
          %v4707 = vpack.i.b16 %v1956, %v1956
          %v4709 = vlaneseq
          %v4710 = vshrl.u32 %v4709, 7
          %v4711 = vsub.s32 0, %v4710
          %v4712 = vrot.slane %v4707, %v4711
          %v4714 = vpack.i.b16 %v1960, %v1960
          %v4716 = vlaneseq
          %v4717 = vshrl.u32 %v4716, 7
          %v4718 = vsub.s32 0, %v4717
          %v4719 = vrot.slane %v4714, %v4718
          %v4721 = vpack.i.b16 %v1964, %v1964
          %v4723 = vlaneseq
          %v4724 = vshrl.u32 %v4723, 7
          %v4725 = vsub.s32 0, %v4724
          %v4726 = vrot.slane %v4721, %v4725
          %v4728 = vpack.i.b16 %v1968, %v1968
          %v4730 = vlaneseq
          %v4731 = vshrl.u32 %v4730, 7
          %v4732 = vsub.s32 0, %v4731
          %v4733 = vrot.slane %v4728, %v4732
          %v4735 = vpack.i.b16 %v1972, %v1972
          %v4737 = vlaneseq
          %v4738 = vshrl.u32 %v4737, 7
          %v4739 = vsub.s32 0, %v4738
          %v4740 = vrot.slane %v4735, %v4739
          %v4742 = vpack.i.b16 %v1976, %v1976
          %v4744 = vlaneseq
          %v4745 = vshrl.u32 %v4744, 7
          %v4746 = vsub.s32 0, %v4745
          %v4747 = vrot.slane %v4742, %v4746
          %v4749 = vpack.i.b16 %v1980, %v1980
          %v4751 = vlaneseq
          %v4752 = vshrl.u32 %v4751, 7
          %v4753 = vsub.s32 0, %v4752
          %v4754 = vrot.slane %v4749, %v4753
          %v4756 = vpack.i.b16 %v1984, %v1984
          %v4758 = vlaneseq
          %v4759 = vshrl.u32 %v4758, 7
          %v4760 = vsub.s32 0, %v4759
          %v4761 = vrot.slane %v4756, %v4760
          %v4763 = vpack.i.b16 %v1988, %v1988
          %v4765 = vlaneseq
          %v4766 = vshrl.u32 %v4765, 7
          %v4767 = vsub.s32 0, %v4766
          %v4768 = vrot.slane %v4763, %v4767
          %v4770 = vpack.i.b16 %v1992, %v1992
          %v4772 = vlaneseq
          %v4773 = vshrl.u32 %v4772, 7
          %v4774 = vsub.s32 0, %v4773
          %v4775 = vrot.slane %v4770, %v4774
          %v4777 = vpack.i.b16 %v1996, %v1996
          %v4779 = vlaneseq
          %v4780 = vshrl.u32 %v4779, 7
          %v4781 = vsub.s32 0, %v4780
          %v4782 = vrot.slane %v4777, %v4781
          %v4784 = vpack.i.b16 %v2000, %v2000
          %v4786 = vlaneseq
          %v4787 = vshrl.u32 %v4786, 7
          %v4788 = vsub.s32 0, %v4787
          %v4789 = vrot.slane %v4784, %v4788
          %v4791 = vpack.i.b16 %v2004, %v2004
          %v4793 = vlaneseq
          %v4794 = vshrl.u32 %v4793, 7
          %v4795 = vsub.s32 0, %v4794
          %v4796 = vrot.slane %v4791, %v4795
          %v4798 = vpack.i.b16 %v2008, %v2008
          %v4800 = vlaneseq
          %v4801 = vshrl.u32 %v4800, 7
          %v4802 = vsub.s32 0, %v4801
          %v4803 = vrot.slane %v4798, %v4802
          %v4805 = vpack.i.b16 %v2012, %v2012
          %v4807 = vlaneseq
          %v4808 = vshrl.u32 %v4807, 7
          %v4809 = vsub.s32 0, %v4808
          %v4810 = vrot.slane %v4805, %v4809
          %v4812 = vpack.i.b16 %v2016, %v2016
          %v4814 = vlaneseq
          %v4815 = vshrl.u32 %v4814, 7
          %v4816 = vsub.s32 0, %v4815
          %v4817 = vrot.slane %v4812, %v4816
          %v4819 = vpack.i.b16 %v2020, %v2020
          %v4821 = vlaneseq
          %v4822 = vshrl.u32 %v4821, 7
          %v4823 = vsub.s32 0, %v4822
          %v4824 = vrot.slane %v4819, %v4823
          %v4826 = vpack.i.b16 %v2024, %v2024
          %v4828 = vlaneseq
          %v4829 = vshrl.u32 %v4828, 7
          %v4830 = vsub.s32 0, %v4829
          %v4831 = vrot.slane %v4826, %v4830
          %v4833 = vpack.i.b16 %v2028, %v2028
          %v4835 = vlaneseq
          %v4836 = vshrl.u32 %v4835, 7
          %v4837 = vsub.s32 0, %v4836
          %v4838 = vrot.slane %v4833, %v4837
          %v4840 = vpack.i.b16 %v2032, %v2032
          %v4842 = vlaneseq
          %v4843 = vshrl.u32 %v4842, 7
          %v4844 = vsub.s32 0, %v4843
          %v4845 = vrot.slane %v4840, %v4844
          %v4847 = vpack.i.b16 %v2036, %v2036
          %v4849 = vlaneseq
          %v4850 = vshrl.u32 %v4849, 7
          %v4851 = vsub.s32 0, %v4850
          %v4852 = vrot.slane %v4847, %v4851
          %v4854 = vpack.i.b16 %v2040, %v2040
          %v4856 = vlaneseq
          %v4857 = vshrl.u32 %v4856, 7
          %v4858 = vsub.s32 0, %v4857
          %v4859 = vrot.slane %v4854, %v4858
          %v4861 = vpack.i.b16 %v2044, %v2044
          %v4863 = vlaneseq
          %v4864 = vshrl.u32 %v4863, 7
          %v4865 = vsub.s32 0, %v4864
          %v4866 = vrot.slane %v4861, %v4865
          %v4868 = vpack.i.b16 %v2048, %v2048
          %v4870 = vlaneseq
          %v4871 = vshrl.u32 %v4870, 7
          %v4872 = vsub.s32 0, %v4871
          %v4873 = vrot.slane %v4868, %v4872
          %v4875 = vpack.i.b16 %v2052, %v2052
          %v4877 = vlaneseq
          %v4878 = vshrl.u32 %v4877, 7
          %v4879 = vsub.s32 0, %v4878
          %v4880 = vrot.slane %v4875, %v4879
          %v4882 = vpack.i.b16 %v2056, %v2056
          %v4884 = vlaneseq
          %v4885 = vshrl.u32 %v4884, 7
          %v4886 = vsub.s32 0, %v4885
          %v4887 = vrot.slane %v4882, %v4886
          %v4889 = vpack.i.b16 %v2060, %v2060
          %v4891 = vlaneseq
          %v4892 = vshrl.u32 %v4891, 7
          %v4893 = vsub.s32 0, %v4892
          %v4894 = vrot.slane %v4889, %v4893
          %v4896 = vpack.i.b16 %v2064, %v2064
          %v4898 = vlaneseq
          %v4899 = vshrl.u32 %v4898, 7
          %v4900 = vsub.s32 0, %v4899
          %v4901 = vrot.slane %v4896, %v4900
          %v4903 = vpack.i.b16 %v2068, %v2068
          %v4905 = vlaneseq
          %v4906 = vshrl.u32 %v4905, 7
          %v4907 = vsub.s32 0, %v4906
          %v4908 = vrot.slane %v4903, %v4907
          %v4910 = vpack.i.b16 %v2072, %v2072
          %v4912 = vlaneseq
          %v4913 = vshrl.u32 %v4912, 7
          %v4914 = vsub.s32 0, %v4913
          %v4915 = vrot.slane %v4910, %v4914
          %v4917 = vpack.i.b16 %v2076, %v2076
          %v4919 = vlaneseq
          %v4920 = vshrl.u32 %v4919, 7
          %v4921 = vsub.s32 0, %v4920
          %v4922 = vrot.slane %v4917, %v4921
          %v4924 = vpack.i.b16 %v2080, %v2080
          %v4926 = vlaneseq
          %v4927 = vshrl.u32 %v4926, 7
          %v4928 = vsub.s32 0, %v4927
          %v4929 = vrot.slane %v4924, %v4928
          %v4931 = vpack.i.b16 %v2084, %v2084
          %v4933 = vlaneseq
          %v4934 = vshrl.u32 %v4933, 7
          %v4935 = vsub.s32 0, %v4934
          %v4936 = vrot.slane %v4931, %v4935
          %v4938 = vpack.i.b16 %v2088, %v2088
          %v4940 = vlaneseq
          %v4941 = vshrl.u32 %v4940, 7
          %v4942 = vsub.s32 0, %v4941
          %v4943 = vrot.slane %v4938, %v4942
          %v4945 = vpack.i.b16 %v2092, %v2092
          %v4947 = vlaneseq
          %v4948 = vshrl.u32 %v4947, 7
          %v4949 = vsub.s32 0, %v4948
          %v4950 = vrot.slane %v4945, %v4949
          %v4952 = vpack.i.b16 %v2096, %v2096
          %v4954 = vlaneseq
          %v4955 = vshrl.u32 %v4954, 7
          %v4956 = vsub.s32 0, %v4955
          %v4957 = vrot.slane %v4952, %v4956
          %v4959 = vpack.i.b16 %v2100, %v2100
          %v4961 = vlaneseq
          %v4962 = vshrl.u32 %v4961, 7
          %v4963 = vsub.s32 0, %v4962
          %v4964 = vrot.slane %v4959, %v4963
          %v4966 = vpack.i.b16 %v2104, %v2104
          %v4968 = vlaneseq
          %v4969 = vshrl.u32 %v4968, 7
          %v4970 = vsub.s32 0, %v4969
          %v4971 = vrot.slane %v4966, %v4970
          %v4973 = vpack.i.b16 %v2108, %v2108
          %v4975 = vlaneseq
          %v4976 = vshrl.u32 %v4975, 7
          %v4977 = vsub.s32 0, %v4976
          %v4978 = vrot.slane %v4973, %v4977
          %v4980 = vpack.i.b16 %v2112, %v2112
          %v4982 = vlaneseq
          %v4983 = vshrl.u32 %v4982, 7
          %v4984 = vsub.s32 0, %v4983
          %v4985 = vrot.slane %v4980, %v4984
          %v4987 = vpack.i.b16 %v2116, %v2116
          %v4989 = vlaneseq
          %v4990 = vshrl.u32 %v4989, 7
          %v4991 = vsub.s32 0, %v4990
          %v4992 = vrot.slane %v4987, %v4991
          %v4994 = vpack.i.b16 %v2120, %v2120
          %v4996 = vlaneseq
          %v4997 = vshrl.u32 %v4996, 7
          %v4998 = vsub.s32 0, %v4997
          %v4999 = vrot.slane %v4994, %v4998
          %v5001 = vpack.i.b16 %v2124, %v2124
          %v5003 = vlaneseq
          %v5004 = vshrl.u32 %v5003, 7
          %v5005 = vsub.s32 0, %v5004
          %v5006 = vrot.slane %v5001, %v5005
          %v5008 = vpack.i.b16 %v2128, %v2128
          %v5010 = vlaneseq
          %v5011 = vshrl.u32 %v5010, 7
          %v5012 = vsub.s32 0, %v5011
          %v5013 = vrot.slane %v5008, %v5012
          %v5015 = vpack.i.b16 %v2132, %v2132
          %v5017 = vlaneseq
          %v5018 = vshrl.u32 %v5017, 7
          %v5019 = vsub.s32 0, %v5018
          %v5020 = vrot.slane %v5015, %v5019
          %v5022 = vpack.i.b16 %v2136, %v2136
          %v5024 = vlaneseq
          %v5025 = vshrl.u32 %v5024, 7
          %v5026 = vsub.s32 0, %v5025
          %v5027 = vrot.slane %v5022, %v5026
          %v5029 = vpack.i.b16 %v2140, %v2140
          %v5031 = vlaneseq
          %v5032 = vshrl.u32 %v5031, 7
          %v5033 = vsub.s32 0, %v5032
          %v5034 = vrot.slane %v5029, %v5033
          %v5036 = vpack.i.b16 %v2144, %v2144
          %v5038 = vlaneseq
          %v5039 = vshrl.u32 %v5038, 7
          %v5040 = vsub.s32 0, %v5039
          %v5041 = vrot.slane %v5036, %v5040
          %v5043 = vpack.i.b16 %v2148, %v2148
          %v5045 = vlaneseq
          %v5046 = vshrl.u32 %v5045, 7
          %v5047 = vsub.s32 0, %v5046
          %v5048 = vrot.slane %v5043, %v5047
          %v5050 = vpack.i.b16 %v2152, %v2152
          %v5052 = vlaneseq
          %v5053 = vshrl.u32 %v5052, 7
          %v5054 = vsub.s32 0, %v5053
          %v5055 = vrot.slane %v5050, %v5054
          %v5057 = vpack.i.b16 %v2156, %v2156
          %v5059 = vlaneseq
          %v5060 = vshrl.u32 %v5059, 7
          %v5061 = vsub.s32 0, %v5060
          %v5062 = vrot.slane %v5057, %v5061
          %v5064 = vpack.i.b16 %v2160, %v2160
          %v5066 = vlaneseq
          %v5067 = vshrl.u32 %v5066, 7
          %v5068 = vsub.s32 0, %v5067
          %v5069 = vrot.slane %v5064, %v5068
          %v5071 = vpack.i.b16 %v2164, %v2164
          %v5073 = vlaneseq
          %v5074 = vshrl.u32 %v5073, 7
          %v5075 = vsub.s32 0, %v5074
          %v5076 = vrot.slane %v5071, %v5075
          %v5078 = vpack.i.b16 %v2168, %v2168
          %v5080 = vlaneseq
          %v5081 = vshrl.u32 %v5080, 7
          %v5082 = vsub.s32 0, %v5081
          %v5083 = vrot.slane %v5078, %v5082
          %v5085 = vpack.i.b16 %v2172, %v2172
          %v5087 = vlaneseq
          %v5088 = vshrl.u32 %v5087, 7
          %v5089 = vsub.s32 0, %v5088
          %v5090 = vrot.slane %v5085, %v5089
          %v5092 = vpack.i.b16 %v2176, %v2176
          %v5094 = vlaneseq
          %v5095 = vshrl.u32 %v5094, 7
          %v5096 = vsub.s32 0, %v5095
          %v5097 = vrot.slane %v5092, %v5096
          %v5099 = vpack.i.b16 %v2180, %v2180
          %v5101 = vlaneseq
          %v5102 = vshrl.u32 %v5101, 7
          %v5103 = vsub.s32 0, %v5102
          %v5104 = vrot.slane %v5099, %v5103
          %v5106 = vpack.i.b16 %v2184, %v2184
          %v5108 = vlaneseq
          %v5109 = vshrl.u32 %v5108, 7
          %v5110 = vsub.s32 0, %v5109
          %v5111 = vrot.slane %v5106, %v5110
          %v5113 = vpack.i.b16 %v2188, %v2188
          %v5115 = vlaneseq
          %v5116 = vshrl.u32 %v5115, 7
          %v5117 = vsub.s32 0, %v5116
          %v5118 = vrot.slane %v5113, %v5117
          %v5120 = vpack.i.b16 %v2192, %v2192
          %v5122 = vlaneseq
          %v5123 = vshrl.u32 %v5122, 7
          %v5124 = vsub.s32 0, %v5123
          %v5125 = vrot.slane %v5120, %v5124
          %v5127 = vpack.i.b16 %v2196, %v2196
          %v5129 = vlaneseq
          %v5130 = vshrl.u32 %v5129, 7
          %v5131 = vsub.s32 0, %v5130
          %v5132 = vrot.slane %v5127, %v5131
          %v5134 = vpack.i.b16 %v2200, %v2200
          %v5136 = vlaneseq
          %v5137 = vshrl.u32 %v5136, 7
          %v5138 = vsub.s32 0, %v5137
          %v5139 = vrot.slane %v5134, %v5138
          %v5141 = vpack.i.b16 %v2204, %v2204
          %v5143 = vlaneseq
          %v5144 = vshrl.u32 %v5143, 7
          %v5145 = vsub.s32 0, %v5144
          %v5146 = vrot.slane %v5141, %v5145
          %v5148 = vpack.i.b16 %v2208, %v2208
          %v5150 = vlaneseq
          %v5151 = vshrl.u32 %v5150, 7
          %v5152 = vsub.s32 0, %v5151
          %v5153 = vrot.slane %v5148, %v5152
          %v5155 = vpack.i.b16 %v2212, %v2212
          %v5157 = vlaneseq
          %v5158 = vshrl.u32 %v5157, 7
          %v5159 = vsub.s32 0, %v5158
          %v5160 = vrot.slane %v5155, %v5159
          %v5162 = vpack.i.b16 %v2216, %v2216
          %v5164 = vlaneseq
          %v5165 = vshrl.u32 %v5164, 7
          %v5166 = vsub.s32 0, %v5165
          %v5167 = vrot.slane %v5162, %v5166
          %v5169 = vpack.i.b16 %v2220, %v2220
          %v5171 = vlaneseq
          %v5172 = vshrl.u32 %v5171, 7
          %v5173 = vsub.s32 0, %v5172
          %v5174 = vrot.slane %v5169, %v5173
          %v5176 = vpack.i.b16 %v2224, %v2224
          %v5178 = vlaneseq
          %v5179 = vshrl.u32 %v5178, 7
          %v5180 = vsub.s32 0, %v5179
          %v5181 = vrot.slane %v5176, %v5180
          %v5183 = vpack.i.b16 %v2228, %v2228
          %v5185 = vlaneseq
          %v5186 = vshrl.u32 %v5185, 7
          %v5187 = vsub.s32 0, %v5186
          %v5188 = vrot.slane %v5183, %v5187
          %v5190 = vpack.i.b16 %v2232, %v2232
          %v5192 = vlaneseq
          %v5193 = vshrl.u32 %v5192, 7
          %v5194 = vsub.s32 0, %v5193
          %v5195 = vrot.slane %v5190, %v5194
          %v5197 = vpack.i.b16 %v2236, %v2236
          %v5199 = vlaneseq
          %v5200 = vshrl.u32 %v5199, 7
          %v5201 = vsub.s32 0, %v5200
          %v5202 = vrot.slane %v5197, %v5201
          %v5204 = vpack.i.b16 %v2240, %v2240
          %v5206 = vlaneseq
          %v5207 = vshrl.u32 %v5206, 7
          %v5208 = vsub.s32 0, %v5207
          %v5209 = vrot.slane %v5204, %v5208
          %v5211 = vpack.i.b16 %v2244, %v2244
          %v5213 = vlaneseq
          %v5214 = vshrl.u32 %v5213, 7
          %v5215 = vsub.s32 0, %v5214
          %v5216 = vrot.slane %v5211, %v5215
          %v5218 = vpack.i.b16 %v2248, %v2248
          %v5220 = vlaneseq
          %v5221 = vshrl.u32 %v5220, 7
          %v5222 = vsub.s32 0, %v5221
          %v5223 = vrot.slane %v5218, %v5222
          %v5225 = vpack.i.b16 %v2252, %v2252
          %v5227 = vlaneseq
          %v5228 = vshrl.u32 %v5227, 7
          %v5229 = vsub.s32 0, %v5228
          %v5230 = vrot.slane %v5225, %v5229
          %v5232 = vpack.i.b16 %v2256, %v2256
          %v5234 = vlaneseq
          %v5235 = vshrl.u32 %v5234, 7
          %v5236 = vsub.s32 0, %v5235
          %v5237 = vrot.slane %v5232, %v5236
          %v5239 = vpack.i.b16 %v2260, %v2260
          %v5241 = vlaneseq
          %v5242 = vshrl.u32 %v5241, 7
          %v5243 = vsub.s32 0, %v5242
          %v5244 = vrot.slane %v5239, %v5243
          %v5246 = vpack.i.b16 %v2264, %v2264
          %v5248 = vlaneseq
          %v5249 = vshrl.u32 %v5248, 7
          %v5250 = vsub.s32 0, %v5249
          %v5251 = vrot.slane %v5246, %v5250
          %v5253 = vpack.i.b16 %v2268, %v2268
          %v5255 = vlaneseq
          %v5256 = vshrl.u32 %v5255, 7
          %v5257 = vsub.s32 0, %v5256
          %v5258 = vrot.slane %v5253, %v5257
          %v5260 = vpack.i.b16 %v2272, %v2272
          %v5262 = vlaneseq
          %v5263 = vshrl.u32 %v5262, 7
          %v5264 = vsub.s32 0, %v5263
          %v5265 = vrot.slane %v5260, %v5264
          %v5267 = vpack.i.b16 %v2276, %v2276
          %v5269 = vlaneseq
          %v5270 = vshrl.u32 %v5269, 7
          %v5271 = vsub.s32 0, %v5270
          %v5272 = vrot.slane %v5267, %v5271
          %v5274 = vpack.i.b16 %v2280, %v2280
          %v5276 = vlaneseq
          %v5277 = vshrl.u32 %v5276, 7
          %v5278 = vsub.s32 0, %v5277
          %v5279 = vrot.slane %v5274, %v5278
          %v5281 = vpack.i.b16 %v2284, %v2284
          %v5283 = vlaneseq
          %v5284 = vshrl.u32 %v5283, 7
          %v5285 = vsub.s32 0, %v5284
          %v5286 = vrot.slane %v5281, %v5285
          %v5288 = vpack.i.b16 %v2288, %v2288
          %v5290 = vlaneseq
          %v5291 = vshrl.u32 %v5290, 7
          %v5292 = vsub.s32 0, %v5291
          %v5293 = vrot.slane %v5288, %v5292
          %v5295 = vpack.i.b16 %v2292, %v2292
          %v5297 = vlaneseq
          %v5298 = vshrl.u32 %v5297, 7
          %v5299 = vsub.s32 0, %v5298
          %v5300 = vrot.slane %v5295, %v5299
          %v5302 = vpack.i.b16 %v2296, %v2296
          %v5304 = vlaneseq
          %v5305 = vshrl.u32 %v5304, 7
          %v5306 = vsub.s32 0, %v5305
          %v5307 = vrot.slane %v5302, %v5306
          %v5309 = vpack.i.b16 %v2300, %v2300
          %v5311 = vlaneseq
          %v5312 = vshrl.u32 %v5311, 7
          %v5313 = vsub.s32 0, %v5312
          %v5314 = vrot.slane %v5309, %v5313
          %v5316 = vpack.i.b16 %v2304, %v2304
          %v5318 = vlaneseq
          %v5319 = vshrl.u32 %v5318, 7
          %v5320 = vsub.s32 0, %v5319
          %v5321 = vrot.slane %v5316, %v5320
          %v5323 = vpack.i.b16 %v2308, %v2308
          %v5325 = vlaneseq
          %v5326 = vshrl.u32 %v5325, 7
          %v5327 = vsub.s32 0, %v5326
          %v5328 = vrot.slane %v5323, %v5327
          %v5330 = vpack.i.b16 %v2312, %v2312
          %v5332 = vlaneseq
          %v5333 = vshrl.u32 %v5332, 7
          %v5334 = vsub.s32 0, %v5333
          %v5335 = vrot.slane %v5330, %v5334
          %v5337 = vpack.i.b16 %v2316, %v2316
          %v5339 = vlaneseq
          %v5340 = vshrl.u32 %v5339, 7
          %v5341 = vsub.s32 0, %v5340
          %v5342 = vrot.slane %v5337, %v5341
          %v5344 = vpack.i.b16 %v2320, %v2320
          %v5346 = vlaneseq
          %v5347 = vshrl.u32 %v5346, 7
          %v5348 = vsub.s32 0, %v5347
          %v5349 = vrot.slane %v5344, %v5348
          %v5351 = vpack.i.b16 %v2324, %v2324
          %v5353 = vlaneseq
          %v5354 = vshrl.u32 %v5353, 7
          %v5355 = vsub.s32 0, %v5354
          %v5356 = vrot.slane %v5351, %v5355
          %v5358 = vpack.i.b16 %v2328, %v2328
          %v5360 = vlaneseq
          %v5361 = vshrl.u32 %v5360, 7
          %v5362 = vsub.s32 0, %v5361
          %v5363 = vrot.slane %v5358, %v5362
          %v5365 = vpack.i.b16 %v2332, %v2332
          %v5367 = vlaneseq
          %v5368 = vshrl.u32 %v5367, 7
          %v5369 = vsub.s32 0, %v5368
          %v5370 = vrot.slane %v5365, %v5369
          %v5372 = vpack.i.b16 %v2336, %v2336
          %v5374 = vlaneseq
          %v5375 = vshrl.u32 %v5374, 7
          %v5376 = vsub.s32 0, %v5375
          %v5377 = vrot.slane %v5372, %v5376
          %v5379 = vpack.i.b16 %v2340, %v2340
          %v5381 = vlaneseq
          %v5382 = vshrl.u32 %v5381, 7
          %v5383 = vsub.s32 0, %v5382
          %v5384 = vrot.slane %v5379, %v5383
          %v5386 = vpack.i.b16 %v2344, %v2344
          %v5388 = vlaneseq
          %v5389 = vshrl.u32 %v5388, 7
          %v5390 = vsub.s32 0, %v5389
          %v5391 = vrot.slane %v5386, %v5390
          %v5393 = vpack.i.b16 %v2348, %v2348
          %v5395 = vlaneseq
          %v5396 = vshrl.u32 %v5395, 7
          %v5397 = vsub.s32 0, %v5396
          %v5398 = vrot.slane %v5393, %v5397
          %v5400 = vpack.i.b16 %v2352, %v2352
          %v5402 = vlaneseq
          %v5403 = vshrl.u32 %v5402, 7
          %v5404 = vsub.s32 0, %v5403
          %v5405 = vrot.slane %v5400, %v5404
          %v5407 = vpack.i.b16 %v2356, %v2356
          %v5409 = vlaneseq
          %v5410 = vshrl.u32 %v5409, 7
          %v5411 = vsub.s32 0, %v5410
          %v5412 = vrot.slane %v5407, %v5411
          %v5414 = vpack.i.b16 %v2360, %v2360
          %v5416 = vlaneseq
          %v5417 = vshrl.u32 %v5416, 7
          %v5418 = vsub.s32 0, %v5417
          %v5419 = vrot.slane %v5414, %v5418
          %v5421 = vpack.i.b16 %v2364, %v2364
          %v5423 = vlaneseq
          %v5424 = vshrl.u32 %v5423, 7
          %v5425 = vsub.s32 0, %v5424
          %v5426 = vrot.slane %v5421, %v5425
          %v5428 = vpack.i.b16 %v2368, %v2368
          %v5430 = vlaneseq
          %v5431 = vshrl.u32 %v5430, 7
          %v5432 = vsub.s32 0, %v5431
          %v5433 = vrot.slane %v5428, %v5432
          %v5435 = vpack.i.b16 %v2372, %v2372
          %v5437 = vlaneseq
          %v5438 = vshrl.u32 %v5437, 7
          %v5439 = vsub.s32 0, %v5438
          %v5440 = vrot.slane %v5435, %v5439
          %v5442 = vpack.i.b16 %v2376, %v2376
          %v5444 = vlaneseq
          %v5445 = vshrl.u32 %v5444, 7
          %v5446 = vsub.s32 0, %v5445
          %v5447 = vrot.slane %v5442, %v5446
          %v5449 = vpack.i.b16 %v2380, %v2380
          %v5451 = vlaneseq
          %v5452 = vshrl.u32 %v5451, 7
          %v5453 = vsub.s32 0, %v5452
          %v5454 = vrot.slane %v5449, %v5453
          %v5456 = vpack.i.b16 %v2384, %v2384
          %v5458 = vlaneseq
          %v5459 = vshrl.u32 %v5458, 7
          %v5460 = vsub.s32 0, %v5459
          %v5461 = vrot.slane %v5456, %v5460
          %v5463 = vpack.i.b16 %v2388, %v2388
          %v5465 = vlaneseq
          %v5466 = vshrl.u32 %v5465, 7
          %v5467 = vsub.s32 0, %v5466
          %v5468 = vrot.slane %v5463, %v5467
          %v5470 = vpack.i.b16 %v2392, %v2392
          %v5472 = vlaneseq
          %v5473 = vshrl.u32 %v5472, 7
          %v5474 = vsub.s32 0, %v5473
          %v5475 = vrot.slane %v5470, %v5474
          %v5477 = vpack.i.b16 %v2396, %v2396
          %v5479 = vlaneseq
          %v5480 = vshrl.u32 %v5479, 7
          %v5481 = vsub.s32 0, %v5480
          %v5482 = vrot.slane %v5477, %v5481
          %v5484 = vpack.i.b16 %v2400, %v2400
          %v5486 = vlaneseq
          %v5487 = vshrl.u32 %v5486, 7
          %v5488 = vsub.s32 0, %v5487
          %v5489 = vrot.slane %v5484, %v5488
          %v5491 = vpack.i.b16 %v2404, %v2404
          %v5493 = vlaneseq
          %v5494 = vshrl.u32 %v5493, 7
          %v5495 = vsub.s32 0, %v5494
          %v5496 = vrot.slane %v5491, %v5495
          %v5498 = vpack.i.b16 %v2408, %v2408
          %v5500 = vlaneseq
          %v5501 = vshrl.u32 %v5500, 7
          %v5502 = vsub.s32 0, %v5501
          %v5503 = vrot.slane %v5498, %v5502
          %v5505 = vpack.i.b16 %v2412, %v2412
          %v5507 = vlaneseq
          %v5508 = vshrl.u32 %v5507, 7
          %v5509 = vsub.s32 0, %v5508
          %v5510 = vrot.slane %v5505, %v5509
          %v5512 = vpack.i.b16 %v2416, %v2416
          %v5514 = vlaneseq
          %v5515 = vshrl.u32 %v5514, 7
          %v5516 = vsub.s32 0, %v5515
          %v5517 = vrot.slane %v5512, %v5516
          %v5519 = vpack.i.b16 %v2420, %v2420
          %v5521 = vlaneseq
          %v5522 = vshrl.u32 %v5521, 7
          %v5523 = vsub.s32 0, %v5522
          %v5524 = vrot.slane %v5519, %v5523
          %v5526 = vpack.i.b16 %v2424, %v2424
          %v5528 = vlaneseq
          %v5529 = vshrl.u32 %v5528, 7
          %v5530 = vsub.s32 0, %v5529
          %v5531 = vrot.slane %v5526, %v5530
          %v5533 = vpack.i.b16 %v2428, %v2428
          %v5535 = vlaneseq
          %v5536 = vshrl.u32 %v5535, 7
          %v5537 = vsub.s32 0, %v5536
          %v5538 = vrot.slane %v5533, %v5537
          %v5540 = vpack.i.b16 %v2432, %v2432
          %v5542 = vlaneseq
          %v5543 = vshrl.u32 %v5542, 7
          %v5544 = vsub.s32 0, %v5543
          %v5545 = vrot.slane %v5540, %v5544
          %v5547 = vpack.i.b16 %v2436, %v2436
          %v5549 = vlaneseq
          %v5550 = vshrl.u32 %v5549, 7
          %v5551 = vsub.s32 0, %v5550
          %v5552 = vrot.slane %v5547, %v5551
          %v5554 = vpack.i.b16 %v2440, %v2440
          %v5556 = vlaneseq
          %v5557 = vshrl.u32 %v5556, 7
          %v5558 = vsub.s32 0, %v5557
          %v5559 = vrot.slane %v5554, %v5558
          %v5561 = vpack.i.b16 %v2444, %v2444
          %v5563 = vlaneseq
          %v5564 = vshrl.u32 %v5563, 7
          %v5565 = vsub.s32 0, %v5564
          %v5566 = vrot.slane %v5561, %v5565
          %v5568 = vpack.i.b16 %v2448, %v2448
          %v5570 = vlaneseq
          %v5571 = vshrl.u32 %v5570, 7
          %v5572 = vsub.s32 0, %v5571
          %v5573 = vrot.slane %v5568, %v5572
          %v5575 = vpack.i.b16 %v2452, %v2452
          %v5577 = vlaneseq
          %v5578 = vshrl.u32 %v5577, 7
          %v5579 = vsub.s32 0, %v5578
          %v5580 = vrot.slane %v5575, %v5579
          %v5582 = vpack.i.b16 %v2456, %v2456
          %v5584 = vlaneseq
          %v5585 = vshrl.u32 %v5584, 7
          %v5586 = vsub.s32 0, %v5585
          %v5587 = vrot.slane %v5582, %v5586
          %v5589 = vpack.i.b16 %v2460, %v2460
          %v5591 = vlaneseq
          %v5592 = vshrl.u32 %v5591, 7
          %v5593 = vsub.s32 0, %v5592
          %v5594 = vrot.slane %v5589, %v5593
          %v5596 = vpack.i.b16 %v2464, %v2464
          %v5598 = vlaneseq
          %v5599 = vshrl.u32 %v5598, 7
          %v5600 = vsub.s32 0, %v5599
          %v5601 = vrot.slane %v5596, %v5600
          %v5603 = vpack.i.b16 %v2468, %v2468
          %v5605 = vlaneseq
          %v5606 = vshrl.u32 %v5605, 7
          %v5607 = vsub.s32 0, %v5606
          %v5608 = vrot.slane %v5603, %v5607
          %v5610 = vpack.i.b16 %v2472, %v2472
          %v5612 = vlaneseq
          %v5613 = vshrl.u32 %v5612, 7
          %v5614 = vsub.s32 0, %v5613
          %v5615 = vrot.slane %v5610, %v5614
          %v5617 = vpack.i.b16 %v2476, %v2476
          %v5619 = vlaneseq
          %v5620 = vshrl.u32 %v5619, 7
          %v5621 = vsub.s32 0, %v5620
          %v5622 = vrot.slane %v5617, %v5621
          %v5624 = vpack.i.b16 %v2480, %v2480
          %v5626 = vlaneseq
          %v5627 = vshrl.u32 %v5626, 7
          %v5628 = vsub.s32 0, %v5627
          %v5629 = vrot.slane %v5624, %v5628
          %v5631 = vpack.i.b16 %v2484, %v2484
          %v5633 = vlaneseq
          %v5634 = vshrl.u32 %v5633, 7
          %v5635 = vsub.s32 0, %v5634
          %v5636 = vrot.slane %v5631, %v5635
          %v5638 = vpack.i.b16 %v2488, %v2488
          %v5640 = vlaneseq
          %v5641 = vshrl.u32 %v5640, 7
          %v5642 = vsub.s32 0, %v5641
          %v5643 = vrot.slane %v5638, %v5642
          %v5645 = vpack.i.b16 %v2492, %v2492
          %v5647 = vlaneseq
          %v5648 = vshrl.u32 %v5647, 7
          %v5649 = vsub.s32 0, %v5648
          %v5650 = vrot.slane %v5645, %v5649
          %v5652 = vpack.i.b16 %v2496, %v2496
          %v5654 = vlaneseq
          %v5655 = vshrl.u32 %v5654, 7
          %v5656 = vsub.s32 0, %v5655
          %v5657 = vrot.slane %v5652, %v5656
          %v5659 = vpack.i.b16 %v2500, %v2500
          %v5661 = vlaneseq
          %v5662 = vshrl.u32 %v5661, 7
          %v5663 = vsub.s32 0, %v5662
          %v5664 = vrot.slane %v5659, %v5663
          %v5666 = vpack.i.b16 %v2504, %v2504
          %v5668 = vlaneseq
          %v5669 = vshrl.u32 %v5668, 7
          %v5670 = vsub.s32 0, %v5669
          %v5671 = vrot.slane %v5666, %v5670
          %v5673 = vpack.i.b16 %v2508, %v2508
          %v5675 = vlaneseq
          %v5676 = vshrl.u32 %v5675, 7
          %v5677 = vsub.s32 0, %v5676
          %v5678 = vrot.slane %v5673, %v5677
          %v5680 = vpack.i.b16 %v2512, %v2512
          %v5682 = vlaneseq
          %v5683 = vshrl.u32 %v5682, 7
          %v5684 = vsub.s32 0, %v5683
          %v5685 = vrot.slane %v5680, %v5684
          %v5687 = vpack.i.b16 %v2516, %v2516
          %v5689 = vlaneseq
          %v5690 = vshrl.u32 %v5689, 7
          %v5691 = vsub.s32 0, %v5690
          %v5692 = vrot.slane %v5687, %v5691
          %v5694 = vpack.i.b16 %v2520, %v2520
          %v5696 = vlaneseq
          %v5697 = vshrl.u32 %v5696, 7
          %v5698 = vsub.s32 0, %v5697
          %v5699 = vrot.slane %v5694, %v5698
          %v5701 = vpack.i.b16 %v2524, %v2524
          %v5703 = vlaneseq
          %v5704 = vshrl.u32 %v5703, 7
          %v5705 = vsub.s32 0, %v5704
          %v5706 = vrot.slane %v5701, %v5705
          %v5708 = vpack.i.b16 %v2528, %v2528
          %v5710 = vlaneseq
          %v5711 = vshrl.u32 %v5710, 7
          %v5712 = vsub.s32 0, %v5711
          %v5713 = vrot.slane %v5708, %v5712
          %v5715 = vpack.i.b16 %v2532, %v2532
          %v5717 = vlaneseq
          %v5718 = vshrl.u32 %v5717, 7
          %v5719 = vsub.s32 0, %v5718
          %v5720 = vrot.slane %v5715, %v5719
          %v5722 = vpack.i.b16 %v2536, %v2536
          %v5724 = vlaneseq
          %v5725 = vshrl.u32 %v5724, 7
          %v5726 = vsub.s32 0, %v5725
          %v5727 = vrot.slane %v5722, %v5726
          %v5729 = vpack.i.b16 %v2540, %v2540
          %v5731 = vlaneseq
          %v5732 = vshrl.u32 %v5731, 7
          %v5733 = vsub.s32 0, %v5732
          %v5734 = vrot.slane %v5729, %v5733
          %v5736 = vpack.i.b16 %v2544, %v2544
          %v5738 = vlaneseq
          %v5739 = vshrl.u32 %v5738, 7
          %v5740 = vsub.s32 0, %v5739
          %v5741 = vrot.slane %v5736, %v5740
          %v5743 = vpack.i.b16 %v2548, %v2548
          %v5745 = vlaneseq
          %v5746 = vshrl.u32 %v5745, 7
          %v5747 = vsub.s32 0, %v5746
          %v5748 = vrot.slane %v5743, %v5747
          %v5750 = vpack.i.b16 %v2552, %v2552
          %v5752 = vlaneseq
          %v5753 = vshrl.u32 %v5752, 7
          %v5754 = vsub.s32 0, %v5753
          %v5755 = vrot.slane %v5750, %v5754
          %v5757 = vpack.i.b16 %v2556, %v2556
          %v5759 = vlaneseq
          %v5760 = vshrl.u32 %v5759, 7
          %v5761 = vsub.s32 0, %v5760
          %v5762 = vrot.slane %v5757, %v5761
          %v5764 = vpack.i.b16 %v2560, %v2560
          %v5766 = vlaneseq
          %v5767 = vshrl.u32 %v5766, 7
          %v5768 = vsub.s32 0, %v5767
          %v5769 = vrot.slane %v5764, %v5768
          %v5771 = vpack.i.b16 %v2564, %v2564
          %v5773 = vlaneseq
          %v5774 = vshrl.u32 %v5773, 7
          %v5775 = vsub.s32 0, %v5774
          %v5776 = vrot.slane %v5771, %v5775
          %v5778 = vpack.i.b16 %v2568, %v2568
          %v5780 = vlaneseq
          %v5781 = vshrl.u32 %v5780, 7
          %v5782 = vsub.s32 0, %v5781
          %v5783 = vrot.slane %v5778, %v5782
          %v5785 = vpack.i.b16 %v2572, %v2572
          %v5787 = vlaneseq
          %v5788 = vshrl.u32 %v5787, 7
          %v5789 = vsub.s32 0, %v5788
          %v5790 = vrot.slane %v5785, %v5789
          %v5792 = vpack.i.b16 %v2576, %v2576
          %v5794 = vlaneseq
          %v5795 = vshrl.u32 %v5794, 7
          %v5796 = vsub.s32 0, %v5795
          %v5797 = vrot.slane %v5792, %v5796
          %v5799 = vpack.i.b16 %v2580, %v2580
          %v5801 = vlaneseq
          %v5802 = vshrl.u32 %v5801, 7
          %v5803 = vsub.s32 0, %v5802
          %v5804 = vrot.slane %v5799, %v5803
          %v5806 = vpack.i.b16 %v2584, %v2584
          %v5808 = vlaneseq
          %v5809 = vshrl.u32 %v5808, 7
          %v5810 = vsub.s32 0, %v5809
          %v5811 = vrot.slane %v5806, %v5810
          %v5813 = vpack.i.b16 %v2588, %v2588
          %v5815 = vlaneseq
          %v5816 = vshrl.u32 %v5815, 7
          %v5817 = vsub.s32 0, %v5816
          %v5818 = vrot.slane %v5813, %v5817
          %v5820 = vpack.i.b16 %v2592, %v2592
          %v5822 = vlaneseq
          %v5823 = vshrl.u32 %v5822, 7
          %v5824 = vsub.s32 0, %v5823
          %v5825 = vrot.slane %v5820, %v5824
          %v5827 = vpack.i.b16 %v2596, %v2596
          %v5829 = vlaneseq
          %v5830 = vshrl.u32 %v5829, 7
          %v5831 = vsub.s32 0, %v5830
          %v5832 = vrot.slane %v5827, %v5831
          %v5834 = vpack.i.b16 %v2600, %v2600
          %v5836 = vlaneseq
          %v5837 = vshrl.u32 %v5836, 7
          %v5838 = vsub.s32 0, %v5837
          %v5839 = vrot.slane %v5834, %v5838
          %v5841 = vpack.i.b16 %v2604, %v2604
          %v5843 = vlaneseq
          %v5844 = vshrl.u32 %v5843, 7
          %v5845 = vsub.s32 0, %v5844
          %v5846 = vrot.slane %v5841, %v5845
          %v5848 = vpack.i.b16 %v2608, %v2608
          %v5850 = vlaneseq
          %v5851 = vshrl.u32 %v5850, 7
          %v5852 = vsub.s32 0, %v5851
          %v5853 = vrot.slane %v5848, %v5852
          %v5855 = vpack.i.b16 %v2612, %v2612
          %v5857 = vlaneseq
          %v5858 = vshrl.u32 %v5857, 7
          %v5859 = vsub.s32 0, %v5858
          %v5860 = vrot.slane %v5855, %v5859
          %v5862 = vpack.i.b16 %v2616, %v2616
          %v5864 = vlaneseq
          %v5865 = vshrl.u32 %v5864, 7
          %v5866 = vsub.s32 0, %v5865
          %v5867 = vrot.slane %v5862, %v5866
          %v5869 = vpack.i.b16 %v2620, %v2620
          %v5871 = vlaneseq
          %v5872 = vshrl.u32 %v5871, 7
          %v5873 = vsub.s32 0, %v5872
          %v5874 = vrot.slane %v5869, %v5873
          %v5876 = vpack.i.b16 %v2624, %v2624
          %v5878 = vlaneseq
          %v5879 = vshrl.u32 %v5878, 7
          %v5880 = vsub.s32 0, %v5879
          %v5881 = vrot.slane %v5876, %v5880
          %v5883 = vpack.i.b16 %v2628, %v2628
          %v5885 = vlaneseq
          %v5886 = vshrl.u32 %v5885, 7
          %v5887 = vsub.s32 0, %v5886
          %v5888 = vrot.slane %v5883, %v5887
          %v5890 = vpack.i.b16 %v2632, %v2632
          %v5892 = vlaneseq
          %v5893 = vshrl.u32 %v5892, 7
          %v5894 = vsub.s32 0, %v5893
          %v5895 = vrot.slane %v5890, %v5894
          %v5897 = vpack.i.b16 %v2636, %v2636
          %v5899 = vlaneseq
          %v5900 = vshrl.u32 %v5899, 7
          %v5901 = vsub.s32 0, %v5900
          %v5902 = vrot.slane %v5897, %v5901
          %v5904 = vpack.i.b16 %v2640, %v2640
          %v5906 = vlaneseq
          %v5907 = vshrl.u32 %v5906, 7
          %v5908 = vsub.s32 0, %v5907
          %v5909 = vrot.slane %v5904, %v5908
          %v5911 = vpack.i.b16 %v2644, %v2644
          %v5913 = vlaneseq
          %v5914 = vshrl.u32 %v5913, 7
          %v5915 = vsub.s32 0, %v5914
          %v5916 = vrot.slane %v5911, %v5915
          %v5918 = vpack.i.b16 %v2648, %v2648
          %v5920 = vlaneseq
          %v5921 = vshrl.u32 %v5920, 7
          %v5922 = vsub.s32 0, %v5921
          %v5923 = vrot.slane %v5918, %v5922
          %v5925 = vpack.i.b16 %v2652, %v2652
          %v5927 = vlaneseq
          %v5928 = vshrl.u32 %v5927, 7
          %v5929 = vsub.s32 0, %v5928
          %v5930 = vrot.slane %v5925, %v5929
          %v5932 = vpack.i.b16 %v2656, %v2656
          %v5934 = vlaneseq
          %v5935 = vshrl.u32 %v5934, 7
          %v5936 = vsub.s32 0, %v5935
          %v5937 = vrot.slane %v5932, %v5936
          %v5939 = vpack.i.b16 %v2660, %v2660
          %v5941 = vlaneseq
          %v5942 = vshrl.u32 %v5941, 7
          %v5943 = vsub.s32 0, %v5942
          %v5944 = vrot.slane %v5939, %v5943
          %v5946 = vpack.i.b16 %v2664, %v2664
          %v5948 = vlaneseq
          %v5949 = vshrl.u32 %v5948, 7
          %v5950 = vsub.s32 0, %v5949
          %v5951 = vrot.slane %v5946, %v5950
          %v5953 = vpack.i.b16 %v2668, %v2668
          %v5955 = vlaneseq
          %v5956 = vshrl.u32 %v5955, 7
          %v5957 = vsub.s32 0, %v5956
          %v5958 = vrot.slane %v5953, %v5957
          %v5960 = vpack.i.b16 %v2672, %v2672
          %v5962 = vlaneseq
          %v5963 = vshrl.u32 %v5962, 7
          %v5964 = vsub.s32 0, %v5963
          %v5965 = vrot.slane %v5960, %v5964
          %v5967 = vpack.i.b16 %v2676, %v2676
          %v5969 = vlaneseq
          %v5970 = vshrl.u32 %v5969, 7
          %v5971 = vsub.s32 0, %v5970
          %v5972 = vrot.slane %v5967, %v5971
          %v5974 = vpack.i.b16 %v2680, %v2680
          %v5976 = vlaneseq
          %v5977 = vshrl.u32 %v5976, 7
          %v5978 = vsub.s32 0, %v5977
          %v5979 = vrot.slane %v5974, %v5978
          %v5981 = vpack.i.b16 %v2684, %v2684
          %v5983 = vlaneseq
          %v5984 = vshrl.u32 %v5983, 7
          %v5985 = vsub.s32 0, %v5984
          %v5986 = vrot.slane %v5981, %v5985
          %v5988 = vpack.i.b16 %v2688, %v2688
          %v5990 = vlaneseq
          %v5991 = vshrl.u32 %v5990, 7
          %v5992 = vsub.s32 0, %v5991
          %v5993 = vrot.slane %v5988, %v5992
          %v5995 = vpack.i.b16 %v2692, %v2692
          %v5997 = vlaneseq
          %v5998 = vshrl.u32 %v5997, 7
          %v5999 = vsub.s32 0, %v5998
          %v6000 = vrot.slane %v5995, %v5999
          %v6002 = vpack.i.b16 %v2696, %v2696
          %v6004 = vlaneseq
          %v6005 = vshrl.u32 %v6004, 7
          %v6006 = vsub.s32 0, %v6005
          %v6007 = vrot.slane %v6002, %v6006
          %v6009 = vpack.i.b16 %v2700, %v2700
          %v6011 = vlaneseq
          %v6012 = vshrl.u32 %v6011, 7
          %v6013 = vsub.s32 0, %v6012
          %v6014 = vrot.slane %v6009, %v6013
          %v6016 = vpack.i.b16 %v2704, %v2704
          %v6018 = vlaneseq
          %v6019 = vshrl.u32 %v6018, 7
          %v6020 = vsub.s32 0, %v6019
          %v6021 = vrot.slane %v6016, %v6020
          %v6023 = vpack.i.b16 %v2708, %v2708
          %v6025 = vlaneseq
          %v6026 = vshrl.u32 %v6025, 7
          %v6027 = vsub.s32 0, %v6026
          %v6028 = vrot.slane %v6023, %v6027
          %v6030 = vpack.i.b16 %v2712, %v2712
          %v6032 = vlaneseq
          %v6033 = vshrl.u32 %v6032, 7
          %v6034 = vsub.s32 0, %v6033
          %v6035 = vrot.slane %v6030, %v6034
          %v6037 = vpack.i.b16 %v2716, %v2716
          %v6039 = vlaneseq
          %v6040 = vshrl.u32 %v6039, 7
          %v6041 = vsub.s32 0, %v6040
          %v6042 = vrot.slane %v6037, %v6041
          %v6044 = vpack.i.b16 %v2720, %v2720
          %v6046 = vlaneseq
          %v6047 = vshrl.u32 %v6046, 7
          %v6048 = vsub.s32 0, %v6047
          %v6049 = vrot.slane %v6044, %v6048
          %v6051 = vpack.i.b16 %v2724, %v2724
          %v6053 = vlaneseq
          %v6054 = vshrl.u32 %v6053, 7
          %v6055 = vsub.s32 0, %v6054
          %v6056 = vrot.slane %v6051, %v6055
          %v6058 = vpack.i.b16 %v2728, %v2728
          %v6060 = vlaneseq
          %v6061 = vshrl.u32 %v6060, 7
          %v6062 = vsub.s32 0, %v6061
          %v6063 = vrot.slane %v6058, %v6062
          %v6065 = vpack.i.b16 %v2732, %v2732
          %v6067 = vlaneseq
          %v6068 = vshrl.u32 %v6067, 7
          %v6069 = vsub.s32 0, %v6068
          %v6070 = vrot.slane %v6065, %v6069
          %v6072 = vpack.i.b16 %v2736, %v2736
          %v6074 = vlaneseq
          %v6075 = vshrl.u32 %v6074, 7
          %v6076 = vsub.s32 0, %v6075
          %v6077 = vrot.slane %v6072, %v6076
          %v6079 = vpack.i.b16 %v2740, %v2740
          %v6081 = vlaneseq
          %v6082 = vshrl.u32 %v6081, 7
          %v6083 = vsub.s32 0, %v6082
          %v6084 = vrot.slane %v6079, %v6083
          %v6086 = vpack.i.b16 %v2744, %v2744
          %v6088 = vlaneseq
          %v6089 = vshrl.u32 %v6088, 7
          %v6090 = vsub.s32 0, %v6089
          %v6091 = vrot.slane %v6086, %v6090
          %v6093 = vpack.i.b16 %v2748, %v2748
          %v6095 = vlaneseq
          %v6096 = vshrl.u32 %v6095, 7
          %v6097 = vsub.s32 0, %v6096
          %v6098 = vrot.slane %v6093, %v6097
          %v6100 = vpack.i.b16 %v2752, %v2752
          %v6102 = vlaneseq
          %v6103 = vshrl.u32 %v6102, 7
          %v6104 = vsub.s32 0, %v6103
          %v6105 = vrot.slane %v6100, %v6104
          %v6107 = vpack.i.b16 %v2756, %v2756
          %v6109 = vlaneseq
          %v6110 = vshrl.u32 %v6109, 7
          %v6111 = vsub.s32 0, %v6110
          %v6112 = vrot.slane %v6107, %v6111
          %v6114 = vpack.i.b16 %v2760, %v2760
          %v6116 = vlaneseq
          %v6117 = vshrl.u32 %v6116, 7
          %v6118 = vsub.s32 0, %v6117
          %v6119 = vrot.slane %v6114, %v6118
          %v6121 = vpack.i.b16 %v2764, %v2764
          %v6123 = vlaneseq
          %v6124 = vshrl.u32 %v6123, 7
          %v6125 = vsub.s32 0, %v6124
          %v6126 = vrot.slane %v6121, %v6125
          %v6128 = vpack.i.b16 %v2768, %v2768
          %v6130 = vlaneseq
          %v6131 = vshrl.u32 %v6130, 7
          %v6132 = vsub.s32 0, %v6131
          %v6133 = vrot.slane %v6128, %v6132
          %v6135 = vpack.i.b16 %v2772, %v2772
          %v6137 = vlaneseq
          %v6138 = vshrl.u32 %v6137, 7
          %v6139 = vsub.s32 0, %v6138
          %v6140 = vrot.slane %v6135, %v6139
          %v6142 = vpack.i.b16 %v2776, %v2776
          %v6144 = vlaneseq
          %v6145 = vshrl.u32 %v6144, 7
          %v6146 = vsub.s32 0, %v6145
          %v6147 = vrot.slane %v6142, %v6146
          %v6149 = vpack.i.b16 %v2780, %v2780
          %v6151 = vlaneseq
          %v6152 = vshrl.u32 %v6151, 7
          %v6153 = vsub.s32 0, %v6152
          %v6154 = vrot.slane %v6149, %v6153
          %v6156 = vpack.i.b16 %v2784, %v2784
          %v6158 = vlaneseq
          %v6159 = vshrl.u32 %v6158, 7
          %v6160 = vsub.s32 0, %v6159
          %v6161 = vrot.slane %v6156, %v6160
          %v6163 = vpack.i.b16 %v2788, %v2788
          %v6165 = vlaneseq
          %v6166 = vshrl.u32 %v6165, 7
          %v6167 = vsub.s32 0, %v6166
          %v6168 = vrot.slane %v6163, %v6167
          %v6170 = vpack.i.b16 %v2792, %v2792
          %v6172 = vlaneseq
          %v6173 = vshrl.u32 %v6172, 7
          %v6174 = vsub.s32 0, %v6173
          %v6175 = vrot.slane %v6170, %v6174
          %v6177 = vpack.i.b16 %v2796, %v2796
          %v6179 = vlaneseq
          %v6180 = vshrl.u32 %v6179, 7
          %v6181 = vsub.s32 0, %v6180
          %v6182 = vrot.slane %v6177, %v6181
          %v6184 = vpack.i.b16 %v2800, %v2800
          %v6186 = vlaneseq
          %v6187 = vshrl.u32 %v6186, 7
          %v6188 = vsub.s32 0, %v6187
          %v6189 = vrot.slane %v6184, %v6188
          %v6191 = vpack.i.b16 %v2804, %v2804
          %v6193 = vlaneseq
          %v6194 = vshrl.u32 %v6193, 7
          %v6195 = vsub.s32 0, %v6194
          %v6196 = vrot.slane %v6191, %v6195
          %v6198 = vpack.i.b16 %v2808, %v2808
          %v6200 = vlaneseq
          %v6201 = vshrl.u32 %v6200, 7
          %v6202 = vsub.s32 0, %v6201
          %v6203 = vrot.slane %v6198, %v6202
          %v6205 = vpack.i.b16 %v2812, %v2812
          %v6207 = vlaneseq
          %v6208 = vshrl.u32 %v6207, 7
          %v6209 = vsub.s32 0, %v6208
          %v6210 = vrot.slane %v6205, %v6209
          %v6212 = vpack.i.b16 %v2816, %v2816
          %v6214 = vlaneseq
          %v6215 = vshrl.u32 %v6214, 7
          %v6216 = vsub.s32 0, %v6215
          %v6217 = vrot.slane %v6212, %v6216
          %v6219 = vpack.i.b16 %v2820, %v2820
          %v6221 = vlaneseq
          %v6222 = vshrl.u32 %v6221, 7
          %v6223 = vsub.s32 0, %v6222
          %v6224 = vrot.slane %v6219, %v6223
          %v6226 = vpack.i.b16 %v2824, %v2824
          %v6228 = vlaneseq
          %v6229 = vshrl.u32 %v6228, 7
          %v6230 = vsub.s32 0, %v6229
          %v6231 = vrot.slane %v6226, %v6230
          %v6233 = vpack.i.b16 %v2828, %v2828
          %v6235 = vlaneseq
          %v6236 = vshrl.u32 %v6235, 7
          %v6237 = vsub.s32 0, %v6236
          %v6238 = vrot.slane %v6233, %v6237
          %v6240 = vpack.i.b16 %v2832, %v2832
          %v6242 = vlaneseq
          %v6243 = vshrl.u32 %v6242, 7
          %v6244 = vsub.s32 0, %v6243
          %v6245 = vrot.slane %v6240, %v6244
          %v6247 = vpack.i.b16 %v2836, %v2836
          %v6249 = vlaneseq
          %v6250 = vshrl.u32 %v6249, 7
          %v6251 = vsub.s32 0, %v6250
          %v6252 = vrot.slane %v6247, %v6251
          %v6254 = vpack.i.b16 %v2840, %v2840
          %v6256 = vlaneseq
          %v6257 = vshrl.u32 %v6256, 7
          %v6258 = vsub.s32 0, %v6257
          %v6259 = vrot.slane %v6254, %v6258
          %v6261 = vpack.i.b16 %v2844, %v2844
          %v6263 = vlaneseq
          %v6264 = vshrl.u32 %v6263, 7
          %v6265 = vsub.s32 0, %v6264
          %v6266 = vrot.slane %v6261, %v6265
          %v6268 = vpack.i.b16 %v2848, %v2848
          %v6270 = vlaneseq
          %v6271 = vshrl.u32 %v6270, 7
          %v6272 = vsub.s32 0, %v6271
          %v6273 = vrot.slane %v6268, %v6272
          %v6275 = vpack.i.b16 %v2852, %v2852
          %v6277 = vlaneseq
          %v6278 = vshrl.u32 %v6277, 7
          %v6279 = vsub.s32 0, %v6278
          %v6280 = vrot.slane %v6275, %v6279
          %v6282 = vpack.i.b16 %v2856, %v2856
          %v6284 = vlaneseq
          %v6285 = vshrl.u32 %v6284, 7
          %v6286 = vsub.s32 0, %v6285
          %v6287 = vrot.slane %v6282, %v6286
          %v6289 = vpack.i.b16 %v2860, %v2860
          %v6291 = vlaneseq
          %v6292 = vshrl.u32 %v6291, 7
          %v6293 = vsub.s32 0, %v6292
          %v6294 = vrot.slane %v6289, %v6293
          %v6296 = vpack.i.b16 %v2864, %v2864
          %v6298 = vlaneseq
          %v6299 = vshrl.u32 %v6298, 7
          %v6300 = vsub.s32 0, %v6299
          %v6301 = vrot.slane %v6296, %v6300
          %v6303 = vpack.i.b16 %v2868, %v2868
          %v6305 = vlaneseq
          %v6306 = vshrl.u32 %v6305, 7
          %v6307 = vsub.s32 0, %v6306
          %v6308 = vrot.slane %v6303, %v6307
          %v6310 = vpack.i.b16 %v2872, %v2872
          %v6312 = vlaneseq
          %v6313 = vshrl.u32 %v6312, 7
          %v6314 = vsub.s32 0, %v6313
          %v6315 = vrot.slane %v6310, %v6314
          %v6317 = vpack.i.b16 %v2876, %v2876
          %v6319 = vlaneseq
          %v6320 = vshrl.u32 %v6319, 7
          %v6321 = vsub.s32 0, %v6320
          %v6322 = vrot.slane %v6317, %v6321
          %v6324 = vpack.i.b16 %v2880, %v2880
          %v6326 = vlaneseq
          %v6327 = vshrl.u32 %v6326, 7
          %v6328 = vsub.s32 0, %v6327
          %v6329 = vrot.slane %v6324, %v6328
          %v6331 = vpack.i.b16 %v2884, %v2884
          %v6333 = vlaneseq
          %v6334 = vshrl.u32 %v6333, 7
          %v6335 = vsub.s32 0, %v6334
          %v6336 = vrot.slane %v6331, %v6335
          %v6338 = vpack.i.b16 %v2888, %v2888
          %v6340 = vlaneseq
          %v6341 = vshrl.u32 %v6340, 7
          %v6342 = vsub.s32 0, %v6341
          %v6343 = vrot.slane %v6338, %v6342
          %v6345 = vpack.i.b16 %v2892, %v2892
          %v6347 = vlaneseq
          %v6348 = vshrl.u32 %v6347, 7
          %v6349 = vsub.s32 0, %v6348
          %v6350 = vrot.slane %v6345, %v6349
          %v6352 = vpack.i.b16 %v2896, %v2896
          %v6354 = vlaneseq
          %v6355 = vshrl.u32 %v6354, 7
          %v6356 = vsub.s32 0, %v6355
          %v6357 = vrot.slane %v6352, %v6356
          %v6359 = vpack.i.b16 %v2900, %v2900
          %v6361 = vlaneseq
          %v6362 = vshrl.u32 %v6361, 7
          %v6363 = vsub.s32 0, %v6362
          %v6364 = vrot.slane %v6359, %v6363
          %v6366 = vpack.i.b16 %v2904, %v2904
          %v6368 = vlaneseq
          %v6369 = vshrl.u32 %v6368, 7
          %v6370 = vsub.s32 0, %v6369
          %v6371 = vrot.slane %v6366, %v6370
          %v6373 = vpack.i.b16 %v2908, %v2908
          %v6375 = vlaneseq
          %v6376 = vshrl.u32 %v6375, 7
          %v6377 = vsub.s32 0, %v6376
          %v6378 = vrot.slane %v6373, %v6377
          %v6380 = vpack.i.b16 %v2912, %v2912
          %v6382 = vlaneseq
          %v6383 = vshrl.u32 %v6382, 7
          %v6384 = vsub.s32 0, %v6383
          %v6385 = vrot.slane %v6380, %v6384
          %v6387 = vpack.i.b16 %v2916, %v2916
          %v6389 = vlaneseq
          %v6390 = vshrl.u32 %v6389, 7
          %v6391 = vsub.s32 0, %v6390
          %v6392 = vrot.slane %v6387, %v6391
          %v6394 = vpack.i.b16 %v2920, %v2920
          %v6396 = vlaneseq
          %v6397 = vshrl.u32 %v6396, 7
          %v6398 = vsub.s32 0, %v6397
          %v6399 = vrot.slane %v6394, %v6398
          %v6401 = vpack.i.b16 %v2924, %v2924
          %v6403 = vlaneseq
          %v6404 = vshrl.u32 %v6403, 7
          %v6405 = vsub.s32 0, %v6404
          %v6406 = vrot.slane %v6401, %v6405
          %v6408 = vpack.i.b16 %v2928, %v2928
          %v6410 = vlaneseq
          %v6411 = vshrl.u32 %v6410, 7
          %v6412 = vsub.s32 0, %v6411
          %v6413 = vrot.slane %v6408, %v6412
          %v6415 = vpack.i.b16 %v2932, %v2932
          %v6417 = vlaneseq
          %v6418 = vshrl.u32 %v6417, 7
          %v6419 = vsub.s32 0, %v6418
          %v6420 = vrot.slane %v6415, %v6419
          %v6422 = vpack.i.b16 %v2936, %v2936
          %v6424 = vlaneseq
          %v6425 = vshrl.u32 %v6424, 7
          %v6426 = vsub.s32 0, %v6425
          %v6427 = vrot.slane %v6422, %v6426
          %v6429 = vpack.i.b16 %v2940, %v2940
          %v6431 = vlaneseq
          %v6432 = vshrl.u32 %v6431, 7
          %v6433 = vsub.s32 0, %v6432
          %v6434 = vrot.slane %v6429, %v6433
          %v6436 = vpack.i.b16 %v2944, %v2944
          %v6438 = vlaneseq
          %v6439 = vshrl.u32 %v6438, 7
          %v6440 = vsub.s32 0, %v6439
          %v6441 = vrot.slane %v6436, %v6440
          %v6443 = vpack.i.b16 %v2948, %v2948
          %v6445 = vlaneseq
          %v6446 = vshrl.u32 %v6445, 7
          %v6447 = vsub.s32 0, %v6446
          %v6448 = vrot.slane %v6443, %v6447
          %v6450 = vpack.i.b16 %v2952, %v2952
          %v6452 = vlaneseq
          %v6453 = vshrl.u32 %v6452, 7
          %v6454 = vsub.s32 0, %v6453
          %v6455 = vrot.slane %v6450, %v6454
          %v6457 = vpack.i.b16 %v2956, %v2956
          %v6459 = vlaneseq
          %v6460 = vshrl.u32 %v6459, 7
          %v6461 = vsub.s32 0, %v6460
          %v6462 = vrot.slane %v6457, %v6461
          %v6464 = vpack.i.b16 %v2960, %v2960
          %v6466 = vlaneseq
          %v6467 = vshrl.u32 %v6466, 7
          %v6468 = vsub.s32 0, %v6467
          %v6469 = vrot.slane %v6464, %v6468
          %v6471 = vpack.i.b16 %v2964, %v2964
          %v6473 = vlaneseq
          %v6474 = vshrl.u32 %v6473, 7
          %v6475 = vsub.s32 0, %v6474
          %v6476 = vrot.slane %v6471, %v6475
          %v6478 = vpack.i.b16 %v2968, %v2968
          %v6480 = vlaneseq
          %v6481 = vshrl.u32 %v6480, 7
          %v6482 = vsub.s32 0, %v6481
          %v6483 = vrot.slane %v6478, %v6482
          %v6485 = vpack.i.b16 %v2972, %v2972
          %v6487 = vlaneseq
          %v6488 = vshrl.u32 %v6487, 7
          %v6489 = vsub.s32 0, %v6488
          %v6490 = vrot.slane %v6485, %v6489
          %v6492 = vpack.i.b16 %v2976, %v2976
          %v6494 = vlaneseq
          %v6495 = vshrl.u32 %v6494, 7
          %v6496 = vsub.s32 0, %v6495
          %v6497 = vrot.slane %v6492, %v6496
          %v6499 = vpack.i.b16 %v2980, %v2980
          %v6501 = vlaneseq
          %v6502 = vshrl.u32 %v6501, 7
          %v6503 = vsub.s32 0, %v6502
          %v6504 = vrot.slane %v6499, %v6503
          %v6506 = vpack.i.b16 %v2984, %v2984
          %v6508 = vlaneseq
          %v6509 = vshrl.u32 %v6508, 7
          %v6510 = vsub.s32 0, %v6509
          %v6511 = vrot.slane %v6506, %v6510
          %v6513 = vpack.i.b16 %v2988, %v2988
          %v6515 = vlaneseq
          %v6516 = vshrl.u32 %v6515, 7
          %v6517 = vsub.s32 0, %v6516
          %v6518 = vrot.slane %v6513, %v6517
          %v6520 = vpack.i.b16 %v2992, %v2992
          %v6522 = vlaneseq
          %v6523 = vshrl.u32 %v6522, 7
          %v6524 = vsub.s32 0, %v6523
          %v6525 = vrot.slane %v6520, %v6524
          %v6527 = vpack.i.b16 %v2996, %v2996
          %v6529 = vlaneseq
          %v6530 = vshrl.u32 %v6529, 7
          %v6531 = vsub.s32 0, %v6530
          %v6532 = vrot.slane %v6527, %v6531
          %v6534 = vpack.i.b16 %v3000, %v3000
          %v6536 = vlaneseq
          %v6537 = vshrl.u32 %v6536, 7
          %v6538 = vsub.s32 0, %v6537
          %v6539 = vrot.slane %v6534, %v6538
          %v6541 = vpack.i.b16 %v3004, %v3004
          %v6543 = vlaneseq
          %v6544 = vshrl.u32 %v6543, 7
          %v6545 = vsub.s32 0, %v6544
          %v6546 = vrot.slane %v6541, %v6545
          %v6548 = vpack.i.b16 %v3008, %v3008
          %v6550 = vlaneseq
          %v6551 = vshrl.u32 %v6550, 7
          %v6552 = vsub.s32 0, %v6551
          %v6553 = vrot.slane %v6548, %v6552
          %v6555 = vpack.i.b16 %v3012, %v3012
          %v6557 = vlaneseq
          %v6558 = vshrl.u32 %v6557, 7
          %v6559 = vsub.s32 0, %v6558
          %v6560 = vrot.slane %v6555, %v6559
          %v6562 = vpack.i.b16 %v3016, %v3016
          %v6564 = vlaneseq
          %v6565 = vshrl.u32 %v6564, 7
          %v6566 = vsub.s32 0, %v6565
          %v6567 = vrot.slane %v6562, %v6566
          %v6569 = vpack.i.b16 %v3020, %v3020
          %v6571 = vlaneseq
          %v6572 = vshrl.u32 %v6571, 7
          %v6573 = vsub.s32 0, %v6572
          %v6574 = vrot.slane %v6569, %v6573
          %v6576 = vpack.i.b16 %v3024, %v3024
          %v6578 = vlaneseq
          %v6579 = vshrl.u32 %v6578, 7
          %v6580 = vsub.s32 0, %v6579
          %v6581 = vrot.slane %v6576, %v6580
          %v6583 = vpack.i.b16 %v3028, %v3028
          %v6585 = vlaneseq
          %v6586 = vshrl.u32 %v6585, 7
          %v6587 = vsub.s32 0, %v6586
          %v6588 = vrot.slane %v6583, %v6587
          %v6590 = vpack.i.b16 %v3032, %v3032
          %v6592 = vlaneseq
          %v6593 = vshrl.u32 %v6592, 7
          %v6594 = vsub.s32 0, %v6593
          %v6595 = vrot.slane %v6590, %v6594
          %v6597 = vpack.i.b16 %v3036, %v3036
          %v6599 = vlaneseq
          %v6600 = vshrl.u32 %v6599, 7
          %v6601 = vsub.s32 0, %v6600
          %v6602 = vrot.slane %v6597, %v6601
          %v6604 = vpack.i.b16 %v3040, %v3040
          %v6606 = vlaneseq
          %v6607 = vshrl.u32 %v6606, 7
          %v6608 = vsub.s32 0, %v6607
          %v6609 = vrot.slane %v6604, %v6608
          %v6611 = vpack.i.b16 %v3044, %v3044
          %v6613 = vlaneseq
          %v6614 = vshrl.u32 %v6613, 7
          %v6615 = vsub.s32 0, %v6614
          %v6616 = vrot.slane %v6611, %v6615
          %v6618 = vpack.i.b16 %v3048, %v3048
          %v6620 = vlaneseq
          %v6621 = vshrl.u32 %v6620, 7
          %v6622 = vsub.s32 0, %v6621
          %v6623 = vrot.slane %v6618, %v6622
          %v6625 = vpack.i.b16 %v3052, %v3052
          %v6627 = vlaneseq
          %v6628 = vshrl.u32 %v6627, 7
          %v6629 = vsub.s32 0, %v6628
          %v6630 = vrot.slane %v6625, %v6629
          %v6632 = vpack.i.b16 %v3056, %v3056
          %v6634 = vlaneseq
          %v6635 = vshrl.u32 %v6634, 7
          %v6636 = vsub.s32 0, %v6635
          %v6637 = vrot.slane %v6632, %v6636
          %v6639 = vpack.i.b16 %v3060, %v3060
          %v6641 = vlaneseq
          %v6642 = vshrl.u32 %v6641, 7
          %v6643 = vsub.s32 0, %v6642
          %v6644 = vrot.slane %v6639, %v6643
          %v6649 = vunpack.c.l.b16 %v337
          %v6650 = vunpack.c.h.b16 %v337
          %v6651 = vunpack.c.l.b16 %v338
          %v6652 = vunpack.c.h.b16 %v338
          %v6653 = vunpack.c.l.b16 %v339
          %v6654 = vunpack.c.h.b16 %v339
          %v6655 = vunpack.c.l.b16 %v340
          %v6656 = vunpack.c.h.b16 %v340
          %v6657 = vpack.c.b16 %v6649, %v6649
          %v6658 = vpack.c.b16 %v6650, %v6650
          %v6659 = vpack.c.b16 %v6651, %v6651
          %v6660 = vpack.c.b16 %v6652, %v6652
          %v6661 = vpack.c.b16 %v6653, %v6653
          %v6662 = vpack.c.b16 %v6654, %v6654
          %v6663 = vpack.c.b16 %v6655, %v6655
          %v6664 = vpack.c.b16 %v6656, %v6656
          %v6673 = vadd.bf16 %v3067, %v6657
          %v6674 = vadd.bf16 %v3074, %v6658
          %v6675 = vadd.bf16 %v3081, %v6659
          %v6676 = vadd.bf16 %v3088, %v6660
          %v6677 = vadd.bf16 %v3095, %v6661
          %v6678 = vadd.bf16 %v3102, %v6662
          %v6679 = vadd.bf16 %v3109, %v6663
          %v6680 = vadd.bf16 %v3116, %v6664
          %v6681 = vadd.bf16 %v3123, %v6657
          %v6682 = vadd.bf16 %v3130, %v6658
          %v6683 = vadd.bf16 %v3137, %v6659
          %v6684 = vadd.bf16 %v3144, %v6660
          %v6685 = vadd.bf16 %v3151, %v6661
          %v6686 = vadd.bf16 %v3158, %v6662
          %v6687 = vadd.bf16 %v3165, %v6663
          %v6688 = vadd.bf16 %v3172, %v6664
          %v6689 = vadd.bf16 %v3179, %v6657
          %v6690 = vadd.bf16 %v3186, %v6658
          %v6691 = vadd.bf16 %v3193, %v6659
          %v6692 = vadd.bf16 %v3200, %v6660
          %v6693 = vadd.bf16 %v3207, %v6661
          %v6694 = vadd.bf16 %v3214, %v6662
          %v6695 = vadd.bf16 %v3221, %v6663
          %v6696 = vadd.bf16 %v3228, %v6664
          %v6697 = vadd.bf16 %v3235, %v6657
          %v6698 = vadd.bf16 %v3242, %v6658
          %v6699 = vadd.bf16 %v3249, %v6659
          %v6700 = vadd.bf16 %v3256, %v6660
          %v6701 = vadd.bf16 %v3263, %v6661
          %v6702 = vadd.bf16 %v3270, %v6662
          %v6703 = vadd.bf16 %v3277, %v6663
          %v6704 = vadd.bf16 %v3284, %v6664
          %v6705 = vadd.bf16 %v3291, %v6657
          %v6706 = vadd.bf16 %v3298, %v6658
          %v6707 = vadd.bf16 %v3305, %v6659
          %v6708 = vadd.bf16 %v3312, %v6660
          %v6709 = vadd.bf16 %v3319, %v6661
          %v6710 = vadd.bf16 %v3326, %v6662
          %v6711 = vadd.bf16 %v3333, %v6663
          %v6712 = vadd.bf16 %v3340, %v6664
          %v6713 = vadd.bf16 %v3347, %v6657
          %v6714 = vadd.bf16 %v3354, %v6658
          %v6715 = vadd.bf16 %v3361, %v6659
          %v6716 = vadd.bf16 %v3368, %v6660
          %v6717 = vadd.bf16 %v3375, %v6661
          %v6718 = vadd.bf16 %v3382, %v6662
          %v6719 = vadd.bf16 %v3389, %v6663
          %v6720 = vadd.bf16 %v3396, %v6664
          %v6721 = vadd.bf16 %v3403, %v6657
          %v6722 = vadd.bf16 %v3410, %v6658
          %v6723 = vadd.bf16 %v3417, %v6659
          %v6724 = vadd.bf16 %v3424, %v6660
          %v6725 = vadd.bf16 %v3431, %v6661
          %v6726 = vadd.bf16 %v3438, %v6662
          %v6727 = vadd.bf16 %v3445, %v6663
          %v6728 = vadd.bf16 %v3452, %v6664
          %v6729 = vadd.bf16 %v3459, %v6657
          %v6730 = vadd.bf16 %v3466, %v6658
          %v6731 = vadd.bf16 %v3473, %v6659
          %v6732 = vadd.bf16 %v3480, %v6660
          %v6733 = vadd.bf16 %v3487, %v6661
          %v6734 = vadd.bf16 %v3494, %v6662
          %v6735 = vadd.bf16 %v3501, %v6663
          %v6736 = vadd.bf16 %v3508, %v6664
          %v6737 = vadd.bf16 %v3515, %v6657
          %v6738 = vadd.bf16 %v3522, %v6658
          %v6739 = vadd.bf16 %v3529, %v6659
          %v6740 = vadd.bf16 %v3536, %v6660
          %v6741 = vadd.bf16 %v3543, %v6661
          %v6742 = vadd.bf16 %v3550, %v6662
          %v6743 = vadd.bf16 %v3557, %v6663
          %v6744 = vadd.bf16 %v3564, %v6664
          %v6745 = vadd.bf16 %v3571, %v6657
          %v6746 = vadd.bf16 %v3578, %v6658
          %v6747 = vadd.bf16 %v3585, %v6659
          %v6748 = vadd.bf16 %v3592, %v6660
          %v6749 = vadd.bf16 %v3599, %v6661
          %v6750 = vadd.bf16 %v3606, %v6662
          %v6751 = vadd.bf16 %v3613, %v6663
          %v6752 = vadd.bf16 %v3620, %v6664
          %v6753 = vadd.bf16 %v3627, %v6657
          %v6754 = vadd.bf16 %v3634, %v6658
          %v6755 = vadd.bf16 %v3641, %v6659
          %v6756 = vadd.bf16 %v3648, %v6660
          %v6757 = vadd.bf16 %v3655, %v6661
          %v6758 = vadd.bf16 %v3662, %v6662
          %v6759 = vadd.bf16 %v3669, %v6663
          %v6760 = vadd.bf16 %v3676, %v6664
          %v6761 = vadd.bf16 %v3683, %v6657
          %v6762 = vadd.bf16 %v3690, %v6658
          %v6763 = vadd.bf16 %v3697, %v6659
          %v6764 = vadd.bf16 %v3704, %v6660
          %v6765 = vadd.bf16 %v3711, %v6661
          %v6766 = vadd.bf16 %v3718, %v6662
          %v6767 = vadd.bf16 %v3725, %v6663
          %v6768 = vadd.bf16 %v3732, %v6664
          %v6769 = vadd.bf16 %v3739, %v6657
          %v6770 = vadd.bf16 %v3746, %v6658
          %v6771 = vadd.bf16 %v3753, %v6659
          %v6772 = vadd.bf16 %v3760, %v6660
          %v6773 = vadd.bf16 %v3767, %v6661
          %v6774 = vadd.bf16 %v3774, %v6662
          %v6775 = vadd.bf16 %v3781, %v6663
          %v6776 = vadd.bf16 %v3788, %v6664
          %v6777 = vadd.bf16 %v3795, %v6657
          %v6778 = vadd.bf16 %v3802, %v6658
          %v6779 = vadd.bf16 %v3809, %v6659
          %v6780 = vadd.bf16 %v3816, %v6660
          %v6781 = vadd.bf16 %v3823, %v6661
          %v6782 = vadd.bf16 %v3830, %v6662
          %v6783 = vadd.bf16 %v3837, %v6663
          %v6784 = vadd.bf16 %v3844, %v6664
          %v6785 = vadd.bf16 %v3851, %v6657
          %v6786 = vadd.bf16 %v3858, %v6658
          %v6787 = vadd.bf16 %v3865, %v6659
          %v6788 = vadd.bf16 %v3872, %v6660
          %v6789 = vadd.bf16 %v3879, %v6661
          %v6790 = vadd.bf16 %v3886, %v6662
          %v6791 = vadd.bf16 %v3893, %v6663
          %v6792 = vadd.bf16 %v3900, %v6664
          %v6793 = vadd.bf16 %v3907, %v6657
          %v6794 = vadd.bf16 %v3914, %v6658
          %v6795 = vadd.bf16 %v3921, %v6659
          %v6796 = vadd.bf16 %v3928, %v6660
          %v6797 = vadd.bf16 %v3935, %v6661
          %v6798 = vadd.bf16 %v3942, %v6662
          %v6799 = vadd.bf16 %v3949, %v6663
          %v6800 = vadd.bf16 %v3956, %v6664
          %v6801 = vadd.bf16 %v3963, %v6657
          %v6802 = vadd.bf16 %v3970, %v6658
          %v6803 = vadd.bf16 %v3977, %v6659
          %v6804 = vadd.bf16 %v3984, %v6660
          %v6805 = vadd.bf16 %v3991, %v6661
          %v6806 = vadd.bf16 %v3998, %v6662
          %v6807 = vadd.bf16 %v4005, %v6663
          %v6808 = vadd.bf16 %v4012, %v6664
          %v6809 = vadd.bf16 %v4019, %v6657
          %v6810 = vadd.bf16 %v4026, %v6658
          %v6811 = vadd.bf16 %v4033, %v6659
          %v6812 = vadd.bf16 %v4040, %v6660
          %v6813 = vadd.bf16 %v4047, %v6661
          %v6814 = vadd.bf16 %v4054, %v6662
          %v6815 = vadd.bf16 %v4061, %v6663
          %v6816 = vadd.bf16 %v4068, %v6664
          %v6817 = vadd.bf16 %v4075, %v6657
          %v6818 = vadd.bf16 %v4082, %v6658
          %v6819 = vadd.bf16 %v4089, %v6659
          %v6820 = vadd.bf16 %v4096, %v6660
          %v6821 = vadd.bf16 %v4103, %v6661
          %v6822 = vadd.bf16 %v4110, %v6662
          %v6823 = vadd.bf16 %v4117, %v6663
          %v6824 = vadd.bf16 %v4124, %v6664
          %v6825 = vadd.bf16 %v4131, %v6657
          %v6826 = vadd.bf16 %v4138, %v6658
          %v6827 = vadd.bf16 %v4145, %v6659
          %v6828 = vadd.bf16 %v4152, %v6660
          %v6829 = vadd.bf16 %v4159, %v6661
          %v6830 = vadd.bf16 %v4166, %v6662
          %v6831 = vadd.bf16 %v4173, %v6663
          %v6832 = vadd.bf16 %v4180, %v6664
          %v6833 = vadd.bf16 %v4187, %v6657
          %v6834 = vadd.bf16 %v4194, %v6658
          %v6835 = vadd.bf16 %v4201, %v6659
          %v6836 = vadd.bf16 %v4208, %v6660
          %v6837 = vadd.bf16 %v4215, %v6661
          %v6838 = vadd.bf16 %v4222, %v6662
          %v6839 = vadd.bf16 %v4229, %v6663
          %v6840 = vadd.bf16 %v4236, %v6664
          %v6841 = vadd.bf16 %v4243, %v6657
          %v6842 = vadd.bf16 %v4250, %v6658
          %v6843 = vadd.bf16 %v4257, %v6659
          %v6844 = vadd.bf16 %v4264, %v6660
          %v6845 = vadd.bf16 %v4271, %v6661
          %v6846 = vadd.bf16 %v4278, %v6662
          %v6847 = vadd.bf16 %v4285, %v6663
          %v6848 = vadd.bf16 %v4292, %v6664
          %v6849 = vadd.bf16 %v4299, %v6657
          %v6850 = vadd.bf16 %v4306, %v6658
          %v6851 = vadd.bf16 %v4313, %v6659
          %v6852 = vadd.bf16 %v4320, %v6660
          %v6853 = vadd.bf16 %v4327, %v6661
          %v6854 = vadd.bf16 %v4334, %v6662
          %v6855 = vadd.bf16 %v4341, %v6663
          %v6856 = vadd.bf16 %v4348, %v6664
          %v6857 = vadd.bf16 %v4355, %v6657
          %v6858 = vadd.bf16 %v4362, %v6658
          %v6859 = vadd.bf16 %v4369, %v6659
          %v6860 = vadd.bf16 %v4376, %v6660
          %v6861 = vadd.bf16 %v4383, %v6661
          %v6862 = vadd.bf16 %v4390, %v6662
          %v6863 = vadd.bf16 %v4397, %v6663
          %v6864 = vadd.bf16 %v4404, %v6664
          %v6865 = vadd.bf16 %v4411, %v6657
          %v6866 = vadd.bf16 %v4418, %v6658
          %v6867 = vadd.bf16 %v4425, %v6659
          %v6868 = vadd.bf16 %v4432, %v6660
          %v6869 = vadd.bf16 %v4439, %v6661
          %v6870 = vadd.bf16 %v4446, %v6662
          %v6871 = vadd.bf16 %v4453, %v6663
          %v6872 = vadd.bf16 %v4460, %v6664
          %v6873 = vadd.bf16 %v4467, %v6657
          %v6874 = vadd.bf16 %v4474, %v6658
          %v6875 = vadd.bf16 %v4481, %v6659
          %v6876 = vadd.bf16 %v4488, %v6660
          %v6877 = vadd.bf16 %v4495, %v6661
          %v6878 = vadd.bf16 %v4502, %v6662
          %v6879 = vadd.bf16 %v4509, %v6663
          %v6880 = vadd.bf16 %v4516, %v6664
          %v6881 = vadd.bf16 %v4523, %v6657
          %v6882 = vadd.bf16 %v4530, %v6658
          %v6883 = vadd.bf16 %v4537, %v6659
          %v6884 = vadd.bf16 %v4544, %v6660
          %v6885 = vadd.bf16 %v4551, %v6661
          %v6886 = vadd.bf16 %v4558, %v6662
          %v6887 = vadd.bf16 %v4565, %v6663
          %v6888 = vadd.bf16 %v4572, %v6664
          %v6889 = vadd.bf16 %v4579, %v6657
          %v6890 = vadd.bf16 %v4586, %v6658
          %v6891 = vadd.bf16 %v4593, %v6659
          %v6892 = vadd.bf16 %v4600, %v6660
          %v6893 = vadd.bf16 %v4607, %v6661
          %v6894 = vadd.bf16 %v4614, %v6662
          %v6895 = vadd.bf16 %v4621, %v6663
          %v6896 = vadd.bf16 %v4628, %v6664
          %v6897 = vadd.bf16 %v4635, %v6657
          %v6898 = vadd.bf16 %v4642, %v6658
          %v6899 = vadd.bf16 %v4649, %v6659
          %v6900 = vadd.bf16 %v4656, %v6660
          %v6901 = vadd.bf16 %v4663, %v6661
          %v6902 = vadd.bf16 %v4670, %v6662
          %v6903 = vadd.bf16 %v4677, %v6663
          %v6904 = vadd.bf16 %v4684, %v6664
          %v6905 = vadd.bf16 %v4691, %v6657
          %v6906 = vadd.bf16 %v4698, %v6658
          %v6907 = vadd.bf16 %v4705, %v6659
          %v6908 = vadd.bf16 %v4712, %v6660
          %v6909 = vadd.bf16 %v4719, %v6661
          %v6910 = vadd.bf16 %v4726, %v6662
          %v6911 = vadd.bf16 %v4733, %v6663
          %v6912 = vadd.bf16 %v4740, %v6664
          %v6913 = vadd.bf16 %v4747, %v6657
          %v6914 = vadd.bf16 %v4754, %v6658
          %v6915 = vadd.bf16 %v4761, %v6659
          %v6916 = vadd.bf16 %v4768, %v6660
          %v6917 = vadd.bf16 %v4775, %v6661
          %v6918 = vadd.bf16 %v4782, %v6662
          %v6919 = vadd.bf16 %v4789, %v6663
          %v6920 = vadd.bf16 %v4796, %v6664
          %v6921 = vadd.bf16 %v4803, %v6657
          %v6922 = vadd.bf16 %v4810, %v6658
          %v6923 = vadd.bf16 %v4817, %v6659
          %v6924 = vadd.bf16 %v4824, %v6660
          %v6925 = vadd.bf16 %v4831, %v6661
          %v6926 = vadd.bf16 %v4838, %v6662
          %v6927 = vadd.bf16 %v4845, %v6663
          %v6928 = vadd.bf16 %v4852, %v6664
          %v6929 = vadd.bf16 %v4859, %v6657
          %v6930 = vadd.bf16 %v4866, %v6658
          %v6931 = vadd.bf16 %v4873, %v6659
          %v6932 = vadd.bf16 %v4880, %v6660
          %v6933 = vadd.bf16 %v4887, %v6661
          %v6934 = vadd.bf16 %v4894, %v6662
          %v6935 = vadd.bf16 %v4901, %v6663
          %v6936 = vadd.bf16 %v4908, %v6664
          %v6937 = vadd.bf16 %v4915, %v6657
          %v6938 = vadd.bf16 %v4922, %v6658
          %v6939 = vadd.bf16 %v4929, %v6659
          %v6940 = vadd.bf16 %v4936, %v6660
          %v6941 = vadd.bf16 %v4943, %v6661
          %v6942 = vadd.bf16 %v4950, %v6662
          %v6943 = vadd.bf16 %v4957, %v6663
          %v6944 = vadd.bf16 %v4964, %v6664
          %v6945 = vadd.bf16 %v4971, %v6657
          %v6946 = vadd.bf16 %v4978, %v6658
          %v6947 = vadd.bf16 %v4985, %v6659
          %v6948 = vadd.bf16 %v4992, %v6660
          %v6949 = vadd.bf16 %v4999, %v6661
          %v6950 = vadd.bf16 %v5006, %v6662
          %v6951 = vadd.bf16 %v5013, %v6663
          %v6952 = vadd.bf16 %v5020, %v6664
          %v6953 = vadd.bf16 %v5027, %v6657
          %v6954 = vadd.bf16 %v5034, %v6658
          %v6955 = vadd.bf16 %v5041, %v6659
          %v6956 = vadd.bf16 %v5048, %v6660
          %v6957 = vadd.bf16 %v5055, %v6661
          %v6958 = vadd.bf16 %v5062, %v6662
          %v6959 = vadd.bf16 %v5069, %v6663
          %v6960 = vadd.bf16 %v5076, %v6664
          %v6961 = vadd.bf16 %v5083, %v6657
          %v6962 = vadd.bf16 %v5090, %v6658
          %v6963 = vadd.bf16 %v5097, %v6659
          %v6964 = vadd.bf16 %v5104, %v6660
          %v6965 = vadd.bf16 %v5111, %v6661
          %v6966 = vadd.bf16 %v5118, %v6662
          %v6967 = vadd.bf16 %v5125, %v6663
          %v6968 = vadd.bf16 %v5132, %v6664
          %v6969 = vadd.bf16 %v5139, %v6657
          %v6970 = vadd.bf16 %v5146, %v6658
          %v6971 = vadd.bf16 %v5153, %v6659
          %v6972 = vadd.bf16 %v5160, %v6660
          %v6973 = vadd.bf16 %v5167, %v6661
          %v6974 = vadd.bf16 %v5174, %v6662
          %v6975 = vadd.bf16 %v5181, %v6663
          %v6976 = vadd.bf16 %v5188, %v6664
          %v6977 = vadd.bf16 %v5195, %v6657
          %v6978 = vadd.bf16 %v5202, %v6658
          %v6979 = vadd.bf16 %v5209, %v6659
          %v6980 = vadd.bf16 %v5216, %v6660
          %v6981 = vadd.bf16 %v5223, %v6661
          %v6982 = vadd.bf16 %v5230, %v6662
          %v6983 = vadd.bf16 %v5237, %v6663
          %v6984 = vadd.bf16 %v5244, %v6664
          %v6985 = vadd.bf16 %v5251, %v6657
          %v6986 = vadd.bf16 %v5258, %v6658
          %v6987 = vadd.bf16 %v5265, %v6659
          %v6988 = vadd.bf16 %v5272, %v6660
          %v6989 = vadd.bf16 %v5279, %v6661
          %v6990 = vadd.bf16 %v5286, %v6662
          %v6991 = vadd.bf16 %v5293, %v6663
          %v6992 = vadd.bf16 %v5300, %v6664
          %v6993 = vadd.bf16 %v5307, %v6657
          %v6994 = vadd.bf16 %v5314, %v6658
          %v6995 = vadd.bf16 %v5321, %v6659
          %v6996 = vadd.bf16 %v5328, %v6660
          %v6997 = vadd.bf16 %v5335, %v6661
          %v6998 = vadd.bf16 %v5342, %v6662
          %v6999 = vadd.bf16 %v5349, %v6663
          %v7000 = vadd.bf16 %v5356, %v6664
          %v7001 = vadd.bf16 %v5363, %v6657
          %v7002 = vadd.bf16 %v5370, %v6658
          %v7003 = vadd.bf16 %v5377, %v6659
          %v7004 = vadd.bf16 %v5384, %v6660
          %v7005 = vadd.bf16 %v5391, %v6661
          %v7006 = vadd.bf16 %v5398, %v6662
          %v7007 = vadd.bf16 %v5405, %v6663
          %v7008 = vadd.bf16 %v5412, %v6664
          %v7009 = vadd.bf16 %v5419, %v6657
          %v7010 = vadd.bf16 %v5426, %v6658
          %v7011 = vadd.bf16 %v5433, %v6659
          %v7012 = vadd.bf16 %v5440, %v6660
          %v7013 = vadd.bf16 %v5447, %v6661
          %v7014 = vadd.bf16 %v5454, %v6662
          %v7015 = vadd.bf16 %v5461, %v6663
          %v7016 = vadd.bf16 %v5468, %v6664
          %v7017 = vadd.bf16 %v5475, %v6657
          %v7018 = vadd.bf16 %v5482, %v6658
          %v7019 = vadd.bf16 %v5489, %v6659
          %v7020 = vadd.bf16 %v5496, %v6660
          %v7021 = vadd.bf16 %v5503, %v6661
          %v7022 = vadd.bf16 %v5510, %v6662
          %v7023 = vadd.bf16 %v5517, %v6663
          %v7024 = vadd.bf16 %v5524, %v6664
          %v7025 = vadd.bf16 %v5531, %v6657
          %v7026 = vadd.bf16 %v5538, %v6658
          %v7027 = vadd.bf16 %v5545, %v6659
          %v7028 = vadd.bf16 %v5552, %v6660
          %v7029 = vadd.bf16 %v5559, %v6661
          %v7030 = vadd.bf16 %v5566, %v6662
          %v7031 = vadd.bf16 %v5573, %v6663
          %v7032 = vadd.bf16 %v5580, %v6664
          %v7033 = vadd.bf16 %v5587, %v6657
          %v7034 = vadd.bf16 %v5594, %v6658
          %v7035 = vadd.bf16 %v5601, %v6659
          %v7036 = vadd.bf16 %v5608, %v6660
          %v7037 = vadd.bf16 %v5615, %v6661
          %v7038 = vadd.bf16 %v5622, %v6662
          %v7039 = vadd.bf16 %v5629, %v6663
          %v7040 = vadd.bf16 %v5636, %v6664
          %v7041 = vadd.bf16 %v5643, %v6657
          %v7042 = vadd.bf16 %v5650, %v6658
          %v7043 = vadd.bf16 %v5657, %v6659
          %v7044 = vadd.bf16 %v5664, %v6660
          %v7045 = vadd.bf16 %v5671, %v6661
          %v7046 = vadd.bf16 %v5678, %v6662
          %v7047 = vadd.bf16 %v5685, %v6663
          %v7048 = vadd.bf16 %v5692, %v6664
          %v7049 = vadd.bf16 %v5699, %v6657
          %v7050 = vadd.bf16 %v5706, %v6658
          %v7051 = vadd.bf16 %v5713, %v6659
          %v7052 = vadd.bf16 %v5720, %v6660
          %v7053 = vadd.bf16 %v5727, %v6661
          %v7054 = vadd.bf16 %v5734, %v6662
          %v7055 = vadd.bf16 %v5741, %v6663
          %v7056 = vadd.bf16 %v5748, %v6664
          %v7057 = vadd.bf16 %v5755, %v6657
          %v7058 = vadd.bf16 %v5762, %v6658
          %v7059 = vadd.bf16 %v5769, %v6659
          %v7060 = vadd.bf16 %v5776, %v6660
          %v7061 = vadd.bf16 %v5783, %v6661
          %v7062 = vadd.bf16 %v5790, %v6662
          %v7063 = vadd.bf16 %v5797, %v6663
          %v7064 = vadd.bf16 %v5804, %v6664
          %v7065 = vadd.bf16 %v5811, %v6657
          %v7066 = vadd.bf16 %v5818, %v6658
          %v7067 = vadd.bf16 %v5825, %v6659
          %v7068 = vadd.bf16 %v5832, %v6660
          %v7069 = vadd.bf16 %v5839, %v6661
          %v7070 = vadd.bf16 %v5846, %v6662
          %v7071 = vadd.bf16 %v5853, %v6663
          %v7072 = vadd.bf16 %v5860, %v6664
          %v7073 = vadd.bf16 %v5867, %v6657
          %v7074 = vadd.bf16 %v5874, %v6658
          %v7075 = vadd.bf16 %v5881, %v6659
          %v7076 = vadd.bf16 %v5888, %v6660
          %v7077 = vadd.bf16 %v5895, %v6661
          %v7078 = vadd.bf16 %v5902, %v6662
          %v7079 = vadd.bf16 %v5909, %v6663
          %v7080 = vadd.bf16 %v5916, %v6664
          %v7081 = vadd.bf16 %v5923, %v6657
          %v7082 = vadd.bf16 %v5930, %v6658
          %v7083 = vadd.bf16 %v5937, %v6659
          %v7084 = vadd.bf16 %v5944, %v6660
          %v7085 = vadd.bf16 %v5951, %v6661
          %v7086 = vadd.bf16 %v5958, %v6662
          %v7087 = vadd.bf16 %v5965, %v6663
          %v7088 = vadd.bf16 %v5972, %v6664
          %v7089 = vadd.bf16 %v5979, %v6657
          %v7090 = vadd.bf16 %v5986, %v6658
          %v7091 = vadd.bf16 %v5993, %v6659
          %v7092 = vadd.bf16 %v6000, %v6660
          %v7093 = vadd.bf16 %v6007, %v6661
          %v7094 = vadd.bf16 %v6014, %v6662
          %v7095 = vadd.bf16 %v6021, %v6663
          %v7096 = vadd.bf16 %v6028, %v6664
          %v7097 = vadd.bf16 %v6035, %v6657
          %v7098 = vadd.bf16 %v6042, %v6658
          %v7099 = vadd.bf16 %v6049, %v6659
          %v7100 = vadd.bf16 %v6056, %v6660
          %v7101 = vadd.bf16 %v6063, %v6661
          %v7102 = vadd.bf16 %v6070, %v6662
          %v7103 = vadd.bf16 %v6077, %v6663
          %v7104 = vadd.bf16 %v6084, %v6664
          %v7105 = vadd.bf16 %v6091, %v6657
          %v7106 = vadd.bf16 %v6098, %v6658
          %v7107 = vadd.bf16 %v6105, %v6659
          %v7108 = vadd.bf16 %v6112, %v6660
          %v7109 = vadd.bf16 %v6119, %v6661
          %v7110 = vadd.bf16 %v6126, %v6662
          %v7111 = vadd.bf16 %v6133, %v6663
          %v7112 = vadd.bf16 %v6140, %v6664
          %v7113 = vadd.bf16 %v6147, %v6657
          %v7114 = vadd.bf16 %v6154, %v6658
          %v7115 = vadd.bf16 %v6161, %v6659
          %v7116 = vadd.bf16 %v6168, %v6660
          %v7117 = vadd.bf16 %v6175, %v6661
          %v7118 = vadd.bf16 %v6182, %v6662
          %v7119 = vadd.bf16 %v6189, %v6663
          %v7120 = vadd.bf16 %v6196, %v6664
          %v7121 = vadd.bf16 %v6203, %v6657
          %v7122 = vadd.bf16 %v6210, %v6658
          %v7123 = vadd.bf16 %v6217, %v6659
          %v7124 = vadd.bf16 %v6224, %v6660
          %v7125 = vadd.bf16 %v6231, %v6661
          %v7126 = vadd.bf16 %v6238, %v6662
          %v7127 = vadd.bf16 %v6245, %v6663
          %v7128 = vadd.bf16 %v6252, %v6664
          %v7129 = vadd.bf16 %v6259, %v6657
          %v7130 = vadd.bf16 %v6266, %v6658
          %v7131 = vadd.bf16 %v6273, %v6659
          %v7132 = vadd.bf16 %v6280, %v6660
          %v7133 = vadd.bf16 %v6287, %v6661
          %v7134 = vadd.bf16 %v6294, %v6662
          %v7135 = vadd.bf16 %v6301, %v6663
          %v7136 = vadd.bf16 %v6308, %v6664
          %v7137 = vadd.bf16 %v6315, %v6657
          %v7138 = vadd.bf16 %v6322, %v6658
          %v7139 = vadd.bf16 %v6329, %v6659
          %v7140 = vadd.bf16 %v6336, %v6660
          %v7141 = vadd.bf16 %v6343, %v6661
          %v7142 = vadd.bf16 %v6350, %v6662
          %v7143 = vadd.bf16 %v6357, %v6663
          %v7144 = vadd.bf16 %v6364, %v6664
          %v7145 = vadd.bf16 %v6371, %v6657
          %v7146 = vadd.bf16 %v6378, %v6658
          %v7147 = vadd.bf16 %v6385, %v6659
          %v7148 = vadd.bf16 %v6392, %v6660
          %v7149 = vadd.bf16 %v6399, %v6661
          %v7150 = vadd.bf16 %v6406, %v6662
          %v7151 = vadd.bf16 %v6413, %v6663
          %v7152 = vadd.bf16 %v6420, %v6664
          %v7153 = vadd.bf16 %v6427, %v6657
          %v7154 = vadd.bf16 %v6434, %v6658
          %v7155 = vadd.bf16 %v6441, %v6659
          %v7156 = vadd.bf16 %v6448, %v6660
          %v7157 = vadd.bf16 %v6455, %v6661
          %v7158 = vadd.bf16 %v6462, %v6662
          %v7159 = vadd.bf16 %v6469, %v6663
          %v7160 = vadd.bf16 %v6476, %v6664
          %v7161 = vadd.bf16 %v6483, %v6657
          %v7162 = vadd.bf16 %v6490, %v6658
          %v7163 = vadd.bf16 %v6497, %v6659
          %v7164 = vadd.bf16 %v6504, %v6660
          %v7165 = vadd.bf16 %v6511, %v6661
          %v7166 = vadd.bf16 %v6518, %v6662
          %v7167 = vadd.bf16 %v6525, %v6663
          %v7168 = vadd.bf16 %v6532, %v6664
          %v7169 = vadd.bf16 %v6539, %v6657
          %v7170 = vadd.bf16 %v6546, %v6658
          %v7171 = vadd.bf16 %v6553, %v6659
          %v7172 = vadd.bf16 %v6560, %v6660
          %v7173 = vadd.bf16 %v6567, %v6661
          %v7174 = vadd.bf16 %v6574, %v6662
          %v7175 = vadd.bf16 %v6581, %v6663
          %v7176 = vadd.bf16 %v6588, %v6664
          %v7177 = vadd.bf16 %v6595, %v6657
          %v7178 = vadd.bf16 %v6602, %v6658
          %v7179 = vadd.bf16 %v6609, %v6659
          %v7180 = vadd.bf16 %v6616, %v6660
          %v7181 = vadd.bf16 %v6623, %v6661
          %v7182 = vadd.bf16 %v6630, %v6662
          %v7183 = vadd.bf16 %v6637, %v6663
          %v7184 = vadd.bf16 %v6644, %v6664
          %v7185 = vmax.bf16 %v6673, 0
          %v7186 = vmax.bf16 %v6674, 0
          %v7187 = vmax.bf16 %v6675, 0
          %v7188 = vmax.bf16 %v6676, 0
          %v7189 = vmax.bf16 %v6677, 0
          %v7190 = vmax.bf16 %v6678, 0
          %v7191 = vmax.bf16 %v6679, 0
          %v7192 = vmax.bf16 %v6680, 0
          %v7193 = vmax.bf16 %v6681, 0
          %v7194 = vmax.bf16 %v6682, 0
          %v7195 = vmax.bf16 %v6683, 0
          %v7196 = vmax.bf16 %v6684, 0
          %v7197 = vmax.bf16 %v6685, 0
          %v7198 = vmax.bf16 %v6686, 0
          %v7199 = vmax.bf16 %v6687, 0
          %v7200 = vmax.bf16 %v6688, 0
          %v7201 = vmax.bf16 %v6689, 0
          %v7202 = vmax.bf16 %v6690, 0
          %v7203 = vmax.bf16 %v6691, 0
          %v7204 = vmax.bf16 %v6692, 0
          %v7205 = vmax.bf16 %v6693, 0
          %v7206 = vmax.bf16 %v6694, 0
          %v7207 = vmax.bf16 %v6695, 0
          %v7208 = vmax.bf16 %v6696, 0
          %v7209 = vmax.bf16 %v6697, 0
          %v7210 = vmax.bf16 %v6698, 0
          %v7211 = vmax.bf16 %v6699, 0
          %v7212 = vmax.bf16 %v6700, 0
          %v7213 = vmax.bf16 %v6701, 0
          %v7214 = vmax.bf16 %v6702, 0
          %v7215 = vmax.bf16 %v6703, 0
          %v7216 = vmax.bf16 %v6704, 0
          %v7217 = vmax.bf16 %v6705, 0
          %v7218 = vmax.bf16 %v6706, 0
          %v7219 = vmax.bf16 %v6707, 0
          %v7220 = vmax.bf16 %v6708, 0
          %v7221 = vmax.bf16 %v6709, 0
          %v7222 = vmax.bf16 %v6710, 0
          %v7223 = vmax.bf16 %v6711, 0
          %v7224 = vmax.bf16 %v6712, 0
          %v7225 = vmax.bf16 %v6713, 0
          %v7226 = vmax.bf16 %v6714, 0
          %v7227 = vmax.bf16 %v6715, 0
          %v7228 = vmax.bf16 %v6716, 0
          %v7229 = vmax.bf16 %v6717, 0
          %v7230 = vmax.bf16 %v6718, 0
          %v7231 = vmax.bf16 %v6719, 0
          %v7232 = vmax.bf16 %v6720, 0
          %v7233 = vmax.bf16 %v6721, 0
          %v7234 = vmax.bf16 %v6722, 0
          %v7235 = vmax.bf16 %v6723, 0
          %v7236 = vmax.bf16 %v6724, 0
          %v7237 = vmax.bf16 %v6725, 0
          %v7238 = vmax.bf16 %v6726, 0
          %v7239 = vmax.bf16 %v6727, 0
          %v7240 = vmax.bf16 %v6728, 0
          %v7241 = vmax.bf16 %v6729, 0
          %v7242 = vmax.bf16 %v6730, 0
          %v7243 = vmax.bf16 %v6731, 0
          %v7244 = vmax.bf16 %v6732, 0
          %v7245 = vmax.bf16 %v6733, 0
          %v7246 = vmax.bf16 %v6734, 0
          %v7247 = vmax.bf16 %v6735, 0
          %v7248 = vmax.bf16 %v6736, 0
          %v7249 = vmax.bf16 %v6737, 0
          %v7250 = vmax.bf16 %v6738, 0
          %v7251 = vmax.bf16 %v6739, 0
          %v7252 = vmax.bf16 %v6740, 0
          %v7253 = vmax.bf16 %v6741, 0
          %v7254 = vmax.bf16 %v6742, 0
          %v7255 = vmax.bf16 %v6743, 0
          %v7256 = vmax.bf16 %v6744, 0
          %v7257 = vmax.bf16 %v6745, 0
          %v7258 = vmax.bf16 %v6746, 0
          %v7259 = vmax.bf16 %v6747, 0
          %v7260 = vmax.bf16 %v6748, 0
          %v7261 = vmax.bf16 %v6749, 0
          %v7262 = vmax.bf16 %v6750, 0
          %v7263 = vmax.bf16 %v6751, 0
          %v7264 = vmax.bf16 %v6752, 0
          %v7265 = vmax.bf16 %v6753, 0
          %v7266 = vmax.bf16 %v6754, 0
          %v7267 = vmax.bf16 %v6755, 0
          %v7268 = vmax.bf16 %v6756, 0
          %v7269 = vmax.bf16 %v6757, 0
          %v7270 = vmax.bf16 %v6758, 0
          %v7271 = vmax.bf16 %v6759, 0
          %v7272 = vmax.bf16 %v6760, 0
          %v7273 = vmax.bf16 %v6761, 0
          %v7274 = vmax.bf16 %v6762, 0
          %v7275 = vmax.bf16 %v6763, 0
          %v7276 = vmax.bf16 %v6764, 0
          %v7277 = vmax.bf16 %v6765, 0
          %v7278 = vmax.bf16 %v6766, 0
          %v7279 = vmax.bf16 %v6767, 0
          %v7280 = vmax.bf16 %v6768, 0
          %v7281 = vmax.bf16 %v6769, 0
          %v7282 = vmax.bf16 %v6770, 0
          %v7283 = vmax.bf16 %v6771, 0
          %v7284 = vmax.bf16 %v6772, 0
          %v7285 = vmax.bf16 %v6773, 0
          %v7286 = vmax.bf16 %v6774, 0
          %v7287 = vmax.bf16 %v6775, 0
          %v7288 = vmax.bf16 %v6776, 0
          %v7289 = vmax.bf16 %v6777, 0
          %v7290 = vmax.bf16 %v6778, 0
          %v7291 = vmax.bf16 %v6779, 0
          %v7292 = vmax.bf16 %v6780, 0
          %v7293 = vmax.bf16 %v6781, 0
          %v7294 = vmax.bf16 %v6782, 0
          %v7295 = vmax.bf16 %v6783, 0
          %v7296 = vmax.bf16 %v6784, 0
          %v7297 = vmax.bf16 %v6785, 0
          %v7298 = vmax.bf16 %v6786, 0
          %v7299 = vmax.bf16 %v6787, 0
          %v7300 = vmax.bf16 %v6788, 0
          %v7301 = vmax.bf16 %v6789, 0
          %v7302 = vmax.bf16 %v6790, 0
          %v7303 = vmax.bf16 %v6791, 0
          %v7304 = vmax.bf16 %v6792, 0
          %v7305 = vmax.bf16 %v6793, 0
          %v7306 = vmax.bf16 %v6794, 0
          %v7307 = vmax.bf16 %v6795, 0
          %v7308 = vmax.bf16 %v6796, 0
          %v7309 = vmax.bf16 %v6797, 0
          %v7310 = vmax.bf16 %v6798, 0
          %v7311 = vmax.bf16 %v6799, 0
          %v7312 = vmax.bf16 %v6800, 0
          %v7313 = vmax.bf16 %v6801, 0
          %v7314 = vmax.bf16 %v6802, 0
          %v7315 = vmax.bf16 %v6803, 0
          %v7316 = vmax.bf16 %v6804, 0
          %v7317 = vmax.bf16 %v6805, 0
          %v7318 = vmax.bf16 %v6806, 0
          %v7319 = vmax.bf16 %v6807, 0
          %v7320 = vmax.bf16 %v6808, 0
          %v7321 = vmax.bf16 %v6809, 0
          %v7322 = vmax.bf16 %v6810, 0
          %v7323 = vmax.bf16 %v6811, 0
          %v7324 = vmax.bf16 %v6812, 0
          %v7325 = vmax.bf16 %v6813, 0
          %v7326 = vmax.bf16 %v6814, 0
          %v7327 = vmax.bf16 %v6815, 0
          %v7328 = vmax.bf16 %v6816, 0
          %v7329 = vmax.bf16 %v6817, 0
          %v7330 = vmax.bf16 %v6818, 0
          %v7331 = vmax.bf16 %v6819, 0
          %v7332 = vmax.bf16 %v6820, 0
          %v7333 = vmax.bf16 %v6821, 0
          %v7334 = vmax.bf16 %v6822, 0
          %v7335 = vmax.bf16 %v6823, 0
          %v7336 = vmax.bf16 %v6824, 0
          %v7337 = vmax.bf16 %v6825, 0
          %v7338 = vmax.bf16 %v6826, 0
          %v7339 = vmax.bf16 %v6827, 0
          %v7340 = vmax.bf16 %v6828, 0
          %v7341 = vmax.bf16 %v6829, 0
          %v7342 = vmax.bf16 %v6830, 0
          %v7343 = vmax.bf16 %v6831, 0
          %v7344 = vmax.bf16 %v6832, 0
          %v7345 = vmax.bf16 %v6833, 0
          %v7346 = vmax.bf16 %v6834, 0
          %v7347 = vmax.bf16 %v6835, 0
          %v7348 = vmax.bf16 %v6836, 0
          %v7349 = vmax.bf16 %v6837, 0
          %v7350 = vmax.bf16 %v6838, 0
          %v7351 = vmax.bf16 %v6839, 0
          %v7352 = vmax.bf16 %v6840, 0
          %v7353 = vmax.bf16 %v6841, 0
          %v7354 = vmax.bf16 %v6842, 0
          %v7355 = vmax.bf16 %v6843, 0
          %v7356 = vmax.bf16 %v6844, 0
          %v7357 = vmax.bf16 %v6845, 0
          %v7358 = vmax.bf16 %v6846, 0
          %v7359 = vmax.bf16 %v6847, 0
          %v7360 = vmax.bf16 %v6848, 0
          %v7361 = vmax.bf16 %v6849, 0
          %v7362 = vmax.bf16 %v6850, 0
          %v7363 = vmax.bf16 %v6851, 0
          %v7364 = vmax.bf16 %v6852, 0
          %v7365 = vmax.bf16 %v6853, 0
          %v7366 = vmax.bf16 %v6854, 0
          %v7367 = vmax.bf16 %v6855, 0
          %v7368 = vmax.bf16 %v6856, 0
          %v7369 = vmax.bf16 %v6857, 0
          %v7370 = vmax.bf16 %v6858, 0
          %v7371 = vmax.bf16 %v6859, 0
          %v7372 = vmax.bf16 %v6860, 0
          %v7373 = vmax.bf16 %v6861, 0
          %v7374 = vmax.bf16 %v6862, 0
          %v7375 = vmax.bf16 %v6863, 0
          %v7376 = vmax.bf16 %v6864, 0
          %v7377 = vmax.bf16 %v6865, 0
          %v7378 = vmax.bf16 %v6866, 0
          %v7379 = vmax.bf16 %v6867, 0
          %v7380 = vmax.bf16 %v6868, 0
          %v7381 = vmax.bf16 %v6869, 0
          %v7382 = vmax.bf16 %v6870, 0
          %v7383 = vmax.bf16 %v6871, 0
          %v7384 = vmax.bf16 %v6872, 0
          %v7385 = vmax.bf16 %v6873, 0
          %v7386 = vmax.bf16 %v6874, 0
          %v7387 = vmax.bf16 %v6875, 0
          %v7388 = vmax.bf16 %v6876, 0
          %v7389 = vmax.bf16 %v6877, 0
          %v7390 = vmax.bf16 %v6878, 0
          %v7391 = vmax.bf16 %v6879, 0
          %v7392 = vmax.bf16 %v6880, 0
          %v7393 = vmax.bf16 %v6881, 0
          %v7394 = vmax.bf16 %v6882, 0
          %v7395 = vmax.bf16 %v6883, 0
          %v7396 = vmax.bf16 %v6884, 0
          %v7397 = vmax.bf16 %v6885, 0
          %v7398 = vmax.bf16 %v6886, 0
          %v7399 = vmax.bf16 %v6887, 0
          %v7400 = vmax.bf16 %v6888, 0
          %v7401 = vmax.bf16 %v6889, 0
          %v7402 = vmax.bf16 %v6890, 0
          %v7403 = vmax.bf16 %v6891, 0
          %v7404 = vmax.bf16 %v6892, 0
          %v7405 = vmax.bf16 %v6893, 0
          %v7406 = vmax.bf16 %v6894, 0
          %v7407 = vmax.bf16 %v6895, 0
          %v7408 = vmax.bf16 %v6896, 0
          %v7409 = vmax.bf16 %v6897, 0
          %v7410 = vmax.bf16 %v6898, 0
          %v7411 = vmax.bf16 %v6899, 0
          %v7412 = vmax.bf16 %v6900, 0
          %v7413 = vmax.bf16 %v6901, 0
          %v7414 = vmax.bf16 %v6902, 0
          %v7415 = vmax.bf16 %v6903, 0
          %v7416 = vmax.bf16 %v6904, 0
          %v7417 = vmax.bf16 %v6905, 0
          %v7418 = vmax.bf16 %v6906, 0
          %v7419 = vmax.bf16 %v6907, 0
          %v7420 = vmax.bf16 %v6908, 0
          %v7421 = vmax.bf16 %v6909, 0
          %v7422 = vmax.bf16 %v6910, 0
          %v7423 = vmax.bf16 %v6911, 0
          %v7424 = vmax.bf16 %v6912, 0
          %v7425 = vmax.bf16 %v6913, 0
          %v7426 = vmax.bf16 %v6914, 0
          %v7427 = vmax.bf16 %v6915, 0
          %v7428 = vmax.bf16 %v6916, 0
          %v7429 = vmax.bf16 %v6917, 0
          %v7430 = vmax.bf16 %v6918, 0
          %v7431 = vmax.bf16 %v6919, 0
          %v7432 = vmax.bf16 %v6920, 0
          %v7433 = vmax.bf16 %v6921, 0
          %v7434 = vmax.bf16 %v6922, 0
          %v7435 = vmax.bf16 %v6923, 0
          %v7436 = vmax.bf16 %v6924, 0
          %v7437 = vmax.bf16 %v6925, 0
          %v7438 = vmax.bf16 %v6926, 0
          %v7439 = vmax.bf16 %v6927, 0
          %v7440 = vmax.bf16 %v6928, 0
          %v7441 = vmax.bf16 %v6929, 0
          %v7442 = vmax.bf16 %v6930, 0
          %v7443 = vmax.bf16 %v6931, 0
          %v7444 = vmax.bf16 %v6932, 0
          %v7445 = vmax.bf16 %v6933, 0
          %v7446 = vmax.bf16 %v6934, 0
          %v7447 = vmax.bf16 %v6935, 0
          %v7448 = vmax.bf16 %v6936, 0
          %v7449 = vmax.bf16 %v6937, 0
          %v7450 = vmax.bf16 %v6938, 0
          %v7451 = vmax.bf16 %v6939, 0
          %v7452 = vmax.bf16 %v6940, 0
          %v7453 = vmax.bf16 %v6941, 0
          %v7454 = vmax.bf16 %v6942, 0
          %v7455 = vmax.bf16 %v6943, 0
          %v7456 = vmax.bf16 %v6944, 0
          %v7457 = vmax.bf16 %v6945, 0
          %v7458 = vmax.bf16 %v6946, 0
          %v7459 = vmax.bf16 %v6947, 0
          %v7460 = vmax.bf16 %v6948, 0
          %v7461 = vmax.bf16 %v6949, 0
          %v7462 = vmax.bf16 %v6950, 0
          %v7463 = vmax.bf16 %v6951, 0
          %v7464 = vmax.bf16 %v6952, 0
          %v7465 = vmax.bf16 %v6953, 0
          %v7466 = vmax.bf16 %v6954, 0
          %v7467 = vmax.bf16 %v6955, 0
          %v7468 = vmax.bf16 %v6956, 0
          %v7469 = vmax.bf16 %v6957, 0
          %v7470 = vmax.bf16 %v6958, 0
          %v7471 = vmax.bf16 %v6959, 0
          %v7472 = vmax.bf16 %v6960, 0
          %v7473 = vmax.bf16 %v6961, 0
          %v7474 = vmax.bf16 %v6962, 0
          %v7475 = vmax.bf16 %v6963, 0
          %v7476 = vmax.bf16 %v6964, 0
          %v7477 = vmax.bf16 %v6965, 0
          %v7478 = vmax.bf16 %v6966, 0
          %v7479 = vmax.bf16 %v6967, 0
          %v7480 = vmax.bf16 %v6968, 0
          %v7481 = vmax.bf16 %v6969, 0
          %v7482 = vmax.bf16 %v6970, 0
          %v7483 = vmax.bf16 %v6971, 0
          %v7484 = vmax.bf16 %v6972, 0
          %v7485 = vmax.bf16 %v6973, 0
          %v7486 = vmax.bf16 %v6974, 0
          %v7487 = vmax.bf16 %v6975, 0
          %v7488 = vmax.bf16 %v6976, 0
          %v7489 = vmax.bf16 %v6977, 0
          %v7490 = vmax.bf16 %v6978, 0
          %v7491 = vmax.bf16 %v6979, 0
          %v7492 = vmax.bf16 %v6980, 0
          %v7493 = vmax.bf16 %v6981, 0
          %v7494 = vmax.bf16 %v6982, 0
          %v7495 = vmax.bf16 %v6983, 0
          %v7496 = vmax.bf16 %v6984, 0
          %v7497 = vmax.bf16 %v6985, 0
          %v7498 = vmax.bf16 %v6986, 0
          %v7499 = vmax.bf16 %v6987, 0
          %v7500 = vmax.bf16 %v6988, 0
          %v7501 = vmax.bf16 %v6989, 0
          %v7502 = vmax.bf16 %v6990, 0
          %v7503 = vmax.bf16 %v6991, 0
          %v7504 = vmax.bf16 %v6992, 0
          %v7505 = vmax.bf16 %v6993, 0
          %v7506 = vmax.bf16 %v6994, 0
          %v7507 = vmax.bf16 %v6995, 0
          %v7508 = vmax.bf16 %v6996, 0
          %v7509 = vmax.bf16 %v6997, 0
          %v7510 = vmax.bf16 %v6998, 0
          %v7511 = vmax.bf16 %v6999, 0
          %v7512 = vmax.bf16 %v7000, 0
          %v7513 = vmax.bf16 %v7001, 0
          %v7514 = vmax.bf16 %v7002, 0
          %v7515 = vmax.bf16 %v7003, 0
          %v7516 = vmax.bf16 %v7004, 0
          %v7517 = vmax.bf16 %v7005, 0
          %v7518 = vmax.bf16 %v7006, 0
          %v7519 = vmax.bf16 %v7007, 0
          %v7520 = vmax.bf16 %v7008, 0
          %v7521 = vmax.bf16 %v7009, 0
          %v7522 = vmax.bf16 %v7010, 0
          %v7523 = vmax.bf16 %v7011, 0
          %v7524 = vmax.bf16 %v7012, 0
          %v7525 = vmax.bf16 %v7013, 0
          %v7526 = vmax.bf16 %v7014, 0
          %v7527 = vmax.bf16 %v7015, 0
          %v7528 = vmax.bf16 %v7016, 0
          %v7529 = vmax.bf16 %v7017, 0
          %v7530 = vmax.bf16 %v7018, 0
          %v7531 = vmax.bf16 %v7019, 0
          %v7532 = vmax.bf16 %v7020, 0
          %v7533 = vmax.bf16 %v7021, 0
          %v7534 = vmax.bf16 %v7022, 0
          %v7535 = vmax.bf16 %v7023, 0
          %v7536 = vmax.bf16 %v7024, 0
          %v7537 = vmax.bf16 %v7025, 0
          %v7538 = vmax.bf16 %v7026, 0
          %v7539 = vmax.bf16 %v7027, 0
          %v7540 = vmax.bf16 %v7028, 0
          %v7541 = vmax.bf16 %v7029, 0
          %v7542 = vmax.bf16 %v7030, 0
          %v7543 = vmax.bf16 %v7031, 0
          %v7544 = vmax.bf16 %v7032, 0
          %v7545 = vmax.bf16 %v7033, 0
          %v7546 = vmax.bf16 %v7034, 0
          %v7547 = vmax.bf16 %v7035, 0
          %v7548 = vmax.bf16 %v7036, 0
          %v7549 = vmax.bf16 %v7037, 0
          %v7550 = vmax.bf16 %v7038, 0
          %v7551 = vmax.bf16 %v7039, 0
          %v7552 = vmax.bf16 %v7040, 0
          %v7553 = vmax.bf16 %v7041, 0
          %v7554 = vmax.bf16 %v7042, 0
          %v7555 = vmax.bf16 %v7043, 0
          %v7556 = vmax.bf16 %v7044, 0
          %v7557 = vmax.bf16 %v7045, 0
          %v7558 = vmax.bf16 %v7046, 0
          %v7559 = vmax.bf16 %v7047, 0
          %v7560 = vmax.bf16 %v7048, 0
          %v7561 = vmax.bf16 %v7049, 0
          %v7562 = vmax.bf16 %v7050, 0
          %v7563 = vmax.bf16 %v7051, 0
          %v7564 = vmax.bf16 %v7052, 0
          %v7565 = vmax.bf16 %v7053, 0
          %v7566 = vmax.bf16 %v7054, 0
          %v7567 = vmax.bf16 %v7055, 0
          %v7568 = vmax.bf16 %v7056, 0
          %v7569 = vmax.bf16 %v7057, 0
          %v7570 = vmax.bf16 %v7058, 0
          %v7571 = vmax.bf16 %v7059, 0
          %v7572 = vmax.bf16 %v7060, 0
          %v7573 = vmax.bf16 %v7061, 0
          %v7574 = vmax.bf16 %v7062, 0
          %v7575 = vmax.bf16 %v7063, 0
          %v7576 = vmax.bf16 %v7064, 0
          %v7577 = vmax.bf16 %v7065, 0
          %v7578 = vmax.bf16 %v7066, 0
          %v7579 = vmax.bf16 %v7067, 0
          %v7580 = vmax.bf16 %v7068, 0
          %v7581 = vmax.bf16 %v7069, 0
          %v7582 = vmax.bf16 %v7070, 0
          %v7583 = vmax.bf16 %v7071, 0
          %v7584 = vmax.bf16 %v7072, 0
          %v7585 = vmax.bf16 %v7073, 0
          %v7586 = vmax.bf16 %v7074, 0
          %v7587 = vmax.bf16 %v7075, 0
          %v7588 = vmax.bf16 %v7076, 0
          %v7589 = vmax.bf16 %v7077, 0
          %v7590 = vmax.bf16 %v7078, 0
          %v7591 = vmax.bf16 %v7079, 0
          %v7592 = vmax.bf16 %v7080, 0
          %v7593 = vmax.bf16 %v7081, 0
          %v7594 = vmax.bf16 %v7082, 0
          %v7595 = vmax.bf16 %v7083, 0
          %v7596 = vmax.bf16 %v7084, 0
          %v7597 = vmax.bf16 %v7085, 0
          %v7598 = vmax.bf16 %v7086, 0
          %v7599 = vmax.bf16 %v7087, 0
          %v7600 = vmax.bf16 %v7088, 0
          %v7601 = vmax.bf16 %v7089, 0
          %v7602 = vmax.bf16 %v7090, 0
          %v7603 = vmax.bf16 %v7091, 0
          %v7604 = vmax.bf16 %v7092, 0
          %v7605 = vmax.bf16 %v7093, 0
          %v7606 = vmax.bf16 %v7094, 0
          %v7607 = vmax.bf16 %v7095, 0
          %v7608 = vmax.bf16 %v7096, 0
          %v7609 = vmax.bf16 %v7097, 0
          %v7610 = vmax.bf16 %v7098, 0
          %v7611 = vmax.bf16 %v7099, 0
          %v7612 = vmax.bf16 %v7100, 0
          %v7613 = vmax.bf16 %v7101, 0
          %v7614 = vmax.bf16 %v7102, 0
          %v7615 = vmax.bf16 %v7103, 0
          %v7616 = vmax.bf16 %v7104, 0
          %v7617 = vmax.bf16 %v7105, 0
          %v7618 = vmax.bf16 %v7106, 0
          %v7619 = vmax.bf16 %v7107, 0
          %v7620 = vmax.bf16 %v7108, 0
          %v7621 = vmax.bf16 %v7109, 0
          %v7622 = vmax.bf16 %v7110, 0
          %v7623 = vmax.bf16 %v7111, 0
          %v7624 = vmax.bf16 %v7112, 0
          %v7625 = vmax.bf16 %v7113, 0
          %v7626 = vmax.bf16 %v7114, 0
          %v7627 = vmax.bf16 %v7115, 0
          %v7628 = vmax.bf16 %v7116, 0
          %v7629 = vmax.bf16 %v7117, 0
          %v7630 = vmax.bf16 %v7118, 0
          %v7631 = vmax.bf16 %v7119, 0
          %v7632 = vmax.bf16 %v7120, 0
          %v7633 = vmax.bf16 %v7121, 0
          %v7634 = vmax.bf16 %v7122, 0
          %v7635 = vmax.bf16 %v7123, 0
          %v7636 = vmax.bf16 %v7124, 0
          %v7637 = vmax.bf16 %v7125, 0
          %v7638 = vmax.bf16 %v7126, 0
          %v7639 = vmax.bf16 %v7127, 0
          %v7640 = vmax.bf16 %v7128, 0
          %v7641 = vmax.bf16 %v7129, 0
          %v7642 = vmax.bf16 %v7130, 0
          %v7643 = vmax.bf16 %v7131, 0
          %v7644 = vmax.bf16 %v7132, 0
          %v7645 = vmax.bf16 %v7133, 0
          %v7646 = vmax.bf16 %v7134, 0
          %v7647 = vmax.bf16 %v7135, 0
          %v7648 = vmax.bf16 %v7136, 0
          %v7649 = vmax.bf16 %v7137, 0
          %v7650 = vmax.bf16 %v7138, 0
          %v7651 = vmax.bf16 %v7139, 0
          %v7652 = vmax.bf16 %v7140, 0
          %v7653 = vmax.bf16 %v7141, 0
          %v7654 = vmax.bf16 %v7142, 0
          %v7655 = vmax.bf16 %v7143, 0
          %v7656 = vmax.bf16 %v7144, 0
          %v7657 = vmax.bf16 %v7145, 0
          %v7658 = vmax.bf16 %v7146, 0
          %v7659 = vmax.bf16 %v7147, 0
          %v7660 = vmax.bf16 %v7148, 0
          %v7661 = vmax.bf16 %v7149, 0
          %v7662 = vmax.bf16 %v7150, 0
          %v7663 = vmax.bf16 %v7151, 0
          %v7664 = vmax.bf16 %v7152, 0
          %v7665 = vmax.bf16 %v7153, 0
          %v7666 = vmax.bf16 %v7154, 0
          %v7667 = vmax.bf16 %v7155, 0
          %v7668 = vmax.bf16 %v7156, 0
          %v7669 = vmax.bf16 %v7157, 0
          %v7670 = vmax.bf16 %v7158, 0
          %v7671 = vmax.bf16 %v7159, 0
          %v7672 = vmax.bf16 %v7160, 0
          %v7673 = vmax.bf16 %v7161, 0
          %v7674 = vmax.bf16 %v7162, 0
          %v7675 = vmax.bf16 %v7163, 0
          %v7676 = vmax.bf16 %v7164, 0
          %v7677 = vmax.bf16 %v7165, 0
          %v7678 = vmax.bf16 %v7166, 0
          %v7679 = vmax.bf16 %v7167, 0
          %v7680 = vmax.bf16 %v7168, 0
          %v7681 = vmax.bf16 %v7169, 0
          %v7682 = vmax.bf16 %v7170, 0
          %v7683 = vmax.bf16 %v7171, 0
          %v7684 = vmax.bf16 %v7172, 0
          %v7685 = vmax.bf16 %v7173, 0
          %v7686 = vmax.bf16 %v7174, 0
          %v7687 = vmax.bf16 %v7175, 0
          %v7688 = vmax.bf16 %v7176, 0
          %v7689 = vmax.bf16 %v7177, 0
          %v7690 = vmax.bf16 %v7178, 0
          %v7691 = vmax.bf16 %v7179, 0
          %v7692 = vmax.bf16 %v7180, 0
          %v7693 = vmax.bf16 %v7181, 0
          %v7694 = vmax.bf16 %v7182, 0
          %v7695 = vmax.bf16 %v7183, 0
          %v7696 = vmax.bf16 %v7184, 0
          %v8209 = vunpack.c.l.b16 %v7185
          %v8210 = vunpack.c.l.b16 %v7186
          %v8211 = vunpack.c.l.b16 %v7187
          %v8212 = vunpack.c.l.b16 %v7188
          %v8213 = vunpack.c.l.b16 %v7189
          %v8214 = vunpack.c.l.b16 %v7190
          %v8215 = vunpack.c.l.b16 %v7191
          %v8216 = vunpack.c.l.b16 %v7192
          %v8217 = vunpack.c.l.b16 %v7193
          %v8218 = vunpack.c.l.b16 %v7194
          %v8219 = vunpack.c.l.b16 %v7195
          %v8220 = vunpack.c.l.b16 %v7196
          %v8221 = vunpack.c.l.b16 %v7197
          %v8222 = vunpack.c.l.b16 %v7198
          %v8223 = vunpack.c.l.b16 %v7199
          %v8224 = vunpack.c.l.b16 %v7200
          %v8225 = vunpack.c.l.b16 %v7201
          %v8226 = vunpack.c.l.b16 %v7202
          %v8227 = vunpack.c.l.b16 %v7203
          %v8228 = vunpack.c.l.b16 %v7204
          %v8229 = vunpack.c.l.b16 %v7205
          %v8230 = vunpack.c.l.b16 %v7206
          %v8231 = vunpack.c.l.b16 %v7207
          %v8232 = vunpack.c.l.b16 %v7208
          %v8233 = vunpack.c.l.b16 %v7209
          %v8234 = vunpack.c.l.b16 %v7210
          %v8235 = vunpack.c.l.b16 %v7211
          %v8236 = vunpack.c.l.b16 %v7212
          %v8237 = vunpack.c.l.b16 %v7213
          %v8238 = vunpack.c.l.b16 %v7214
          %v8239 = vunpack.c.l.b16 %v7215
          %v8240 = vunpack.c.l.b16 %v7216
          %v8241 = vunpack.c.l.b16 %v7217
          %v8242 = vunpack.c.l.b16 %v7218
          %v8243 = vunpack.c.l.b16 %v7219
          %v8244 = vunpack.c.l.b16 %v7220
          %v8245 = vunpack.c.l.b16 %v7221
          %v8246 = vunpack.c.l.b16 %v7222
          %v8247 = vunpack.c.l.b16 %v7223
          %v8248 = vunpack.c.l.b16 %v7224
          %v8249 = vunpack.c.l.b16 %v7225
          %v8250 = vunpack.c.l.b16 %v7226
          %v8251 = vunpack.c.l.b16 %v7227
          %v8252 = vunpack.c.l.b16 %v7228
          %v8253 = vunpack.c.l.b16 %v7229
          %v8254 = vunpack.c.l.b16 %v7230
          %v8255 = vunpack.c.l.b16 %v7231
          %v8256 = vunpack.c.l.b16 %v7232
          %v8257 = vunpack.c.l.b16 %v7233
          %v8258 = vunpack.c.l.b16 %v7234
          %v8259 = vunpack.c.l.b16 %v7235
          %v8260 = vunpack.c.l.b16 %v7236
          %v8261 = vunpack.c.l.b16 %v7237
          %v8262 = vunpack.c.l.b16 %v7238
          %v8263 = vunpack.c.l.b16 %v7239
          %v8264 = vunpack.c.l.b16 %v7240
          %v8265 = vunpack.c.l.b16 %v7241
          %v8266 = vunpack.c.l.b16 %v7242
          %v8267 = vunpack.c.l.b16 %v7243
          %v8268 = vunpack.c.l.b16 %v7244
          %v8269 = vunpack.c.l.b16 %v7245
          %v8270 = vunpack.c.l.b16 %v7246
          %v8271 = vunpack.c.l.b16 %v7247
          %v8272 = vunpack.c.l.b16 %v7248
          %v8273 = vunpack.c.l.b16 %v7249
          %v8274 = vunpack.c.l.b16 %v7250
          %v8275 = vunpack.c.l.b16 %v7251
          %v8276 = vunpack.c.l.b16 %v7252
          %v8277 = vunpack.c.l.b16 %v7253
          %v8278 = vunpack.c.l.b16 %v7254
          %v8279 = vunpack.c.l.b16 %v7255
          %v8280 = vunpack.c.l.b16 %v7256
          %v8281 = vunpack.c.l.b16 %v7257
          %v8282 = vunpack.c.l.b16 %v7258
          %v8283 = vunpack.c.l.b16 %v7259
          %v8284 = vunpack.c.l.b16 %v7260
          %v8285 = vunpack.c.l.b16 %v7261
          %v8286 = vunpack.c.l.b16 %v7262
          %v8287 = vunpack.c.l.b16 %v7263
          %v8288 = vunpack.c.l.b16 %v7264
          %v8289 = vunpack.c.l.b16 %v7265
          %v8290 = vunpack.c.l.b16 %v7266
          %v8291 = vunpack.c.l.b16 %v7267
          %v8292 = vunpack.c.l.b16 %v7268
          %v8293 = vunpack.c.l.b16 %v7269
          %v8294 = vunpack.c.l.b16 %v7270
          %v8295 = vunpack.c.l.b16 %v7271
          %v8296 = vunpack.c.l.b16 %v7272
          %v8297 = vunpack.c.l.b16 %v7273
          %v8298 = vunpack.c.l.b16 %v7274
          %v8299 = vunpack.c.l.b16 %v7275
          %v8300 = vunpack.c.l.b16 %v7276
          %v8301 = vunpack.c.l.b16 %v7277
          %v8302 = vunpack.c.l.b16 %v7278
          %v8303 = vunpack.c.l.b16 %v7279
          %v8304 = vunpack.c.l.b16 %v7280
          %v8305 = vunpack.c.l.b16 %v7281
          %v8306 = vunpack.c.l.b16 %v7282
          %v8307 = vunpack.c.l.b16 %v7283
          %v8308 = vunpack.c.l.b16 %v7284
          %v8309 = vunpack.c.l.b16 %v7285
          %v8310 = vunpack.c.l.b16 %v7286
          %v8311 = vunpack.c.l.b16 %v7287
          %v8312 = vunpack.c.l.b16 %v7288
          %v8313 = vunpack.c.l.b16 %v7289
          %v8314 = vunpack.c.l.b16 %v7290
          %v8315 = vunpack.c.l.b16 %v7291
          %v8316 = vunpack.c.l.b16 %v7292
          %v8317 = vunpack.c.l.b16 %v7293
          %v8318 = vunpack.c.l.b16 %v7294
          %v8319 = vunpack.c.l.b16 %v7295
          %v8320 = vunpack.c.l.b16 %v7296
          %v8321 = vunpack.c.l.b16 %v7297
          %v8322 = vunpack.c.l.b16 %v7298
          %v8323 = vunpack.c.l.b16 %v7299
          %v8324 = vunpack.c.l.b16 %v7300
          %v8325 = vunpack.c.l.b16 %v7301
          %v8326 = vunpack.c.l.b16 %v7302
          %v8327 = vunpack.c.l.b16 %v7303
          %v8328 = vunpack.c.l.b16 %v7304
          %v8329 = vunpack.c.l.b16 %v7305
          %v8330 = vunpack.c.l.b16 %v7306
          %v8331 = vunpack.c.l.b16 %v7307
          %v8332 = vunpack.c.l.b16 %v7308
          %v8333 = vunpack.c.l.b16 %v7309
          %v8334 = vunpack.c.l.b16 %v7310
          %v8335 = vunpack.c.l.b16 %v7311
          %v8336 = vunpack.c.l.b16 %v7312
          %v8337 = vunpack.c.l.b16 %v7313
          %v8338 = vunpack.c.l.b16 %v7314
          %v8339 = vunpack.c.l.b16 %v7315
          %v8340 = vunpack.c.l.b16 %v7316
          %v8341 = vunpack.c.l.b16 %v7317
          %v8342 = vunpack.c.l.b16 %v7318
          %v8343 = vunpack.c.l.b16 %v7319
          %v8344 = vunpack.c.l.b16 %v7320
          %v8345 = vunpack.c.l.b16 %v7321
          %v8346 = vunpack.c.l.b16 %v7322
          %v8347 = vunpack.c.l.b16 %v7323
          %v8348 = vunpack.c.l.b16 %v7324
          %v8349 = vunpack.c.l.b16 %v7325
          %v8350 = vunpack.c.l.b16 %v7326
          %v8351 = vunpack.c.l.b16 %v7327
          %v8352 = vunpack.c.l.b16 %v7328
          %v8353 = vunpack.c.l.b16 %v7329
          %v8354 = vunpack.c.l.b16 %v7330
          %v8355 = vunpack.c.l.b16 %v7331
          %v8356 = vunpack.c.l.b16 %v7332
          %v8357 = vunpack.c.l.b16 %v7333
          %v8358 = vunpack.c.l.b16 %v7334
          %v8359 = vunpack.c.l.b16 %v7335
          %v8360 = vunpack.c.l.b16 %v7336
          %v8361 = vunpack.c.l.b16 %v7337
          %v8362 = vunpack.c.l.b16 %v7338
          %v8363 = vunpack.c.l.b16 %v7339
          %v8364 = vunpack.c.l.b16 %v7340
          %v8365 = vunpack.c.l.b16 %v7341
          %v8366 = vunpack.c.l.b16 %v7342
          %v8367 = vunpack.c.l.b16 %v7343
          %v8368 = vunpack.c.l.b16 %v7344
          %v8369 = vunpack.c.l.b16 %v7345
          %v8370 = vunpack.c.l.b16 %v7346
          %v8371 = vunpack.c.l.b16 %v7347
          %v8372 = vunpack.c.l.b16 %v7348
          %v8373 = vunpack.c.l.b16 %v7349
          %v8374 = vunpack.c.l.b16 %v7350
          %v8375 = vunpack.c.l.b16 %v7351
          %v8376 = vunpack.c.l.b16 %v7352
          %v8377 = vunpack.c.l.b16 %v7353
          %v8378 = vunpack.c.l.b16 %v7354
          %v8379 = vunpack.c.l.b16 %v7355
          %v8380 = vunpack.c.l.b16 %v7356
          %v8381 = vunpack.c.l.b16 %v7357
          %v8382 = vunpack.c.l.b16 %v7358
          %v8383 = vunpack.c.l.b16 %v7359
          %v8384 = vunpack.c.l.b16 %v7360
          %v8385 = vunpack.c.l.b16 %v7361
          %v8386 = vunpack.c.l.b16 %v7362
          %v8387 = vunpack.c.l.b16 %v7363
          %v8388 = vunpack.c.l.b16 %v7364
          %v8389 = vunpack.c.l.b16 %v7365
          %v8390 = vunpack.c.l.b16 %v7366
          %v8391 = vunpack.c.l.b16 %v7367
          %v8392 = vunpack.c.l.b16 %v7368
          %v8393 = vunpack.c.l.b16 %v7369
          %v8394 = vunpack.c.l.b16 %v7370
          %v8395 = vunpack.c.l.b16 %v7371
          %v8396 = vunpack.c.l.b16 %v7372
          %v8397 = vunpack.c.l.b16 %v7373
          %v8398 = vunpack.c.l.b16 %v7374
          %v8399 = vunpack.c.l.b16 %v7375
          %v8400 = vunpack.c.l.b16 %v7376
          %v8401 = vunpack.c.l.b16 %v7377
          %v8402 = vunpack.c.l.b16 %v7378
          %v8403 = vunpack.c.l.b16 %v7379
          %v8404 = vunpack.c.l.b16 %v7380
          %v8405 = vunpack.c.l.b16 %v7381
          %v8406 = vunpack.c.l.b16 %v7382
          %v8407 = vunpack.c.l.b16 %v7383
          %v8408 = vunpack.c.l.b16 %v7384
          %v8409 = vunpack.c.l.b16 %v7385
          %v8410 = vunpack.c.l.b16 %v7386
          %v8411 = vunpack.c.l.b16 %v7387
          %v8412 = vunpack.c.l.b16 %v7388
          %v8413 = vunpack.c.l.b16 %v7389
          %v8414 = vunpack.c.l.b16 %v7390
          %v8415 = vunpack.c.l.b16 %v7391
          %v8416 = vunpack.c.l.b16 %v7392
          %v8417 = vunpack.c.l.b16 %v7393
          %v8418 = vunpack.c.l.b16 %v7394
          %v8419 = vunpack.c.l.b16 %v7395
          %v8420 = vunpack.c.l.b16 %v7396
          %v8421 = vunpack.c.l.b16 %v7397
          %v8422 = vunpack.c.l.b16 %v7398
          %v8423 = vunpack.c.l.b16 %v7399
          %v8424 = vunpack.c.l.b16 %v7400
          %v8425 = vunpack.c.l.b16 %v7401
          %v8426 = vunpack.c.l.b16 %v7402
          %v8427 = vunpack.c.l.b16 %v7403
          %v8428 = vunpack.c.l.b16 %v7404
          %v8429 = vunpack.c.l.b16 %v7405
          %v8430 = vunpack.c.l.b16 %v7406
          %v8431 = vunpack.c.l.b16 %v7407
          %v8432 = vunpack.c.l.b16 %v7408
          %v8433 = vunpack.c.l.b16 %v7409
          %v8434 = vunpack.c.l.b16 %v7410
          %v8435 = vunpack.c.l.b16 %v7411
          %v8436 = vunpack.c.l.b16 %v7412
          %v8437 = vunpack.c.l.b16 %v7413
          %v8438 = vunpack.c.l.b16 %v7414
          %v8439 = vunpack.c.l.b16 %v7415
          %v8440 = vunpack.c.l.b16 %v7416
          %v8441 = vunpack.c.l.b16 %v7417
          %v8442 = vunpack.c.l.b16 %v7418
          %v8443 = vunpack.c.l.b16 %v7419
          %v8444 = vunpack.c.l.b16 %v7420
          %v8445 = vunpack.c.l.b16 %v7421
          %v8446 = vunpack.c.l.b16 %v7422
          %v8447 = vunpack.c.l.b16 %v7423
          %v8448 = vunpack.c.l.b16 %v7424
          %v8449 = vunpack.c.l.b16 %v7425
          %v8450 = vunpack.c.l.b16 %v7426
          %v8451 = vunpack.c.l.b16 %v7427
          %v8452 = vunpack.c.l.b16 %v7428
          %v8453 = vunpack.c.l.b16 %v7429
          %v8454 = vunpack.c.l.b16 %v7430
          %v8455 = vunpack.c.l.b16 %v7431
          %v8456 = vunpack.c.l.b16 %v7432
          %v8457 = vunpack.c.l.b16 %v7433
          %v8458 = vunpack.c.l.b16 %v7434
          %v8459 = vunpack.c.l.b16 %v7435
          %v8460 = vunpack.c.l.b16 %v7436
          %v8461 = vunpack.c.l.b16 %v7437
          %v8462 = vunpack.c.l.b16 %v7438
          %v8463 = vunpack.c.l.b16 %v7439
          %v8464 = vunpack.c.l.b16 %v7440
          %v8465 = vunpack.c.l.b16 %v7441
          %v8466 = vunpack.c.l.b16 %v7442
          %v8467 = vunpack.c.l.b16 %v7443
          %v8468 = vunpack.c.l.b16 %v7444
          %v8469 = vunpack.c.l.b16 %v7445
          %v8470 = vunpack.c.l.b16 %v7446
          %v8471 = vunpack.c.l.b16 %v7447
          %v8472 = vunpack.c.l.b16 %v7448
          %v8473 = vunpack.c.l.b16 %v7449
          %v8474 = vunpack.c.l.b16 %v7450
          %v8475 = vunpack.c.l.b16 %v7451
          %v8476 = vunpack.c.l.b16 %v7452
          %v8477 = vunpack.c.l.b16 %v7453
          %v8478 = vunpack.c.l.b16 %v7454
          %v8479 = vunpack.c.l.b16 %v7455
          %v8480 = vunpack.c.l.b16 %v7456
          %v8481 = vunpack.c.l.b16 %v7457
          %v8482 = vunpack.c.l.b16 %v7458
          %v8483 = vunpack.c.l.b16 %v7459
          %v8484 = vunpack.c.l.b16 %v7460
          %v8485 = vunpack.c.l.b16 %v7461
          %v8486 = vunpack.c.l.b16 %v7462
          %v8487 = vunpack.c.l.b16 %v7463
          %v8488 = vunpack.c.l.b16 %v7464
          %v8489 = vunpack.c.l.b16 %v7465
          %v8490 = vunpack.c.l.b16 %v7466
          %v8491 = vunpack.c.l.b16 %v7467
          %v8492 = vunpack.c.l.b16 %v7468
          %v8493 = vunpack.c.l.b16 %v7469
          %v8494 = vunpack.c.l.b16 %v7470
          %v8495 = vunpack.c.l.b16 %v7471
          %v8496 = vunpack.c.l.b16 %v7472
          %v8497 = vunpack.c.l.b16 %v7473
          %v8498 = vunpack.c.l.b16 %v7474
          %v8499 = vunpack.c.l.b16 %v7475
          %v8500 = vunpack.c.l.b16 %v7476
          %v8501 = vunpack.c.l.b16 %v7477
          %v8502 = vunpack.c.l.b16 %v7478
          %v8503 = vunpack.c.l.b16 %v7479
          %v8504 = vunpack.c.l.b16 %v7480
          %v8505 = vunpack.c.l.b16 %v7481
          %v8506 = vunpack.c.l.b16 %v7482
          %v8507 = vunpack.c.l.b16 %v7483
          %v8508 = vunpack.c.l.b16 %v7484
          %v8509 = vunpack.c.l.b16 %v7485
          %v8510 = vunpack.c.l.b16 %v7486
          %v8511 = vunpack.c.l.b16 %v7487
          %v8512 = vunpack.c.l.b16 %v7488
          %v8513 = vunpack.c.l.b16 %v7489
          %v8514 = vunpack.c.l.b16 %v7490
          %v8515 = vunpack.c.l.b16 %v7491
          %v8516 = vunpack.c.l.b16 %v7492
          %v8517 = vunpack.c.l.b16 %v7493
          %v8518 = vunpack.c.l.b16 %v7494
          %v8519 = vunpack.c.l.b16 %v7495
          %v8520 = vunpack.c.l.b16 %v7496
          %v8521 = vunpack.c.l.b16 %v7497
          %v8522 = vunpack.c.l.b16 %v7498
          %v8523 = vunpack.c.l.b16 %v7499
          %v8524 = vunpack.c.l.b16 %v7500
          %v8525 = vunpack.c.l.b16 %v7501
          %v8526 = vunpack.c.l.b16 %v7502
          %v8527 = vunpack.c.l.b16 %v7503
          %v8528 = vunpack.c.l.b16 %v7504
          %v8529 = vunpack.c.l.b16 %v7505
          %v8530 = vunpack.c.l.b16 %v7506
          %v8531 = vunpack.c.l.b16 %v7507
          %v8532 = vunpack.c.l.b16 %v7508
          %v8533 = vunpack.c.l.b16 %v7509
          %v8534 = vunpack.c.l.b16 %v7510
          %v8535 = vunpack.c.l.b16 %v7511
          %v8536 = vunpack.c.l.b16 %v7512
          %v8537 = vunpack.c.l.b16 %v7513
          %v8538 = vunpack.c.l.b16 %v7514
          %v8539 = vunpack.c.l.b16 %v7515
          %v8540 = vunpack.c.l.b16 %v7516
          %v8541 = vunpack.c.l.b16 %v7517
          %v8542 = vunpack.c.l.b16 %v7518
          %v8543 = vunpack.c.l.b16 %v7519
          %v8544 = vunpack.c.l.b16 %v7520
          %v8545 = vunpack.c.l.b16 %v7521
          %v8546 = vunpack.c.l.b16 %v7522
          %v8547 = vunpack.c.l.b16 %v7523
          %v8548 = vunpack.c.l.b16 %v7524
          %v8549 = vunpack.c.l.b16 %v7525
          %v8550 = vunpack.c.l.b16 %v7526
          %v8551 = vunpack.c.l.b16 %v7527
          %v8552 = vunpack.c.l.b16 %v7528
          %v8553 = vunpack.c.l.b16 %v7529
          %v8554 = vunpack.c.l.b16 %v7530
          %v8555 = vunpack.c.l.b16 %v7531
          %v8556 = vunpack.c.l.b16 %v7532
          %v8557 = vunpack.c.l.b16 %v7533
          %v8558 = vunpack.c.l.b16 %v7534
          %v8559 = vunpack.c.l.b16 %v7535
          %v8560 = vunpack.c.l.b16 %v7536
          %v8561 = vunpack.c.l.b16 %v7537
          %v8562 = vunpack.c.l.b16 %v7538
          %v8563 = vunpack.c.l.b16 %v7539
          %v8564 = vunpack.c.l.b16 %v7540
          %v8565 = vunpack.c.l.b16 %v7541
          %v8566 = vunpack.c.l.b16 %v7542
          %v8567 = vunpack.c.l.b16 %v7543
          %v8568 = vunpack.c.l.b16 %v7544
          %v8569 = vunpack.c.l.b16 %v7545
          %v8570 = vunpack.c.l.b16 %v7546
          %v8571 = vunpack.c.l.b16 %v7547
          %v8572 = vunpack.c.l.b16 %v7548
          %v8573 = vunpack.c.l.b16 %v7549
          %v8574 = vunpack.c.l.b16 %v7550
          %v8575 = vunpack.c.l.b16 %v7551
          %v8576 = vunpack.c.l.b16 %v7552
          %v8577 = vunpack.c.l.b16 %v7553
          %v8578 = vunpack.c.l.b16 %v7554
          %v8579 = vunpack.c.l.b16 %v7555
          %v8580 = vunpack.c.l.b16 %v7556
          %v8581 = vunpack.c.l.b16 %v7557
          %v8582 = vunpack.c.l.b16 %v7558
          %v8583 = vunpack.c.l.b16 %v7559
          %v8584 = vunpack.c.l.b16 %v7560
          %v8585 = vunpack.c.l.b16 %v7561
          %v8586 = vunpack.c.l.b16 %v7562
          %v8587 = vunpack.c.l.b16 %v7563
          %v8588 = vunpack.c.l.b16 %v7564
          %v8589 = vunpack.c.l.b16 %v7565
          %v8590 = vunpack.c.l.b16 %v7566
          %v8591 = vunpack.c.l.b16 %v7567
          %v8592 = vunpack.c.l.b16 %v7568
          %v8593 = vunpack.c.l.b16 %v7569
          %v8594 = vunpack.c.l.b16 %v7570
          %v8595 = vunpack.c.l.b16 %v7571
          %v8596 = vunpack.c.l.b16 %v7572
          %v8597 = vunpack.c.l.b16 %v7573
          %v8598 = vunpack.c.l.b16 %v7574
          %v8599 = vunpack.c.l.b16 %v7575
          %v8600 = vunpack.c.l.b16 %v7576
          %v8601 = vunpack.c.l.b16 %v7577
          %v8602 = vunpack.c.l.b16 %v7578
          %v8603 = vunpack.c.l.b16 %v7579
          %v8604 = vunpack.c.l.b16 %v7580
          %v8605 = vunpack.c.l.b16 %v7581
          %v8606 = vunpack.c.l.b16 %v7582
          %v8607 = vunpack.c.l.b16 %v7583
          %v8608 = vunpack.c.l.b16 %v7584
          %v8609 = vunpack.c.l.b16 %v7585
          %v8610 = vunpack.c.l.b16 %v7586
          %v8611 = vunpack.c.l.b16 %v7587
          %v8612 = vunpack.c.l.b16 %v7588
          %v8613 = vunpack.c.l.b16 %v7589
          %v8614 = vunpack.c.l.b16 %v7590
          %v8615 = vunpack.c.l.b16 %v7591
          %v8616 = vunpack.c.l.b16 %v7592
          %v8617 = vunpack.c.l.b16 %v7593
          %v8618 = vunpack.c.l.b16 %v7594
          %v8619 = vunpack.c.l.b16 %v7595
          %v8620 = vunpack.c.l.b16 %v7596
          %v8621 = vunpack.c.l.b16 %v7597
          %v8622 = vunpack.c.l.b16 %v7598
          %v8623 = vunpack.c.l.b16 %v7599
          %v8624 = vunpack.c.l.b16 %v7600
          %v8625 = vunpack.c.l.b16 %v7601
          %v8626 = vunpack.c.l.b16 %v7602
          %v8627 = vunpack.c.l.b16 %v7603
          %v8628 = vunpack.c.l.b16 %v7604
          %v8629 = vunpack.c.l.b16 %v7605
          %v8630 = vunpack.c.l.b16 %v7606
          %v8631 = vunpack.c.l.b16 %v7607
          %v8632 = vunpack.c.l.b16 %v7608
          %v8633 = vunpack.c.l.b16 %v7609
          %v8634 = vunpack.c.l.b16 %v7610
          %v8635 = vunpack.c.l.b16 %v7611
          %v8636 = vunpack.c.l.b16 %v7612
          %v8637 = vunpack.c.l.b16 %v7613
          %v8638 = vunpack.c.l.b16 %v7614
          %v8639 = vunpack.c.l.b16 %v7615
          %v8640 = vunpack.c.l.b16 %v7616
          %v8641 = vunpack.c.l.b16 %v7617
          %v8642 = vunpack.c.l.b16 %v7618
          %v8643 = vunpack.c.l.b16 %v7619
          %v8644 = vunpack.c.l.b16 %v7620
          %v8645 = vunpack.c.l.b16 %v7621
          %v8646 = vunpack.c.l.b16 %v7622
          %v8647 = vunpack.c.l.b16 %v7623
          %v8648 = vunpack.c.l.b16 %v7624
          %v8649 = vunpack.c.l.b16 %v7625
          %v8650 = vunpack.c.l.b16 %v7626
          %v8651 = vunpack.c.l.b16 %v7627
          %v8652 = vunpack.c.l.b16 %v7628
          %v8653 = vunpack.c.l.b16 %v7629
          %v8654 = vunpack.c.l.b16 %v7630
          %v8655 = vunpack.c.l.b16 %v7631
          %v8656 = vunpack.c.l.b16 %v7632
          %v8657 = vunpack.c.l.b16 %v7633
          %v8658 = vunpack.c.l.b16 %v7634
          %v8659 = vunpack.c.l.b16 %v7635
          %v8660 = vunpack.c.l.b16 %v7636
          %v8661 = vunpack.c.l.b16 %v7637
          %v8662 = vunpack.c.l.b16 %v7638
          %v8663 = vunpack.c.l.b16 %v7639
          %v8664 = vunpack.c.l.b16 %v7640
          %v8665 = vunpack.c.l.b16 %v7641
          %v8666 = vunpack.c.l.b16 %v7642
          %v8667 = vunpack.c.l.b16 %v7643
          %v8668 = vunpack.c.l.b16 %v7644
          %v8669 = vunpack.c.l.b16 %v7645
          %v8670 = vunpack.c.l.b16 %v7646
          %v8671 = vunpack.c.l.b16 %v7647
          %v8672 = vunpack.c.l.b16 %v7648
          %v8673 = vunpack.c.l.b16 %v7649
          %v8674 = vunpack.c.l.b16 %v7650
          %v8675 = vunpack.c.l.b16 %v7651
          %v8676 = vunpack.c.l.b16 %v7652
          %v8677 = vunpack.c.l.b16 %v7653
          %v8678 = vunpack.c.l.b16 %v7654
          %v8679 = vunpack.c.l.b16 %v7655
          %v8680 = vunpack.c.l.b16 %v7656
          %v8681 = vunpack.c.l.b16 %v7657
          %v8682 = vunpack.c.l.b16 %v7658
          %v8683 = vunpack.c.l.b16 %v7659
          %v8684 = vunpack.c.l.b16 %v7660
          %v8685 = vunpack.c.l.b16 %v7661
          %v8686 = vunpack.c.l.b16 %v7662
          %v8687 = vunpack.c.l.b16 %v7663
          %v8688 = vunpack.c.l.b16 %v7664
          %v8689 = vunpack.c.l.b16 %v7665
          %v8690 = vunpack.c.l.b16 %v7666
          %v8691 = vunpack.c.l.b16 %v7667
          %v8692 = vunpack.c.l.b16 %v7668
          %v8693 = vunpack.c.l.b16 %v7669
          %v8694 = vunpack.c.l.b16 %v7670
          %v8695 = vunpack.c.l.b16 %v7671
          %v8696 = vunpack.c.l.b16 %v7672
          %v8697 = vunpack.c.l.b16 %v7673
          %v8698 = vunpack.c.l.b16 %v7674
          %v8699 = vunpack.c.l.b16 %v7675
          %v8700 = vunpack.c.l.b16 %v7676
          %v8701 = vunpack.c.l.b16 %v7677
          %v8702 = vunpack.c.l.b16 %v7678
          %v8703 = vunpack.c.l.b16 %v7679
          %v8704 = vunpack.c.l.b16 %v7680
          %v8705 = vunpack.c.l.b16 %v7681
          %v8706 = vunpack.c.l.b16 %v7682
          %v8707 = vunpack.c.l.b16 %v7683
          %v8708 = vunpack.c.l.b16 %v7684
          %v8709 = vunpack.c.l.b16 %v7685
          %v8710 = vunpack.c.l.b16 %v7686
          %v8711 = vunpack.c.l.b16 %v7687
          %v8712 = vunpack.c.l.b16 %v7688
          %v8713 = vunpack.c.l.b16 %v7689
          %v8714 = vunpack.c.l.b16 %v7690
          %v8715 = vunpack.c.l.b16 %v7691
          %v8716 = vunpack.c.l.b16 %v7692
          %v8717 = vunpack.c.l.b16 %v7693
          %v8718 = vunpack.c.l.b16 %v7694
          %v8719 = vunpack.c.l.b16 %v7695
          %v8720 = vunpack.c.l.b16 %v7696
          %v8721 = vpack.c.b16 %v8217, %v8209
          %v8722 = vpack.c.b16 %v8218, %v8210
          %v8723 = vpack.c.b16 %v8219, %v8211
          %v8724 = vpack.c.b16 %v8220, %v8212
          %v8725 = vpack.c.b16 %v8221, %v8213
          %v8726 = vpack.c.b16 %v8222, %v8214
          %v8727 = vpack.c.b16 %v8223, %v8215
          %v8728 = vpack.c.b16 %v8224, %v8216
          %v8729 = vpack.c.b16 %v8233, %v8225
          %v8730 = vpack.c.b16 %v8234, %v8226
          %v8731 = vpack.c.b16 %v8235, %v8227
          %v8732 = vpack.c.b16 %v8236, %v8228
          %v8733 = vpack.c.b16 %v8237, %v8229
          %v8734 = vpack.c.b16 %v8238, %v8230
          %v8735 = vpack.c.b16 %v8239, %v8231
          %v8736 = vpack.c.b16 %v8240, %v8232
          %v8737 = vpack.c.b16 %v8249, %v8241
          %v8738 = vpack.c.b16 %v8250, %v8242
          %v8739 = vpack.c.b16 %v8251, %v8243
          %v8740 = vpack.c.b16 %v8252, %v8244
          %v8741 = vpack.c.b16 %v8253, %v8245
          %v8742 = vpack.c.b16 %v8254, %v8246
          %v8743 = vpack.c.b16 %v8255, %v8247
          %v8744 = vpack.c.b16 %v8256, %v8248
          %v8745 = vpack.c.b16 %v8265, %v8257
          %v8746 = vpack.c.b16 %v8266, %v8258
          %v8747 = vpack.c.b16 %v8267, %v8259
          %v8748 = vpack.c.b16 %v8268, %v8260
          %v8749 = vpack.c.b16 %v8269, %v8261
          %v8750 = vpack.c.b16 %v8270, %v8262
          %v8751 = vpack.c.b16 %v8271, %v8263
          %v8752 = vpack.c.b16 %v8272, %v8264
          %v8753 = vpack.c.b16 %v8281, %v8273
          %v8754 = vpack.c.b16 %v8282, %v8274
          %v8755 = vpack.c.b16 %v8283, %v8275
          %v8756 = vpack.c.b16 %v8284, %v8276
          %v8757 = vpack.c.b16 %v8285, %v8277
          %v8758 = vpack.c.b16 %v8286, %v8278
          %v8759 = vpack.c.b16 %v8287, %v8279
          %v8760 = vpack.c.b16 %v8288, %v8280
          %v8761 = vpack.c.b16 %v8297, %v8289
          %v8762 = vpack.c.b16 %v8298, %v8290
          %v8763 = vpack.c.b16 %v8299, %v8291
          %v8764 = vpack.c.b16 %v8300, %v8292
          %v8765 = vpack.c.b16 %v8301, %v8293
          %v8766 = vpack.c.b16 %v8302, %v8294
          %v8767 = vpack.c.b16 %v8303, %v8295
          %v8768 = vpack.c.b16 %v8304, %v8296
          %v8769 = vpack.c.b16 %v8313, %v8305
          %v8770 = vpack.c.b16 %v8314, %v8306
          %v8771 = vpack.c.b16 %v8315, %v8307
          %v8772 = vpack.c.b16 %v8316, %v8308
          %v8773 = vpack.c.b16 %v8317, %v8309
          %v8774 = vpack.c.b16 %v8318, %v8310
          %v8775 = vpack.c.b16 %v8319, %v8311
          %v8776 = vpack.c.b16 %v8320, %v8312
          %v8777 = vpack.c.b16 %v8329, %v8321
          %v8778 = vpack.c.b16 %v8330, %v8322
          %v8779 = vpack.c.b16 %v8331, %v8323
          %v8780 = vpack.c.b16 %v8332, %v8324
          %v8781 = vpack.c.b16 %v8333, %v8325
          %v8782 = vpack.c.b16 %v8334, %v8326
          %v8783 = vpack.c.b16 %v8335, %v8327
          %v8784 = vpack.c.b16 %v8336, %v8328
          %v8785 = vpack.c.b16 %v8345, %v8337
          %v8786 = vpack.c.b16 %v8346, %v8338
          %v8787 = vpack.c.b16 %v8347, %v8339
          %v8788 = vpack.c.b16 %v8348, %v8340
          %v8789 = vpack.c.b16 %v8349, %v8341
          %v8790 = vpack.c.b16 %v8350, %v8342
          %v8791 = vpack.c.b16 %v8351, %v8343
          %v8792 = vpack.c.b16 %v8352, %v8344
          %v8793 = vpack.c.b16 %v8361, %v8353
          %v8794 = vpack.c.b16 %v8362, %v8354
          %v8795 = vpack.c.b16 %v8363, %v8355
          %v8796 = vpack.c.b16 %v8364, %v8356
          %v8797 = vpack.c.b16 %v8365, %v8357
          %v8798 = vpack.c.b16 %v8366, %v8358
          %v8799 = vpack.c.b16 %v8367, %v8359
          %v8800 = vpack.c.b16 %v8368, %v8360
          %v8801 = vpack.c.b16 %v8377, %v8369
          %v8802 = vpack.c.b16 %v8378, %v8370
          %v8803 = vpack.c.b16 %v8379, %v8371
          %v8804 = vpack.c.b16 %v8380, %v8372
          %v8805 = vpack.c.b16 %v8381, %v8373
          %v8806 = vpack.c.b16 %v8382, %v8374
          %v8807 = vpack.c.b16 %v8383, %v8375
          %v8808 = vpack.c.b16 %v8384, %v8376
          %v8809 = vpack.c.b16 %v8393, %v8385
          %v8810 = vpack.c.b16 %v8394, %v8386
          %v8811 = vpack.c.b16 %v8395, %v8387
          %v8812 = vpack.c.b16 %v8396, %v8388
          %v8813 = vpack.c.b16 %v8397, %v8389
          %v8814 = vpack.c.b16 %v8398, %v8390
          %v8815 = vpack.c.b16 %v8399, %v8391
          %v8816 = vpack.c.b16 %v8400, %v8392
          %v8817 = vpack.c.b16 %v8409, %v8401
          %v8818 = vpack.c.b16 %v8410, %v8402
          %v8819 = vpack.c.b16 %v8411, %v8403
          %v8820 = vpack.c.b16 %v8412, %v8404
          %v8821 = vpack.c.b16 %v8413, %v8405
          %v8822 = vpack.c.b16 %v8414, %v8406
          %v8823 = vpack.c.b16 %v8415, %v8407
          %v8824 = vpack.c.b16 %v8416, %v8408
          %v8825 = vpack.c.b16 %v8425, %v8417
          %v8826 = vpack.c.b16 %v8426, %v8418
          %v8827 = vpack.c.b16 %v8427, %v8419
          %v8828 = vpack.c.b16 %v8428, %v8420
          %v8829 = vpack.c.b16 %v8429, %v8421
          %v8830 = vpack.c.b16 %v8430, %v8422
          %v8831 = vpack.c.b16 %v8431, %v8423
          %v8832 = vpack.c.b16 %v8432, %v8424
          %v8833 = vpack.c.b16 %v8441, %v8433
          %v8834 = vpack.c.b16 %v8442, %v8434
          %v8835 = vpack.c.b16 %v8443, %v8435
          %v8836 = vpack.c.b16 %v8444, %v8436
          %v8837 = vpack.c.b16 %v8445, %v8437
          %v8838 = vpack.c.b16 %v8446, %v8438
          %v8839 = vpack.c.b16 %v8447, %v8439
          %v8840 = vpack.c.b16 %v8448, %v8440
          %v8841 = vpack.c.b16 %v8457, %v8449
          %v8842 = vpack.c.b16 %v8458, %v8450
          %v8843 = vpack.c.b16 %v8459, %v8451
          %v8844 = vpack.c.b16 %v8460, %v8452
          %v8845 = vpack.c.b16 %v8461, %v8453
          %v8846 = vpack.c.b16 %v8462, %v8454
          %v8847 = vpack.c.b16 %v8463, %v8455
          %v8848 = vpack.c.b16 %v8464, %v8456
          %v8849 = vpack.c.b16 %v8473, %v8465
          %v8850 = vpack.c.b16 %v8474, %v8466
          %v8851 = vpack.c.b16 %v8475, %v8467
          %v8852 = vpack.c.b16 %v8476, %v8468
          %v8853 = vpack.c.b16 %v8477, %v8469
          %v8854 = vpack.c.b16 %v8478, %v8470
          %v8855 = vpack.c.b16 %v8479, %v8471
          %v8856 = vpack.c.b16 %v8480, %v8472
          %v8857 = vpack.c.b16 %v8489, %v8481
          %v8858 = vpack.c.b16 %v8490, %v8482
          %v8859 = vpack.c.b16 %v8491, %v8483
          %v8860 = vpack.c.b16 %v8492, %v8484
          %v8861 = vpack.c.b16 %v8493, %v8485
          %v8862 = vpack.c.b16 %v8494, %v8486
          %v8863 = vpack.c.b16 %v8495, %v8487
          %v8864 = vpack.c.b16 %v8496, %v8488
          %v8865 = vpack.c.b16 %v8505, %v8497
          %v8866 = vpack.c.b16 %v8506, %v8498
          %v8867 = vpack.c.b16 %v8507, %v8499
          %v8868 = vpack.c.b16 %v8508, %v8500
          %v8869 = vpack.c.b16 %v8509, %v8501
          %v8870 = vpack.c.b16 %v8510, %v8502
          %v8871 = vpack.c.b16 %v8511, %v8503
          %v8872 = vpack.c.b16 %v8512, %v8504
          %v8873 = vpack.c.b16 %v8521, %v8513
          %v8874 = vpack.c.b16 %v8522, %v8514
          %v8875 = vpack.c.b16 %v8523, %v8515
          %v8876 = vpack.c.b16 %v8524, %v8516
          %v8877 = vpack.c.b16 %v8525, %v8517
          %v8878 = vpack.c.b16 %v8526, %v8518
          %v8879 = vpack.c.b16 %v8527, %v8519
          %v8880 = vpack.c.b16 %v8528, %v8520
          %v8881 = vpack.c.b16 %v8537, %v8529
          %v8882 = vpack.c.b16 %v8538, %v8530
          %v8883 = vpack.c.b16 %v8539, %v8531
          %v8884 = vpack.c.b16 %v8540, %v8532
          %v8885 = vpack.c.b16 %v8541, %v8533
          %v8886 = vpack.c.b16 %v8542, %v8534
          %v8887 = vpack.c.b16 %v8543, %v8535
          %v8888 = vpack.c.b16 %v8544, %v8536
          %v8889 = vpack.c.b16 %v8553, %v8545
          %v8890 = vpack.c.b16 %v8554, %v8546
          %v8891 = vpack.c.b16 %v8555, %v8547
          %v8892 = vpack.c.b16 %v8556, %v8548
          %v8893 = vpack.c.b16 %v8557, %v8549
          %v8894 = vpack.c.b16 %v8558, %v8550
          %v8895 = vpack.c.b16 %v8559, %v8551
          %v8896 = vpack.c.b16 %v8560, %v8552
          %v8897 = vpack.c.b16 %v8569, %v8561
          %v8898 = vpack.c.b16 %v8570, %v8562
          %v8899 = vpack.c.b16 %v8571, %v8563
          %v8900 = vpack.c.b16 %v8572, %v8564
          %v8901 = vpack.c.b16 %v8573, %v8565
          %v8902 = vpack.c.b16 %v8574, %v8566
          %v8903 = vpack.c.b16 %v8575, %v8567
          %v8904 = vpack.c.b16 %v8576, %v8568
          %v8905 = vpack.c.b16 %v8585, %v8577
          %v8906 = vpack.c.b16 %v8586, %v8578
          %v8907 = vpack.c.b16 %v8587, %v8579
          %v8908 = vpack.c.b16 %v8588, %v8580
          %v8909 = vpack.c.b16 %v8589, %v8581
          %v8910 = vpack.c.b16 %v8590, %v8582
          %v8911 = vpack.c.b16 %v8591, %v8583
          %v8912 = vpack.c.b16 %v8592, %v8584
          %v8913 = vpack.c.b16 %v8601, %v8593
          %v8914 = vpack.c.b16 %v8602, %v8594
          %v8915 = vpack.c.b16 %v8603, %v8595
          %v8916 = vpack.c.b16 %v8604, %v8596
          %v8917 = vpack.c.b16 %v8605, %v8597
          %v8918 = vpack.c.b16 %v8606, %v8598
          %v8919 = vpack.c.b16 %v8607, %v8599
          %v8920 = vpack.c.b16 %v8608, %v8600
          %v8921 = vpack.c.b16 %v8617, %v8609
          %v8922 = vpack.c.b16 %v8618, %v8610
          %v8923 = vpack.c.b16 %v8619, %v8611
          %v8924 = vpack.c.b16 %v8620, %v8612
          %v8925 = vpack.c.b16 %v8621, %v8613
          %v8926 = vpack.c.b16 %v8622, %v8614
          %v8927 = vpack.c.b16 %v8623, %v8615
          %v8928 = vpack.c.b16 %v8624, %v8616
          %v8929 = vpack.c.b16 %v8633, %v8625
          %v8930 = vpack.c.b16 %v8634, %v8626
          %v8931 = vpack.c.b16 %v8635, %v8627
          %v8932 = vpack.c.b16 %v8636, %v8628
          %v8933 = vpack.c.b16 %v8637, %v8629
          %v8934 = vpack.c.b16 %v8638, %v8630
          %v8935 = vpack.c.b16 %v8639, %v8631
          %v8936 = vpack.c.b16 %v8640, %v8632
          %v8937 = vpack.c.b16 %v8649, %v8641
          %v8938 = vpack.c.b16 %v8650, %v8642
          %v8939 = vpack.c.b16 %v8651, %v8643
          %v8940 = vpack.c.b16 %v8652, %v8644
          %v8941 = vpack.c.b16 %v8653, %v8645
          %v8942 = vpack.c.b16 %v8654, %v8646
          %v8943 = vpack.c.b16 %v8655, %v8647
          %v8944 = vpack.c.b16 %v8656, %v8648
          %v8945 = vpack.c.b16 %v8665, %v8657
          %v8946 = vpack.c.b16 %v8666, %v8658
          %v8947 = vpack.c.b16 %v8667, %v8659
          %v8948 = vpack.c.b16 %v8668, %v8660
          %v8949 = vpack.c.b16 %v8669, %v8661
          %v8950 = vpack.c.b16 %v8670, %v8662
          %v8951 = vpack.c.b16 %v8671, %v8663
          %v8952 = vpack.c.b16 %v8672, %v8664
          %v8953 = vpack.c.b16 %v8681, %v8673
          %v8954 = vpack.c.b16 %v8682, %v8674
          %v8955 = vpack.c.b16 %v8683, %v8675
          %v8956 = vpack.c.b16 %v8684, %v8676
          %v8957 = vpack.c.b16 %v8685, %v8677
          %v8958 = vpack.c.b16 %v8686, %v8678
          %v8959 = vpack.c.b16 %v8687, %v8679
          %v8960 = vpack.c.b16 %v8688, %v8680
          %v8961 = vpack.c.b16 %v8697, %v8689
          %v8962 = vpack.c.b16 %v8698, %v8690
          %v8963 = vpack.c.b16 %v8699, %v8691
          %v8964 = vpack.c.b16 %v8700, %v8692
          %v8965 = vpack.c.b16 %v8701, %v8693
          %v8966 = vpack.c.b16 %v8702, %v8694
          %v8967 = vpack.c.b16 %v8703, %v8695
          %v8968 = vpack.c.b16 %v8704, %v8696
          %v8969 = vpack.c.b16 %v8713, %v8705
          %v8970 = vpack.c.b16 %v8714, %v8706
          %v8971 = vpack.c.b16 %v8715, %v8707
          %v8972 = vpack.c.b16 %v8716, %v8708
          %v8973 = vpack.c.b16 %v8717, %v8709
          %v8974 = vpack.c.b16 %v8718, %v8710
          %v8975 = vpack.c.b16 %v8719, %v8711
          %v8976 = vpack.c.b16 %v8720, %v8712
          %9233 = vst [vmem:[#allocation2] sm:$0xff] %v8721
          %9234 = vst [vmem:[#allocation2 + $0x8] sm:$0xff] %v8722
          %9235 = vst [vmem:[#allocation2 + $0x10] sm:$0xff] %v8723
          %9236 = vst [vmem:[#allocation2 + $0x18] sm:$0xff] %v8724
          %9237 = vst [vmem:[#allocation2 + $0x20] sm:$0xff] %v8725
          %9238 = vst [vmem:[#allocation2 + $0x28] sm:$0xff] %v8726
          %9239 = vst [vmem:[#allocation2 + $0x30] sm:$0xff] %v8727
          %9240 = vst [vmem:[#allocation2 + $0x38] sm:$0xff] %v8728
          %9241 = vst [vmem:[#allocation2 + $0x40] sm:$0xff] %v8729
          %9242 = vst [vmem:[#allocation2 + $0x48] sm:$0xff] %v8730
          %9243 = vst [vmem:[#allocation2 + $0x50] sm:$0xff] %v8731
          %9244 = vst [vmem:[#allocation2 + $0x58] sm:$0xff] %v8732
          %9245 = vst [vmem:[#allocation2 + $0x60] sm:$0xff] %v8733
          %9246 = vst [vmem:[#allocation2 + $0x68] sm:$0xff] %v8734
          %9247 = vst [vmem:[#allocation2 + $0x70] sm:$0xff] %v8735
          %9248 = vst [vmem:[#allocation2 + $0x78] sm:$0xff] %v8736
          %9249 = vst [vmem:[#allocation2 + $0x80] sm:$0xff] %v8737
          %9250 = vst [vmem:[#allocation2 + $0x88] sm:$0xff] %v8738
          %9251 = vst [vmem:[#allocation2 + $0x90] sm:$0xff] %v8739
          %9252 = vst [vmem:[#allocation2 + $0x98] sm:$0xff] %v8740
          %9253 = vst [vmem:[#allocation2 + $0xa0] sm:$0xff] %v8741
          %9254 = vst [vmem:[#allocation2 + $0xa8] sm:$0xff] %v8742
          %9255 = vst [vmem:[#allocation2 + $0xb0] sm:$0xff] %v8743
          %9256 = vst [vmem:[#allocation2 + $0xb8] sm:$0xff] %v8744
          %9257 = vst [vmem:[#allocation2 + $0xc0] sm:$0xff] %v8745
          %9258 = vst [vmem:[#allocation2 + $0xc8] sm:$0xff] %v8746
          %9259 = vst [vmem:[#allocation2 + $0xd0] sm:$0xff] %v8747
          %9260 = vst [vmem:[#allocation2 + $0xd8] sm:$0xff] %v8748
          %9261 = vst [vmem:[#allocation2 + $0xe0] sm:$0xff] %v8749
          %9262 = vst [vmem:[#allocation2 + $0xe8] sm:$0xff] %v8750
          %9263 = vst [vmem:[#allocation2 + $0xf0] sm:$0xff] %v8751
          %9264 = vst [vmem:[#allocation2 + $0xf8] sm:$0xff] %v8752
          %9265 = vst [vmem:[#allocation2 + $0x100] sm:$0xff] %v8753
          %9266 = vst [vmem:[#allocation2 + $0x108] sm:$0xff] %v8754
          %9267 = vst [vmem:[#allocation2 + $0x110] sm:$0xff] %v8755
          %9268 = vst [vmem:[#allocation2 + $0x118] sm:$0xff] %v8756
          %9269 = vst [vmem:[#allocation2 + $0x120] sm:$0xff] %v8757
          %9270 = vst [vmem:[#allocation2 + $0x128] sm:$0xff] %v8758
          %9271 = vst [vmem:[#allocation2 + $0x130] sm:$0xff] %v8759
          %9272 = vst [vmem:[#allocation2 + $0x138] sm:$0xff] %v8760
          %9273 = vst [vmem:[#allocation2 + $0x140] sm:$0xff] %v8761
          %9274 = vst [vmem:[#allocation2 + $0x148] sm:$0xff] %v8762
          %9275 = vst [vmem:[#allocation2 + $0x150] sm:$0xff] %v8763
          %9276 = vst [vmem:[#allocation2 + $0x158] sm:$0xff] %v8764
          %9277 = vst [vmem:[#allocation2 + $0x160] sm:$0xff] %v8765
          %9278 = vst [vmem:[#allocation2 + $0x168] sm:$0xff] %v8766
          %9279 = vst [vmem:[#allocation2 + $0x170] sm:$0xff] %v8767
          %9280 = vst [vmem:[#allocation2 + $0x178] sm:$0xff] %v8768
          %9281 = vst [vmem:[#allocation2 + $0x180] sm:$0xff] %v8769
          %9282 = vst [vmem:[#allocation2 + $0x188] sm:$0xff] %v8770
          %9283 = vst [vmem:[#allocation2 + $0x190] sm:$0xff] %v8771
          %9284 = vst [vmem:[#allocation2 + $0x198] sm:$0xff] %v8772
          %9285 = vst [vmem:[#allocation2 + $0x1a0] sm:$0xff] %v8773
          %9286 = vst [vmem:[#allocation2 + $0x1a8] sm:$0xff] %v8774
          %9287 = vst [vmem:[#allocation2 + $0x1b0] sm:$0xff] %v8775
          %9288 = vst [vmem:[#allocation2 + $0x1b8] sm:$0xff] %v8776
          %9289 = vst [vmem:[#allocation2 + $0x1c0] sm:$0xff] %v8777
          %9290 = vst [vmem:[#allocation2 + $0x1c8] sm:$0xff] %v8778
          %9291 = vst [vmem:[#allocation2 + $0x1d0] sm:$0xff] %v8779
          %9292 = vst [vmem:[#allocation2 + $0x1d8] sm:$0xff] %v8780
          %9293 = vst [vmem:[#allocation2 + $0x1e0] sm:$0xff] %v8781
          %9294 = vst [vmem:[#allocation2 + $0x1e8] sm:$0xff] %v8782
          %9295 = vst [vmem:[#allocation2 + $0x1f0] sm:$0xff] %v8783
          %9296 = vst [vmem:[#allocation2 + $0x1f8] sm:$0xff] %v8784
          %9297 = vst [vmem:[#allocation2 + $0x200] sm:$0xff] %v8785
          %9298 = vst [vmem:[#allocation2 + $0x208] sm:$0xff] %v8786
          %9299 = vst [vmem:[#allocation2 + $0x210] sm:$0xff] %v8787
          %9300 = vst [vmem:[#allocation2 + $0x218] sm:$0xff] %v8788
          %9301 = vst [vmem:[#allocation2 + $0x220] sm:$0xff] %v8789
          %9302 = vst [vmem:[#allocation2 + $0x228] sm:$0xff] %v8790
          %9303 = vst [vmem:[#allocation2 + $0x230] sm:$0xff] %v8791
          %9304 = vst [vmem:[#allocation2 + $0x238] sm:$0xff] %v8792
          %9305 = vst [vmem:[#allocation2 + $0x240] sm:$0xff] %v8793
          %9306 = vst [vmem:[#allocation2 + $0x248] sm:$0xff] %v8794
          %9307 = vst [vmem:[#allocation2 + $0x250] sm:$0xff] %v8795
          %9308 = vst [vmem:[#allocation2 + $0x258] sm:$0xff] %v8796
          %9309 = vst [vmem:[#allocation2 + $0x260] sm:$0xff] %v8797
          %9310 = vst [vmem:[#allocation2 + $0x268] sm:$0xff] %v8798
          %9311 = vst [vmem:[#allocation2 + $0x270] sm:$0xff] %v8799
          %9312 = vst [vmem:[#allocation2 + $0x278] sm:$0xff] %v8800
          %9313 = vst [vmem:[#allocation2 + $0x280] sm:$0xff] %v8801
          %9314 = vst [vmem:[#allocation2 + $0x288] sm:$0xff] %v8802
          %9315 = vst [vmem:[#allocation2 + $0x290] sm:$0xff] %v8803
          %9316 = vst [vmem:[#allocation2 + $0x298] sm:$0xff] %v8804
          %9317 = vst [vmem:[#allocation2 + $0x2a0] sm:$0xff] %v8805
          %9318 = vst [vmem:[#allocation2 + $0x2a8] sm:$0xff] %v8806
          %9319 = vst [vmem:[#allocation2 + $0x2b0] sm:$0xff] %v8807
          %9320 = vst [vmem:[#allocation2 + $0x2b8] sm:$0xff] %v8808
          %9321 = vst [vmem:[#allocation2 + $0x2c0] sm:$0xff] %v8809
          %9322 = vst [vmem:[#allocation2 + $0x2c8] sm:$0xff] %v8810
          %9323 = vst [vmem:[#allocation2 + $0x2d0] sm:$0xff] %v8811
          %9324 = vst [vmem:[#allocation2 + $0x2d8] sm:$0xff] %v8812
          %9325 = vst [vmem:[#allocation2 + $0x2e0] sm:$0xff] %v8813
          %9326 = vst [vmem:[#allocation2 + $0x2e8] sm:$0xff] %v8814
          %9327 = vst [vmem:[#allocation2 + $0x2f0] sm:$0xff] %v8815
          %9328 = vst [vmem:[#allocation2 + $0x2f8] sm:$0xff] %v8816
          %9329 = vst [vmem:[#allocation2 + $0x300] sm:$0xff] %v8817
          %9330 = vst [vmem:[#allocation2 + $0x308] sm:$0xff] %v8818
          %9331 = vst [vmem:[#allocation2 + $0x310] sm:$0xff] %v8819
          %9332 = vst [vmem:[#allocation2 + $0x318] sm:$0xff] %v8820
          %9333 = vst [vmem:[#allocation2 + $0x320] sm:$0xff] %v8821
          %9334 = vst [vmem:[#allocation2 + $0x328] sm:$0xff] %v8822
          %9335 = vst [vmem:[#allocation2 + $0x330] sm:$0xff] %v8823
          %9336 = vst [vmem:[#allocation2 + $0x338] sm:$0xff] %v8824
          %9337 = vst [vmem:[#allocation2 + $0x340] sm:$0xff] %v8825
          %9338 = vst [vmem:[#allocation2 + $0x348] sm:$0xff] %v8826
          %9339 = vst [vmem:[#allocation2 + $0x350] sm:$0xff] %v8827
          %9340 = vst [vmem:[#allocation2 + $0x358] sm:$0xff] %v8828
          %9341 = vst [vmem:[#allocation2 + $0x360] sm:$0xff] %v8829
          %9342 = vst [vmem:[#allocation2 + $0x368] sm:$0xff] %v8830
          %9343 = vst [vmem:[#allocation2 + $0x370] sm:$0xff] %v8831
          %9344 = vst [vmem:[#allocation2 + $0x378] sm:$0xff] %v8832
          %9345 = vst [vmem:[#allocation2 + $0x380] sm:$0xff] %v8833
          %9346 = vst [vmem:[#allocation2 + $0x388] sm:$0xff] %v8834
          %9347 = vst [vmem:[#allocation2 + $0x390] sm:$0xff] %v8835
          %9348 = vst [vmem:[#allocation2 + $0x398] sm:$0xff] %v8836
          %9349 = vst [vmem:[#allocation2 + $0x3a0] sm:$0xff] %v8837
          %9350 = vst [vmem:[#allocation2 + $0x3a8] sm:$0xff] %v8838
          %9351 = vst [vmem:[#allocation2 + $0x3b0] sm:$0xff] %v8839
          %9352 = vst [vmem:[#allocation2 + $0x3b8] sm:$0xff] %v8840
          %9353 = vst [vmem:[#allocation2 + $0x3c0] sm:$0xff] %v8841
          %9354 = vst [vmem:[#allocation2 + $0x3c8] sm:$0xff] %v8842
          %9355 = vst [vmem:[#allocation2 + $0x3d0] sm:$0xff] %v8843
          %9356 = vst [vmem:[#allocation2 + $0x3d8] sm:$0xff] %v8844
          %9357 = vst [vmem:[#allocation2 + $0x3e0] sm:$0xff] %v8845
          %9358 = vst [vmem:[#allocation2 + $0x3e8] sm:$0xff] %v8846
          %9359 = vst [vmem:[#allocation2 + $0x3f0] sm:$0xff] %v8847
          %9360 = vst [vmem:[#allocation2 + $0x3f8] sm:$0xff] %v8848
          %9361 = vst [vmem:[#allocation2 + $0x400] sm:$0xff] %v8849
          %9362 = vst [vmem:[#allocation2 + $0x408] sm:$0xff] %v8850
          %9363 = vst [vmem:[#allocation2 + $0x410] sm:$0xff] %v8851
          %9364 = vst [vmem:[#allocation2 + $0x418] sm:$0xff] %v8852
          %9365 = vst [vmem:[#allocation2 + $0x420] sm:$0xff] %v8853
          %9366 = vst [vmem:[#allocation2 + $0x428] sm:$0xff] %v8854
          %9367 = vst [vmem:[#allocation2 + $0x430] sm:$0xff] %v8855
          %9368 = vst [vmem:[#allocation2 + $0x438] sm:$0xff] %v8856
          %9369 = vst [vmem:[#allocation2 + $0x440] sm:$0xff] %v8857
          %9370 = vst [vmem:[#allocation2 + $0x448] sm:$0xff] %v8858
          %9371 = vst [vmem:[#allocation2 + $0x450] sm:$0xff] %v8859
          %9372 = vst [vmem:[#allocation2 + $0x458] sm:$0xff] %v8860
          %9373 = vst [vmem:[#allocation2 + $0x460] sm:$0xff] %v8861
          %9374 = vst [vmem:[#allocation2 + $0x468] sm:$0xff] %v8862
          %9375 = vst [vmem:[#allocation2 + $0x470] sm:$0xff] %v8863
          %9376 = vst [vmem:[#allocation2 + $0x478] sm:$0xff] %v8864
          %9377 = vst [vmem:[#allocation2 + $0x480] sm:$0xff] %v8865
          %9378 = vst [vmem:[#allocation2 + $0x488] sm:$0xff] %v8866
          %9379 = vst [vmem:[#allocation2 + $0x490] sm:$0xff] %v8867
          %9380 = vst [vmem:[#allocation2 + $0x498] sm:$0xff] %v8868
          %9381 = vst [vmem:[#allocation2 + $0x4a0] sm:$0xff] %v8869
          %9382 = vst [vmem:[#allocation2 + $0x4a8] sm:$0xff] %v8870
          %9383 = vst [vmem:[#allocation2 + $0x4b0] sm:$0xff] %v8871
          %9384 = vst [vmem:[#allocation2 + $0x4b8] sm:$0xff] %v8872
          %9385 = vst [vmem:[#allocation2 + $0x4c0] sm:$0xff] %v8873
          %9386 = vst [vmem:[#allocation2 + $0x4c8] sm:$0xff] %v8874
          %9387 = vst [vmem:[#allocation2 + $0x4d0] sm:$0xff] %v8875
          %9388 = vst [vmem:[#allocation2 + $0x4d8] sm:$0xff] %v8876
          %9389 = vst [vmem:[#allocation2 + $0x4e0] sm:$0xff] %v8877
          %9390 = vst [vmem:[#allocation2 + $0x4e8] sm:$0xff] %v8878
          %9391 = vst [vmem:[#allocation2 + $0x4f0] sm:$0xff] %v8879
          %9392 = vst [vmem:[#allocation2 + $0x4f8] sm:$0xff] %v8880
          %9393 = vst [vmem:[#allocation2 + $0x500] sm:$0xff] %v8881
          %9394 = vst [vmem:[#allocation2 + $0x508] sm:$0xff] %v8882
          %9395 = vst [vmem:[#allocation2 + $0x510] sm:$0xff] %v8883
          %9396 = vst [vmem:[#allocation2 + $0x518] sm:$0xff] %v8884
          %9397 = vst [vmem:[#allocation2 + $0x520] sm:$0xff] %v8885
          %9398 = vst [vmem:[#allocation2 + $0x528] sm:$0xff] %v8886
          %9399 = vst [vmem:[#allocation2 + $0x530] sm:$0xff] %v8887
          %9400 = vst [vmem:[#allocation2 + $0x538] sm:$0xff] %v8888
          %9401 = vst [vmem:[#allocation2 + $0x540] sm:$0xff] %v8889
          %9402 = vst [vmem:[#allocation2 + $0x548] sm:$0xff] %v8890
          %9403 = vst [vmem:[#allocation2 + $0x550] sm:$0xff] %v8891
          %9404 = vst [vmem:[#allocation2 + $0x558] sm:$0xff] %v8892
          %9405 = vst [vmem:[#allocation2 + $0x560] sm:$0xff] %v8893
          %9406 = vst [vmem:[#allocation2 + $0x568] sm:$0xff] %v8894
          %9407 = vst [vmem:[#allocation2 + $0x570] sm:$0xff] %v8895
          %9408 = vst [vmem:[#allocation2 + $0x578] sm:$0xff] %v8896
          %9409 = vst [vmem:[#allocation2 + $0x580] sm:$0xff] %v8897
          %9410 = vst [vmem:[#allocation2 + $0x588] sm:$0xff] %v8898
          %9411 = vst [vmem:[#allocation2 + $0x590] sm:$0xff] %v8899
          %9412 = vst [vmem:[#allocation2 + $0x598] sm:$0xff] %v8900
          %9413 = vst [vmem:[#allocation2 + $0x5a0] sm:$0xff] %v8901
          %9414 = vst [vmem:[#allocation2 + $0x5a8] sm:$0xff] %v8902
          %9415 = vst [vmem:[#allocation2 + $0x5b0] sm:$0xff] %v8903
          %9416 = vst [vmem:[#allocation2 + $0x5b8] sm:$0xff] %v8904
          %9417 = vst [vmem:[#allocation2 + $0x5c0] sm:$0xff] %v8905
          %9418 = vst [vmem:[#allocation2 + $0x5c8] sm:$0xff] %v8906
          %9419 = vst [vmem:[#allocation2 + $0x5d0] sm:$0xff] %v8907
          %9420 = vst [vmem:[#allocation2 + $0x5d8] sm:$0xff] %v8908
          %9421 = vst [vmem:[#allocation2 + $0x5e0] sm:$0xff] %v8909
          %9422 = vst [vmem:[#allocation2 + $0x5e8] sm:$0xff] %v8910
          %9423 = vst [vmem:[#allocation2 + $0x5f0] sm:$0xff] %v8911
          %9424 = vst [vmem:[#allocation2 + $0x5f8] sm:$0xff] %v8912
          %9425 = vst [vmem:[#allocation2 + $0x600] sm:$0xff] %v8913
          %9426 = vst [vmem:[#allocation2 + $0x608] sm:$0xff] %v8914
          %9427 = vst [vmem:[#allocation2 + $0x610] sm:$0xff] %v8915
          %9428 = vst [vmem:[#allocation2 + $0x618] sm:$0xff] %v8916
          %9429 = vst [vmem:[#allocation2 + $0x620] sm:$0xff] %v8917
          %9430 = vst [vmem:[#allocation2 + $0x628] sm:$0xff] %v8918
          %9431 = vst [vmem:[#allocation2 + $0x630] sm:$0xff] %v8919
          %9432 = vst [vmem:[#allocation2 + $0x638] sm:$0xff] %v8920
          %9433 = vst [vmem:[#allocation2 + $0x640] sm:$0xff] %v8921
          %9434 = vst [vmem:[#allocation2 + $0x648] sm:$0xff] %v8922
          %9435 = vst [vmem:[#allocation2 + $0x650] sm:$0xff] %v8923
          %9436 = vst [vmem:[#allocation2 + $0x658] sm:$0xff] %v8924
          %9437 = vst [vmem:[#allocation2 + $0x660] sm:$0xff] %v8925
          %9438 = vst [vmem:[#allocation2 + $0x668] sm:$0xff] %v8926
          %9439 = vst [vmem:[#allocation2 + $0x670] sm:$0xff] %v8927
          %9440 = vst [vmem:[#allocation2 + $0x678] sm:$0xff] %v8928
          %9441 = vst [vmem:[#allocation2 + $0x680] sm:$0xff] %v8929
          %9442 = vst [vmem:[#allocation2 + $0x688] sm:$0xff] %v8930
          %9443 = vst [vmem:[#allocation2 + $0x690] sm:$0xff] %v8931
          %9444 = vst [vmem:[#allocation2 + $0x698] sm:$0xff] %v8932
          %9445 = vst [vmem:[#allocation2 + $0x6a0] sm:$0xff] %v8933
          %9446 = vst [vmem:[#allocation2 + $0x6a8] sm:$0xff] %v8934
          %9447 = vst [vmem:[#allocation2 + $0x6b0] sm:$0xff] %v8935
          %9448 = vst [vmem:[#allocation2 + $0x6b8] sm:$0xff] %v8936
          %9449 = vst [vmem:[#allocation2 + $0x6c0] sm:$0xff] %v8937
          %9450 = vst [vmem:[#allocation2 + $0x6c8] sm:$0xff] %v8938
          %9451 = vst [vmem:[#allocation2 + $0x6d0] sm:$0xff] %v8939
          %9452 = vst [vmem:[#allocation2 + $0x6d8] sm:$0xff] %v8940
          %9453 = vst [vmem:[#allocation2 + $0x6e0] sm:$0xff] %v8941
          %9454 = vst [vmem:[#allocation2 + $0x6e8] sm:$0xff] %v8942
          %9455 = vst [vmem:[#allocation2 + $0x6f0] sm:$0xff] %v8943
          %9456 = vst [vmem:[#allocation2 + $0x6f8] sm:$0xff] %v8944
          %9457 = vst [vmem:[#allocation2 + $0x700] sm:$0xff] %v8945
          %9458 = vst [vmem:[#allocation2 + $0x708] sm:$0xff] %v8946
          %9459 = vst [vmem:[#allocation2 + $0x710] sm:$0xff] %v8947
          %9460 = vst [vmem:[#allocation2 + $0x718] sm:$0xff] %v8948
          %9461 = vst [vmem:[#allocation2 + $0x720] sm:$0xff] %v8949
          %9462 = vst [vmem:[#allocation2 + $0x728] sm:$0xff] %v8950
          %9463 = vst [vmem:[#allocation2 + $0x730] sm:$0xff] %v8951
          %9464 = vst [vmem:[#allocation2 + $0x738] sm:$0xff] %v8952
          %9465 = vst [vmem:[#allocation2 + $0x740] sm:$0xff] %v8953
          %9466 = vst [vmem:[#allocation2 + $0x748] sm:$0xff] %v8954
          %9467 = vst [vmem:[#allocation2 + $0x750] sm:$0xff] %v8955
          %9468 = vst [vmem:[#allocation2 + $0x758] sm:$0xff] %v8956
          %9469 = vst [vmem:[#allocation2 + $0x760] sm:$0xff] %v8957
          %9470 = vst [vmem:[#allocation2 + $0x768] sm:$0xff] %v8958
          %9471 = vst [vmem:[#allocation2 + $0x770] sm:$0xff] %v8959
          %9472 = vst [vmem:[#allocation2 + $0x778] sm:$0xff] %v8960
          %9473 = vst [vmem:[#allocation2 + $0x780] sm:$0xff] %v8961
          %9474 = vst [vmem:[#allocation2 + $0x788] sm:$0xff] %v8962
          %9475 = vst [vmem:[#allocation2 + $0x790] sm:$0xff] %v8963
          %9476 = vst [vmem:[#allocation2 + $0x798] sm:$0xff] %v8964
          %9477 = vst [vmem:[#allocation2 + $0x7a0] sm:$0xff] %v8965
          %9478 = vst [vmem:[#allocation2 + $0x7a8] sm:$0xff] %v8966
          %9479 = vst [vmem:[#allocation2 + $0x7b0] sm:$0xff] %v8967
          %9480 = vst [vmem:[#allocation2 + $0x7b8] sm:$0xff] %v8968
          %9481 = vst [vmem:[#allocation2 + $0x7c0] sm:$0xff] %v8969
          %9482 = vst [vmem:[#allocation2 + $0x7c8] sm:$0xff] %v8970
          %9483 = vst [vmem:[#allocation2 + $0x7d0] sm:$0xff] %v8971
          %9484 = vst [vmem:[#allocation2 + $0x7d8] sm:$0xff] %v8972
          %9485 = vst [vmem:[#allocation2 + $0x7e0] sm:$0xff] %v8973
          %9486 = vst [vmem:[#allocation2 + $0x7e8] sm:$0xff] %v8974
          %9487 = vst [vmem:[#allocation2 + $0x7f0] sm:$0xff] %v8975
          %9488 = vst [vmem:[#allocation2 + $0x7f8] sm:$0xff] %v8976
        $region40: #{joiner_forward.1} parent=35 // pred_fallthru
          _
        %v9489 = vld [vmem:[#allocation2] sm:$0xff]
        %v9490 = vld [vmem:[#allocation2 + $0x8] sm:$0xff]
        %v9491 = vld [vmem:[#allocation2 + $0x10] sm:$0xff]
        %v9492 = vld [vmem:[#allocation2 + $0x18] sm:$0xff]
        %v9493 = vld [vmem:[#allocation2 + $0x20] sm:$0xff]
        %v9494 = vld [vmem:[#allocation2 + $0x28] sm:$0xff]
        %v9495 = vld [vmem:[#allocation2 + $0x30] sm:$0xff]
        %v9496 = vld [vmem:[#allocation2 + $0x38] sm:$0xff]
        %v9497 = vld [vmem:[#allocation2 + $0x40] sm:$0xff]
        %v9498 = vld [vmem:[#allocation2 + $0x48] sm:$0xff]
        %v9499 = vld [vmem:[#allocation2 + $0x50] sm:$0xff]
        %v9500 = vld [vmem:[#allocation2 + $0x58] sm:$0xff]
        %v9501 = vld [vmem:[#allocation2 + $0x60] sm:$0xff]
        %v9502 = vld [vmem:[#allocation2 + $0x68] sm:$0xff]
        %v9503 = vld [vmem:[#allocation2 + $0x70] sm:$0xff]
        %v9504 = vld [vmem:[#allocation2 + $0x78] sm:$0xff]
        %v9505 = vld [vmem:[#allocation2 + $0x80] sm:$0xff]
        %v9506 = vld [vmem:[#allocation2 + $0x88] sm:$0xff]
        %v9507 = vld [vmem:[#allocation2 + $0x90] sm:$0xff]
        %v9508 = vld [vmem:[#allocation2 + $0x98] sm:$0xff]
        %v9509 = vld [vmem:[#allocation2 + $0xa0] sm:$0xff]
        %v9510 = vld [vmem:[#allocation2 + $0xa8] sm:$0xff]
        %v9511 = vld [vmem:[#allocation2 + $0xb0] sm:$0xff]
        %v9512 = vld [vmem:[#allocation2 + $0xb8] sm:$0xff]
        %v9513 = vld [vmem:[#allocation2 + $0xc0] sm:$0xff]
        %v9514 = vld [vmem:[#allocation2 + $0xc8] sm:$0xff]
        %v9515 = vld [vmem:[#allocation2 + $0xd0] sm:$0xff]
        %v9516 = vld [vmem:[#allocation2 + $0xd8] sm:$0xff]
        %v9517 = vld [vmem:[#allocation2 + $0xe0] sm:$0xff]
        %v9518 = vld [vmem:[#allocation2 + $0xe8] sm:$0xff]
        %v9519 = vld [vmem:[#allocation2 + $0xf0] sm:$0xff]
        %v9520 = vld [vmem:[#allocation2 + $0xf8] sm:$0xff]
        %v9521 = vld [vmem:[#allocation2 + $0x100] sm:$0xff]
        %v9522 = vld [vmem:[#allocation2 + $0x108] sm:$0xff]
        %v9523 = vld [vmem:[#allocation2 + $0x110] sm:$0xff]
        %v9524 = vld [vmem:[#allocation2 + $0x118] sm:$0xff]
        %v9525 = vld [vmem:[#allocation2 + $0x120] sm:$0xff]
        %v9526 = vld [vmem:[#allocation2 + $0x128] sm:$0xff]
        %v9527 = vld [vmem:[#allocation2 + $0x130] sm:$0xff]
        %v9528 = vld [vmem:[#allocation2 + $0x138] sm:$0xff]
        %v9529 = vld [vmem:[#allocation2 + $0x140] sm:$0xff]
        %v9530 = vld [vmem:[#allocation2 + $0x148] sm:$0xff]
        %v9531 = vld [vmem:[#allocation2 + $0x150] sm:$0xff]
        %v9532 = vld [vmem:[#allocation2 + $0x158] sm:$0xff]
        %v9533 = vld [vmem:[#allocation2 + $0x160] sm:$0xff]
        %v9534 = vld [vmem:[#allocation2 + $0x168] sm:$0xff]
        %v9535 = vld [vmem:[#allocation2 + $0x170] sm:$0xff]
        %v9536 = vld [vmem:[#allocation2 + $0x178] sm:$0xff]
        %v9537 = vld [vmem:[#allocation2 + $0x180] sm:$0xff]
        %v9538 = vld [vmem:[#allocation2 + $0x188] sm:$0xff]
        %v9539 = vld [vmem:[#allocation2 + $0x190] sm:$0xff]
        %v9540 = vld [vmem:[#allocation2 + $0x198] sm:$0xff]
        %v9541 = vld [vmem:[#allocation2 + $0x1a0] sm:$0xff]
        %v9542 = vld [vmem:[#allocation2 + $0x1a8] sm:$0xff]
        %v9543 = vld [vmem:[#allocation2 + $0x1b0] sm:$0xff]
        %v9544 = vld [vmem:[#allocation2 + $0x1b8] sm:$0xff]
        %v9545 = vld [vmem:[#allocation2 + $0x1c0] sm:$0xff]
        %v9546 = vld [vmem:[#allocation2 + $0x1c8] sm:$0xff]
        %v9547 = vld [vmem:[#allocation2 + $0x1d0] sm:$0xff]
        %v9548 = vld [vmem:[#allocation2 + $0x1d8] sm:$0xff]
        %v9549 = vld [vmem:[#allocation2 + $0x1e0] sm:$0xff]
        %v9550 = vld [vmem:[#allocation2 + $0x1e8] sm:$0xff]
        %v9551 = vld [vmem:[#allocation2 + $0x1f0] sm:$0xff]
        %v9552 = vld [vmem:[#allocation2 + $0x1f8] sm:$0xff]
        %v9553 = vld [vmem:[#allocation2 + $0x200] sm:$0xff]
        %v9554 = vld [vmem:[#allocation2 + $0x208] sm:$0xff]
        %v9555 = vld [vmem:[#allocation2 + $0x210] sm:$0xff]
        %v9556 = vld [vmem:[#allocation2 + $0x218] sm:$0xff]
        %v9557 = vld [vmem:[#allocation2 + $0x220] sm:$0xff]
        %v9558 = vld [vmem:[#allocation2 + $0x228] sm:$0xff]
        %v9559 = vld [vmem:[#allocation2 + $0x230] sm:$0xff]
        %v9560 = vld [vmem:[#allocation2 + $0x238] sm:$0xff]
        %v9561 = vld [vmem:[#allocation2 + $0x240] sm:$0xff]
        %v9562 = vld [vmem:[#allocation2 + $0x248] sm:$0xff]
        %v9563 = vld [vmem:[#allocation2 + $0x250] sm:$0xff]
        %v9564 = vld [vmem:[#allocation2 + $0x258] sm:$0xff]
        %v9565 = vld [vmem:[#allocation2 + $0x260] sm:$0xff]
        %v9566 = vld [vmem:[#allocation2 + $0x268] sm:$0xff]
        %v9567 = vld [vmem:[#allocation2 + $0x270] sm:$0xff]
        %v9568 = vld [vmem:[#allocation2 + $0x278] sm:$0xff]
        %v9569 = vld [vmem:[#allocation2 + $0x280] sm:$0xff]
        %v9570 = vld [vmem:[#allocation2 + $0x288] sm:$0xff]
        %v9571 = vld [vmem:[#allocation2 + $0x290] sm:$0xff]
        %v9572 = vld [vmem:[#allocation2 + $0x298] sm:$0xff]
        %v9573 = vld [vmem:[#allocation2 + $0x2a0] sm:$0xff]
        %v9574 = vld [vmem:[#allocation2 + $0x2a8] sm:$0xff]
        %v9575 = vld [vmem:[#allocation2 + $0x2b0] sm:$0xff]
        %v9576 = vld [vmem:[#allocation2 + $0x2b8] sm:$0xff]
        %v9577 = vld [vmem:[#allocation2 + $0x2c0] sm:$0xff]
        %v9578 = vld [vmem:[#allocation2 + $0x2c8] sm:$0xff]
        %v9579 = vld [vmem:[#allocation2 + $0x2d0] sm:$0xff]
        %v9580 = vld [vmem:[#allocation2 + $0x2d8] sm:$0xff]
        %v9581 = vld [vmem:[#allocation2 + $0x2e0] sm:$0xff]
        %v9582 = vld [vmem:[#allocation2 + $0x2e8] sm:$0xff]
        %v9583 = vld [vmem:[#allocation2 + $0x2f0] sm:$0xff]
        %v9584 = vld [vmem:[#allocation2 + $0x2f8] sm:$0xff]
        %v9585 = vld [vmem:[#allocation2 + $0x300] sm:$0xff]
        %v9586 = vld [vmem:[#allocation2 + $0x308] sm:$0xff]
        %v9587 = vld [vmem:[#allocation2 + $0x310] sm:$0xff]
        %v9588 = vld [vmem:[#allocation2 + $0x318] sm:$0xff]
        %v9589 = vld [vmem:[#allocation2 + $0x320] sm:$0xff]
        %v9590 = vld [vmem:[#allocation2 + $0x328] sm:$0xff]
        %v9591 = vld [vmem:[#allocation2 + $0x330] sm:$0xff]
        %v9592 = vld [vmem:[#allocation2 + $0x338] sm:$0xff]
        %v9593 = vld [vmem:[#allocation2 + $0x340] sm:$0xff]
        %v9594 = vld [vmem:[#allocation2 + $0x348] sm:$0xff]
        %v9595 = vld [vmem:[#allocation2 + $0x350] sm:$0xff]
        %v9596 = vld [vmem:[#allocation2 + $0x358] sm:$0xff]
        %v9597 = vld [vmem:[#allocation2 + $0x360] sm:$0xff]
        %v9598 = vld [vmem:[#allocation2 + $0x368] sm:$0xff]
        %v9599 = vld [vmem:[#allocation2 + $0x370] sm:$0xff]
        %v9600 = vld [vmem:[#allocation2 + $0x378] sm:$0xff]
        %v9601 = vld [vmem:[#allocation2 + $0x380] sm:$0xff]
        %v9602 = vld [vmem:[#allocation2 + $0x388] sm:$0xff]
        %v9603 = vld [vmem:[#allocation2 + $0x390] sm:$0xff]
        %v9604 = vld [vmem:[#allocation2 + $0x398] sm:$0xff]
        %v9605 = vld [vmem:[#allocation2 + $0x3a0] sm:$0xff]
        %v9606 = vld [vmem:[#allocation2 + $0x3a8] sm:$0xff]
        %v9607 = vld [vmem:[#allocation2 + $0x3b0] sm:$0xff]
        %v9608 = vld [vmem:[#allocation2 + $0x3b8] sm:$0xff]
        %v9609 = vld [vmem:[#allocation2 + $0x3c0] sm:$0xff]
        %v9610 = vld [vmem:[#allocation2 + $0x3c8] sm:$0xff]
        %v9611 = vld [vmem:[#allocation2 + $0x3d0] sm:$0xff]
        %v9612 = vld [vmem:[#allocation2 + $0x3d8] sm:$0xff]
        %v9613 = vld [vmem:[#allocation2 + $0x3e0] sm:$0xff]
        %v9614 = vld [vmem:[#allocation2 + $0x3e8] sm:$0xff]
        %v9615 = vld [vmem:[#allocation2 + $0x3f0] sm:$0xff]
        %v9616 = vld [vmem:[#allocation2 + $0x3f8] sm:$0xff]
        %v9617 = vld [vmem:[#allocation2 + $0x400] sm:$0xff]
        %v9618 = vld [vmem:[#allocation2 + $0x408] sm:$0xff]
        %v9619 = vld [vmem:[#allocation2 + $0x410] sm:$0xff]
        %v9620 = vld [vmem:[#allocation2 + $0x418] sm:$0xff]
        %v9621 = vld [vmem:[#allocation2 + $0x420] sm:$0xff]
        %v9622 = vld [vmem:[#allocation2 + $0x428] sm:$0xff]
        %v9623 = vld [vmem:[#allocation2 + $0x430] sm:$0xff]
        %v9624 = vld [vmem:[#allocation2 + $0x438] sm:$0xff]
        %v9625 = vld [vmem:[#allocation2 + $0x440] sm:$0xff]
        %v9626 = vld [vmem:[#allocation2 + $0x448] sm:$0xff]
        %v9627 = vld [vmem:[#allocation2 + $0x450] sm:$0xff]
        %v9628 = vld [vmem:[#allocation2 + $0x458] sm:$0xff]
        %v9629 = vld [vmem:[#allocation2 + $0x460] sm:$0xff]
        %v9630 = vld [vmem:[#allocation2 + $0x468] sm:$0xff]
        %v9631 = vld [vmem:[#allocation2 + $0x470] sm:$0xff]
        %v9632 = vld [vmem:[#allocation2 + $0x478] sm:$0xff]
        %v9633 = vld [vmem:[#allocation2 + $0x480] sm:$0xff]
        %v9634 = vld [vmem:[#allocation2 + $0x488] sm:$0xff]
        %v9635 = vld [vmem:[#allocation2 + $0x490] sm:$0xff]
        %v9636 = vld [vmem:[#allocation2 + $0x498] sm:$0xff]
        %v9637 = vld [vmem:[#allocation2 + $0x4a0] sm:$0xff]
        %v9638 = vld [vmem:[#allocation2 + $0x4a8] sm:$0xff]
        %v9639 = vld [vmem:[#allocation2 + $0x4b0] sm:$0xff]
        %v9640 = vld [vmem:[#allocation2 + $0x4b8] sm:$0xff]
        %v9641 = vld [vmem:[#allocation2 + $0x4c0] sm:$0xff]
        %v9642 = vld [vmem:[#allocation2 + $0x4c8] sm:$0xff]
        %v9643 = vld [vmem:[#allocation2 + $0x4d0] sm:$0xff]
        %v9644 = vld [vmem:[#allocation2 + $0x4d8] sm:$0xff]
        %v9645 = vld [vmem:[#allocation2 + $0x4e0] sm:$0xff]
        %v9646 = vld [vmem:[#allocation2 + $0x4e8] sm:$0xff]
        %v9647 = vld [vmem:[#allocation2 + $0x4f0] sm:$0xff]
        %v9648 = vld [vmem:[#allocation2 + $0x4f8] sm:$0xff]
        %v9649 = vld [vmem:[#allocation2 + $0x500] sm:$0xff]
        %v9650 = vld [vmem:[#allocation2 + $0x508] sm:$0xff]
        %v9651 = vld [vmem:[#allocation2 + $0x510] sm:$0xff]
        %v9652 = vld [vmem:[#allocation2 + $0x518] sm:$0xff]
        %v9653 = vld [vmem:[#allocation2 + $0x520] sm:$0xff]
        %v9654 = vld [vmem:[#allocation2 + $0x528] sm:$0xff]
        %v9655 = vld [vmem:[#allocation2 + $0x530] sm:$0xff]
        %v9656 = vld [vmem:[#allocation2 + $0x538] sm:$0xff]
        %v9657 = vld [vmem:[#allocation2 + $0x540] sm:$0xff]
        %v9658 = vld [vmem:[#allocation2 + $0x548] sm:$0xff]
        %v9659 = vld [vmem:[#allocation2 + $0x550] sm:$0xff]
        %v9660 = vld [vmem:[#allocation2 + $0x558] sm:$0xff]
        %v9661 = vld [vmem:[#allocation2 + $0x560] sm:$0xff]
        %v9662 = vld [vmem:[#allocation2 + $0x568] sm:$0xff]
        %v9663 = vld [vmem:[#allocation2 + $0x570] sm:$0xff]
        %v9664 = vld [vmem:[#allocation2 + $0x578] sm:$0xff]
        %v9665 = vld [vmem:[#allocation2 + $0x580] sm:$0xff]
        %v9666 = vld [vmem:[#allocation2 + $0x588] sm:$0xff]
        %v9667 = vld [vmem:[#allocation2 + $0x590] sm:$0xff]
        %v9668 = vld [vmem:[#allocation2 + $0x598] sm:$0xff]
        %v9669 = vld [vmem:[#allocation2 + $0x5a0] sm:$0xff]
        %v9670 = vld [vmem:[#allocation2 + $0x5a8] sm:$0xff]
        %v9671 = vld [vmem:[#allocation2 + $0x5b0] sm:$0xff]
        %v9672 = vld [vmem:[#allocation2 + $0x5b8] sm:$0xff]
        %v9673 = vld [vmem:[#allocation2 + $0x5c0] sm:$0xff]
        %v9674 = vld [vmem:[#allocation2 + $0x5c8] sm:$0xff]
        %v9675 = vld [vmem:[#allocation2 + $0x5d0] sm:$0xff]
        %v9676 = vld [vmem:[#allocation2 + $0x5d8] sm:$0xff]
        %v9677 = vld [vmem:[#allocation2 + $0x5e0] sm:$0xff]
        %v9678 = vld [vmem:[#allocation2 + $0x5e8] sm:$0xff]
        %v9679 = vld [vmem:[#allocation2 + $0x5f0] sm:$0xff]
        %v9680 = vld [vmem:[#allocation2 + $0x5f8] sm:$0xff]
        %v9681 = vld [vmem:[#allocation2 + $0x600] sm:$0xff]
        %v9682 = vld [vmem:[#allocation2 + $0x608] sm:$0xff]
        %v9683 = vld [vmem:[#allocation2 + $0x610] sm:$0xff]
        %v9684 = vld [vmem:[#allocation2 + $0x618] sm:$0xff]
        %v9685 = vld [vmem:[#allocation2 + $0x620] sm:$0xff]
        %v9686 = vld [vmem:[#allocation2 + $0x628] sm:$0xff]
        %v9687 = vld [vmem:[#allocation2 + $0x630] sm:$0xff]
        %v9688 = vld [vmem:[#allocation2 + $0x638] sm:$0xff]
        %v9689 = vld [vmem:[#allocation2 + $0x640] sm:$0xff]
        %v9690 = vld [vmem:[#allocation2 + $0x648] sm:$0xff]
        %v9691 = vld [vmem:[#allocation2 + $0x650] sm:$0xff]
        %v9692 = vld [vmem:[#allocation2 + $0x658] sm:$0xff]
        %v9693 = vld [vmem:[#allocation2 + $0x660] sm:$0xff]
        %v9694 = vld [vmem:[#allocation2 + $0x668] sm:$0xff]
        %v9695 = vld [vmem:[#allocation2 + $0x670] sm:$0xff]
        %v9696 = vld [vmem:[#allocation2 + $0x678] sm:$0xff]
        %v9697 = vld [vmem:[#allocation2 + $0x680] sm:$0xff]
        %v9698 = vld [vmem:[#allocation2 + $0x688] sm:$0xff]
        %v9699 = vld [vmem:[#allocation2 + $0x690] sm:$0xff]
        %v9700 = vld [vmem:[#allocation2 + $0x698] sm:$0xff]
        %v9701 = vld [vmem:[#allocation2 + $0x6a0] sm:$0xff]
        %v9702 = vld [vmem:[#allocation2 + $0x6a8] sm:$0xff]
        %v9703 = vld [vmem:[#allocation2 + $0x6b0] sm:$0xff]
        %v9704 = vld [vmem:[#allocation2 + $0x6b8] sm:$0xff]
        %v9705 = vld [vmem:[#allocation2 + $0x6c0] sm:$0xff]
        %v9706 = vld [vmem:[#allocation2 + $0x6c8] sm:$0xff]
        %v9707 = vld [vmem:[#allocation2 + $0x6d0] sm:$0xff]
        %v9708 = vld [vmem:[#allocation2 + $0x6d8] sm:$0xff]
        %v9709 = vld [vmem:[#allocation2 + $0x6e0] sm:$0xff]
        %v9710 = vld [vmem:[#allocation2 + $0x6e8] sm:$0xff]
        %v9711 = vld [vmem:[#allocation2 + $0x6f0] sm:$0xff]
        %v9712 = vld [vmem:[#allocation2 + $0x6f8] sm:$0xff]
        %v9713 = vld [vmem:[#allocation2 + $0x700] sm:$0xff]
        %v9714 = vld [vmem:[#allocation2 + $0x708] sm:$0xff]
        %v9715 = vld [vmem:[#allocation2 + $0x710] sm:$0xff]
        %v9716 = vld [vmem:[#allocation2 + $0x718] sm:$0xff]
        %v9717 = vld [vmem:[#allocation2 + $0x720] sm:$0xff]
        %v9718 = vld [vmem:[#allocation2 + $0x728] sm:$0xff]
        %v9719 = vld [vmem:[#allocation2 + $0x730] sm:$0xff]
        %v9720 = vld [vmem:[#allocation2 + $0x738] sm:$0xff]
        %v9721 = vld [vmem:[#allocation2 + $0x740] sm:$0xff]
        %v9722 = vld [vmem:[#allocation2 + $0x748] sm:$0xff]
        %v9723 = vld [vmem:[#allocation2 + $0x750] sm:$0xff]
        %v9724 = vld [vmem:[#allocation2 + $0x758] sm:$0xff]
        %v9725 = vld [vmem:[#allocation2 + $0x760] sm:$0xff]
        %v9726 = vld [vmem:[#allocation2 + $0x768] sm:$0xff]
        %v9727 = vld [vmem:[#allocation2 + $0x770] sm:$0xff]
        %v9728 = vld [vmem:[#allocation2 + $0x778] sm:$0xff]
        %v9729 = vld [vmem:[#allocation2 + $0x780] sm:$0xff]
        %v9730 = vld [vmem:[#allocation2 + $0x788] sm:$0xff]
        %v9731 = vld [vmem:[#allocation2 + $0x790] sm:$0xff]
        %v9732 = vld [vmem:[#allocation2 + $0x798] sm:$0xff]
        %v9733 = vld [vmem:[#allocation2 + $0x7a0] sm:$0xff]
        %v9734 = vld [vmem:[#allocation2 + $0x7a8] sm:$0xff]
        %v9735 = vld [vmem:[#allocation2 + $0x7b0] sm:$0xff]
        %v9736 = vld [vmem:[#allocation2 + $0x7b8] sm:$0xff]
        %v9737 = vld [vmem:[#allocation2 + $0x7c0] sm:$0xff]
        %v9738 = vld [vmem:[#allocation2 + $0x7c8] sm:$0xff]
        %v9739 = vld [vmem:[#allocation2 + $0x7d0] sm:$0xff]
        %v9740 = vld [vmem:[#allocation2 + $0x7d8] sm:$0xff]
        %v9741 = vld [vmem:[#allocation2 + $0x7e0] sm:$0xff]
        %v9742 = vld [vmem:[#allocation2 + $0x7e8] sm:$0xff]
        %v9743 = vld [vmem:[#allocation2 + $0x7f0] sm:$0xff]
        %v9744 = vld [vmem:[#allocation2 + $0x7f8] sm:$0xff]
        %v9745 = vld [vmem:[%s291] sm:$0xff]
        %v9746 = vld [vmem:[%s291 + $0x8] sm:$0xff]
        %v9747 = vld [vmem:[%s291 + $0x10] sm:$0xff]
        %v9748 = vld [vmem:[%s291 + $0x18] sm:$0xff]
        %v9749 = vld [vmem:[%s291 + $0x20] sm:$0xff]
        %v9750 = vld [vmem:[%s291 + $0x28] sm:$0xff]
        %v9751 = vld [vmem:[%s291 + $0x30] sm:$0xff]
        %v9752 = vld [vmem:[%s291 + $0x38] sm:$0xff]
        %v9753 = vld [vmem:[%s291 + $0x40] sm:$0xff]
        %v9754 = vld [vmem:[%s291 + $0x48] sm:$0xff]
        %v9755 = vld [vmem:[%s291 + $0x50] sm:$0xff]
        %v9756 = vld [vmem:[%s291 + $0x58] sm:$0xff]
        %v9757 = vld [vmem:[%s291 + $0x60] sm:$0xff]
        %v9758 = vld [vmem:[%s291 + $0x68] sm:$0xff]
        %v9759 = vld [vmem:[%s291 + $0x70] sm:$0xff]
        %v9760 = vld [vmem:[%s291 + $0x78] sm:$0xff]
        %v9761 = vld [vmem:[%s291 + $0x80] sm:$0xff]
        %v9762 = vld [vmem:[%s291 + $0x88] sm:$0xff]
        %v9763 = vld [vmem:[%s291 + $0x90] sm:$0xff]
        %v9764 = vld [vmem:[%s291 + $0x98] sm:$0xff]
        %v9765 = vld [vmem:[%s291 + $0xa0] sm:$0xff]
        %v9766 = vld [vmem:[%s291 + $0xa8] sm:$0xff]
        %v9767 = vld [vmem:[%s291 + $0xb0] sm:$0xff]
        %v9768 = vld [vmem:[%s291 + $0xb8] sm:$0xff]
        %v9769 = vld [vmem:[%s291 + $0xc0] sm:$0xff]
        %v9770 = vld [vmem:[%s291 + $0xc8] sm:$0xff]
        %v9771 = vld [vmem:[%s291 + $0xd0] sm:$0xff]
        %v9772 = vld [vmem:[%s291 + $0xd8] sm:$0xff]
        %v9773 = vld [vmem:[%s291 + $0xe0] sm:$0xff]
        %v9774 = vld [vmem:[%s291 + $0xe8] sm:$0xff]
        %v9775 = vld [vmem:[%s291 + $0xf0] sm:$0xff]
        %v9776 = vld [vmem:[%s291 + $0xf8] sm:$0xff]
        %v9777 = vld [vmem:[%s291 + $0x100] sm:$0xff]
        %v9778 = vld [vmem:[%s291 + $0x108] sm:$0xff]
        %v9779 = vld [vmem:[%s291 + $0x110] sm:$0xff]
        %v9780 = vld [vmem:[%s291 + $0x118] sm:$0xff]
        %v9781 = vld [vmem:[%s291 + $0x120] sm:$0xff]
        %v9782 = vld [vmem:[%s291 + $0x128] sm:$0xff]
        %v9783 = vld [vmem:[%s291 + $0x130] sm:$0xff]
        %v9784 = vld [vmem:[%s291 + $0x138] sm:$0xff]
        %v9785 = vld [vmem:[%s291 + $0x140] sm:$0xff]
        %v9786 = vld [vmem:[%s291 + $0x148] sm:$0xff]
        %v9787 = vld [vmem:[%s291 + $0x150] sm:$0xff]
        %v9788 = vld [vmem:[%s291 + $0x158] sm:$0xff]
        %v9789 = vld [vmem:[%s291 + $0x160] sm:$0xff]
        %v9790 = vld [vmem:[%s291 + $0x168] sm:$0xff]
        %v9791 = vld [vmem:[%s291 + $0x170] sm:$0xff]
        %v9792 = vld [vmem:[%s291 + $0x178] sm:$0xff]
        %v9793 = vld [vmem:[%s291 + $0x180] sm:$0xff]
        %v9794 = vld [vmem:[%s291 + $0x188] sm:$0xff]
        %v9795 = vld [vmem:[%s291 + $0x190] sm:$0xff]
        %v9796 = vld [vmem:[%s291 + $0x198] sm:$0xff]
        %v9797 = vld [vmem:[%s291 + $0x1a0] sm:$0xff]
        %v9798 = vld [vmem:[%s291 + $0x1a8] sm:$0xff]
        %v9799 = vld [vmem:[%s291 + $0x1b0] sm:$0xff]
        %v9800 = vld [vmem:[%s291 + $0x1b8] sm:$0xff]
        %v9801 = vld [vmem:[%s291 + $0x1c0] sm:$0xff]
        %v9802 = vld [vmem:[%s291 + $0x1c8] sm:$0xff]
        %v9803 = vld [vmem:[%s291 + $0x1d0] sm:$0xff]
        %v9804 = vld [vmem:[%s291 + $0x1d8] sm:$0xff]
        %v9805 = vld [vmem:[%s291 + $0x1e0] sm:$0xff]
        %v9806 = vld [vmem:[%s291 + $0x1e8] sm:$0xff]
        %v9807 = vld [vmem:[%s291 + $0x1f0] sm:$0xff]
        %v9808 = vld [vmem:[%s291 + $0x1f8] sm:$0xff]
        %v9809 = vld [vmem:[%s291 + $0x200] sm:$0xff]
        %v9810 = vld [vmem:[%s291 + $0x208] sm:$0xff]
        %v9811 = vld [vmem:[%s291 + $0x210] sm:$0xff]
        %v9812 = vld [vmem:[%s291 + $0x218] sm:$0xff]
        %v9813 = vld [vmem:[%s291 + $0x220] sm:$0xff]
        %v9814 = vld [vmem:[%s291 + $0x228] sm:$0xff]
        %v9815 = vld [vmem:[%s291 + $0x230] sm:$0xff]
        %v9816 = vld [vmem:[%s291 + $0x238] sm:$0xff]
        %v9817 = vld [vmem:[%s291 + $0x240] sm:$0xff]
        %v9818 = vld [vmem:[%s291 + $0x248] sm:$0xff]
        %v9819 = vld [vmem:[%s291 + $0x250] sm:$0xff]
        %v9820 = vld [vmem:[%s291 + $0x258] sm:$0xff]
        %v9821 = vld [vmem:[%s291 + $0x260] sm:$0xff]
        %v9822 = vld [vmem:[%s291 + $0x268] sm:$0xff]
        %v9823 = vld [vmem:[%s291 + $0x270] sm:$0xff]
        %v9824 = vld [vmem:[%s291 + $0x278] sm:$0xff]
        %v9825 = vld [vmem:[%s291 + $0x280] sm:$0xff]
        %v9826 = vld [vmem:[%s291 + $0x288] sm:$0xff]
        %v9827 = vld [vmem:[%s291 + $0x290] sm:$0xff]
        %v9828 = vld [vmem:[%s291 + $0x298] sm:$0xff]
        %v9829 = vld [vmem:[%s291 + $0x2a0] sm:$0xff]
        %v9830 = vld [vmem:[%s291 + $0x2a8] sm:$0xff]
        %v9831 = vld [vmem:[%s291 + $0x2b0] sm:$0xff]
        %v9832 = vld [vmem:[%s291 + $0x2b8] sm:$0xff]
        %v9833 = vld [vmem:[%s291 + $0x2c0] sm:$0xff]
        %v9834 = vld [vmem:[%s291 + $0x2c8] sm:$0xff]
        %v9835 = vld [vmem:[%s291 + $0x2d0] sm:$0xff]
        %v9836 = vld [vmem:[%s291 + $0x2d8] sm:$0xff]
        %v9837 = vld [vmem:[%s291 + $0x2e0] sm:$0xff]
        %v9838 = vld [vmem:[%s291 + $0x2e8] sm:$0xff]
        %v9839 = vld [vmem:[%s291 + $0x2f0] sm:$0xff]
        %v9840 = vld [vmem:[%s291 + $0x2f8] sm:$0xff]
        %v9841 = vld [vmem:[%s291 + $0x300] sm:$0xff]
        %v9842 = vld [vmem:[%s291 + $0x308] sm:$0xff]
        %v9843 = vld [vmem:[%s291 + $0x310] sm:$0xff]
        %v9844 = vld [vmem:[%s291 + $0x318] sm:$0xff]
        %v9845 = vld [vmem:[%s291 + $0x320] sm:$0xff]
        %v9846 = vld [vmem:[%s291 + $0x328] sm:$0xff]
        %v9847 = vld [vmem:[%s291 + $0x330] sm:$0xff]
        %v9848 = vld [vmem:[%s291 + $0x338] sm:$0xff]
        %v9849 = vld [vmem:[%s291 + $0x340] sm:$0xff]
        %v9850 = vld [vmem:[%s291 + $0x348] sm:$0xff]
        %v9851 = vld [vmem:[%s291 + $0x350] sm:$0xff]
        %v9852 = vld [vmem:[%s291 + $0x358] sm:$0xff]
        %v9853 = vld [vmem:[%s291 + $0x360] sm:$0xff]
        %v9854 = vld [vmem:[%s291 + $0x368] sm:$0xff]
        %v9855 = vld [vmem:[%s291 + $0x370] sm:$0xff]
        %v9856 = vld [vmem:[%s291 + $0x378] sm:$0xff]
        %v9857 = vld [vmem:[%s291 + $0x380] sm:$0xff]
        %v9858 = vld [vmem:[%s291 + $0x388] sm:$0xff]
        %v9859 = vld [vmem:[%s291 + $0x390] sm:$0xff]
        %v9860 = vld [vmem:[%s291 + $0x398] sm:$0xff]
        %v9861 = vld [vmem:[%s291 + $0x3a0] sm:$0xff]
        %v9862 = vld [vmem:[%s291 + $0x3a8] sm:$0xff]
        %v9863 = vld [vmem:[%s291 + $0x3b0] sm:$0xff]
        %v9864 = vld [vmem:[%s291 + $0x3b8] sm:$0xff]
        %v9865 = vld [vmem:[%s291 + $0x3c0] sm:$0xff]
        %v9866 = vld [vmem:[%s291 + $0x3c8] sm:$0xff]
        %v9867 = vld [vmem:[%s291 + $0x3d0] sm:$0xff]
        %v9868 = vld [vmem:[%s291 + $0x3d8] sm:$0xff]
        %v9869 = vld [vmem:[%s291 + $0x3e0] sm:$0xff]
        %v9870 = vld [vmem:[%s291 + $0x3e8] sm:$0xff]
        %v9871 = vld [vmem:[%s291 + $0x3f0] sm:$0xff]
        %v9872 = vld [vmem:[%s291 + $0x3f8] sm:$0xff]
        %v9873 = vld [vmem:[%s296] sm:$0x3]
        %v9875 = vlaneseq
        %v9876 = vshrl.u32 %v9875, 7
        %v9877 = vsub.s32 0, %v9876
        %v9878 = vrot.slane %v9873, %v9877
        %v9879 = vlaneseq
        %v9880 = vshrl.u32 %v9879, 7
        %v9881 = vsub.s32 1, %v9880
        %v9882 = vrot.slane %v9873, %v9881
        %v10013 = vunpack.c.l.b16 %v9745
        %v10014 = vunpack.c.h.b16 %v9745
        %v10015 = vunpack.c.l.b16 %v9746
        %v10016 = vunpack.c.h.b16 %v9746
        %v10017 = vunpack.c.l.b16 %v9747
        %v10018 = vunpack.c.h.b16 %v9747
        %v10019 = vunpack.c.l.b16 %v9748
        %v10020 = vunpack.c.h.b16 %v9748
        %v10021 = vunpack.c.l.b16 %v9749
        %v10022 = vunpack.c.h.b16 %v9749
        %v10023 = vunpack.c.l.b16 %v9750
        %v10024 = vunpack.c.h.b16 %v9750
        %v10025 = vunpack.c.l.b16 %v9751
        %v10026 = vunpack.c.h.b16 %v9751
        %v10027 = vunpack.c.l.b16 %v9752
        %v10028 = vunpack.c.h.b16 %v9752
        %v10029 = vunpack.c.l.b16 %v9753
        %v10030 = vunpack.c.h.b16 %v9753
        %v10031 = vunpack.c.l.b16 %v9754
        %v10032 = vunpack.c.h.b16 %v9754
        %v10033 = vunpack.c.l.b16 %v9755
        %v10034 = vunpack.c.h.b16 %v9755
        %v10035 = vunpack.c.l.b16 %v9756
        %v10036 = vunpack.c.h.b16 %v9756
        %v10037 = vunpack.c.l.b16 %v9757
        %v10038 = vunpack.c.h.b16 %v9757
        %v10039 = vunpack.c.l.b16 %v9758
        %v10040 = vunpack.c.h.b16 %v9758
        %v10041 = vunpack.c.l.b16 %v9759
        %v10042 = vunpack.c.h.b16 %v9759
        %v10043 = vunpack.c.l.b16 %v9760
        %v10044 = vunpack.c.h.b16 %v9760
        %v10045 = vunpack.c.l.b16 %v9761
        %v10046 = vunpack.c.h.b16 %v9761
        %v10047 = vunpack.c.l.b16 %v9762
        %v10048 = vunpack.c.h.b16 %v9762
        %v10049 = vunpack.c.l.b16 %v9763
        %v10050 = vunpack.c.h.b16 %v9763
        %v10051 = vunpack.c.l.b16 %v9764
        %v10052 = vunpack.c.h.b16 %v9764
        %v10053 = vunpack.c.l.b16 %v9765
        %v10054 = vunpack.c.h.b16 %v9765
        %v10055 = vunpack.c.l.b16 %v9766
        %v10056 = vunpack.c.h.b16 %v9766
        %v10057 = vunpack.c.l.b16 %v9767
        %v10058 = vunpack.c.h.b16 %v9767
        %v10059 = vunpack.c.l.b16 %v9768
        %v10060 = vunpack.c.h.b16 %v9768
        %v10061 = vunpack.c.l.b16 %v9769
        %v10062 = vunpack.c.h.b16 %v9769
        %v10063 = vunpack.c.l.b16 %v9770
        %v10064 = vunpack.c.h.b16 %v9770
        %v10065 = vunpack.c.l.b16 %v9771
        %v10066 = vunpack.c.h.b16 %v9771
        %v10067 = vunpack.c.l.b16 %v9772
        %v10068 = vunpack.c.h.b16 %v9772
        %v10069 = vunpack.c.l.b16 %v9773
        %v10070 = vunpack.c.h.b16 %v9773
        %v10071 = vunpack.c.l.b16 %v9774
        %v10072 = vunpack.c.h.b16 %v9774
        %v10073 = vunpack.c.l.b16 %v9775
        %v10074 = vunpack.c.h.b16 %v9775
        %v10075 = vunpack.c.l.b16 %v9776
        %v10076 = vunpack.c.h.b16 %v9776
        %v10077 = vunpack.c.l.b16 %v9777
        %v10078 = vunpack.c.h.b16 %v9777
        %v10079 = vunpack.c.l.b16 %v9778
        %v10080 = vunpack.c.h.b16 %v9778
        %v10081 = vunpack.c.l.b16 %v9779
        %v10082 = vunpack.c.h.b16 %v9779
        %v10083 = vunpack.c.l.b16 %v9780
        %v10084 = vunpack.c.h.b16 %v9780
        %v10085 = vunpack.c.l.b16 %v9781
        %v10086 = vunpack.c.h.b16 %v9781
        %v10087 = vunpack.c.l.b16 %v9782
        %v10088 = vunpack.c.h.b16 %v9782
        %v10089 = vunpack.c.l.b16 %v9783
        %v10090 = vunpack.c.h.b16 %v9783
        %v10091 = vunpack.c.l.b16 %v9784
        %v10092 = vunpack.c.h.b16 %v9784
        %v10093 = vunpack.c.l.b16 %v9785
        %v10094 = vunpack.c.h.b16 %v9785
        %v10095 = vunpack.c.l.b16 %v9786
        %v10096 = vunpack.c.h.b16 %v9786
        %v10097 = vunpack.c.l.b16 %v9787
        %v10098 = vunpack.c.h.b16 %v9787
        %v10099 = vunpack.c.l.b16 %v9788
        %v10100 = vunpack.c.h.b16 %v9788
        %v10101 = vunpack.c.l.b16 %v9789
        %v10102 = vunpack.c.h.b16 %v9789
        %v10103 = vunpack.c.l.b16 %v9790
        %v10104 = vunpack.c.h.b16 %v9790
        %v10105 = vunpack.c.l.b16 %v9791
        %v10106 = vunpack.c.h.b16 %v9791
        %v10107 = vunpack.c.l.b16 %v9792
        %v10108 = vunpack.c.h.b16 %v9792
        %v10109 = vunpack.c.l.b16 %v9793
        %v10110 = vunpack.c.h.b16 %v9793
        %v10111 = vunpack.c.l.b16 %v9794
        %v10112 = vunpack.c.h.b16 %v9794
        %v10113 = vunpack.c.l.b16 %v9795
        %v10114 = vunpack.c.h.b16 %v9795
        %v10115 = vunpack.c.l.b16 %v9796
        %v10116 = vunpack.c.h.b16 %v9796
        %v10117 = vunpack.c.l.b16 %v9797
        %v10118 = vunpack.c.h.b16 %v9797
        %v10119 = vunpack.c.l.b16 %v9798
        %v10120 = vunpack.c.h.b16 %v9798
        %v10121 = vunpack.c.l.b16 %v9799
        %v10122 = vunpack.c.h.b16 %v9799
        %v10123 = vunpack.c.l.b16 %v9800
        %v10124 = vunpack.c.h.b16 %v9800
        %v10125 = vunpack.c.l.b16 %v9801
        %v10126 = vunpack.c.h.b16 %v9801
        %v10127 = vunpack.c.l.b16 %v9802
        %v10128 = vunpack.c.h.b16 %v9802
        %v10129 = vunpack.c.l.b16 %v9803
        %v10130 = vunpack.c.h.b16 %v9803
        %v10131 = vunpack.c.l.b16 %v9804
        %v10132 = vunpack.c.h.b16 %v9804
        %v10133 = vunpack.c.l.b16 %v9805
        %v10134 = vunpack.c.h.b16 %v9805
        %v10135 = vunpack.c.l.b16 %v9806
        %v10136 = vunpack.c.h.b16 %v9806
        %v10137 = vunpack.c.l.b16 %v9807
        %v10138 = vunpack.c.h.b16 %v9807
        %v10139 = vunpack.c.l.b16 %v9808
        %v10140 = vunpack.c.h.b16 %v9808
        %v10141 = vunpack.c.l.b16 %v9809
        %v10142 = vunpack.c.h.b16 %v9809
        %v10143 = vunpack.c.l.b16 %v9810
        %v10144 = vunpack.c.h.b16 %v9810
        %v10145 = vunpack.c.l.b16 %v9811
        %v10146 = vunpack.c.h.b16 %v9811
        %v10147 = vunpack.c.l.b16 %v9812
        %v10148 = vunpack.c.h.b16 %v9812
        %v10149 = vunpack.c.l.b16 %v9813
        %v10150 = vunpack.c.h.b16 %v9813
        %v10151 = vunpack.c.l.b16 %v9814
        %v10152 = vunpack.c.h.b16 %v9814
        %v10153 = vunpack.c.l.b16 %v9815
        %v10154 = vunpack.c.h.b16 %v9815
        %v10155 = vunpack.c.l.b16 %v9816
        %v10156 = vunpack.c.h.b16 %v9816
        %v10157 = vunpack.c.l.b16 %v9817
        %v10158 = vunpack.c.h.b16 %v9817
        %v10159 = vunpack.c.l.b16 %v9818
        %v10160 = vunpack.c.h.b16 %v9818
        %v10161 = vunpack.c.l.b16 %v9819
        %v10162 = vunpack.c.h.b16 %v9819
        %v10163 = vunpack.c.l.b16 %v9820
        %v10164 = vunpack.c.h.b16 %v9820
        %v10165 = vunpack.c.l.b16 %v9821
        %v10166 = vunpack.c.h.b16 %v9821
        %v10167 = vunpack.c.l.b16 %v9822
        %v10168 = vunpack.c.h.b16 %v9822
        %v10169 = vunpack.c.l.b16 %v9823
        %v10170 = vunpack.c.h.b16 %v9823
        %v10171 = vunpack.c.l.b16 %v9824
        %v10172 = vunpack.c.h.b16 %v9824
        %v10173 = vunpack.c.l.b16 %v9825
        %v10174 = vunpack.c.h.b16 %v9825
        %v10175 = vunpack.c.l.b16 %v9826
        %v10176 = vunpack.c.h.b16 %v9826
        %v10177 = vunpack.c.l.b16 %v9827
        %v10178 = vunpack.c.h.b16 %v9827
        %v10179 = vunpack.c.l.b16 %v9828
        %v10180 = vunpack.c.h.b16 %v9828
        %v10181 = vunpack.c.l.b16 %v9829
        %v10182 = vunpack.c.h.b16 %v9829
        %v10183 = vunpack.c.l.b16 %v9830
        %v10184 = vunpack.c.h.b16 %v9830
        %v10185 = vunpack.c.l.b16 %v9831
        %v10186 = vunpack.c.h.b16 %v9831
        %v10187 = vunpack.c.l.b16 %v9832
        %v10188 = vunpack.c.h.b16 %v9832
        %v10189 = vunpack.c.l.b16 %v9833
        %v10190 = vunpack.c.h.b16 %v9833
        %v10191 = vunpack.c.l.b16 %v9834
        %v10192 = vunpack.c.h.b16 %v9834
        %v10193 = vunpack.c.l.b16 %v9835
        %v10194 = vunpack.c.h.b16 %v9835
        %v10195 = vunpack.c.l.b16 %v9836
        %v10196 = vunpack.c.h.b16 %v9836
        %v10197 = vunpack.c.l.b16 %v9837
        %v10198 = vunpack.c.h.b16 %v9837
        %v10199 = vunpack.c.l.b16 %v9838
        %v10200 = vunpack.c.h.b16 %v9838
        %v10201 = vunpack.c.l.b16 %v9839
        %v10202 = vunpack.c.h.b16 %v9839
        %v10203 = vunpack.c.l.b16 %v9840
        %v10204 = vunpack.c.h.b16 %v9840
        %v10205 = vunpack.c.l.b16 %v9841
        %v10206 = vunpack.c.h.b16 %v9841
        %v10207 = vunpack.c.l.b16 %v9842
        %v10208 = vunpack.c.h.b16 %v9842
        %v10209 = vunpack.c.l.b16 %v9843
        %v10210 = vunpack.c.h.b16 %v9843
        %v10211 = vunpack.c.l.b16 %v9844
        %v10212 = vunpack.c.h.b16 %v9844
        %v10213 = vunpack.c.l.b16 %v9845
        %v10214 = vunpack.c.h.b16 %v9845
        %v10215 = vunpack.c.l.b16 %v9846
        %v10216 = vunpack.c.h.b16 %v9846
        %v10217 = vunpack.c.l.b16 %v9847
        %v10218 = vunpack.c.h.b16 %v9847
        %v10219 = vunpack.c.l.b16 %v9848
        %v10220 = vunpack.c.h.b16 %v9848
        %v10221 = vunpack.c.l.b16 %v9849
        %v10222 = vunpack.c.h.b16 %v9849
        %v10223 = vunpack.c.l.b16 %v9850
        %v10224 = vunpack.c.h.b16 %v9850
        %v10225 = vunpack.c.l.b16 %v9851
        %v10226 = vunpack.c.h.b16 %v9851
        %v10227 = vunpack.c.l.b16 %v9852
        %v10228 = vunpack.c.h.b16 %v9852
        %v10229 = vunpack.c.l.b16 %v9853
        %v10230 = vunpack.c.h.b16 %v9853
        %v10231 = vunpack.c.l.b16 %v9854
        %v10232 = vunpack.c.h.b16 %v9854
        %v10233 = vunpack.c.l.b16 %v9855
        %v10234 = vunpack.c.h.b16 %v9855
        %v10235 = vunpack.c.l.b16 %v9856
        %v10236 = vunpack.c.h.b16 %v9856
        %v10237 = vunpack.c.l.b16 %v9857
        %v10238 = vunpack.c.h.b16 %v9857
        %v10239 = vunpack.c.l.b16 %v9858
        %v10240 = vunpack.c.h.b16 %v9858
        %v10241 = vunpack.c.l.b16 %v9859
        %v10242 = vunpack.c.h.b16 %v9859
        %v10243 = vunpack.c.l.b16 %v9860
        %v10244 = vunpack.c.h.b16 %v9860
        %v10245 = vunpack.c.l.b16 %v9861
        %v10246 = vunpack.c.h.b16 %v9861
        %v10247 = vunpack.c.l.b16 %v9862
        %v10248 = vunpack.c.h.b16 %v9862
        %v10249 = vunpack.c.l.b16 %v9863
        %v10250 = vunpack.c.h.b16 %v9863
        %v10251 = vunpack.c.l.b16 %v9864
        %v10252 = vunpack.c.h.b16 %v9864
        %v10253 = vunpack.c.l.b16 %v9865
        %v10254 = vunpack.c.h.b16 %v9865
        %v10255 = vunpack.c.l.b16 %v9866
        %v10256 = vunpack.c.h.b16 %v9866
        %v10257 = vunpack.c.l.b16 %v9867
        %v10258 = vunpack.c.h.b16 %v9867
        %v10259 = vunpack.c.l.b16 %v9868
        %v10260 = vunpack.c.h.b16 %v9868
        %v10261 = vunpack.c.l.b16 %v9869
        %v10262 = vunpack.c.h.b16 %v9869
        %v10263 = vunpack.c.l.b16 %v9870
        %v10264 = vunpack.c.h.b16 %v9870
        %v10265 = vunpack.c.l.b16 %v9871
        %v10266 = vunpack.c.h.b16 %v9871
        %v10267 = vunpack.c.l.b16 %v9872
        %v10268 = vunpack.c.h.b16 %v9872
        %v10269 = vpack.c.b16 %v10021, %v10013
        %v10270 = vpack.c.b16 %v10022, %v10014
        %v10271 = vpack.c.b16 %v10023, %v10015
        %v10272 = vpack.c.b16 %v10024, %v10016
        %v10273 = vpack.c.b16 %v10025, %v10017
        %v10274 = vpack.c.b16 %v10026, %v10018
        %v10275 = vpack.c.b16 %v10027, %v10019
        %v10276 = vpack.c.b16 %v10028, %v10020
        %v10277 = vpack.c.b16 %v10037, %v10029
        %v10278 = vpack.c.b16 %v10038, %v10030
        %v10279 = vpack.c.b16 %v10039, %v10031
        %v10280 = vpack.c.b16 %v10040, %v10032
        %v10281 = vpack.c.b16 %v10041, %v10033
        %v10282 = vpack.c.b16 %v10042, %v10034
        %v10283 = vpack.c.b16 %v10043, %v10035
        %v10284 = vpack.c.b16 %v10044, %v10036
        %v10285 = vpack.c.b16 %v10053, %v10045
        %v10286 = vpack.c.b16 %v10054, %v10046
        %v10287 = vpack.c.b16 %v10055, %v10047
        %v10288 = vpack.c.b16 %v10056, %v10048
        %v10289 = vpack.c.b16 %v10057, %v10049
        %v10290 = vpack.c.b16 %v10058, %v10050
        %v10291 = vpack.c.b16 %v10059, %v10051
        %v10292 = vpack.c.b16 %v10060, %v10052
        %v10293 = vpack.c.b16 %v10069, %v10061
        %v10294 = vpack.c.b16 %v10070, %v10062
        %v10295 = vpack.c.b16 %v10071, %v10063
        %v10296 = vpack.c.b16 %v10072, %v10064
        %v10297 = vpack.c.b16 %v10073, %v10065
        %v10298 = vpack.c.b16 %v10074, %v10066
        %v10299 = vpack.c.b16 %v10075, %v10067
        %v10300 = vpack.c.b16 %v10076, %v10068
        %v10301 = vpack.c.b16 %v10085, %v10077
        %v10302 = vpack.c.b16 %v10086, %v10078
        %v10303 = vpack.c.b16 %v10087, %v10079
        %v10304 = vpack.c.b16 %v10088, %v10080
        %v10305 = vpack.c.b16 %v10089, %v10081
        %v10306 = vpack.c.b16 %v10090, %v10082
        %v10307 = vpack.c.b16 %v10091, %v10083
        %v10308 = vpack.c.b16 %v10092, %v10084
        %v10309 = vpack.c.b16 %v10101, %v10093
        %v10310 = vpack.c.b16 %v10102, %v10094
        %v10311 = vpack.c.b16 %v10103, %v10095
        %v10312 = vpack.c.b16 %v10104, %v10096
        %v10313 = vpack.c.b16 %v10105, %v10097
        %v10314 = vpack.c.b16 %v10106, %v10098
        %v10315 = vpack.c.b16 %v10107, %v10099
        %v10316 = vpack.c.b16 %v10108, %v10100
        %v10317 = vpack.c.b16 %v10117, %v10109
        %v10318 = vpack.c.b16 %v10118, %v10110
        %v10319 = vpack.c.b16 %v10119, %v10111
        %v10320 = vpack.c.b16 %v10120, %v10112
        %v10321 = vpack.c.b16 %v10121, %v10113
        %v10322 = vpack.c.b16 %v10122, %v10114
        %v10323 = vpack.c.b16 %v10123, %v10115
        %v10324 = vpack.c.b16 %v10124, %v10116
        %v10325 = vpack.c.b16 %v10133, %v10125
        %v10326 = vpack.c.b16 %v10134, %v10126
        %v10327 = vpack.c.b16 %v10135, %v10127
        %v10328 = vpack.c.b16 %v10136, %v10128
        %v10329 = vpack.c.b16 %v10137, %v10129
        %v10330 = vpack.c.b16 %v10138, %v10130
        %v10331 = vpack.c.b16 %v10139, %v10131
        %v10332 = vpack.c.b16 %v10140, %v10132
        %v10333 = vpack.c.b16 %v10149, %v10141
        %v10334 = vpack.c.b16 %v10150, %v10142
        %v10335 = vpack.c.b16 %v10151, %v10143
        %v10336 = vpack.c.b16 %v10152, %v10144
        %v10337 = vpack.c.b16 %v10153, %v10145
        %v10338 = vpack.c.b16 %v10154, %v10146
        %v10339 = vpack.c.b16 %v10155, %v10147
        %v10340 = vpack.c.b16 %v10156, %v10148
        %v10341 = vpack.c.b16 %v10165, %v10157
        %v10342 = vpack.c.b16 %v10166, %v10158
        %v10343 = vpack.c.b16 %v10167, %v10159
        %v10344 = vpack.c.b16 %v10168, %v10160
        %v10345 = vpack.c.b16 %v10169, %v10161
        %v10346 = vpack.c.b16 %v10170, %v10162
        %v10347 = vpack.c.b16 %v10171, %v10163
        %v10348 = vpack.c.b16 %v10172, %v10164
        %v10349 = vpack.c.b16 %v10181, %v10173
        %v10350 = vpack.c.b16 %v10182, %v10174
        %v10351 = vpack.c.b16 %v10183, %v10175
        %v10352 = vpack.c.b16 %v10184, %v10176
        %v10353 = vpack.c.b16 %v10185, %v10177
        %v10354 = vpack.c.b16 %v10186, %v10178
        %v10355 = vpack.c.b16 %v10187, %v10179
        %v10356 = vpack.c.b16 %v10188, %v10180
        %v10357 = vpack.c.b16 %v10197, %v10189
        %v10358 = vpack.c.b16 %v10198, %v10190
        %v10359 = vpack.c.b16 %v10199, %v10191
        %v10360 = vpack.c.b16 %v10200, %v10192
        %v10361 = vpack.c.b16 %v10201, %v10193
        %v10362 = vpack.c.b16 %v10202, %v10194
        %v10363 = vpack.c.b16 %v10203, %v10195
        %v10364 = vpack.c.b16 %v10204, %v10196
        %v10365 = vpack.c.b16 %v10213, %v10205
        %v10366 = vpack.c.b16 %v10214, %v10206
        %v10367 = vpack.c.b16 %v10215, %v10207
        %v10368 = vpack.c.b16 %v10216, %v10208
        %v10369 = vpack.c.b16 %v10217, %v10209
        %v10370 = vpack.c.b16 %v10218, %v10210
        %v10371 = vpack.c.b16 %v10219, %v10211
        %v10372 = vpack.c.b16 %v10220, %v10212
        %v10373 = vpack.c.b16 %v10229, %v10221
        %v10374 = vpack.c.b16 %v10230, %v10222
        %v10375 = vpack.c.b16 %v10231, %v10223
        %v10376 = vpack.c.b16 %v10232, %v10224
        %v10377 = vpack.c.b16 %v10233, %v10225
        %v10378 = vpack.c.b16 %v10234, %v10226
        %v10379 = vpack.c.b16 %v10235, %v10227
        %v10380 = vpack.c.b16 %v10236, %v10228
        %v10381 = vpack.c.b16 %v10245, %v10237
        %v10382 = vpack.c.b16 %v10246, %v10238
        %v10383 = vpack.c.b16 %v10247, %v10239
        %v10384 = vpack.c.b16 %v10248, %v10240
        %v10385 = vpack.c.b16 %v10249, %v10241
        %v10386 = vpack.c.b16 %v10250, %v10242
        %v10387 = vpack.c.b16 %v10251, %v10243
        %v10388 = vpack.c.b16 %v10252, %v10244
        %v10389 = vpack.c.b16 %v10261, %v10253
        %v10390 = vpack.c.b16 %v10262, %v10254
        %v10391 = vpack.c.b16 %v10263, %v10255
        %v10392 = vpack.c.b16 %v10264, %v10256
        %v10393 = vpack.c.b16 %v10265, %v10257
        %v10394 = vpack.c.b16 %v10266, %v10258
        %v10395 = vpack.c.b16 %v10267, %v10259
        %v10396 = vpack.c.b16 %v10268, %v10260
        %10525 = vmatprep.subr.bf16.mxu0 %v10270
        %10526 = vmatpush1.bf16.xpose.msra.mxu0 %v10269
        %10527 = vmatprep.subr.bf16.mxu0 %v10278
        %10528 = vmatpush1.bf16.xpose.msra.mxu0 %v10277
        %10529 = vmatprep.subr.bf16.mxu0 %v10286
        %10530 = vmatpush1.bf16.xpose.msra.mxu0 %v10285
        %10531 = vmatprep.subr.bf16.mxu0 %v10294
        %10532 = vmatpush1.bf16.xpose.msra.mxu0 %v10293
        %10533 = vmatprep.subr.bf16.mxu0 %v10302
        %10534 = vmatpush1.bf16.xpose.msra.mxu0 %v10301
        %10535 = vmatprep.subr.bf16.mxu0 %v10310
        %10536 = vmatpush1.bf16.xpose.msra.mxu0 %v10309
        %10537 = vmatprep.subr.bf16.mxu0 %v10318
        %10538 = vmatpush1.bf16.xpose.msra.mxu0 %v10317
        %10539 = vmatprep.subr.bf16.mxu0 %v10326
        %10540 = vmatpush1.bf16.xpose.msra.mxu0 %v10325
        %10541 = vmatprep.subr.bf16.mxu0 %v10334
        %10542 = vmatpush1.bf16.xpose.msra.mxu0 %v10333
        %10543 = vmatprep.subr.bf16.mxu0 %v10342
        %10544 = vmatpush1.bf16.xpose.msra.mxu0 %v10341
        %10545 = vmatprep.subr.bf16.mxu0 %v10350
        %10546 = vmatpush1.bf16.xpose.msra.mxu0 %v10349
        %10547 = vmatprep.subr.bf16.mxu0 %v10358
        %10548 = vmatpush1.bf16.xpose.msra.mxu0 %v10357
        %10549 = vmatprep.subr.bf16.mxu0 %v10366
        %10550 = vmatpush1.bf16.xpose.msra.mxu0 %v10365
        %10551 = vmatprep.subr.bf16.mxu0 %v10374
        %10552 = vmatpush1.bf16.xpose.msra.mxu0 %v10373
        %10553 = vmatprep.subr.bf16.mxu0 %v10382
        %10554 = vmatpush1.bf16.xpose.msra.mxu0 %v10381
        %10555 = vmatprep.subr.bf16.mxu0 %v10390
        %10556 = vmatpush1.bf16.xpose.msra.mxu0 %v10389
        %10557 = vmatprep.mubr.bf16.mxu0 %v9490
        %10558 = vmatmul.mubr.bf16.gmra.mrb[0].mxu0 %v9489
        %v10559 = vpop.f32.mrb[0].mxu0
        %v10560 = vadd.f32 %v9878, %v10559
        %v10561 = vpop.f32.mrb[0].mxu0
        %v10562 = vadd.f32 %v9882, %v10561
        %v10563 = vpop.f32.mrb[0].mxu0
        %v10564 = vadd.f32 %v9878, %v10563
        %v10565 = vpop.f32.mrb[0].mxu0
        %v10566 = vadd.f32 %v9882, %v10565
        %10567 = vmatprep.mubr.bf16.mxu0 %v9498
        %10568 = vmatmul.mubr.bf16.gmra.mrb[0].mxu0 %v9497
        %v10569 = vpop.f32.mrb[0].mxu0
        %v10570 = vadd.f32 %v9878, %v10569
        %v10571 = vpop.f32.mrb[0].mxu0
        %v10572 = vadd.f32 %v9882, %v10571
        %v10573 = vpop.f32.mrb[0].mxu0
        %v10574 = vadd.f32 %v9878, %v10573
        %v10575 = vpop.f32.mrb[0].mxu0
        %v10576 = vadd.f32 %v9882, %v10575
        %10577 = vmatprep.mubr.bf16.mxu0 %v9506
        %10578 = vmatmul.mubr.bf16.gmra.mrb[0].mxu0 %v9505
        %v10579 = vpop.f32.mrb[0].mxu0
        %v10580 = vadd.f32 %v9878, %v10579
        %v10581 = vpop.f32.mrb[0].mxu0
        %v10582 = vadd.f32 %v9882, %v10581
        %v10583 = vpop.f32.mrb[0].mxu0
        %v10584 = vadd.f32 %v9878, %v10583
        %v10585 = vpop.f32.mrb[0].mxu0
        %v10586 = vadd.f32 %v9882, %v10585
        %10587 = vmatprep.mubr.bf16.mxu0 %v9514
        %10588 = vmatmul.mubr.bf16.gmra.mrb[0].mxu0 %v9513
        %v10589 = vpop.f32.mrb[0].mxu0
        %v10590 = vadd.f32 %v9878, %v10589
        %v10591 = vpop.f32.mrb[0].mxu0
        %v10592 = vadd.f32 %v9882, %v10591
        %v10593 = vpop.f32.mrb[0].mxu0
        %v10594 = vadd.f32 %v9878, %v10593
        %v10595 = vpop.f32.mrb[0].mxu0
        %v10596 = vadd.f32 %v9882, %v10595
        %10597 = vmatprep.mubr.bf16.mxu0 %v9522
        %10598 = vmatmul.mubr.bf16.gmra.mrb[0].mxu0 %v9521
        %v10599 = vpop.f32.mrb[0].mxu0
        %v10600 = vadd.f32 %v9878, %v10599
        %v10601 = vpop.f32.mrb[0].mxu0
        %v10602 = vadd.f32 %v9882, %v10601
        %v10603 = vpop.f32.mrb[0].mxu0
        %v10604 = vadd.f32 %v9878, %v10603
        %v10605 = vpop.f32.mrb[0].mxu0
        %v10606 = vadd.f32 %v9882, %v10605
        %10607 = vmatprep.mubr.bf16.mxu0 %v9530
        %10608 = vmatmul.mubr.bf16.gmra.mrb[0].mxu0 %v9529
        %v10609 = vpop.f32.mrb[0].mxu0
        %v10610 = vadd.f32 %v9878, %v10609
        %v10611 = vpop.f32.mrb[0].mxu0
        %v10612 = vadd.f32 %v9882, %v10611
        %v10613 = vpop.f32.mrb[0].mxu0
        %v10614 = vadd.f32 %v9878, %v10613
        %v10615 = vpop.f32.mrb[0].mxu0
        %v10616 = vadd.f32 %v9882, %v10615
        %10617 = vmatprep.mubr.bf16.mxu0 %v9538
        %10618 = vmatmul.mubr.bf16.gmra.mrb[0].mxu0 %v9537
        %v10619 = vpop.f32.mrb[0].mxu0
        %v10620 = vadd.f32 %v9878, %v10619
        %v10621 = vpop.f32.mrb[0].mxu0
        %v10622 = vadd.f32 %v9882, %v10621
        %v10623 = vpop.f32.mrb[0].mxu0
        %v10624 = vadd.f32 %v9878, %v10623
        %v10625 = vpop.f32.mrb[0].mxu0
        %v10626 = vadd.f32 %v9882, %v10625
        %10627 = vmatprep.mubr.bf16.mxu0 %v9546
        %10628 = vmatmul.mubr.bf16.gmra.mrb[0].mxu0 %v9545
        %v10629 = vpop.f32.mrb[0].mxu0
        %v10630 = vadd.f32 %v9878, %v10629
        %v10631 = vpop.f32.mrb[0].mxu0
        %v10632 = vadd.f32 %v9882, %v10631
        %v10633 = vpop.f32.mrb[0].mxu0
        %v10634 = vadd.f32 %v9878, %v10633
        %v10635 = vpop.f32.mrb[0].mxu0
        %v10636 = vadd.f32 %v9882, %v10635
        %10637 = vmatprep.mubr.bf16.mxu0 %v9554
        %10638 = vmatmul.mubr.bf16.gmra.mrb[0].mxu0 %v9553
        %v10639 = vpop.f32.mrb[0].mxu0
        %v10640 = vadd.f32 %v9878, %v10639
        %v10641 = vpop.f32.mrb[0].mxu0
        %v10642 = vadd.f32 %v9882, %v10641
        %v10643 = vpop.f32.mrb[0].mxu0
        %v10644 = vadd.f32 %v9878, %v10643
        %v10645 = vpop.f32.mrb[0].mxu0
        %v10646 = vadd.f32 %v9882, %v10645
        %10647 = vmatprep.mubr.bf16.mxu0 %v9562
        %10648 = vmatmul.mubr.bf16.gmra.mrb[0].mxu0 %v9561
        %v10649 = vpop.f32.mrb[0].mxu0
        %v10650 = vadd.f32 %v9878, %v10649
        %v10651 = vpop.f32.mrb[0].mxu0
        %v10652 = vadd.f32 %v9882, %v10651
        %v10653 = vpop.f32.mrb[0].mxu0
        %v10654 = vadd.f32 %v9878, %v10653
        %v10655 = vpop.f32.mrb[0].mxu0
        %v10656 = vadd.f32 %v9882, %v10655
        %10657 = vmatprep.mubr.bf16.mxu0 %v9570
        %10658 = vmatmul.mubr.bf16.gmra.mrb[0].mxu0 %v9569
        %v10659 = vpop.f32.mrb[0].mxu0
        %v10660 = vadd.f32 %v9878, %v10659
        %v10661 = vpop.f32.mrb[0].mxu0
        %v10662 = vadd.f32 %v9882, %v10661
        %v10663 = vpop.f32.mrb[0].mxu0
        %v10664 = vadd.f32 %v9878, %v10663
        %v10665 = vpop.f32.mrb[0].mxu0
        %v10666 = vadd.f32 %v9882, %v10665
        %10667 = vmatprep.mubr.bf16.mxu0 %v9578
        %10668 = vmatmul.mubr.bf16.gmra.mrb[0].mxu0 %v9577
        %v10669 = vpop.f32.mrb[0].mxu0
        %v10670 = vadd.f32 %v9878, %v10669
        %v10671 = vpop.f32.mrb[0].mxu0
        %v10672 = vadd.f32 %v9882, %v10671
        %v10673 = vpop.f32.mrb[0].mxu0
        %v10674 = vadd.f32 %v9878, %v10673
        %v10675 = vpop.f32.mrb[0].mxu0
        %v10676 = vadd.f32 %v9882, %v10675
        %10677 = vmatprep.mubr.bf16.mxu0 %v9586
        %10678 = vmatmul.mubr.bf16.gmra.mrb[0].mxu0 %v9585
        %v10679 = vpop.f32.mrb[0].mxu0
        %v10680 = vadd.f32 %v9878, %v10679
        %v10681 = vpop.f32.mrb[0].mxu0
        %v10682 = vadd.f32 %v9882, %v10681
        %v10683 = vpop.f32.mrb[0].mxu0
        %v10684 = vadd.f32 %v9878, %v10683
        %v10685 = vpop.f32.mrb[0].mxu0
        %v10686 = vadd.f32 %v9882, %v10685
        %10687 = vmatprep.mubr.bf16.mxu0 %v9594
        %10688 = vmatmul.mubr.bf16.gmra.mrb[0].mxu0 %v9593
        %v10689 = vpop.f32.mrb[0].mxu0
        %v10690 = vadd.f32 %v9878, %v10689
        %v10691 = vpop.f32.mrb[0].mxu0
        %v10692 = vadd.f32 %v9882, %v10691
        %v10693 = vpop.f32.mrb[0].mxu0
        %v10694 = vadd.f32 %v9878, %v10693
        %v10695 = vpop.f32.mrb[0].mxu0
        %v10696 = vadd.f32 %v9882, %v10695
        %10697 = vmatprep.mubr.bf16.mxu0 %v9602
        %10698 = vmatmul.mubr.bf16.gmra.mrb[0].mxu0 %v9601
        %v10699 = vpop.f32.mrb[0].mxu0
        %v10700 = vadd.f32 %v9878, %v10699
        %v10701 = vpop.f32.mrb[0].mxu0
        %v10702 = vadd.f32 %v9882, %v10701
        %v10703 = vpop.f32.mrb[0].mxu0
        %v10704 = vadd.f32 %v9878, %v10703
        %v10705 = vpop.f32.mrb[0].mxu0
        %v10706 = vadd.f32 %v9882, %v10705
        %10707 = vmatprep.mubr.bf16.mxu0 %v9610
        %10708 = vmatmul.mubr.bf16.gmra.mrb[0].mxu0 %v9609
        %v10709 = vpop.f32.mrb[0].mxu0
        %v10710 = vadd.f32 %v9878, %v10709
        %v10711 = vpop.f32.mrb[0].mxu0
        %v10712 = vadd.f32 %v9882, %v10711
        %v10713 = vpop.f32.mrb[0].mxu0
        %v10714 = vadd.f32 %v9878, %v10713
        %v10715 = vpop.f32.mrb[0].mxu0
        %v10716 = vadd.f32 %v9882, %v10715
        %10717 = vmatprep.mubr.bf16.mxu0 %v9618
        %10718 = vmatmul.mubr.bf16.gmra.mrb[0].mxu0 %v9617
        %v10719 = vpop.f32.mrb[0].mxu0
        %v10720 = vadd.f32 %v9878, %v10719
        %v10721 = vpop.f32.mrb[0].mxu0
        %v10722 = vadd.f32 %v9882, %v10721
        %v10723 = vpop.f32.mrb[0].mxu0
        %v10724 = vadd.f32 %v9878, %v10723
        %v10725 = vpop.f32.mrb[0].mxu0
        %v10726 = vadd.f32 %v9882, %v10725
        %10727 = vmatprep.mubr.bf16.mxu0 %v9626
        %10728 = vmatmul.mubr.bf16.gmra.mrb[0].mxu0 %v9625
        %v10729 = vpop.f32.mrb[0].mxu0
        %v10730 = vadd.f32 %v9878, %v10729
        %v10731 = vpop.f32.mrb[0].mxu0
        %v10732 = vadd.f32 %v9882, %v10731
        %v10733 = vpop.f32.mrb[0].mxu0
        %v10734 = vadd.f32 %v9878, %v10733
        %v10735 = vpop.f32.mrb[0].mxu0
        %v10736 = vadd.f32 %v9882, %v10735
        %10737 = vmatprep.mubr.bf16.mxu0 %v9634
        %10738 = vmatmul.mubr.bf16.gmra.mrb[0].mxu0 %v9633
        %v10739 = vpop.f32.mrb[0].mxu0
        %v10740 = vadd.f32 %v9878, %v10739
        %v10741 = vpop.f32.mrb[0].mxu0
        %v10742 = vadd.f32 %v9882, %v10741
        %v10743 = vpop.f32.mrb[0].mxu0
        %v10744 = vadd.f32 %v9878, %v10743
        %v10745 = vpop.f32.mrb[0].mxu0
        %v10746 = vadd.f32 %v9882, %v10745
        %10747 = vmatprep.mubr.bf16.mxu0 %v9642
        %10748 = vmatmul.mubr.bf16.gmra.mrb[0].mxu0 %v9641
        %v10749 = vpop.f32.mrb[0].mxu0
        %v10750 = vadd.f32 %v9878, %v10749
        %v10751 = vpop.f32.mrb[0].mxu0
        %v10752 = vadd.f32 %v9882, %v10751
        %v10753 = vpop.f32.mrb[0].mxu0
        %v10754 = vadd.f32 %v9878, %v10753
        %v10755 = vpop.f32.mrb[0].mxu0
        %v10756 = vadd.f32 %v9882, %v10755
        %10757 = vmatprep.mubr.bf16.mxu0 %v9650
        %10758 = vmatmul.mubr.bf16.gmra.mrb[0].mxu0 %v9649
        %v10759 = vpop.f32.mrb[0].mxu0
        %v10760 = vadd.f32 %v9878, %v10759
        %v10761 = vpop.f32.mrb[0].mxu0
        %v10762 = vadd.f32 %v9882, %v10761
        %v10763 = vpop.f32.mrb[0].mxu0
        %v10764 = vadd.f32 %v9878, %v10763
        %v10765 = vpop.f32.mrb[0].mxu0
        %v10766 = vadd.f32 %v9882, %v10765
        %10767 = vmatprep.mubr.bf16.mxu0 %v9658
        %10768 = vmatmul.mubr.bf16.gmra.mrb[0].mxu0 %v9657
        %v10769 = vpop.f32.mrb[0].mxu0
        %v10770 = vadd.f32 %v9878, %v10769
        %v10771 = vpop.f32.mrb[0].mxu0
        %v10772 = vadd.f32 %v9882, %v10771
        %v10773 = vpop.f32.mrb[0].mxu0
        %v10774 = vadd.f32 %v9878, %v10773
        %v10775 = vpop.f32.mrb[0].mxu0
        %v10776 = vadd.f32 %v9882, %v10775
        %10777 = vmatprep.mubr.bf16.mxu0 %v9666
        %10778 = vmatmul.mubr.bf16.gmra.mrb[0].mxu0 %v9665
        %v10779 = vpop.f32.mrb[0].mxu0
        %v10780 = vadd.f32 %v9878, %v10779
        %v10781 = vpop.f32.mrb[0].mxu0
        %v10782 = vadd.f32 %v9882, %v10781
        %v10783 = vpop.f32.mrb[0].mxu0
        %v10784 = vadd.f32 %v9878, %v10783
        %v10785 = vpop.f32.mrb[0].mxu0
        %v10786 = vadd.f32 %v9882, %v10785
        %10787 = vmatprep.mubr.bf16.mxu0 %v9674
        %10788 = vmatmul.mubr.bf16.gmra.mrb[0].mxu0 %v9673
        %v10789 = vpop.f32.mrb[0].mxu0
        %v10790 = vadd.f32 %v9878, %v10789
        %v10791 = vpop.f32.mrb[0].mxu0
        %v10792 = vadd.f32 %v9882, %v10791
        %v10793 = vpop.f32.mrb[0].mxu0
        %v10794 = vadd.f32 %v9878, %v10793
        %v10795 = vpop.f32.mrb[0].mxu0
        %v10796 = vadd.f32 %v9882, %v10795
        %10797 = vmatprep.mubr.bf16.mxu0 %v9682
        %10798 = vmatmul.mubr.bf16.gmra.mrb[0].mxu0 %v9681
        %v10799 = vpop.f32.mrb[0].mxu0
        %v10800 = vadd.f32 %v9878, %v10799
        %v10801 = vpop.f32.mrb[0].mxu0
        %v10802 = vadd.f32 %v9882, %v10801
        %v10803 = vpop.f32.mrb[0].mxu0
        %v10804 = vadd.f32 %v9878, %v10803
        %v10805 = vpop.f32.mrb[0].mxu0
        %v10806 = vadd.f32 %v9882, %v10805
        %10807 = vmatprep.mubr.bf16.mxu0 %v9690
        %10808 = vmatmul.mubr.bf16.gmra.mrb[0].mxu0 %v9689
        %v10809 = vpop.f32.mrb[0].mxu0
        %v10810 = vadd.f32 %v9878, %v10809
        %v10811 = vpop.f32.mrb[0].mxu0
        %v10812 = vadd.f32 %v9882, %v10811
        %v10813 = vpop.f32.mrb[0].mxu0
        %v10814 = vadd.f32 %v9878, %v10813
        %v10815 = vpop.f32.mrb[0].mxu0
        %v10816 = vadd.f32 %v9882, %v10815
        %10817 = vmatprep.mubr.bf16.mxu0 %v9698
        %10818 = vmatmul.mubr.bf16.gmra.mrb[0].mxu0 %v9697
        %v10819 = vpop.f32.mrb[0].mxu0
        %v10820 = vadd.f32 %v9878, %v10819
        %v10821 = vpop.f32.mrb[0].mxu0
        %v10822 = vadd.f32 %v9882, %v10821
        %v10823 = vpop.f32.mrb[0].mxu0
        %v10824 = vadd.f32 %v9878, %v10823
        %v10825 = vpop.f32.mrb[0].mxu0
        %v10826 = vadd.f32 %v9882, %v10825
        %10827 = vmatprep.mubr.bf16.mxu0 %v9706
        %10828 = vmatmul.mubr.bf16.gmra.mrb[0].mxu0 %v9705
        %v10829 = vpop.f32.mrb[0].mxu0
        %v10830 = vadd.f32 %v9878, %v10829
        %v10831 = vpop.f32.mrb[0].mxu0
        %v10832 = vadd.f32 %v9882, %v10831
        %v10833 = vpop.f32.mrb[0].mxu0
        %v10834 = vadd.f32 %v9878, %v10833
        %v10835 = vpop.f32.mrb[0].mxu0
        %v10836 = vadd.f32 %v9882, %v10835
        %10837 = vmatprep.mubr.bf16.mxu0 %v9714
        %10838 = vmatmul.mubr.bf16.gmra.mrb[0].mxu0 %v9713
        %v10839 = vpop.f32.mrb[0].mxu0
        %v10840 = vadd.f32 %v9878, %v10839
        %v10841 = vpop.f32.mrb[0].mxu0
        %v10842 = vadd.f32 %v9882, %v10841
        %v10843 = vpop.f32.mrb[0].mxu0
        %v10844 = vadd.f32 %v9878, %v10843
        %v10845 = vpop.f32.mrb[0].mxu0
        %v10846 = vadd.f32 %v9882, %v10845
        %10847 = vmatprep.mubr.bf16.mxu0 %v9722
        %10848 = vmatmul.mubr.bf16.gmra.mrb[0].mxu0 %v9721
        %v10849 = vpop.f32.mrb[0].mxu0
        %v10850 = vadd.f32 %v9878, %v10849
        %v10851 = vpop.f32.mrb[0].mxu0
        %v10852 = vadd.f32 %v9882, %v10851
        %v10853 = vpop.f32.mrb[0].mxu0
        %v10854 = vadd.f32 %v9878, %v10853
        %v10855 = vpop.f32.mrb[0].mxu0
        %v10856 = vadd.f32 %v9882, %v10855
        %10857 = vmatprep.mubr.bf16.mxu0 %v9730
        %10858 = vmatmul.mubr.bf16.gmra.mrb[0].mxu0 %v9729
        %v10859 = vpop.f32.mrb[0].mxu0
        %v10860 = vadd.f32 %v9878, %v10859
        %v10861 = vpop.f32.mrb[0].mxu0
        %v10862 = vadd.f32 %v9882, %v10861
        %v10863 = vpop.f32.mrb[0].mxu0
        %v10864 = vadd.f32 %v9878, %v10863
        %v10865 = vpop.f32.mrb[0].mxu0
        %v10866 = vadd.f32 %v9882, %v10865
        %10867 = vmatprep.mubr.bf16.mxu0 %v9738
        %10868 = vmatmul.mubr.bf16.gmra.mrb[0].mxu0 %v9737
        %v10869 = vpop.f32.mrb[0].mxu0
        %v10870 = vadd.f32 %v9878, %v10869
        %v10871 = vpop.f32.mrb[0].mxu0
        %v10872 = vadd.f32 %v9882, %v10871
        %v10873 = vpop.f32.mrb[0].mxu0
        %v10874 = vadd.f32 %v9878, %v10873
        %v10875 = vpop.f32.mrb[0].mxu0
        %v10876 = vadd.f32 %v9882, %v10875
        %10877 = vdwg.mxu0
        %10878 = vmatprep.subr.bf16.mxu0 %v10272
        %10879 = vmatpush1.bf16.xpose.msra.mxu0 %v10271
        %10880 = vmatprep.subr.bf16.mxu0 %v10280
        %10881 = vmatpush1.bf16.xpose.msra.mxu0 %v10279
        %10882 = vmatprep.subr.bf16.mxu0 %v10288
        %10883 = vmatpush1.bf16.xpose.msra.mxu0 %v10287
        %10884 = vmatprep.subr.bf16.mxu0 %v10296
        %10885 = vmatpush1.bf16.xpose.msra.mxu0 %v10295
        %10886 = vmatprep.subr.bf16.mxu0 %v10304
        %10887 = vmatpush1.bf16.xpose.msra.mxu0 %v10303
        %10888 = vmatprep.subr.bf16.mxu0 %v10312
        %10889 = vmatpush1.bf16.xpose.msra.mxu0 %v10311
        %10890 = vmatprep.subr.bf16.mxu0 %v10320
        %10891 = vmatpush1.bf16.xpose.msra.mxu0 %v10319
        %10892 = vmatprep.subr.bf16.mxu0 %v10328
        %10893 = vmatpush1.bf16.xpose.msra.mxu0 %v10327
        %10894 = vmatprep.subr.bf16.mxu0 %v10336
        %10895 = vmatpush1.bf16.xpose.msra.mxu0 %v10335
        %10896 = vmatprep.subr.bf16.mxu0 %v10344
        %10897 = vmatpush1.bf16.xpose.msra.mxu0 %v10343
        %10898 = vmatprep.subr.bf16.mxu0 %v10352
        %10899 = vmatpush1.bf16.xpose.msra.mxu0 %v10351
        %10900 = vmatprep.subr.bf16.mxu0 %v10360
        %10901 = vmatpush1.bf16.xpose.msra.mxu0 %v10359
        %10902 = vmatprep.subr.bf16.mxu0 %v10368
        %10903 = vmatpush1.bf16.xpose.msra.mxu0 %v10367
        %10904 = vmatprep.subr.bf16.mxu0 %v10376
        %10905 = vmatpush1.bf16.xpose.msra.mxu0 %v10375
        %10906 = vmatprep.subr.bf16.mxu0 %v10384
        %10907 = vmatpush1.bf16.xpose.msra.mxu0 %v10383
        %10908 = vmatprep.subr.bf16.mxu0 %v10392
        %10909 = vmatpush1.bf16.xpose.msra.mxu0 %v10391
        %10910 = vmatprep.mubr.bf16.mxu0 %v9492
        %10911 = vmatmul.mubr.bf16.gmra.mrb[0].mxu0 %v9491
        %v10912 = vpop.f32.mrb[0].mxu0
        %v10913 = vadd.f32 %v10560, %v10912
        %v10914 = vpop.f32.mrb[0].mxu0
        %v10915 = vadd.f32 %v10562, %v10914
        %v10916 = vpop.f32.mrb[0].mxu0
        %v10917 = vadd.f32 %v10564, %v10916
        %v10918 = vpop.f32.mrb[0].mxu0
        %v10919 = vadd.f32 %v10566, %v10918
        %10920 = vmatprep.mubr.bf16.mxu0 %v9500
        %10921 = vmatmul.mubr.bf16.gmra.mrb[0].mxu0 %v9499
        %v10922 = vpop.f32.mrb[0].mxu0
        %v10923 = vadd.f32 %v10570, %v10922
        %v10924 = vpop.f32.mrb[0].mxu0
        %v10925 = vadd.f32 %v10572, %v10924
        %v10926 = vpop.f32.mrb[0].mxu0
        %v10927 = vadd.f32 %v10574, %v10926
        %v10928 = vpop.f32.mrb[0].mxu0
        %v10929 = vadd.f32 %v10576, %v10928
        %10930 = vmatprep.mubr.bf16.mxu0 %v9508
        %10931 = vmatmul.mubr.bf16.gmra.mrb[0].mxu0 %v9507
        %v10932 = vpop.f32.mrb[0].mxu0
        %v10933 = vadd.f32 %v10580, %v10932
        %v10934 = vpop.f32.mrb[0].mxu0
        %v10935 = vadd.f32 %v10582, %v10934
        %v10936 = vpop.f32.mrb[0].mxu0
        %v10937 = vadd.f32 %v10584, %v10936
        %v10938 = vpop.f32.mrb[0].mxu0
        %v10939 = vadd.f32 %v10586, %v10938
        %10940 = vmatprep.mubr.bf16.mxu0 %v9516
        %10941 = vmatmul.mubr.bf16.gmra.mrb[0].mxu0 %v9515
        %v10942 = vpop.f32.mrb[0].mxu0
        %v10943 = vadd.f32 %v10590, %v10942
        %v10944 = vpop.f32.mrb[0].mxu0
        %v10945 = vadd.f32 %v10592, %v10944
        %v10946 = vpop.f32.mrb[0].mxu0
        %v10947 = vadd.f32 %v10594, %v10946
        %v10948 = vpop.f32.mrb[0].mxu0
        %v10949 = vadd.f32 %v10596, %v10948
        %10950 = vmatprep.mubr.bf16.mxu0 %v9524
        %10951 = vmatmul.mubr.bf16.gmra.mrb[0].mxu0 %v9523
        %v10952 = vpop.f32.mrb[0].mxu0
        %v10953 = vadd.f32 %v10600, %v10952
        %v10954 = vpop.f32.mrb[0].mxu0
        %v10955 = vadd.f32 %v10602, %v10954
        %v10956 = vpop.f32.mrb[0].mxu0
        %v10957 = vadd.f32 %v10604, %v10956
        %v10958 = vpop.f32.mrb[0].mxu0
        %v10959 = vadd.f32 %v10606, %v10958
        %10960 = vmatprep.mubr.bf16.mxu0 %v9532
        %10961 = vmatmul.mubr.bf16.gmra.mrb[0].mxu0 %v9531
        %v10962 = vpop.f32.mrb[0].mxu0
        %v10963 = vadd.f32 %v10610, %v10962
        %v10964 = vpop.f32.mrb[0].mxu0
        %v10965 = vadd.f32 %v10612, %v10964
        %v10966 = vpop.f32.mrb[0].mxu0
        %v10967 = vadd.f32 %v10614, %v10966
        %v10968 = vpop.f32.mrb[0].mxu0
        %v10969 = vadd.f32 %v10616, %v10968
        %10970 = vmatprep.mubr.bf16.mxu0 %v9540
        %10971 = vmatmul.mubr.bf16.gmra.mrb[0].mxu0 %v9539
        %v10972 = vpop.f32.mrb[0].mxu0
        %v10973 = vadd.f32 %v10620, %v10972
        %v10974 = vpop.f32.mrb[0].mxu0
        %v10975 = vadd.f32 %v10622, %v10974
        %v10976 = vpop.f32.mrb[0].mxu0
        %v10977 = vadd.f32 %v10624, %v10976
        %v10978 = vpop.f32.mrb[0].mxu0
        %v10979 = vadd.f32 %v10626, %v10978
        %10980 = vmatprep.mubr.bf16.mxu0 %v9548
        %10981 = vmatmul.mubr.bf16.gmra.mrb[0].mxu0 %v9547
        %v10982 = vpop.f32.mrb[0].mxu0
        %v10983 = vadd.f32 %v10630, %v10982
        %v10984 = vpop.f32.mrb[0].mxu0
        %v10985 = vadd.f32 %v10632, %v10984
        %v10986 = vpop.f32.mrb[0].mxu0
        %v10987 = vadd.f32 %v10634, %v10986
        %v10988 = vpop.f32.mrb[0].mxu0
        %v10989 = vadd.f32 %v10636, %v10988
        %10990 = vmatprep.mubr.bf16.mxu0 %v9556
        %10991 = vmatmul.mubr.bf16.gmra.mrb[0].mxu0 %v9555
        %v10992 = vpop.f32.mrb[0].mxu0
        %v10993 = vadd.f32 %v10640, %v10992
        %v10994 = vpop.f32.mrb[0].mxu0
        %v10995 = vadd.f32 %v10642, %v10994
        %v10996 = vpop.f32.mrb[0].mxu0
        %v10997 = vadd.f32 %v10644, %v10996
        %v10998 = vpop.f32.mrb[0].mxu0
        %v10999 = vadd.f32 %v10646, %v10998
        %11000 = vmatprep.mubr.bf16.mxu0 %v9564
        %11001 = vmatmul.mubr.bf16.gmra.mrb[0].mxu0 %v9563
        %v11002 = vpop.f32.mrb[0].mxu0
        %v11003 = vadd.f32 %v10650, %v11002
        %v11004 = vpop.f32.mrb[0].mxu0
        %v11005 = vadd.f32 %v10652, %v11004
        %v11006 = vpop.f32.mrb[0].mxu0
        %v11007 = vadd.f32 %v10654, %v11006
        %v11008 = vpop.f32.mrb[0].mxu0
        %v11009 = vadd.f32 %v10656, %v11008
        %11010 = vmatprep.mubr.bf16.mxu0 %v9572
        %11011 = vmatmul.mubr.bf16.gmra.mrb[0].mxu0 %v9571
        %v11012 = vpop.f32.mrb[0].mxu0
        %v11013 = vadd.f32 %v10660, %v11012
        %v11014 = vpop.f32.mrb[0].mxu0
        %v11015 = vadd.f32 %v10662, %v11014
        %v11016 = vpop.f32.mrb[0].mxu0
        %v11017 = vadd.f32 %v10664, %v11016
        %v11018 = vpop.f32.mrb[0].mxu0
        %v11019 = vadd.f32 %v10666, %v11018
        %11020 = vmatprep.mubr.bf16.mxu0 %v9580
        %11021 = vmatmul.mubr.bf16.gmra.mrb[0].mxu0 %v9579
        %v11022 = vpop.f32.mrb[0].mxu0
        %v11023 = vadd.f32 %v10670, %v11022
        %v11024 = vpop.f32.mrb[0].mxu0
        %v11025 = vadd.f32 %v10672, %v11024
        %v11026 = vpop.f32.mrb[0].mxu0
        %v11027 = vadd.f32 %v10674, %v11026
        %v11028 = vpop.f32.mrb[0].mxu0
        %v11029 = vadd.f32 %v10676, %v11028
        %11030 = vmatprep.mubr.bf16.mxu0 %v9588
        %11031 = vmatmul.mubr.bf16.gmra.mrb[0].mxu0 %v9587
        %v11032 = vpop.f32.mrb[0].mxu0
        %v11033 = vadd.f32 %v10680, %v11032
        %v11034 = vpop.f32.mrb[0].mxu0
        %v11035 = vadd.f32 %v10682, %v11034
        %v11036 = vpop.f32.mrb[0].mxu0
        %v11037 = vadd.f32 %v10684, %v11036
        %v11038 = vpop.f32.mrb[0].mxu0
        %v11039 = vadd.f32 %v10686, %v11038
        %11040 = vmatprep.mubr.bf16.mxu0 %v9596
        %11041 = vmatmul.mubr.bf16.gmra.mrb[0].mxu0 %v9595
        %v11042 = vpop.f32.mrb[0].mxu0
        %v11043 = vadd.f32 %v10690, %v11042
        %v11044 = vpop.f32.mrb[0].mxu0
        %v11045 = vadd.f32 %v10692, %v11044
        %v11046 = vpop.f32.mrb[0].mxu0
        %v11047 = vadd.f32 %v10694, %v11046
        %v11048 = vpop.f32.mrb[0].mxu0
        %v11049 = vadd.f32 %v10696, %v11048
        %11050 = vmatprep.mubr.bf16.mxu0 %v9604
        %11051 = vmatmul.mubr.bf16.gmra.mrb[0].mxu0 %v9603
        %v11052 = vpop.f32.mrb[0].mxu0
        %v11053 = vadd.f32 %v10700, %v11052
        %v11054 = vpop.f32.mrb[0].mxu0
        %v11055 = vadd.f32 %v10702, %v11054
        %v11056 = vpop.f32.mrb[0].mxu0
        %v11057 = vadd.f32 %v10704, %v11056
        %v11058 = vpop.f32.mrb[0].mxu0
        %v11059 = vadd.f32 %v10706, %v11058
        %11060 = vmatprep.mubr.bf16.mxu0 %v9612
        %11061 = vmatmul.mubr.bf16.gmra.mrb[0].mxu0 %v9611
        %v11062 = vpop.f32.mrb[0].mxu0
        %v11063 = vadd.f32 %v10710, %v11062
        %v11064 = vpop.f32.mrb[0].mxu0
        %v11065 = vadd.f32 %v10712, %v11064
        %v11066 = vpop.f32.mrb[0].mxu0
        %v11067 = vadd.f32 %v10714, %v11066
        %v11068 = vpop.f32.mrb[0].mxu0
        %v11069 = vadd.f32 %v10716, %v11068
        %11070 = vmatprep.mubr.bf16.mxu0 %v9620
        %11071 = vmatmul.mubr.bf16.gmra.mrb[0].mxu0 %v9619
        %v11072 = vpop.f32.mrb[0].mxu0
        %v11073 = vadd.f32 %v10720, %v11072
        %v11074 = vpop.f32.mrb[0].mxu0
        %v11075 = vadd.f32 %v10722, %v11074
        %v11076 = vpop.f32.mrb[0].mxu0
        %v11077 = vadd.f32 %v10724, %v11076
        %v11078 = vpop.f32.mrb[0].mxu0
        %v11079 = vadd.f32 %v10726, %v11078
        %11080 = vmatprep.mubr.bf16.mxu0 %v9628
        %11081 = vmatmul.mubr.bf16.gmra.mrb[0].mxu0 %v9627
        %v11082 = vpop.f32.mrb[0].mxu0
        %v11083 = vadd.f32 %v10730, %v11082
        %v11084 = vpop.f32.mrb[0].mxu0
        %v11085 = vadd.f32 %v10732, %v11084
        %v11086 = vpop.f32.mrb[0].mxu0
        %v11087 = vadd.f32 %v10734, %v11086
        %v11088 = vpop.f32.mrb[0].mxu0
        %v11089 = vadd.f32 %v10736, %v11088
        %11090 = vmatprep.mubr.bf16.mxu0 %v9636
        %11091 = vmatmul.mubr.bf16.gmra.mrb[0].mxu0 %v9635
        %v11092 = vpop.f32.mrb[0].mxu0
        %v11093 = vadd.f32 %v10740, %v11092
        %v11094 = vpop.f32.mrb[0].mxu0
        %v11095 = vadd.f32 %v10742, %v11094
        %v11096 = vpop.f32.mrb[0].mxu0
        %v11097 = vadd.f32 %v10744, %v11096
        %v11098 = vpop.f32.mrb[0].mxu0
        %v11099 = vadd.f32 %v10746, %v11098
        %11100 = vmatprep.mubr.bf16.mxu0 %v9644
        %11101 = vmatmul.mubr.bf16.gmra.mrb[0].mxu0 %v9643
        %v11102 = vpop.f32.mrb[0].mxu0
        %v11103 = vadd.f32 %v10750, %v11102
        %v11104 = vpop.f32.mrb[0].mxu0
        %v11105 = vadd.f32 %v10752, %v11104
        %v11106 = vpop.f32.mrb[0].mxu0
        %v11107 = vadd.f32 %v10754, %v11106
        %v11108 = vpop.f32.mrb[0].mxu0
        %v11109 = vadd.f32 %v10756, %v11108
        %11110 = vmatprep.mubr.bf16.mxu0 %v9652
        %11111 = vmatmul.mubr.bf16.gmra.mrb[0].mxu0 %v9651
        %v11112 = vpop.f32.mrb[0].mxu0
        %v11113 = vadd.f32 %v10760, %v11112
        %v11114 = vpop.f32.mrb[0].mxu0
        %v11115 = vadd.f32 %v10762, %v11114
        %v11116 = vpop.f32.mrb[0].mxu0
        %v11117 = vadd.f32 %v10764, %v11116
        %v11118 = vpop.f32.mrb[0].mxu0
        %v11119 = vadd.f32 %v10766, %v11118
        %11120 = vmatprep.mubr.bf16.mxu0 %v9660
        %11121 = vmatmul.mubr.bf16.gmra.mrb[0].mxu0 %v9659
        %v11122 = vpop.f32.mrb[0].mxu0
        %v11123 = vadd.f32 %v10770, %v11122
        %v11124 = vpop.f32.mrb[0].mxu0
        %v11125 = vadd.f32 %v10772, %v11124
        %v11126 = vpop.f32.mrb[0].mxu0
        %v11127 = vadd.f32 %v10774, %v11126
        %v11128 = vpop.f32.mrb[0].mxu0
        %v11129 = vadd.f32 %v10776, %v11128
        %11130 = vmatprep.mubr.bf16.mxu0 %v9668
        %11131 = vmatmul.mubr.bf16.gmra.mrb[0].mxu0 %v9667
        %v11132 = vpop.f32.mrb[0].mxu0
        %v11133 = vadd.f32 %v10780, %v11132
        %v11134 = vpop.f32.mrb[0].mxu0
        %v11135 = vadd.f32 %v10782, %v11134
        %v11136 = vpop.f32.mrb[0].mxu0
        %v11137 = vadd.f32 %v10784, %v11136
        %v11138 = vpop.f32.mrb[0].mxu0
        %v11139 = vadd.f32 %v10786, %v11138
        %11140 = vmatprep.mubr.bf16.mxu0 %v9676
        %11141 = vmatmul.mubr.bf16.gmra.mrb[0].mxu0 %v9675
        %v11142 = vpop.f32.mrb[0].mxu0
        %v11143 = vadd.f32 %v10790, %v11142
        %v11144 = vpop.f32.mrb[0].mxu0
        %v11145 = vadd.f32 %v10792, %v11144
        %v11146 = vpop.f32.mrb[0].mxu0
        %v11147 = vadd.f32 %v10794, %v11146
        %v11148 = vpop.f32.mrb[0].mxu0
        %v11149 = vadd.f32 %v10796, %v11148
        %11150 = vmatprep.mubr.bf16.mxu0 %v9684
        %11151 = vmatmul.mubr.bf16.gmra.mrb[0].mxu0 %v9683
        %v11152 = vpop.f32.mrb[0].mxu0
        %v11153 = vadd.f32 %v10800, %v11152
        %v11154 = vpop.f32.mrb[0].mxu0
        %v11155 = vadd.f32 %v10802, %v11154
        %v11156 = vpop.f32.mrb[0].mxu0
        %v11157 = vadd.f32 %v10804, %v11156
        %v11158 = vpop.f32.mrb[0].mxu0
        %v11159 = vadd.f32 %v10806, %v11158
        %11160 = vmatprep.mubr.bf16.mxu0 %v9692
        %11161 = vmatmul.mubr.bf16.gmra.mrb[0].mxu0 %v9691
        %v11162 = vpop.f32.mrb[0].mxu0
        %v11163 = vadd.f32 %v10810, %v11162
        %v11164 = vpop.f32.mrb[0].mxu0
        %v11165 = vadd.f32 %v10812, %v11164
        %v11166 = vpop.f32.mrb[0].mxu0
        %v11167 = vadd.f32 %v10814, %v11166
        %v11168 = vpop.f32.mrb[0].mxu0
        %v11169 = vadd.f32 %v10816, %v11168
        %11170 = vmatprep.mubr.bf16.mxu0 %v9700
        %11171 = vmatmul.mubr.bf16.gmra.mrb[0].mxu0 %v9699
        %v11172 = vpop.f32.mrb[0].mxu0
        %v11173 = vadd.f32 %v10820, %v11172
        %v11174 = vpop.f32.mrb[0].mxu0
        %v11175 = vadd.f32 %v10822, %v11174
        %v11176 = vpop.f32.mrb[0].mxu0
        %v11177 = vadd.f32 %v10824, %v11176
        %v11178 = vpop.f32.mrb[0].mxu0
        %v11179 = vadd.f32 %v10826, %v11178
        %11180 = vmatprep.mubr.bf16.mxu0 %v9708
        %11181 = vmatmul.mubr.bf16.gmra.mrb[0].mxu0 %v9707
        %v11182 = vpop.f32.mrb[0].mxu0
        %v11183 = vadd.f32 %v10830, %v11182
        %v11184 = vpop.f32.mrb[0].mxu0
        %v11185 = vadd.f32 %v10832, %v11184
        %v11186 = vpop.f32.mrb[0].mxu0
        %v11187 = vadd.f32 %v10834, %v11186
        %v11188 = vpop.f32.mrb[0].mxu0
        %v11189 = vadd.f32 %v10836, %v11188
        %11190 = vmatprep.mubr.bf16.mxu0 %v9716
        %11191 = vmatmul.mubr.bf16.gmra.mrb[0].mxu0 %v9715
        %v11192 = vpop.f32.mrb[0].mxu0
        %v11193 = vadd.f32 %v10840, %v11192
        %v11194 = vpop.f32.mrb[0].mxu0
        %v11195 = vadd.f32 %v10842, %v11194
        %v11196 = vpop.f32.mrb[0].mxu0
        %v11197 = vadd.f32 %v10844, %v11196
        %v11198 = vpop.f32.mrb[0].mxu0
        %v11199 = vadd.f32 %v10846, %v11198
        %11200 = vmatprep.mubr.bf16.mxu0 %v9724
        %11201 = vmatmul.mubr.bf16.gmra.mrb[0].mxu0 %v9723
        %v11202 = vpop.f32.mrb[0].mxu0
        %v11203 = vadd.f32 %v10850, %v11202
        %v11204 = vpop.f32.mrb[0].mxu0
        %v11205 = vadd.f32 %v10852, %v11204
        %v11206 = vpop.f32.mrb[0].mxu0
        %v11207 = vadd.f32 %v10854, %v11206
        %v11208 = vpop.f32.mrb[0].mxu0
        %v11209 = vadd.f32 %v10856, %v11208
        %11210 = vmatprep.mubr.bf16.mxu0 %v9732
        %11211 = vmatmul.mubr.bf16.gmra.mrb[0].mxu0 %v9731
        %v11212 = vpop.f32.mrb[0].mxu0
        %v11213 = vadd.f32 %v10860, %v11212
        %v11214 = vpop.f32.mrb[0].mxu0
        %v11215 = vadd.f32 %v10862, %v11214
        %v11216 = vpop.f32.mrb[0].mxu0
        %v11217 = vadd.f32 %v10864, %v11216
        %v11218 = vpop.f32.mrb[0].mxu0
        %v11219 = vadd.f32 %v10866, %v11218
        %11220 = vmatprep.mubr.bf16.mxu0 %v9740
        %11221 = vmatmul.mubr.bf16.gmra.mrb[0].mxu0 %v9739
        %v11222 = vpop.f32.mrb[0].mxu0
        %v11223 = vadd.f32 %v10870, %v11222
        %v11224 = vpop.f32.mrb[0].mxu0
        %v11225 = vadd.f32 %v10872, %v11224
        %v11226 = vpop.f32.mrb[0].mxu0
        %v11227 = vadd.f32 %v10874, %v11226
        %v11228 = vpop.f32.mrb[0].mxu0
        %v11229 = vadd.f32 %v10876, %v11228
        %11230 = vdwg.mxu0
        %11231 = vmatprep.subr.bf16.mxu0 %v10274
        %11232 = vmatpush1.bf16.xpose.msra.mxu0 %v10273
        %11233 = vmatprep.subr.bf16.mxu0 %v10282
        %11234 = vmatpush1.bf16.xpose.msra.mxu0 %v10281
        %11235 = vmatprep.subr.bf16.mxu0 %v10290
        %11236 = vmatpush1.bf16.xpose.msra.mxu0 %v10289
        %11237 = vmatprep.subr.bf16.mxu0 %v10298
        %11238 = vmatpush1.bf16.xpose.msra.mxu0 %v10297
        %11239 = vmatprep.subr.bf16.mxu0 %v10306
        %11240 = vmatpush1.bf16.xpose.msra.mxu0 %v10305
        %11241 = vmatprep.subr.bf16.mxu0 %v10314
        %11242 = vmatpush1.bf16.xpose.msra.mxu0 %v10313
        %11243 = vmatprep.subr.bf16.mxu0 %v10322
        %11244 = vmatpush1.bf16.xpose.msra.mxu0 %v10321
        %11245 = vmatprep.subr.bf16.mxu0 %v10330
        %11246 = vmatpush1.bf16.xpose.msra.mxu0 %v10329
        %11247 = vmatprep.subr.bf16.mxu0 %v10338
        %11248 = vmatpush1.bf16.xpose.msra.mxu0 %v10337
        %11249 = vmatprep.subr.bf16.mxu0 %v10346
        %11250 = vmatpush1.bf16.xpose.msra.mxu0 %v10345
        %11251 = vmatprep.subr.bf16.mxu0 %v10354
        %11252 = vmatpush1.bf16.xpose.msra.mxu0 %v10353
        %11253 = vmatprep.subr.bf16.mxu0 %v10362
        %11254 = vmatpush1.bf16.xpose.msra.mxu0 %v10361
        %11255 = vmatprep.subr.bf16.mxu0 %v10370
        %11256 = vmatpush1.bf16.xpose.msra.mxu0 %v10369
        %11257 = vmatprep.subr.bf16.mxu0 %v10378
        %11258 = vmatpush1.bf16.xpose.msra.mxu0 %v10377
        %11259 = vmatprep.subr.bf16.mxu0 %v10386
        %11260 = vmatpush1.bf16.xpose.msra.mxu0 %v10385
        %11261 = vmatprep.subr.bf16.mxu0 %v10394
        %11262 = vmatpush1.bf16.xpose.msra.mxu0 %v10393
        %11263 = vmatprep.mubr.bf16.mxu0 %v9494
        %11264 = vmatmul.mubr.bf16.gmra.mrb[0].mxu0 %v9493
        %v11265 = vpop.f32.mrb[0].mxu0
        %v11266 = vadd.f32 %v10913, %v11265
        %v11267 = vpop.f32.mrb[0].mxu0
        %v11268 = vadd.f32 %v10915, %v11267
        %v11269 = vpop.f32.mrb[0].mxu0
        %v11270 = vadd.f32 %v10917, %v11269
        %v11271 = vpop.f32.mrb[0].mxu0
        %v11272 = vadd.f32 %v10919, %v11271
        %11273 = vmatprep.mubr.bf16.mxu0 %v9502
        %11274 = vmatmul.mubr.bf16.gmra.mrb[0].mxu0 %v9501
        %v11275 = vpop.f32.mrb[0].mxu0
        %v11276 = vadd.f32 %v10923, %v11275
        %v11277 = vpop.f32.mrb[0].mxu0
        %v11278 = vadd.f32 %v10925, %v11277
        %v11279 = vpop.f32.mrb[0].mxu0
        %v11280 = vadd.f32 %v10927, %v11279
        %v11281 = vpop.f32.mrb[0].mxu0
        %v11282 = vadd.f32 %v10929, %v11281
        %11283 = vmatprep.mubr.bf16.mxu0 %v9510
        %11284 = vmatmul.mubr.bf16.gmra.mrb[0].mxu0 %v9509
        %v11285 = vpop.f32.mrb[0].mxu0
        %v11286 = vadd.f32 %v10933, %v11285
        %v11287 = vpop.f32.mrb[0].mxu0
        %v11288 = vadd.f32 %v10935, %v11287
        %v11289 = vpop.f32.mrb[0].mxu0
        %v11290 = vadd.f32 %v10937, %v11289
        %v11291 = vpop.f32.mrb[0].mxu0
        %v11292 = vadd.f32 %v10939, %v11291
        %11293 = vmatprep.mubr.bf16.mxu0 %v9518
        %11294 = vmatmul.mubr.bf16.gmra.mrb[0].mxu0 %v9517
        %v11295 = vpop.f32.mrb[0].mxu0
        %v11296 = vadd.f32 %v10943, %v11295
        %v11297 = vpop.f32.mrb[0].mxu0
        %v11298 = vadd.f32 %v10945, %v11297
        %v11299 = vpop.f32.mrb[0].mxu0
        %v11300 = vadd.f32 %v10947, %v11299
        %v11301 = vpop.f32.mrb[0].mxu0
        %v11302 = vadd.f32 %v10949, %v11301
        %11303 = vmatprep.mubr.bf16.mxu0 %v9526
        %11304 = vmatmul.mubr.bf16.gmra.mrb[0].mxu0 %v9525
        %v11305 = vpop.f32.mrb[0].mxu0
        %v11306 = vadd.f32 %v10953, %v11305
        %v11307 = vpop.f32.mrb[0].mxu0
        %v11308 = vadd.f32 %v10955, %v11307
        %v11309 = vpop.f32.mrb[0].mxu0
        %v11310 = vadd.f32 %v10957, %v11309
        %v11311 = vpop.f32.mrb[0].mxu0
        %v11312 = vadd.f32 %v10959, %v11311
        %11313 = vmatprep.mubr.bf16.mxu0 %v9534
        %11314 = vmatmul.mubr.bf16.gmra.mrb[0].mxu0 %v9533
        %v11315 = vpop.f32.mrb[0].mxu0
        %v11316 = vadd.f32 %v10963, %v11315
        %v11317 = vpop.f32.mrb[0].mxu0
        %v11318 = vadd.f32 %v10965, %v11317
        %v11319 = vpop.f32.mrb[0].mxu0
        %v11320 = vadd.f32 %v10967, %v11319
        %v11321 = vpop.f32.mrb[0].mxu0
        %v11322 = vadd.f32 %v10969, %v11321
        %11323 = vmatprep.mubr.bf16.mxu0 %v9542
        %11324 = vmatmul.mubr.bf16.gmra.mrb[0].mxu0 %v9541
        %v11325 = vpop.f32.mrb[0].mxu0
        %v11326 = vadd.f32 %v10973, %v11325
        %v11327 = vpop.f32.mrb[0].mxu0
        %v11328 = vadd.f32 %v10975, %v11327
        %v11329 = vpop.f32.mrb[0].mxu0
        %v11330 = vadd.f32 %v10977, %v11329
        %v11331 = vpop.f32.mrb[0].mxu0
        %v11332 = vadd.f32 %v10979, %v11331
        %11333 = vmatprep.mubr.bf16.mxu0 %v9550
        %11334 = vmatmul.mubr.bf16.gmra.mrb[0].mxu0 %v9549
        %v11335 = vpop.f32.mrb[0].mxu0
        %v11336 = vadd.f32 %v10983, %v11335
        %v11337 = vpop.f32.mrb[0].mxu0
        %v11338 = vadd.f32 %v10985, %v11337
        %v11339 = vpop.f32.mrb[0].mxu0
        %v11340 = vadd.f32 %v10987, %v11339
        %v11341 = vpop.f32.mrb[0].mxu0
        %v11342 = vadd.f32 %v10989, %v11341
        %11343 = vmatprep.mubr.bf16.mxu0 %v9558
        %11344 = vmatmul.mubr.bf16.gmra.mrb[0].mxu0 %v9557
        %v11345 = vpop.f32.mrb[0].mxu0
        %v11346 = vadd.f32 %v10993, %v11345
        %v11347 = vpop.f32.mrb[0].mxu0
        %v11348 = vadd.f32 %v10995, %v11347
        %v11349 = vpop.f32.mrb[0].mxu0
        %v11350 = vadd.f32 %v10997, %v11349
        %v11351 = vpop.f32.mrb[0].mxu0
        %v11352 = vadd.f32 %v10999, %v11351
        %11353 = vmatprep.mubr.bf16.mxu0 %v9566
        %11354 = vmatmul.mubr.bf16.gmra.mrb[0].mxu0 %v9565
        %v11355 = vpop.f32.mrb[0].mxu0
        %v11356 = vadd.f32 %v11003, %v11355
        %v11357 = vpop.f32.mrb[0].mxu0
        %v11358 = vadd.f32 %v11005, %v11357
        %v11359 = vpop.f32.mrb[0].mxu0
        %v11360 = vadd.f32 %v11007, %v11359
        %v11361 = vpop.f32.mrb[0].mxu0
        %v11362 = vadd.f32 %v11009, %v11361
        %11363 = vmatprep.mubr.bf16.mxu0 %v9574
        %11364 = vmatmul.mubr.bf16.gmra.mrb[0].mxu0 %v9573
        %v11365 = vpop.f32.mrb[0].mxu0
        %v11366 = vadd.f32 %v11013, %v11365
        %v11367 = vpop.f32.mrb[0].mxu0
        %v11368 = vadd.f32 %v11015, %v11367
        %v11369 = vpop.f32.mrb[0].mxu0
        %v11370 = vadd.f32 %v11017, %v11369
        %v11371 = vpop.f32.mrb[0].mxu0
        %v11372 = vadd.f32 %v11019, %v11371
        %11373 = vmatprep.mubr.bf16.mxu0 %v9582
        %11374 = vmatmul.mubr.bf16.gmra.mrb[0].mxu0 %v9581
        %v11375 = vpop.f32.mrb[0].mxu0
        %v11376 = vadd.f32 %v11023, %v11375
        %v11377 = vpop.f32.mrb[0].mxu0
        %v11378 = vadd.f32 %v11025, %v11377
        %v11379 = vpop.f32.mrb[0].mxu0
        %v11380 = vadd.f32 %v11027, %v11379
        %v11381 = vpop.f32.mrb[0].mxu0
        %v11382 = vadd.f32 %v11029, %v11381
        %11383 = vmatprep.mubr.bf16.mxu0 %v9590
        %11384 = vmatmul.mubr.bf16.gmra.mrb[0].mxu0 %v9589
        %v11385 = vpop.f32.mrb[0].mxu0
        %v11386 = vadd.f32 %v11033, %v11385
        %v11387 = vpop.f32.mrb[0].mxu0
        %v11388 = vadd.f32 %v11035, %v11387
        %v11389 = vpop.f32.mrb[0].mxu0
        %v11390 = vadd.f32 %v11037, %v11389
        %v11391 = vpop.f32.mrb[0].mxu0
        %v11392 = vadd.f32 %v11039, %v11391
        %11393 = vmatprep.mubr.bf16.mxu0 %v9598
        %11394 = vmatmul.mubr.bf16.gmra.mrb[0].mxu0 %v9597
        %v11395 = vpop.f32.mrb[0].mxu0
        %v11396 = vadd.f32 %v11043, %v11395
        %v11397 = vpop.f32.mrb[0].mxu0
        %v11398 = vadd.f32 %v11045, %v11397
        %v11399 = vpop.f32.mrb[0].mxu0
        %v11400 = vadd.f32 %v11047, %v11399
        %v11401 = vpop.f32.mrb[0].mxu0
        %v11402 = vadd.f32 %v11049, %v11401
        %11403 = vmatprep.mubr.bf16.mxu0 %v9606
        %11404 = vmatmul.mubr.bf16.gmra.mrb[0].mxu0 %v9605
        %v11405 = vpop.f32.mrb[0].mxu0
        %v11406 = vadd.f32 %v11053, %v11405
        %v11407 = vpop.f32.mrb[0].mxu0
        %v11408 = vadd.f32 %v11055, %v11407
        %v11409 = vpop.f32.mrb[0].mxu0
        %v11410 = vadd.f32 %v11057, %v11409
        %v11411 = vpop.f32.mrb[0].mxu0
        %v11412 = vadd.f32 %v11059, %v11411
        %11413 = vmatprep.mubr.bf16.mxu0 %v9614
        %11414 = vmatmul.mubr.bf16.gmra.mrb[0].mxu0 %v9613
        %v11415 = vpop.f32.mrb[0].mxu0
        %v11416 = vadd.f32 %v11063, %v11415
        %v11417 = vpop.f32.mrb[0].mxu0
        %v11418 = vadd.f32 %v11065, %v11417
        %v11419 = vpop.f32.mrb[0].mxu0
        %v11420 = vadd.f32 %v11067, %v11419
        %v11421 = vpop.f32.mrb[0].mxu0
        %v11422 = vadd.f32 %v11069, %v11421
        %11423 = vmatprep.mubr.bf16.mxu0 %v9622
        %11424 = vmatmul.mubr.bf16.gmra.mrb[0].mxu0 %v9621
        %v11425 = vpop.f32.mrb[0].mxu0
        %v11426 = vadd.f32 %v11073, %v11425
        %v11427 = vpop.f32.mrb[0].mxu0
        %v11428 = vadd.f32 %v11075, %v11427
        %v11429 = vpop.f32.mrb[0].mxu0
        %v11430 = vadd.f32 %v11077, %v11429
        %v11431 = vpop.f32.mrb[0].mxu0
        %v11432 = vadd.f32 %v11079, %v11431
        %11433 = vmatprep.mubr.bf16.mxu0 %v9630
        %11434 = vmatmul.mubr.bf16.gmra.mrb[0].mxu0 %v9629
        %v11435 = vpop.f32.mrb[0].mxu0
        %v11436 = vadd.f32 %v11083, %v11435
        %v11437 = vpop.f32.mrb[0].mxu0
        %v11438 = vadd.f32 %v11085, %v11437
        %v11439 = vpop.f32.mrb[0].mxu0
        %v11440 = vadd.f32 %v11087, %v11439
        %v11441 = vpop.f32.mrb[0].mxu0
        %v11442 = vadd.f32 %v11089, %v11441
        %11443 = vmatprep.mubr.bf16.mxu0 %v9638
        %11444 = vmatmul.mubr.bf16.gmra.mrb[0].mxu0 %v9637
        %v11445 = vpop.f32.mrb[0].mxu0
        %v11446 = vadd.f32 %v11093, %v11445
        %v11447 = vpop.f32.mrb[0].mxu0
        %v11448 = vadd.f32 %v11095, %v11447
        %v11449 = vpop.f32.mrb[0].mxu0
        %v11450 = vadd.f32 %v11097, %v11449
        %v11451 = vpop.f32.mrb[0].mxu0
        %v11452 = vadd.f32 %v11099, %v11451
        %11453 = vmatprep.mubr.bf16.mxu0 %v9646
        %11454 = vmatmul.mubr.bf16.gmra.mrb[0].mxu0 %v9645
        %v11455 = vpop.f32.mrb[0].mxu0
        %v11456 = vadd.f32 %v11103, %v11455
        %v11457 = vpop.f32.mrb[0].mxu0
        %v11458 = vadd.f32 %v11105, %v11457
        %v11459 = vpop.f32.mrb[0].mxu0
        %v11460 = vadd.f32 %v11107, %v11459
        %v11461 = vpop.f32.mrb[0].mxu0
        %v11462 = vadd.f32 %v11109, %v11461
        %11463 = vmatprep.mubr.bf16.mxu0 %v9654
        %11464 = vmatmul.mubr.bf16.gmra.mrb[0].mxu0 %v9653
        %v11465 = vpop.f32.mrb[0].mxu0
        %v11466 = vadd.f32 %v11113, %v11465
        %v11467 = vpop.f32.mrb[0].mxu0
        %v11468 = vadd.f32 %v11115, %v11467
        %v11469 = vpop.f32.mrb[0].mxu0
        %v11470 = vadd.f32 %v11117, %v11469
        %v11471 = vpop.f32.mrb[0].mxu0
        %v11472 = vadd.f32 %v11119, %v11471
        %11473 = vmatprep.mubr.bf16.mxu0 %v9662
        %11474 = vmatmul.mubr.bf16.gmra.mrb[0].mxu0 %v9661
        %v11475 = vpop.f32.mrb[0].mxu0
        %v11476 = vadd.f32 %v11123, %v11475
        %v11477 = vpop.f32.mrb[0].mxu0
        %v11478 = vadd.f32 %v11125, %v11477
        %v11479 = vpop.f32.mrb[0].mxu0
        %v11480 = vadd.f32 %v11127, %v11479
        %v11481 = vpop.f32.mrb[0].mxu0
        %v11482 = vadd.f32 %v11129, %v11481
        %11483 = vmatprep.mubr.bf16.mxu0 %v9670
        %11484 = vmatmul.mubr.bf16.gmra.mrb[0].mxu0 %v9669
        %v11485 = vpop.f32.mrb[0].mxu0
        %v11486 = vadd.f32 %v11133, %v11485
        %v11487 = vpop.f32.mrb[0].mxu0
        %v11488 = vadd.f32 %v11135, %v11487
        %v11489 = vpop.f32.mrb[0].mxu0
        %v11490 = vadd.f32 %v11137, %v11489
        %v11491 = vpop.f32.mrb[0].mxu0
        %v11492 = vadd.f32 %v11139, %v11491
        %11493 = vmatprep.mubr.bf16.mxu0 %v9678
        %11494 = vmatmul.mubr.bf16.gmra.mrb[0].mxu0 %v9677
        %v11495 = vpop.f32.mrb[0].mxu0
        %v11496 = vadd.f32 %v11143, %v11495
        %v11497 = vpop.f32.mrb[0].mxu0
        %v11498 = vadd.f32 %v11145, %v11497
        %v11499 = vpop.f32.mrb[0].mxu0
        %v11500 = vadd.f32 %v11147, %v11499
        %v11501 = vpop.f32.mrb[0].mxu0
        %v11502 = vadd.f32 %v11149, %v11501
        %11503 = vmatprep.mubr.bf16.mxu0 %v9686
        %11504 = vmatmul.mubr.bf16.gmra.mrb[0].mxu0 %v9685
        %v11505 = vpop.f32.mrb[0].mxu0
        %v11506 = vadd.f32 %v11153, %v11505
        %v11507 = vpop.f32.mrb[0].mxu0
        %v11508 = vadd.f32 %v11155, %v11507
        %v11509 = vpop.f32.mrb[0].mxu0
        %v11510 = vadd.f32 %v11157, %v11509
        %v11511 = vpop.f32.mrb[0].mxu0
        %v11512 = vadd.f32 %v11159, %v11511
        %11513 = vmatprep.mubr.bf16.mxu0 %v9694
        %11514 = vmatmul.mubr.bf16.gmra.mrb[0].mxu0 %v9693
        %v11515 = vpop.f32.mrb[0].mxu0
        %v11516 = vadd.f32 %v11163, %v11515
        %v11517 = vpop.f32.mrb[0].mxu0
        %v11518 = vadd.f32 %v11165, %v11517
        %v11519 = vpop.f32.mrb[0].mxu0
        %v11520 = vadd.f32 %v11167, %v11519
        %v11521 = vpop.f32.mrb[0].mxu0
        %v11522 = vadd.f32 %v11169, %v11521
        %11523 = vmatprep.mubr.bf16.mxu0 %v9702
        %11524 = vmatmul.mubr.bf16.gmra.mrb[0].mxu0 %v9701
        %v11525 = vpop.f32.mrb[0].mxu0
        %v11526 = vadd.f32 %v11173, %v11525
        %v11527 = vpop.f32.mrb[0].mxu0
        %v11528 = vadd.f32 %v11175, %v11527
        %v11529 = vpop.f32.mrb[0].mxu0
        %v11530 = vadd.f32 %v11177, %v11529
        %v11531 = vpop.f32.mrb[0].mxu0
        %v11532 = vadd.f32 %v11179, %v11531
        %11533 = vmatprep.mubr.bf16.mxu0 %v9710
        %11534 = vmatmul.mubr.bf16.gmra.mrb[0].mxu0 %v9709
        %v11535 = vpop.f32.mrb[0].mxu0
        %v11536 = vadd.f32 %v11183, %v11535
        %v11537 = vpop.f32.mrb[0].mxu0
        %v11538 = vadd.f32 %v11185, %v11537
        %v11539 = vpop.f32.mrb[0].mxu0
        %v11540 = vadd.f32 %v11187, %v11539
        %v11541 = vpop.f32.mrb[0].mxu0
        %v11542 = vadd.f32 %v11189, %v11541
        %11543 = vmatprep.mubr.bf16.mxu0 %v9718
        %11544 = vmatmul.mubr.bf16.gmra.mrb[0].mxu0 %v9717
        %v11545 = vpop.f32.mrb[0].mxu0
        %v11546 = vadd.f32 %v11193, %v11545
        %v11547 = vpop.f32.mrb[0].mxu0
        %v11548 = vadd.f32 %v11195, %v11547
        %v11549 = vpop.f32.mrb[0].mxu0
        %v11550 = vadd.f32 %v11197, %v11549
        %v11551 = vpop.f32.mrb[0].mxu0
        %v11552 = vadd.f32 %v11199, %v11551
        %11553 = vmatprep.mubr.bf16.mxu0 %v9726
        %11554 = vmatmul.mubr.bf16.gmra.mrb[0].mxu0 %v9725
        %v11555 = vpop.f32.mrb[0].mxu0
        %v11556 = vadd.f32 %v11203, %v11555
        %v11557 = vpop.f32.mrb[0].mxu0
        %v11558 = vadd.f32 %v11205, %v11557
        %v11559 = vpop.f32.mrb[0].mxu0
        %v11560 = vadd.f32 %v11207, %v11559
        %v11561 = vpop.f32.mrb[0].mxu0
        %v11562 = vadd.f32 %v11209, %v11561
        %11563 = vmatprep.mubr.bf16.mxu0 %v9734
        %11564 = vmatmul.mubr.bf16.gmra.mrb[0].mxu0 %v9733
        %v11565 = vpop.f32.mrb[0].mxu0
        %v11566 = vadd.f32 %v11213, %v11565
        %v11567 = vpop.f32.mrb[0].mxu0
        %v11568 = vadd.f32 %v11215, %v11567
        %v11569 = vpop.f32.mrb[0].mxu0
        %v11570 = vadd.f32 %v11217, %v11569
        %v11571 = vpop.f32.mrb[0].mxu0
        %v11572 = vadd.f32 %v11219, %v11571
        %11573 = vmatprep.mubr.bf16.mxu0 %v9742
        %11574 = vmatmul.mubr.bf16.gmra.mrb[0].mxu0 %v9741
        %v11575 = vpop.f32.mrb[0].mxu0
        %v11576 = vadd.f32 %v11223, %v11575
        %v11577 = vpop.f32.mrb[0].mxu0
        %v11578 = vadd.f32 %v11225, %v11577
        %v11579 = vpop.f32.mrb[0].mxu0
        %v11580 = vadd.f32 %v11227, %v11579
        %v11581 = vpop.f32.mrb[0].mxu0
        %v11582 = vadd.f32 %v11229, %v11581
        %11583 = vdwg.mxu0
        %11584 = vmatprep.subr.bf16.mxu0 %v10276
        %11585 = vmatpush1.bf16.xpose.msra.mxu0 %v10275
        %11586 = vmatprep.subr.bf16.mxu0 %v10284
        %11587 = vmatpush1.bf16.xpose.msra.mxu0 %v10283
        %11588 = vmatprep.subr.bf16.mxu0 %v10292
        %11589 = vmatpush1.bf16.xpose.msra.mxu0 %v10291
        %11590 = vmatprep.subr.bf16.mxu0 %v10300
        %11591 = vmatpush1.bf16.xpose.msra.mxu0 %v10299
        %11592 = vmatprep.subr.bf16.mxu0 %v10308
        %11593 = vmatpush1.bf16.xpose.msra.mxu0 %v10307
        %11594 = vmatprep.subr.bf16.mxu0 %v10316
        %11595 = vmatpush1.bf16.xpose.msra.mxu0 %v10315
        %11596 = vmatprep.subr.bf16.mxu0 %v10324
        %11597 = vmatpush1.bf16.xpose.msra.mxu0 %v10323
        %11598 = vmatprep.subr.bf16.mxu0 %v10332
        %11599 = vmatpush1.bf16.xpose.msra.mxu0 %v10331
        %11600 = vmatprep.subr.bf16.mxu0 %v10340
        %11601 = vmatpush1.bf16.xpose.msra.mxu0 %v10339
        %11602 = vmatprep.subr.bf16.mxu0 %v10348
        %11603 = vmatpush1.bf16.xpose.msra.mxu0 %v10347
        %11604 = vmatprep.subr.bf16.mxu0 %v10356
        %11605 = vmatpush1.bf16.xpose.msra.mxu0 %v10355
        %11606 = vmatprep.subr.bf16.mxu0 %v10364
        %11607 = vmatpush1.bf16.xpose.msra.mxu0 %v10363
        %11608 = vmatprep.subr.bf16.mxu0 %v10372
        %11609 = vmatpush1.bf16.xpose.msra.mxu0 %v10371
        %11610 = vmatprep.subr.bf16.mxu0 %v10380
        %11611 = vmatpush1.bf16.xpose.msra.mxu0 %v10379
        %11612 = vmatprep.subr.bf16.mxu0 %v10388
        %11613 = vmatpush1.bf16.xpose.msra.mxu0 %v10387
        %11614 = vmatprep.subr.bf16.mxu0 %v10396
        %11615 = vmatpush1.bf16.xpose.msra.mxu0 %v10395
        %11616 = vmatprep.mubr.bf16.mxu0 %v9496
        %11617 = vmatmul.mubr.bf16.gmra.mrb[0].mxu0 %v9495
        %v11618 = vpop.f32.mrb[0].mxu0
        %v11619 = vadd.f32 %v11266, %v11618
        %v11620 = vpop.f32.mrb[0].mxu0
        %v11621 = vadd.f32 %v11268, %v11620
        %v11622 = vpop.f32.mrb[0].mxu0
        %v11623 = vadd.f32 %v11270, %v11622
        %v11624 = vpop.f32.mrb[0].mxu0
        %v11625 = vadd.f32 %v11272, %v11624
        %11626 = vmatprep.mubr.bf16.mxu0 %v9504
        %11627 = vmatmul.mubr.bf16.gmra.mrb[0].mxu0 %v9503
        %v11628 = vpop.f32.mrb[0].mxu0
        %v11629 = vadd.f32 %v11276, %v11628
        %v11630 = vpop.f32.mrb[0].mxu0
        %v11631 = vadd.f32 %v11278, %v11630
        %v11632 = vpop.f32.mrb[0].mxu0
        %v11633 = vadd.f32 %v11280, %v11632
        %v11634 = vpop.f32.mrb[0].mxu0
        %v11635 = vadd.f32 %v11282, %v11634
        %11636 = vmatprep.mubr.bf16.mxu0 %v9512
        %11637 = vmatmul.mubr.bf16.gmra.mrb[0].mxu0 %v9511
        %v11638 = vpop.f32.mrb[0].mxu0
        %v11639 = vadd.f32 %v11286, %v11638
        %v11640 = vpop.f32.mrb[0].mxu0
        %v11641 = vadd.f32 %v11288, %v11640
        %v11642 = vpop.f32.mrb[0].mxu0
        %v11643 = vadd.f32 %v11290, %v11642
        %v11644 = vpop.f32.mrb[0].mxu0
        %v11645 = vadd.f32 %v11292, %v11644
        %11646 = vmatprep.mubr.bf16.mxu0 %v9520
        %11647 = vmatmul.mubr.bf16.gmra.mrb[0].mxu0 %v9519
        %v11648 = vpop.f32.mrb[0].mxu0
        %v11649 = vadd.f32 %v11296, %v11648
        %v11650 = vpop.f32.mrb[0].mxu0
        %v11651 = vadd.f32 %v11298, %v11650
        %v11652 = vpop.f32.mrb[0].mxu0
        %v11653 = vadd.f32 %v11300, %v11652
        %v11654 = vpop.f32.mrb[0].mxu0
        %v11655 = vadd.f32 %v11302, %v11654
        %11656 = vmatprep.mubr.bf16.mxu0 %v9528
        %11657 = vmatmul.mubr.bf16.gmra.mrb[0].mxu0 %v9527
        %v11658 = vpop.f32.mrb[0].mxu0
        %v11659 = vadd.f32 %v11306, %v11658
        %v11660 = vpop.f32.mrb[0].mxu0
        %v11661 = vadd.f32 %v11308, %v11660
        %v11662 = vpop.f32.mrb[0].mxu0
        %v11663 = vadd.f32 %v11310, %v11662
        %v11664 = vpop.f32.mrb[0].mxu0
        %v11665 = vadd.f32 %v11312, %v11664
        %11666 = vmatprep.mubr.bf16.mxu0 %v9536
        %11667 = vmatmul.mubr.bf16.gmra.mrb[0].mxu0 %v9535
        %v11668 = vpop.f32.mrb[0].mxu0
        %v11669 = vadd.f32 %v11316, %v11668
        %v11670 = vpop.f32.mrb[0].mxu0
        %v11671 = vadd.f32 %v11318, %v11670
        %v11672 = vpop.f32.mrb[0].mxu0
        %v11673 = vadd.f32 %v11320, %v11672
        %v11674 = vpop.f32.mrb[0].mxu0
        %v11675 = vadd.f32 %v11322, %v11674
        %11676 = vmatprep.mubr.bf16.mxu0 %v9544
        %11677 = vmatmul.mubr.bf16.gmra.mrb[0].mxu0 %v9543
        %v11678 = vpop.f32.mrb[0].mxu0
        %v11679 = vadd.f32 %v11326, %v11678
        %v11680 = vpop.f32.mrb[0].mxu0
        %v11681 = vadd.f32 %v11328, %v11680
        %v11682 = vpop.f32.mrb[0].mxu0
        %v11683 = vadd.f32 %v11330, %v11682
        %v11684 = vpop.f32.mrb[0].mxu0
        %v11685 = vadd.f32 %v11332, %v11684
        %11686 = vmatprep.mubr.bf16.mxu0 %v9552
        %11687 = vmatmul.mubr.bf16.gmra.mrb[0].mxu0 %v9551
        %v11688 = vpop.f32.mrb[0].mxu0
        %v11689 = vadd.f32 %v11336, %v11688
        %v11690 = vpop.f32.mrb[0].mxu0
        %v11691 = vadd.f32 %v11338, %v11690
        %v11692 = vpop.f32.mrb[0].mxu0
        %v11693 = vadd.f32 %v11340, %v11692
        %v11694 = vpop.f32.mrb[0].mxu0
        %v11695 = vadd.f32 %v11342, %v11694
        %11696 = vmatprep.mubr.bf16.mxu0 %v9560
        %11697 = vmatmul.mubr.bf16.gmra.mrb[0].mxu0 %v9559
        %v11698 = vpop.f32.mrb[0].mxu0
        %v11699 = vadd.f32 %v11346, %v11698
        %v11700 = vpop.f32.mrb[0].mxu0
        %v11701 = vadd.f32 %v11348, %v11700
        %v11702 = vpop.f32.mrb[0].mxu0
        %v11703 = vadd.f32 %v11350, %v11702
        %v11704 = vpop.f32.mrb[0].mxu0
        %v11705 = vadd.f32 %v11352, %v11704
        %11706 = vmatprep.mubr.bf16.mxu0 %v9568
        %11707 = vmatmul.mubr.bf16.gmra.mrb[0].mxu0 %v9567
        %v11708 = vpop.f32.mrb[0].mxu0
        %v11709 = vadd.f32 %v11356, %v11708
        %v11710 = vpop.f32.mrb[0].mxu0
        %v11711 = vadd.f32 %v11358, %v11710
        %v11712 = vpop.f32.mrb[0].mxu0
        %v11713 = vadd.f32 %v11360, %v11712
        %v11714 = vpop.f32.mrb[0].mxu0
        %v11715 = vadd.f32 %v11362, %v11714
        %11716 = vmatprep.mubr.bf16.mxu0 %v9576
        %11717 = vmatmul.mubr.bf16.gmra.mrb[0].mxu0 %v9575
        %v11718 = vpop.f32.mrb[0].mxu0
        %v11719 = vadd.f32 %v11366, %v11718
        %v11720 = vpop.f32.mrb[0].mxu0
        %v11721 = vadd.f32 %v11368, %v11720
        %v11722 = vpop.f32.mrb[0].mxu0
        %v11723 = vadd.f32 %v11370, %v11722
        %v11724 = vpop.f32.mrb[0].mxu0
        %v11725 = vadd.f32 %v11372, %v11724
        %11726 = vmatprep.mubr.bf16.mxu0 %v9584
        %11727 = vmatmul.mubr.bf16.gmra.mrb[0].mxu0 %v9583
        %v11728 = vpop.f32.mrb[0].mxu0
        %v11729 = vadd.f32 %v11376, %v11728
        %v11730 = vpop.f32.mrb[0].mxu0
        %v11731 = vadd.f32 %v11378, %v11730
        %v11732 = vpop.f32.mrb[0].mxu0
        %v11733 = vadd.f32 %v11380, %v11732
        %v11734 = vpop.f32.mrb[0].mxu0
        %v11735 = vadd.f32 %v11382, %v11734
        %11736 = vmatprep.mubr.bf16.mxu0 %v9592
        %11737 = vmatmul.mubr.bf16.gmra.mrb[0].mxu0 %v9591
        %v11738 = vpop.f32.mrb[0].mxu0
        %v11739 = vadd.f32 %v11386, %v11738
        %v11740 = vpop.f32.mrb[0].mxu0
        %v11741 = vadd.f32 %v11388, %v11740
        %v11742 = vpop.f32.mrb[0].mxu0
        %v11743 = vadd.f32 %v11390, %v11742
        %v11744 = vpop.f32.mrb[0].mxu0
        %v11745 = vadd.f32 %v11392, %v11744
        %11746 = vmatprep.mubr.bf16.mxu0 %v9600
        %11747 = vmatmul.mubr.bf16.gmra.mrb[0].mxu0 %v9599
        %v11748 = vpop.f32.mrb[0].mxu0
        %v11749 = vadd.f32 %v11396, %v11748
        %v11750 = vpop.f32.mrb[0].mxu0
        %v11751 = vadd.f32 %v11398, %v11750
        %v11752 = vpop.f32.mrb[0].mxu0
        %v11753 = vadd.f32 %v11400, %v11752
        %v11754 = vpop.f32.mrb[0].mxu0
        %v11755 = vadd.f32 %v11402, %v11754
        %11756 = vmatprep.mubr.bf16.mxu0 %v9608
        %11757 = vmatmul.mubr.bf16.gmra.mrb[0].mxu0 %v9607
        %v11758 = vpop.f32.mrb[0].mxu0
        %v11759 = vadd.f32 %v11406, %v11758
        %v11760 = vpop.f32.mrb[0].mxu0
        %v11761 = vadd.f32 %v11408, %v11760
        %v11762 = vpop.f32.mrb[0].mxu0
        %v11763 = vadd.f32 %v11410, %v11762
        %v11764 = vpop.f32.mrb[0].mxu0
        %v11765 = vadd.f32 %v11412, %v11764
        %11766 = vmatprep.mubr.bf16.mxu0 %v9616
        %11767 = vmatmul.mubr.bf16.gmra.mrb[0].mxu0 %v9615
        %v11768 = vpop.f32.mrb[0].mxu0
        %v11769 = vadd.f32 %v11416, %v11768
        %v11770 = vpop.f32.mrb[0].mxu0
        %v11771 = vadd.f32 %v11418, %v11770
        %v11772 = vpop.f32.mrb[0].mxu0
        %v11773 = vadd.f32 %v11420, %v11772
        %v11774 = vpop.f32.mrb[0].mxu0
        %v11775 = vadd.f32 %v11422, %v11774
        %11776 = vmatprep.mubr.bf16.mxu0 %v9624
        %11777 = vmatmul.mubr.bf16.gmra.mrb[0].mxu0 %v9623
        %v11778 = vpop.f32.mrb[0].mxu0
        %v11779 = vadd.f32 %v11426, %v11778
        %v11780 = vpop.f32.mrb[0].mxu0
        %v11781 = vadd.f32 %v11428, %v11780
        %v11782 = vpop.f32.mrb[0].mxu0
        %v11783 = vadd.f32 %v11430, %v11782
        %v11784 = vpop.f32.mrb[0].mxu0
        %v11785 = vadd.f32 %v11432, %v11784
        %11786 = vmatprep.mubr.bf16.mxu0 %v9632
        %11787 = vmatmul.mubr.bf16.gmra.mrb[0].mxu0 %v9631
        %v11788 = vpop.f32.mrb[0].mxu0
        %v11789 = vadd.f32 %v11436, %v11788
        %v11790 = vpop.f32.mrb[0].mxu0
        %v11791 = vadd.f32 %v11438, %v11790
        %v11792 = vpop.f32.mrb[0].mxu0
        %v11793 = vadd.f32 %v11440, %v11792
        %v11794 = vpop.f32.mrb[0].mxu0
        %v11795 = vadd.f32 %v11442, %v11794
        %11796 = vmatprep.mubr.bf16.mxu0 %v9640
        %11797 = vmatmul.mubr.bf16.gmra.mrb[0].mxu0 %v9639
        %v11798 = vpop.f32.mrb[0].mxu0
        %v11799 = vadd.f32 %v11446, %v11798
        %v11800 = vpop.f32.mrb[0].mxu0
        %v11801 = vadd.f32 %v11448, %v11800
        %v11802 = vpop.f32.mrb[0].mxu0
        %v11803 = vadd.f32 %v11450, %v11802
        %v11804 = vpop.f32.mrb[0].mxu0
        %v11805 = vadd.f32 %v11452, %v11804
        %11806 = vmatprep.mubr.bf16.mxu0 %v9648
        %11807 = vmatmul.mubr.bf16.gmra.mrb[0].mxu0 %v9647
        %v11808 = vpop.f32.mrb[0].mxu0
        %v11809 = vadd.f32 %v11456, %v11808
        %v11810 = vpop.f32.mrb[0].mxu0
        %v11811 = vadd.f32 %v11458, %v11810
        %v11812 = vpop.f32.mrb[0].mxu0
        %v11813 = vadd.f32 %v11460, %v11812
        %v11814 = vpop.f32.mrb[0].mxu0
        %v11815 = vadd.f32 %v11462, %v11814
        %11816 = vmatprep.mubr.bf16.mxu0 %v9656
        %11817 = vmatmul.mubr.bf16.gmra.mrb[0].mxu0 %v9655
        %v11818 = vpop.f32.mrb[0].mxu0
        %v11819 = vadd.f32 %v11466, %v11818
        %v11820 = vpop.f32.mrb[0].mxu0
        %v11821 = vadd.f32 %v11468, %v11820
        %v11822 = vpop.f32.mrb[0].mxu0
        %v11823 = vadd.f32 %v11470, %v11822
        %v11824 = vpop.f32.mrb[0].mxu0
        %v11825 = vadd.f32 %v11472, %v11824
        %11826 = vmatprep.mubr.bf16.mxu0 %v9664
        %11827 = vmatmul.mubr.bf16.gmra.mrb[0].mxu0 %v9663
        %v11828 = vpop.f32.mrb[0].mxu0
        %v11829 = vadd.f32 %v11476, %v11828
        %v11830 = vpop.f32.mrb[0].mxu0
        %v11831 = vadd.f32 %v11478, %v11830
        %v11832 = vpop.f32.mrb[0].mxu0
        %v11833 = vadd.f32 %v11480, %v11832
        %v11834 = vpop.f32.mrb[0].mxu0
        %v11835 = vadd.f32 %v11482, %v11834
        %11836 = vmatprep.mubr.bf16.mxu0 %v9672
        %11837 = vmatmul.mubr.bf16.gmra.mrb[0].mxu0 %v9671
        %v11838 = vpop.f32.mrb[0].mxu0
        %v11839 = vadd.f32 %v11486, %v11838
        %v11840 = vpop.f32.mrb[0].mxu0
        %v11841 = vadd.f32 %v11488, %v11840
        %v11842 = vpop.f32.mrb[0].mxu0
        %v11843 = vadd.f32 %v11490, %v11842
        %v11844 = vpop.f32.mrb[0].mxu0
        %v11845 = vadd.f32 %v11492, %v11844
        %11846 = vmatprep.mubr.bf16.mxu0 %v9680
        %11847 = vmatmul.mubr.bf16.gmra.mrb[0].mxu0 %v9679
        %v11848 = vpop.f32.mrb[0].mxu0
        %v11849 = vadd.f32 %v11496, %v11848
        %v11850 = vpop.f32.mrb[0].mxu0
        %v11851 = vadd.f32 %v11498, %v11850
        %v11852 = vpop.f32.mrb[0].mxu0
        %v11853 = vadd.f32 %v11500, %v11852
        %v11854 = vpop.f32.mrb[0].mxu0
        %v11855 = vadd.f32 %v11502, %v11854
        %11856 = vmatprep.mubr.bf16.mxu0 %v9688
        %11857 = vmatmul.mubr.bf16.gmra.mrb[0].mxu0 %v9687
        %v11858 = vpop.f32.mrb[0].mxu0
        %v11859 = vadd.f32 %v11506, %v11858
        %v11860 = vpop.f32.mrb[0].mxu0
        %v11861 = vadd.f32 %v11508, %v11860
        %v11862 = vpop.f32.mrb[0].mxu0
        %v11863 = vadd.f32 %v11510, %v11862
        %v11864 = vpop.f32.mrb[0].mxu0
        %v11865 = vadd.f32 %v11512, %v11864
        %11866 = vmatprep.mubr.bf16.mxu0 %v9696
        %11867 = vmatmul.mubr.bf16.gmra.mrb[0].mxu0 %v9695
        %v11868 = vpop.f32.mrb[0].mxu0
        %v11869 = vadd.f32 %v11516, %v11868
        %v11870 = vpop.f32.mrb[0].mxu0
        %v11871 = vadd.f32 %v11518, %v11870
        %v11872 = vpop.f32.mrb[0].mxu0
        %v11873 = vadd.f32 %v11520, %v11872
        %v11874 = vpop.f32.mrb[0].mxu0
        %v11875 = vadd.f32 %v11522, %v11874
        %11876 = vmatprep.mubr.bf16.mxu0 %v9704
        %11877 = vmatmul.mubr.bf16.gmra.mrb[0].mxu0 %v9703
        %v11878 = vpop.f32.mrb[0].mxu0
        %v11879 = vadd.f32 %v11526, %v11878
        %v11880 = vpop.f32.mrb[0].mxu0
        %v11881 = vadd.f32 %v11528, %v11880
        %v11882 = vpop.f32.mrb[0].mxu0
        %v11883 = vadd.f32 %v11530, %v11882
        %v11884 = vpop.f32.mrb[0].mxu0
        %v11885 = vadd.f32 %v11532, %v11884
        %11886 = vmatprep.mubr.bf16.mxu0 %v9712
        %11887 = vmatmul.mubr.bf16.gmra.mrb[0].mxu0 %v9711
        %v11888 = vpop.f32.mrb[0].mxu0
        %v11889 = vadd.f32 %v11536, %v11888
        %v11890 = vpop.f32.mrb[0].mxu0
        %v11891 = vadd.f32 %v11538, %v11890
        %v11892 = vpop.f32.mrb[0].mxu0
        %v11893 = vadd.f32 %v11540, %v11892
        %v11894 = vpop.f32.mrb[0].mxu0
        %v11895 = vadd.f32 %v11542, %v11894
        %11896 = vmatprep.mubr.bf16.mxu0 %v9720
        %11897 = vmatmul.mubr.bf16.gmra.mrb[0].mxu0 %v9719
        %v11898 = vpop.f32.mrb[0].mxu0
        %v11899 = vadd.f32 %v11546, %v11898
        %v11900 = vpop.f32.mrb[0].mxu0
        %v11901 = vadd.f32 %v11548, %v11900
        %v11902 = vpop.f32.mrb[0].mxu0
        %v11903 = vadd.f32 %v11550, %v11902
        %v11904 = vpop.f32.mrb[0].mxu0
        %v11905 = vadd.f32 %v11552, %v11904
        %11906 = vmatprep.mubr.bf16.mxu0 %v9728
        %11907 = vmatmul.mubr.bf16.gmra.mrb[0].mxu0 %v9727
        %v11908 = vpop.f32.mrb[0].mxu0
        %v11909 = vadd.f32 %v11556, %v11908
        %v11910 = vpop.f32.mrb[0].mxu0
        %v11911 = vadd.f32 %v11558, %v11910
        %v11912 = vpop.f32.mrb[0].mxu0
        %v11913 = vadd.f32 %v11560, %v11912
        %v11914 = vpop.f32.mrb[0].mxu0
        %v11915 = vadd.f32 %v11562, %v11914
        %11916 = vmatprep.mubr.bf16.mxu0 %v9736
        %11917 = vmatmul.mubr.bf16.gmra.mrb[0].mxu0 %v9735
        %v11918 = vpop.f32.mrb[0].mxu0
        %v11919 = vadd.f32 %v11566, %v11918
        %v11920 = vpop.f32.mrb[0].mxu0
        %v11921 = vadd.f32 %v11568, %v11920
        %v11922 = vpop.f32.mrb[0].mxu0
        %v11923 = vadd.f32 %v11570, %v11922
        %v11924 = vpop.f32.mrb[0].mxu0
        %v11925 = vadd.f32 %v11572, %v11924
        %11926 = vmatprep.mubr.bf16.mxu0 %v9744
        %11927 = vmatmul.mubr.bf16.gmra.mrb[0].mxu0 %v9743
        %v11928 = vpop.f32.mrb[0].mxu0
        %v11929 = vadd.f32 %v11576, %v11928
        %v11930 = vpop.f32.mrb[0].mxu0
        %v11931 = vadd.f32 %v11578, %v11930
        %v11932 = vpop.f32.mrb[0].mxu0
        %v11933 = vadd.f32 %v11580, %v11932
        %v11934 = vpop.f32.mrb[0].mxu0
        %v11935 = vadd.f32 %v11582, %v11934
        %11936 = vdwg.mxu0
        %11937 = vst [vmem:[%s269] sm:$0xff] %v11619
        %11938 = vst [vmem:[%s269 + $0x8] sm:$0xff] %v11621
        %11939 = vst [vmem:[%s269 + $0x10] sm:$0xff] %v11623
        %11940 = vst [vmem:[%s269 + $0x18] sm:$0xff] %v11625
        %11941 = vst [vmem:[%s269 + $0x20] sm:$0xff] %v11629
        %11942 = vst [vmem:[%s269 + $0x28] sm:$0xff] %v11631
        %11943 = vst [vmem:[%s269 + $0x30] sm:$0xff] %v11633
        %11944 = vst [vmem:[%s269 + $0x38] sm:$0xff] %v11635
        %11945 = vst [vmem:[%s269 + $0x40] sm:$0xff] %v11639
        %11946 = vst [vmem:[%s269 + $0x48] sm:$0xff] %v11641
        %11947 = vst [vmem:[%s269 + $0x50] sm:$0xff] %v11643
        %11948 = vst [vmem:[%s269 + $0x58] sm:$0xff] %v11645
        %11949 = vst [vmem:[%s269 + $0x60] sm:$0xff] %v11649
        %11950 = vst [vmem:[%s269 + $0x68] sm:$0xff] %v11651
        %11951 = vst [vmem:[%s269 + $0x70] sm:$0xff] %v11653
        %11952 = vst [vmem:[%s269 + $0x78] sm:$0xff] %v11655
        %11953 = vst [vmem:[%s269 + $0x80] sm:$0xff] %v11659
        %11954 = vst [vmem:[%s269 + $0x88] sm:$0xff] %v11661
        %11955 = vst [vmem:[%s269 + $0x90] sm:$0xff] %v11663
        %11956 = vst [vmem:[%s269 + $0x98] sm:$0xff] %v11665
        %11957 = vst [vmem:[%s269 + $0xa0] sm:$0xff] %v11669
        %11958 = vst [vmem:[%s269 + $0xa8] sm:$0xff] %v11671
        %11959 = vst [vmem:[%s269 + $0xb0] sm:$0xff] %v11673
        %11960 = vst [vmem:[%s269 + $0xb8] sm:$0xff] %v11675
        %11961 = vst [vmem:[%s269 + $0xc0] sm:$0xff] %v11679
        %11962 = vst [vmem:[%s269 + $0xc8] sm:$0xff] %v11681
        %11963 = vst [vmem:[%s269 + $0xd0] sm:$0xff] %v11683
        %11964 = vst [vmem:[%s269 + $0xd8] sm:$0xff] %v11685
        %11965 = vst [vmem:[%s269 + $0xe0] sm:$0xff] %v11689
        %11966 = vst [vmem:[%s269 + $0xe8] sm:$0xff] %v11691
        %11967 = vst [vmem:[%s269 + $0xf0] sm:$0xff] %v11693
        %11968 = vst [vmem:[%s269 + $0xf8] sm:$0xff] %v11695
        %11969 = vst [vmem:[%s269 + $0x100] sm:$0xff] %v11699
        %11970 = vst [vmem:[%s269 + $0x108] sm:$0xff] %v11701
        %11971 = vst [vmem:[%s269 + $0x110] sm:$0xff] %v11703
        %11972 = vst [vmem:[%s269 + $0x118] sm:$0xff] %v11705
        %11973 = vst [vmem:[%s269 + $0x120] sm:$0xff] %v11709
        %11974 = vst [vmem:[%s269 + $0x128] sm:$0xff] %v11711
        %11975 = vst [vmem:[%s269 + $0x130] sm:$0xff] %v11713
        %11976 = vst [vmem:[%s269 + $0x138] sm:$0xff] %v11715
        %11977 = vst [vmem:[%s269 + $0x140] sm:$0xff] %v11719
        %11978 = vst [vmem:[%s269 + $0x148] sm:$0xff] %v11721
        %11979 = vst [vmem:[%s269 + $0x150] sm:$0xff] %v11723
        %11980 = vst [vmem:[%s269 + $0x158] sm:$0xff] %v11725
        %11981 = vst [vmem:[%s269 + $0x160] sm:$0xff] %v11729
        %11982 = vst [vmem:[%s269 + $0x168] sm:$0xff] %v11731
        %11983 = vst [vmem:[%s269 + $0x170] sm:$0xff] %v11733
        %11984 = vst [vmem:[%s269 + $0x178] sm:$0xff] %v11735
        %11985 = vst [vmem:[%s269 + $0x180] sm:$0xff] %v11739
        %11986 = vst [vmem:[%s269 + $0x188] sm:$0xff] %v11741
        %11987 = vst [vmem:[%s269 + $0x190] sm:$0xff] %v11743
        %11988 = vst [vmem:[%s269 + $0x198] sm:$0xff] %v11745
        %11989 = vst [vmem:[%s269 + $0x1a0] sm:$0xff] %v11749
        %11990 = vst [vmem:[%s269 + $0x1a8] sm:$0xff] %v11751
        %11991 = vst [vmem:[%s269 + $0x1b0] sm:$0xff] %v11753
        %11992 = vst [vmem:[%s269 + $0x1b8] sm:$0xff] %v11755
        %11993 = vst [vmem:[%s269 + $0x1c0] sm:$0xff] %v11759
        %11994 = vst [vmem:[%s269 + $0x1c8] sm:$0xff] %v11761
        %11995 = vst [vmem:[%s269 + $0x1d0] sm:$0xff] %v11763
        %11996 = vst [vmem:[%s269 + $0x1d8] sm:$0xff] %v11765
        %11997 = vst [vmem:[%s269 + $0x1e0] sm:$0xff] %v11769
        %11998 = vst [vmem:[%s269 + $0x1e8] sm:$0xff] %v11771
        %11999 = vst [vmem:[%s269 + $0x1f0] sm:$0xff] %v11773
        %12000 = vst [vmem:[%s269 + $0x1f8] sm:$0xff] %v11775
        %12001 = vst [vmem:[%s269 + $0x200] sm:$0xff] %v11779
        %12002 = vst [vmem:[%s269 + $0x208] sm:$0xff] %v11781
        %12003 = vst [vmem:[%s269 + $0x210] sm:$0xff] %v11783
        %12004 = vst [vmem:[%s269 + $0x218] sm:$0xff] %v11785
        %12005 = vst [vmem:[%s269 + $0x220] sm:$0xff] %v11789
        %12006 = vst [vmem:[%s269 + $0x228] sm:$0xff] %v11791
        %12007 = vst [vmem:[%s269 + $0x230] sm:$0xff] %v11793
        %12008 = vst [vmem:[%s269 + $0x238] sm:$0xff] %v11795
        %12009 = vst [vmem:[%s269 + $0x240] sm:$0xff] %v11799
        %12010 = vst [vmem:[%s269 + $0x248] sm:$0xff] %v11801
        %12011 = vst [vmem:[%s269 + $0x250] sm:$0xff] %v11803
        %12012 = vst [vmem:[%s269 + $0x258] sm:$0xff] %v11805
        %12013 = vst [vmem:[%s269 + $0x260] sm:$0xff] %v11809
        %12014 = vst [vmem:[%s269 + $0x268] sm:$0xff] %v11811
        %12015 = vst [vmem:[%s269 + $0x270] sm:$0xff] %v11813
        %12016 = vst [vmem:[%s269 + $0x278] sm:$0xff] %v11815
        %12017 = vst [vmem:[%s269 + $0x280] sm:$0xff] %v11819
        %12018 = vst [vmem:[%s269 + $0x288] sm:$0xff] %v11821
        %12019 = vst [vmem:[%s269 + $0x290] sm:$0xff] %v11823
        %12020 = vst [vmem:[%s269 + $0x298] sm:$0xff] %v11825
        %12021 = vst [vmem:[%s269 + $0x2a0] sm:$0xff] %v11829
        %12022 = vst [vmem:[%s269 + $0x2a8] sm:$0xff] %v11831
        %12023 = vst [vmem:[%s269 + $0x2b0] sm:$0xff] %v11833
        %12024 = vst [vmem:[%s269 + $0x2b8] sm:$0xff] %v11835
        %12025 = vst [vmem:[%s269 + $0x2c0] sm:$0xff] %v11839
        %12026 = vst [vmem:[%s269 + $0x2c8] sm:$0xff] %v11841
        %12027 = vst [vmem:[%s269 + $0x2d0] sm:$0xff] %v11843
        %12028 = vst [vmem:[%s269 + $0x2d8] sm:$0xff] %v11845
        %12029 = vst [vmem:[%s269 + $0x2e0] sm:$0xff] %v11849
        %12030 = vst [vmem:[%s269 + $0x2e8] sm:$0xff] %v11851
        %12031 = vst [vmem:[%s269 + $0x2f0] sm:$0xff] %v11853
        %12032 = vst [vmem:[%s269 + $0x2f8] sm:$0xff] %v11855
        %12033 = vst [vmem:[%s269 + $0x300] sm:$0xff] %v11859
        %12034 = vst [vmem:[%s269 + $0x308] sm:$0xff] %v11861
        %12035 = vst [vmem:[%s269 + $0x310] sm:$0xff] %v11863
        %12036 = vst [vmem:[%s269 + $0x318] sm:$0xff] %v11865
        %12037 = vst [vmem:[%s269 + $0x320] sm:$0xff] %v11869
        %12038 = vst [vmem:[%s269 + $0x328] sm:$0xff] %v11871
        %12039 = vst [vmem:[%s269 + $0x330] sm:$0xff] %v11873
        %12040 = vst [vmem:[%s269 + $0x338] sm:$0xff] %v11875
        %12041 = vst [vmem:[%s269 + $0x340] sm:$0xff] %v11879
        %12042 = vst [vmem:[%s269 + $0x348] sm:$0xff] %v11881
        %12043 = vst [vmem:[%s269 + $0x350] sm:$0xff] %v11883
        %12044 = vst [vmem:[%s269 + $0x358] sm:$0xff] %v11885
        %12045 = vst [vmem:[%s269 + $0x360] sm:$0xff] %v11889
        %12046 = vst [vmem:[%s269 + $0x368] sm:$0xff] %v11891
        %12047 = vst [vmem:[%s269 + $0x370] sm:$0xff] %v11893
        %12048 = vst [vmem:[%s269 + $0x378] sm:$0xff] %v11895
        %12049 = vst [vmem:[%s269 + $0x380] sm:$0xff] %v11899
        %12050 = vst [vmem:[%s269 + $0x388] sm:$0xff] %v11901
        %12051 = vst [vmem:[%s269 + $0x390] sm:$0xff] %v11903
        %12052 = vst [vmem:[%s269 + $0x398] sm:$0xff] %v11905
        %12053 = vst [vmem:[%s269 + $0x3a0] sm:$0xff] %v11909
        %12054 = vst [vmem:[%s269 + $0x3a8] sm:$0xff] %v11911
        %12055 = vst [vmem:[%s269 + $0x3b0] sm:$0xff] %v11913
        %12056 = vst [vmem:[%s269 + $0x3b8] sm:$0xff] %v11915
        %12057 = vst [vmem:[%s269 + $0x3c0] sm:$0xff] %v11919
        %12058 = vst [vmem:[%s269 + $0x3c8] sm:$0xff] %v11921
        %12059 = vst [vmem:[%s269 + $0x3d0] sm:$0xff] %v11923
        %12060 = vst [vmem:[%s269 + $0x3d8] sm:$0xff] %v11925
        %12061 = vst [vmem:[%s269 + $0x3e0] sm:$0xff] %v11929
        %12062 = vst [vmem:[%s269 + $0x3e8] sm:$0xff] %v11931
        %12063 = vst [vmem:[%s269 + $0x3f0] sm:$0xff] %v11933
        %12064 = vst [vmem:[%s269 + $0x3f8] sm:$0xff] %v11935
        %s12065 = sand.u32 %s152, 1
        %s12066 = sand.u32 %s152, 1
        %s12067 = smul.addr %s12066, 1024
        %s12068 = scalar_lea.vmem [#allocation3], %s12067
        // Predicated region
        $region41: #{joiner_forward.1} parent=35 // pred_check
          %p12069 = pneg %p162
        $region42: #{joiner_forward.1} parent=35 // pred_check_branch
          %12071 = sbr.rel (%p12069) target = $region44
        $region43: #{joiner_forward.1} parent=35 // pred_region
          %s12072 = smul.u32 64, %s21
          %s12073 = smul.u32 2, %s22
          %s12074 = smul.addr %s12072, 4
          %s12075 = sadd.s32 %s12073, %s12074
          %s12076 = smul.addr %s20, 512
          %s12077 = sadd.s32 %s12075, %s12076
          %s12078 = smul.addr %s12077, 8
          %s12079 = scalar_lea.vmem %s4, %s12078
          // Predicated region
          $region45: #{joiner_forward.1} parent=43 // pred_check
            _
          $region46: #{joiner_forward.1} parent=43 // pred_check_branch
            %12081 = sbr.rel (0) target = $region48
          $region47: #{joiner_forward.1} parent=43 // pred_region
            // Predicated region
            $region49: #{joiner_forward.1} parent=47 // pred_check
              _
            $region50: #{joiner_forward.1} parent=47 // pred_check_branch
              %12083 = sbr.rel (0) target = $region52
            $region51: #{joiner_forward.1} parent=47 // pred_region
              loop: start=0, step=1, limit=1
              $region53: #{joiner_forward.1} parent=51 // loop_pre_header
                _
              $region54: #{joiner_forward.1} parent=51 // loop_header
                %s12085 = sphi 0, %s12089
                %p12086 = scmp.ge.s32.totalorder %s12085, 1
                %s12090 = sphi %s12068, %s12068
                %s12091 = sphi %s12079, %s12079
              $region55: #{joiner_forward.1} parent=51 // loop_header_branch
                %12088 = sbr.rel (%p12086) target = $region59
              $region56: #{joiner_forward.1} parent=51 // loop_body
                %v12092 = vld [vmem:[%s12090] sm:$0xff]
                %12093 = vst [vmem:[%s12091] sm:$0xff] %v12092
                %v12094 = vld [vmem:[%s12090 + $0x8] sm:$0xff]
                %12095 = vst [vmem:[%s12091 + $0x8] sm:$0xff] %v12094
                %v12096 = vld [vmem:[%s12090 + $0x10] sm:$0xff]
                %12097 = vst [vmem:[%s12091 + $0x20] sm:$0xff] %v12096
                %v12098 = vld [vmem:[%s12090 + $0x18] sm:$0xff]
                %12099 = vst [vmem:[%s12091 + $0x28] sm:$0xff] %v12098
                %v12100 = vld [vmem:[%s12090 + $0x20] sm:$0xff]
                %12101 = vst [vmem:[%s12091 + $0x40] sm:$0xff] %v12100
                %v12102 = vld [vmem:[%s12090 + $0x28] sm:$0xff]
                %12103 = vst [vmem:[%s12091 + $0x48] sm:$0xff] %v12102
                %v12104 = vld [vmem:[%s12090 + $0x30] sm:$0xff]
                %12105 = vst [vmem:[%s12091 + $0x60] sm:$0xff] %v12104
                %v12106 = vld [vmem:[%s12090 + $0x38] sm:$0xff]
                %12107 = vst [vmem:[%s12091 + $0x68] sm:$0xff] %v12106
                %v12108 = vld [vmem:[%s12090 + $0x40] sm:$0xff]
                %12109 = vst [vmem:[%s12091 + $0x80] sm:$0xff] %v12108
                %v12110 = vld [vmem:[%s12090 + $0x48] sm:$0xff]
                %12111 = vst [vmem:[%s12091 + $0x88] sm:$0xff] %v12110
                %v12112 = vld [vmem:[%s12090 + $0x50] sm:$0xff]
                %12113 = vst [vmem:[%s12091 + $0xa0] sm:$0xff] %v12112
                %v12114 = vld [vmem:[%s12090 + $0x58] sm:$0xff]
                %12115 = vst [vmem:[%s12091 + $0xa8] sm:$0xff] %v12114
                %v12116 = vld [vmem:[%s12090 + $0x60] sm:$0xff]
                %12117 = vst [vmem:[%s12091 + $0xc0] sm:$0xff] %v12116
                %v12118 = vld [vmem:[%s12090 + $0x68] sm:$0xff]
                %12119 = vst [vmem:[%s12091 + $0xc8] sm:$0xff] %v12118
                %v12120 = vld [vmem:[%s12090 + $0x70] sm:$0xff]
                %12121 = vst [vmem:[%s12091 + $0xe0] sm:$0xff] %v12120
                %v12122 = vld [vmem:[%s12090 + $0x78] sm:$0xff]
                %12123 = vst [vmem:[%s12091 + $0xe8] sm:$0xff] %v12122
                %v12124 = vld [vmem:[%s12090 + $0x80] sm:$0xff]
                %12125 = vst [vmem:[%s12091 + $0x100] sm:$0xff] %v12124
                %v12126 = vld [vmem:[%s12090 + $0x88] sm:$0xff]
                %12127 = vst [vmem:[%s12091 + $0x108] sm:$0xff] %v12126
                %v12128 = vld [vmem:[%s12090 + $0x90] sm:$0xff]
                %12129 = vst [vmem:[%s12091 + $0x120] sm:$0xff] %v12128
                %v12130 = vld [vmem:[%s12090 + $0x98] sm:$0xff]
                %12131 = vst [vmem:[%s12091 + $0x128] sm:$0xff] %v12130
                %v12132 = vld [vmem:[%s12090 + $0xa0] sm:$0xff]
                %12133 = vst [vmem:[%s12091 + $0x140] sm:$0xff] %v12132
                %v12134 = vld [vmem:[%s12090 + $0xa8] sm:$0xff]
                %12135 = vst [vmem:[%s12091 + $0x148] sm:$0xff] %v12134
                %v12136 = vld [vmem:[%s12090 + $0xb0] sm:$0xff]
                %12137 = vst [vmem:[%s12091 + $0x160] sm:$0xff] %v12136
                %v12138 = vld [vmem:[%s12090 + $0xb8] sm:$0xff]
                %12139 = vst [vmem:[%s12091 + $0x168] sm:$0xff] %v12138
                %v12140 = vld [vmem:[%s12090 + $0xc0] sm:$0xff]
                %12141 = vst [vmem:[%s12091 + $0x180] sm:$0xff] %v12140
                %v12142 = vld [vmem:[%s12090 + $0xc8] sm:$0xff]
                %12143 = vst [vmem:[%s12091 + $0x188] sm:$0xff] %v12142
                %v12144 = vld [vmem:[%s12090 + $0xd0] sm:$0xff]
                %12145 = vst [vmem:[%s12091 + $0x1a0] sm:$0xff] %v12144
                %v12146 = vld [vmem:[%s12090 + $0xd8] sm:$0xff]
                %12147 = vst [vmem:[%s12091 + $0x1a8] sm:$0xff] %v12146
                %v12148 = vld [vmem:[%s12090 + $0xe0] sm:$0xff]
                %12149 = vst [vmem:[%s12091 + $0x1c0] sm:$0xff] %v12148
                %v12150 = vld [vmem:[%s12090 + $0xe8] sm:$0xff]
                %12151 = vst [vmem:[%s12091 + $0x1c8] sm:$0xff] %v12150
                %v12152 = vld [vmem:[%s12090 + $0xf0] sm:$0xff]
                %12153 = vst [vmem:[%s12091 + $0x1e0] sm:$0xff] %v12152
                %v12154 = vld [vmem:[%s12090 + $0xf8] sm:$0xff]
                %12155 = vst [vmem:[%s12091 + $0x1e8] sm:$0xff] %v12154
                %v12156 = vld [vmem:[%s12090 + $0x100] sm:$0xff]
                %12157 = vst [vmem:[%s12091 + $0x200] sm:$0xff] %v12156
                %v12158 = vld [vmem:[%s12090 + $0x108] sm:$0xff]
                %12159 = vst [vmem:[%s12091 + $0x208] sm:$0xff] %v12158
                %v12160 = vld [vmem:[%s12090 + $0x110] sm:$0xff]
                %12161 = vst [vmem:[%s12091 + $0x220] sm:$0xff] %v12160
                %v12162 = vld [vmem:[%s12090 + $0x118] sm:$0xff]
                %12163 = vst [vmem:[%s12091 + $0x228] sm:$0xff] %v12162
                %v12164 = vld [vmem:[%s12090 + $0x120] sm:$0xff]
                %12165 = vst [vmem:[%s12091 + $0x240] sm:$0xff] %v12164
                %v12166 = vld [vmem:[%s12090 + $0x128] sm:$0xff]
                %12167 = vst [vmem:[%s12091 + $0x248] sm:$0xff] %v12166
                %v12168 = vld [vmem:[%s12090 + $0x130] sm:$0xff]
                %12169 = vst [vmem:[%s12091 + $0x260] sm:$0xff] %v12168
                %v12170 = vld [vmem:[%s12090 + $0x138] sm:$0xff]
                %12171 = vst [vmem:[%s12091 + $0x268] sm:$0xff] %v12170
                %v12172 = vld [vmem:[%s12090 + $0x140] sm:$0xff]
                %12173 = vst [vmem:[%s12091 + $0x280] sm:$0xff] %v12172
                %v12174 = vld [vmem:[%s12090 + $0x148] sm:$0xff]
                %12175 = vst [vmem:[%s12091 + $0x288] sm:$0xff] %v12174
                %v12176 = vld [vmem:[%s12090 + $0x150] sm:$0xff]
                %12177 = vst [vmem:[%s12091 + $0x2a0] sm:$0xff] %v12176
                %v12178 = vld [vmem:[%s12090 + $0x158] sm:$0xff]
                %12179 = vst [vmem:[%s12091 + $0x2a8] sm:$0xff] %v12178
                %v12180 = vld [vmem:[%s12090 + $0x160] sm:$0xff]
                %12181 = vst [vmem:[%s12091 + $0x2c0] sm:$0xff] %v12180
                %v12182 = vld [vmem:[%s12090 + $0x168] sm:$0xff]
                %12183 = vst [vmem:[%s12091 + $0x2c8] sm:$0xff] %v12182
                %v12184 = vld [vmem:[%s12090 + $0x170] sm:$0xff]
                %12185 = vst [vmem:[%s12091 + $0x2e0] sm:$0xff] %v12184
                %v12186 = vld [vmem:[%s12090 + $0x178] sm:$0xff]
                %12187 = vst [vmem:[%s12091 + $0x2e8] sm:$0xff] %v12186
                %v12188 = vld [vmem:[%s12090 + $0x180] sm:$0xff]
                %12189 = vst [vmem:[%s12091 + $0x300] sm:$0xff] %v12188
                %v12190 = vld [vmem:[%s12090 + $0x188] sm:$0xff]
                %12191 = vst [vmem:[%s12091 + $0x308] sm:$0xff] %v12190
                %v12192 = vld [vmem:[%s12090 + $0x190] sm:$0xff]
                %12193 = vst [vmem:[%s12091 + $0x320] sm:$0xff] %v12192
                %v12194 = vld [vmem:[%s12090 + $0x198] sm:$0xff]
                %12195 = vst [vmem:[%s12091 + $0x328] sm:$0xff] %v12194
                %v12196 = vld [vmem:[%s12090 + $0x1a0] sm:$0xff]
                %12197 = vst [vmem:[%s12091 + $0x340] sm:$0xff] %v12196
                %v12198 = vld [vmem:[%s12090 + $0x1a8] sm:$0xff]
                %12199 = vst [vmem:[%s12091 + $0x348] sm:$0xff] %v12198
                %v12200 = vld [vmem:[%s12090 + $0x1b0] sm:$0xff]
                %12201 = vst [vmem:[%s12091 + $0x360] sm:$0xff] %v12200
                %v12202 = vld [vmem:[%s12090 + $0x1b8] sm:$0xff]
                %12203 = vst [vmem:[%s12091 + $0x368] sm:$0xff] %v12202
                %v12204 = vld [vmem:[%s12090 + $0x1c0] sm:$0xff]
                %12205 = vst [vmem:[%s12091 + $0x380] sm:$0xff] %v12204
                %v12206 = vld [vmem:[%s12090 + $0x1c8] sm:$0xff]
                %12207 = vst [vmem:[%s12091 + $0x388] sm:$0xff] %v12206
                %v12208 = vld [vmem:[%s12090 + $0x1d0] sm:$0xff]
                %12209 = vst [vmem:[%s12091 + $0x3a0] sm:$0xff] %v12208
                %v12210 = vld [vmem:[%s12090 + $0x1d8] sm:$0xff]
                %12211 = vst [vmem:[%s12091 + $0x3a8] sm:$0xff] %v12210
                %v12212 = vld [vmem:[%s12090 + $0x1e0] sm:$0xff]
                %12213 = vst [vmem:[%s12091 + $0x3c0] sm:$0xff] %v12212
                %v12214 = vld [vmem:[%s12090 + $0x1e8] sm:$0xff]
                %12215 = vst [vmem:[%s12091 + $0x3c8] sm:$0xff] %v12214
                %v12216 = vld [vmem:[%s12090 + $0x1f0] sm:$0xff]
                %12217 = vst [vmem:[%s12091 + $0x3e0] sm:$0xff] %v12216
                %v12218 = vld [vmem:[%s12090 + $0x1f8] sm:$0xff]
                %12219 = vst [vmem:[%s12091 + $0x3e8] sm:$0xff] %v12218
                %v12220 = vld [vmem:[%s12090 + $0x200] sm:$0xff]
                %12221 = vst [vmem:[%s12091 + $0x400] sm:$0xff] %v12220
                %v12222 = vld [vmem:[%s12090 + $0x208] sm:$0xff]
                %12223 = vst [vmem:[%s12091 + $0x408] sm:$0xff] %v12222
                %v12224 = vld [vmem:[%s12090 + $0x210] sm:$0xff]
                %12225 = vst [vmem:[%s12091 + $0x420] sm:$0xff] %v12224
                %v12226 = vld [vmem:[%s12090 + $0x218] sm:$0xff]
                %12227 = vst [vmem:[%s12091 + $0x428] sm:$0xff] %v12226
                %v12228 = vld [vmem:[%s12090 + $0x220] sm:$0xff]
                %12229 = vst [vmem:[%s12091 + $0x440] sm:$0xff] %v12228
                %v12230 = vld [vmem:[%s12090 + $0x228] sm:$0xff]
                %12231 = vst [vmem:[%s12091 + $0x448] sm:$0xff] %v12230
                %v12232 = vld [vmem:[%s12090 + $0x230] sm:$0xff]
                %12233 = vst [vmem:[%s12091 + $0x460] sm:$0xff] %v12232
                %v12234 = vld [vmem:[%s12090 + $0x238] sm:$0xff]
                %12235 = vst [vmem:[%s12091 + $0x468] sm:$0xff] %v12234
                %v12236 = vld [vmem:[%s12090 + $0x240] sm:$0xff]
                %12237 = vst [vmem:[%s12091 + $0x480] sm:$0xff] %v12236
                %v12238 = vld [vmem:[%s12090 + $0x248] sm:$0xff]
                %12239 = vst [vmem:[%s12091 + $0x488] sm:$0xff] %v12238
                %v12240 = vld [vmem:[%s12090 + $0x250] sm:$0xff]
                %12241 = vst [vmem:[%s12091 + $0x4a0] sm:$0xff] %v12240
                %v12242 = vld [vmem:[%s12090 + $0x258] sm:$0xff]
                %12243 = vst [vmem:[%s12091 + $0x4a8] sm:$0xff] %v12242
                %v12244 = vld [vmem:[%s12090 + $0x260] sm:$0xff]
                %12245 = vst [vmem:[%s12091 + $0x4c0] sm:$0xff] %v12244
                %v12246 = vld [vmem:[%s12090 + $0x268] sm:$0xff]
                %12247 = vst [vmem:[%s12091 + $0x4c8] sm:$0xff] %v12246
                %v12248 = vld [vmem:[%s12090 + $0x270] sm:$0xff]
                %12249 = vst [vmem:[%s12091 + $0x4e0] sm:$0xff] %v12248
                %v12250 = vld [vmem:[%s12090 + $0x278] sm:$0xff]
                %12251 = vst [vmem:[%s12091 + $0x4e8] sm:$0xff] %v12250
                %v12252 = vld [vmem:[%s12090 + $0x280] sm:$0xff]
                %12253 = vst [vmem:[%s12091 + $0x500] sm:$0xff] %v12252
                %v12254 = vld [vmem:[%s12090 + $0x288] sm:$0xff]
                %12255 = vst [vmem:[%s12091 + $0x508] sm:$0xff] %v12254
                %v12256 = vld [vmem:[%s12090 + $0x290] sm:$0xff]
                %12257 = vst [vmem:[%s12091 + $0x520] sm:$0xff] %v12256
                %v12258 = vld [vmem:[%s12090 + $0x298] sm:$0xff]
                %12259 = vst [vmem:[%s12091 + $0x528] sm:$0xff] %v12258
                %v12260 = vld [vmem:[%s12090 + $0x2a0] sm:$0xff]
                %12261 = vst [vmem:[%s12091 + $0x540] sm:$0xff] %v12260
                %v12262 = vld [vmem:[%s12090 + $0x2a8] sm:$0xff]
                %12263 = vst [vmem:[%s12091 + $0x548] sm:$0xff] %v12262
                %v12264 = vld [vmem:[%s12090 + $0x2b0] sm:$0xff]
                %12265 = vst [vmem:[%s12091 + $0x560] sm:$0xff] %v12264
                %v12266 = vld [vmem:[%s12090 + $0x2b8] sm:$0xff]
                %12267 = vst [vmem:[%s12091 + $0x568] sm:$0xff] %v12266
                %v12268 = vld [vmem:[%s12090 + $0x2c0] sm:$0xff]
                %12269 = vst [vmem:[%s12091 + $0x580] sm:$0xff] %v12268
                %v12270 = vld [vmem:[%s12090 + $0x2c8] sm:$0xff]
                %12271 = vst [vmem:[%s12091 + $0x588] sm:$0xff] %v12270
                %v12272 = vld [vmem:[%s12090 + $0x2d0] sm:$0xff]
                %12273 = vst [vmem:[%s12091 + $0x5a0] sm:$0xff] %v12272
                %v12274 = vld [vmem:[%s12090 + $0x2d8] sm:$0xff]
                %12275 = vst [vmem:[%s12091 + $0x5a8] sm:$0xff] %v12274
                %v12276 = vld [vmem:[%s12090 + $0x2e0] sm:$0xff]
                %12277 = vst [vmem:[%s12091 + $0x5c0] sm:$0xff] %v12276
                %v12278 = vld [vmem:[%s12090 + $0x2e8] sm:$0xff]
                %12279 = vst [vmem:[%s12091 + $0x5c8] sm:$0xff] %v12278
                %v12280 = vld [vmem:[%s12090 + $0x2f0] sm:$0xff]
                %12281 = vst [vmem:[%s12091 + $0x5e0] sm:$0xff] %v12280
                %v12282 = vld [vmem:[%s12090 + $0x2f8] sm:$0xff]
                %12283 = vst [vmem:[%s12091 + $0x5e8] sm:$0xff] %v12282
                %v12284 = vld [vmem:[%s12090 + $0x300] sm:$0xff]
                %12285 = vst [vmem:[%s12091 + $0x600] sm:$0xff] %v12284
                %v12286 = vld [vmem:[%s12090 + $0x308] sm:$0xff]
                %12287 = vst [vmem:[%s12091 + $0x608] sm:$0xff] %v12286
                %v12288 = vld [vmem:[%s12090 + $0x310] sm:$0xff]
                %12289 = vst [vmem:[%s12091 + $0x620] sm:$0xff] %v12288
                %v12290 = vld [vmem:[%s12090 + $0x318] sm:$0xff]
                %12291 = vst [vmem:[%s12091 + $0x628] sm:$0xff] %v12290
                %v12292 = vld [vmem:[%s12090 + $0x320] sm:$0xff]
                %12293 = vst [vmem:[%s12091 + $0x640] sm:$0xff] %v12292
                %v12294 = vld [vmem:[%s12090 + $0x328] sm:$0xff]
                %12295 = vst [vmem:[%s12091 + $0x648] sm:$0xff] %v12294
                %v12296 = vld [vmem:[%s12090 + $0x330] sm:$0xff]
                %12297 = vst [vmem:[%s12091 + $0x660] sm:$0xff] %v12296
                %v12298 = vld [vmem:[%s12090 + $0x338] sm:$0xff]
                %12299 = vst [vmem:[%s12091 + $0x668] sm:$0xff] %v12298
                %v12300 = vld [vmem:[%s12090 + $0x340] sm:$0xff]
                %12301 = vst [vmem:[%s12091 + $0x680] sm:$0xff] %v12300
                %v12302 = vld [vmem:[%s12090 + $0x348] sm:$0xff]
                %12303 = vst [vmem:[%s12091 + $0x688] sm:$0xff] %v12302
                %v12304 = vld [vmem:[%s12090 + $0x350] sm:$0xff]
                %12305 = vst [vmem:[%s12091 + $0x6a0] sm:$0xff] %v12304
                %v12306 = vld [vmem:[%s12090 + $0x358] sm:$0xff]
                %12307 = vst [vmem:[%s12091 + $0x6a8] sm:$0xff] %v12306
                %v12308 = vld [vmem:[%s12090 + $0x360] sm:$0xff]
                %12309 = vst [vmem:[%s12091 + $0x6c0] sm:$0xff] %v12308
                %v12310 = vld [vmem:[%s12090 + $0x368] sm:$0xff]
                %12311 = vst [vmem:[%s12091 + $0x6c8] sm:$0xff] %v12310
                %v12312 = vld [vmem:[%s12090 + $0x370] sm:$0xff]
                %12313 = vst [vmem:[%s12091 + $0x6e0] sm:$0xff] %v12312
                %v12314 = vld [vmem:[%s12090 + $0x378] sm:$0xff]
                %12315 = vst [vmem:[%s12091 + $0x6e8] sm:$0xff] %v12314
                %v12316 = vld [vmem:[%s12090 + $0x380] sm:$0xff]
                %12317 = vst [vmem:[%s12091 + $0x700] sm:$0xff] %v12316
                %v12318 = vld [vmem:[%s12090 + $0x388] sm:$0xff]
                %12319 = vst [vmem:[%s12091 + $0x708] sm:$0xff] %v12318
                %v12320 = vld [vmem:[%s12090 + $0x390] sm:$0xff]
                %12321 = vst [vmem:[%s12091 + $0x720] sm:$0xff] %v12320
                %v12322 = vld [vmem:[%s12090 + $0x398] sm:$0xff]
                %12323 = vst [vmem:[%s12091 + $0x728] sm:$0xff] %v12322
                %v12324 = vld [vmem:[%s12090 + $0x3a0] sm:$0xff]
                %12325 = vst [vmem:[%s12091 + $0x740] sm:$0xff] %v12324
                %v12326 = vld [vmem:[%s12090 + $0x3a8] sm:$0xff]
                %12327 = vst [vmem:[%s12091 + $0x748] sm:$0xff] %v12326
                %v12328 = vld [vmem:[%s12090 + $0x3b0] sm:$0xff]
                %12329 = vst [vmem:[%s12091 + $0x760] sm:$0xff] %v12328
                %v12330 = vld [vmem:[%s12090 + $0x3b8] sm:$0xff]
                %12331 = vst [vmem:[%s12091 + $0x768] sm:$0xff] %v12330
                %v12332 = vld [vmem:[%s12090 + $0x3c0] sm:$0xff]
                %12333 = vst [vmem:[%s12091 + $0x780] sm:$0xff] %v12332
                %v12334 = vld [vmem:[%s12090 + $0x3c8] sm:$0xff]
                %12335 = vst [vmem:[%s12091 + $0x788] sm:$0xff] %v12334
                %v12336 = vld [vmem:[%s12090 + $0x3d0] sm:$0xff]
                %12337 = vst [vmem:[%s12091 + $0x7a0] sm:$0xff] %v12336
                %v12338 = vld [vmem:[%s12090 + $0x3d8] sm:$0xff]
                %12339 = vst [vmem:[%s12091 + $0x7a8] sm:$0xff] %v12338
                %v12340 = vld [vmem:[%s12090 + $0x3e0] sm:$0xff]
                %12341 = vst [vmem:[%s12091 + $0x7c0] sm:$0xff] %v12340
                %v12342 = vld [vmem:[%s12090 + $0x3e8] sm:$0xff]
                %12343 = vst [vmem:[%s12091 + $0x7c8] sm:$0xff] %v12342
                %v12344 = vld [vmem:[%s12090 + $0x3f0] sm:$0xff]
                %12345 = vst [vmem:[%s12091 + $0x7e0] sm:$0xff] %v12344
                %v12346 = vld [vmem:[%s12090 + $0x3f8] sm:$0xff]
                %12347 = vst [vmem:[%s12091 + $0x7e8] sm:$0xff] %v12346
              $region57: #{joiner_forward.1} parent=51 // loop_footer
                %s12089 = sadd.s32 1, %s12085
              $region58: #{joiner_forward.1} parent=51 // loop_footer_branch
                %12084 = sbr.rel target = $region54
              $region59: #{joiner_forward.1} parent=51 // loop_exit
                _
            $region52: #{joiner_forward.1} parent=47 // pred_fallthru
              _
            // Predicated region
            $region60: #{joiner_forward.1} parent=47 // pred_check
              _
            $region61: #{joiner_forward.1} parent=47 // pred_check_branch
              %12349 = sbr.rel target = $region63
            $region62: #{joiner_forward.1} parent=47 // pred_region
              _
            $region63: #{joiner_forward.1} parent=47 // pred_fallthru
              _
          $region48: #{joiner_forward.1} parent=43 // pred_fallthru
            _
          %12350 = vnop
        $region44: #{joiner_forward.1} parent=35 // pred_fallthru
          _
      $region36: #{joiner_forward.1} parent=5 // pred_fallthru
        _
      %p12351 = scmp.le.s32.totalorder 2, %s10
      // Predicated region
      $region64: #{joiner_forward.1} parent=5 // pred_check
        %p12352 = pneg %p12351
      $region65: #{joiner_forward.1} parent=5 // pred_check_branch
        %12354 = sbr.rel (%p12352) target = $region67
      $region66: #{joiner_forward.1} parent=5 // pred_region
        %s12355 = ssub.s32 %s10, 2
        // Predicated region
        $region68: #{joiner_forward.1} parent=66 // pred_check
          %p12356 = pneg %p168
        $region69: #{joiner_forward.1} parent=66 // pred_check_branch
          %12358 = sbr.rel (%p12356) target = $region71
        $region70: #{joiner_forward.1} parent=66 // pred_region
          %s12359 = sand.u32 %s153, 1
          %s12360 = sand.u32 %s153, 1
          %s12361 = smul.addr %s12360, 1024
          %s12362 = scalar_lea.vmem [#allocation3], %s12361
        $region71: #{joiner_forward.1} parent=66 // pred_fallthru
          _
      $region67: #{joiner_forward.1} parent=5 // pred_fallthru
        _
    $region6: #{joiner_forward.1} parent=1 // loop_footer
      %s14 = sadd.s32 1, %s10
    $region7: #{joiner_forward.1} parent=1 // loop_footer_branch
      %9 = sbr.rel target = $region3
    $region8: #{joiner_forward.1} parent=1 // loop_exit
      _

</llo_original>
